<compile_context>
chip_gen: v7x
topology: tpu7x:2x2x1
jax: 0.10.0
libtpu: 0.0.40
codegen_flags: <defaults>
</compile_context>

<pallas_src>
import functools

import jax
import jax.numpy as jnp
from jax import lax
from jax.experimental import pallas as pl
from jax.experimental.pallas import tpu as pltpu


# Per-block strides of the Encoder's 6 MultiResolutionBlocks (static architecture).
_STRIDES = (4, 4, 4, 4, 4, 2)
_LEAKY_SLOPE = 0.2


# ------------------------------ Pallas kernel ------------------------------ #

def _encoder_kernel(*refs, cfg, K, P, slope):
    """Whole-encoder forward for ONE batch element (grid axis = batch).

    refs = (x_ref,                                   # (window+2P, 1) zero-padded input
            w_0, b_0, ..., w_{nb-1}, b_{nb-1},       # fused per-block conv weights
            wf, bf,                                  # final linear
            out_ref,                                 # (1, latent_dim)
            buf0, buf1)                              # ping-pong VMEM scratch

    cfg[i] = (c_in, n_out, stride, l_in, l_out), all static Python ints.
    Each block computes  y[l, :] = sum_t x_pad[stride*l + t, :] @ W[t*c_in:(t+1)*c_in, :]
    + bias, then leaky_relu(slope) — exactly Conv1d(k, stride, padding=k//2) for both
    branches (smaller kernels carry zero taps), channels concatenated branch-major.
    """
    nb = len(cfg)
    x_ref = refs[0]
    w_refs = [refs[1 + 2 * i] for i in range(nb)]
    b_refs = [refs[2 + 2 * i] for i in range(nb)]
    wf_ref = refs[1 + 2 * nb]
    bf_ref = refs[2 + 2 * nb]
    out_ref = refs[3 + 2 * nb]
    bufs = (refs[4 + 2 * nb], refs[5 + 2 * nb])

    y = None
    for i, (c_in, n_out, stride, _l_in, l_out) in enumerate(cfg):
        # Source holds this block's zero-padded input in rows [0, l_in + 2P).
        src = x_ref if i == 0 else bufs[(i - 1) % 2]
        w_ref, b_ref = w_refs[i], b_refs[i]
        acc = None
        for t in range(K):                                        # static unroll, K = 5
            # Strided in-VMEM im2col read: rows stride*l + t, all c_in lanes.
            xt = src[pl.ds(t, l_out, stride=stride), :]           # (l_out, c_in)
            if c_in == 1:
                part = xt * w_ref[t:t + 1, :]                     # VPU outer product
            else:
                part = jnp.dot(xt, w_ref[t * c_in:(t + 1) * c_in, :],
                               preferred_element_type=jnp.float32)  # MXU
            acc = part if acc is None else acc + part
        y = acc + b_ref[...]                                      # (l_out, n_out)
        y = jnp.where(y > 0, y, slope * y)                        # leaky_relu(0.2)
        if i + 1 < nb:
            # Stage (zero-padded) for the next block's strided tap reads.
            dst = bufs[i % 2]
            zpad = jnp.zeros((P, n_out), jnp.float32)
            dst[0:P, :] = zpad
            dst[P:P + l_out, :] = y
            dst[P + l_out:P + l_out + P, :] = zpad

    # Final nn.Linear on the (1, n_filters) feature vector of this sample.
    z = jnp.dot(y, wf_ref[...], preferred_element_type=jnp.float32) + bf_ref[...]
    out_ref[...] = z.astype(out_ref.dtype)


# ----------------------------- weight packing ------------------------------ #

def _pack_block(branches, kernel_sizes, K):
    """Fuse all kernel-size branches of one MultiResolutionBlock into a single
    (K*C_in, sum C_out) weight (rows tap-major: row = t*C_in + c) + (1, sum C_out)
    bias. Smaller kernels are centred on the K-tap grid with zero taps, which is
    exactly equivalent to their smaller PyTorch padding (k//2)."""
    ws, bs = [], []
    for (w, b), k in zip(branches, kernel_sizes):
        c_out, c_in, kk = w.shape
        assert kk == k and (K - k) % 2 == 0, "kernel sizes must share parity"
        lo = (K - k) // 2
        wp = jnp.pad(w, ((0, 0), (0, 0), (lo, K - k - lo)))         # (c_out, c_in, K)
        wp = jnp.transpose(wp, (2, 1, 0)).reshape(K * c_in, c_out)   # row = t*c_in + c
        ws.append(wp)
        bs.append(b)
    return (jnp.concatenate(ws, axis=1).astype(jnp.float32),
            jnp.concatenate(bs).reshape(1, -1).astype(jnp.float32))


def pack_params(params, kernel_sizes):
    """Raw (PyTorch-layout) params -> fused kernel operands. Run once at setup."""
    conv_blocks, (wf, bf) = params
    K = max(kernel_sizes)
    fused = [_pack_block(branches, kernel_sizes, K) for branches in conv_blocks]
    wf_m = jnp.asarray(wf, jnp.float32).T                 # (n_filters, latent_dim)
    bf_m = jnp.asarray(bf, jnp.float32).reshape(1, -1)    # (1, latent_dim)
    return fused, wf_m, bf_m


# ------------------------------ forward pass ------------------------------- #

def encoder_forward(x, packed, *, window_size, kernel_sizes, n_filters, latent_dim,
                    return_features=False):
    if return_features:
        # TODO(synk): return_features path (per-block feature concat) not implemented
        # in the fused kernel; default (latent) path fully covered.
        raise NotImplementedError("return_features=True is not supported")

    fused, wf_m, bf_m = packed
    K = max(kernel_sizes)
    P = K // 2

    x = jnp.asarray(x, jnp.float32).reshape(-1, window_size)   # == torch .view(-1,1,W)
    B = x.shape[0]

    # ---- static per-block config (shapes & strides are Python ints) ----
    cfg = []
    L = window_size
    for (Wb, _bb), stride in zip(fused, _STRIDES):
        c_in = Wb.shape[0] // K
        n_out = Wb.shape[1]
        l_out = (L + 2 * P - K) // stride + 1
        cfg.append((c_in, n_out, stride, L, l_out))
        L = l_out
    assert L == 1, "product of block strides must equal window_size"
    assert cfg[-1][1] == n_filters
    # All inter-block activations share one channel width -> full-width scratch I/O.
    buf_cols = cfg[1][0]
    assert all(c[0] == buf_cols for c in cfg[1:])
    assert all(c[1] == buf_cols for c in cfg[:-1])
    buf_rows = max(c[3] for c in cfg[1:]) + 2 * P
    buf_rows = (buf_rows + 7) // 8 * 8

    # Zero-pad the raw input once (P samples per side) so block 1 reads its taps the
    # same way as every other block (from a pre-padded buffer).
    xp = jnp.pad(x.reshape(B, window_size, 1), ((0, 0), (P, P), (0, 0)))

    inputs = [xp]
    in_specs = [pl.BlockSpec((None, window_size + 2 * P, 1), lambda b: (b, 0, 0))]
    for Wb, bb in fused:
        inputs += [Wb, bb]
        in_specs += [pl.BlockSpec(Wb.shape, lambda b: (0, 0)),
                     pl.BlockSpec(bb.shape, lambda b: (0, 0))]
    inputs += [wf_m, bf_m]
    in_specs += [pl.BlockSpec(wf_m.shape, lambda b: (0, 0)),
                 pl.BlockSpec(bf_m.shape, lambda b: (0, 0))]

    kernel = functools.partial(_encoder_kernel, cfg=tuple(cfg), K=K, P=P,
                               slope=_LEAKY_SLOPE)
    out = pl.pallas_call(
        kernel,
        out_shape=jax.ShapeDtypeStruct((B, 1, latent_dim), jnp.float32),
        grid=(B,),
        in_specs=in_specs,
        out_specs=pl.BlockSpec((None, 1, latent_dim), lambda b: (b, 0, 0)),
        scratch_shapes=[pltpu.VMEM((buf_rows, buf_cols), jnp.float32),
                        pltpu.VMEM((buf_rows, buf_cols), jnp.float32)],
        compiler_params=pltpu.CompilerParams(dimension_semantics=("parallel",)),
    )(*inputs)
    return out.reshape(B, latent_dim)


# ---------------------------- parameter init ------------------------------- #

def init_params(key, latent_dim, window_size, kernel_sizes, n_filters):
    nk = len(kernel_sizes)
    specs = ([(1, n_filters)]
             + [(n_filters * nk, n_filters)] * 4
             + [(n_filters * nk, n_filters // nk)])
    conv_blocks = []
    for (cin, cout) in specs:
        branches = []
        for k in kernel_sizes:
            key, k1, k2 = jax.random.split(key, 3)
            bound = 1.0 / (cin * k) ** 0.5            # PyTorch Conv1d default init scale
            w = jax.random.uniform(k1, (cout, cin, k), jnp.float32, -bound, bound)
            b = jax.random.uniform(k2, (cout,), jnp.float32, -bound, bound)
            branches.append((w, b))
        conv_blocks.append(branches)
    key, k1, k2 = jax.random.split(key, 3)
    bound = 1.0 / n_filters ** 0.5
    wf = jax.random.uniform(k1, (latent_dim, n_filters), jnp.float32, -bound, bound)
    bf = jax.random.uniform(k2, (latent_dim,), jnp.float32, -bound, bound)
    return conv_blocks, (wf, bf)


# ---------------------- pure-JAX reference (verification) ------------------ #

def _reference_forward(x, params, *, window_size, kernel_sizes, n_filters):
    """Plain-XLA mirror of the PyTorch Encoder.forward."""
    conv_blocks, (wf, bf) = params
    h = jnp.asarray(x, jnp.float32).reshape(-1, 1, window_size)
    for branches, stride in zip(conv_blocks, _STRIDES):
        outs = []
        for (w, b), k in zip(branches, kernel_sizes):
            y = lax.conv_general_dilated(
                h, w, window_strides=(stride,), padding=[(k // 2, k // 2)],
                dimension_numbers=("NCH", "OIH", "NCH"),
                precision=lax.Precision.HIGHEST)
            outs.append(y + b[None, :, None])
        h = jnp.concatenate(outs, axis=1)
        h = jnp.where(h > 0, h, _LEAKY_SLOPE * h)
    h = h.reshape(-1, n_filters)
    return jnp.dot(h, wf.T, precision=lax.Precision.HIGHEST) + bf


# ---------------------------------- main ----------------------------------- #

if __name__ == "__main__":
    latent_dim = 8
    window_size = 2048          # == product of block strides (4*4*4*4*4*2)
    kernel_sizes = (3, 5)       # nk = 2
    n_filters = 8

    key = jax.random.PRNGKey(0)
    kparams, kx = jax.random.split(key)
    params = init_params(kparams, latent_dim, window_size, kernel_sizes, n_filters)
    packed = pack_params(params, kernel_sizes)

    x = jax.random.normal(kx, (2, window_size), jnp.float32)   # batch=2 raw windows

    fwd = jax.jit(functools.partial(
        encoder_forward, window_size=window_size, kernel_sizes=kernel_sizes,
        n_filters=n_filters, latent_dim=latent_dim))
    out = fwd(x, packed)
    jax.block_until_ready(out)
    assert out.shape == (2, latent_dim), out.shape

    ref = _reference_forward(x, params, window_size=window_size,
                             kernel_sizes=kernel_sizes, n_filters=n_filters)
    assert jnp.allclose(out, ref, rtol=2e-2, atol=2e-3), \
        float(jnp.max(jnp.abs(out - ref)))

    print("KERNEL_OK")
</pallas_src>

<mosaic_0001>
module attributes {stable_mosaic.version = 11 : i64} {
  func.func @_encoder_kernel(%arg0: i32, %arg1: memref<1x2052x1xf32, #tpu.memory_space<vmem>>, %arg2: memref<5x16xf32, #tpu.memory_space<vmem>>, %arg3: memref<1x16xf32, #tpu.memory_space<vmem>>, %arg4: memref<80x16xf32, #tpu.memory_space<vmem>>, %arg5: memref<1x16xf32, #tpu.memory_space<vmem>>, %arg6: memref<80x16xf32, #tpu.memory_space<vmem>>, %arg7: memref<1x16xf32, #tpu.memory_space<vmem>>, %arg8: memref<80x16xf32, #tpu.memory_space<vmem>>, %arg9: memref<1x16xf32, #tpu.memory_space<vmem>>, %arg10: memref<80x16xf32, #tpu.memory_space<vmem>>, %arg11: memref<1x16xf32, #tpu.memory_space<vmem>>, %arg12: memref<80x8xf32, #tpu.memory_space<vmem>>, %arg13: memref<1x8xf32, #tpu.memory_space<vmem>>, %arg14: memref<8x8xf32, #tpu.memory_space<vmem>>, %arg15: memref<1x8xf32, #tpu.memory_space<vmem>>, %arg16: memref<1x1x8xf32, #tpu.memory_space<vmem>>, %arg17: memref<520x16xf32, #tpu.memory_space<vmem>>, %arg18: memref<520x16xf32, #tpu.memory_space<vmem>>) attributes {dimension_semantics = [#tpu.dimension_semantics<parallel>], iteration_bounds = array<i64: 2>, scalar_prefetch = 0 : i64, scratch_operands = 2 : i64, tpu.core_type = #tpu.core_type<tc>, window_params = [{transform_indices = @transform_0, window_bounds = array<i64: 1, 2052, 1>}, {pipeline_mode = #tpu.pipeline_mode<synchronous>, transform_indices = @transform_1, window_bounds = array<i64: 5, 16>}, {pipeline_mode = #tpu.pipeline_mode<synchronous>, transform_indices = @transform_2, window_bounds = array<i64: 1, 16>}, {pipeline_mode = #tpu.pipeline_mode<synchronous>, transform_indices = @transform_3, window_bounds = array<i64: 80, 16>}, {pipeline_mode = #tpu.pipeline_mode<synchronous>, transform_indices = @transform_4, window_bounds = array<i64: 1, 16>}, {pipeline_mode = #tpu.pipeline_mode<synchronous>, transform_indices = @transform_5, window_bounds = array<i64: 80, 16>}, {pipeline_mode = #tpu.pipeline_mode<synchronous>, transform_indices = @transform_6, window_bounds = array<i64: 1, 16>}, {pipeline_mode = #tpu.pipeline_mode<synchronous>, transform_indices = @transform_7, window_bounds = array<i64: 80, 16>}, {pipeline_mode = #tpu.pipeline_mode<synchronous>, transform_indices = @transform_8, window_bounds = array<i64: 1, 16>}, {pipeline_mode = #tpu.pipeline_mode<synchronous>, transform_indices = @transform_9, window_bounds = array<i64: 80, 16>}, {pipeline_mode = #tpu.pipeline_mode<synchronous>, transform_indices = @transform_10, window_bounds = array<i64: 1, 16>}, {pipeline_mode = #tpu.pipeline_mode<synchronous>, transform_indices = @transform_11, window_bounds = array<i64: 80, 8>}, {pipeline_mode = #tpu.pipeline_mode<synchronous>, transform_indices = @transform_12, window_bounds = array<i64: 1, 8>}, {pipeline_mode = #tpu.pipeline_mode<synchronous>, transform_indices = @transform_13, window_bounds = array<i64: 8, 8>}, {pipeline_mode = #tpu.pipeline_mode<synchronous>, transform_indices = @transform_14, window_bounds = array<i64: 1, 8>}, {transform_indices = @transform_15, window_bounds = array<i64: 1, 1, 8>}]} {
    %c0 = arith.constant 0 : index
    %c0_0 = arith.constant 0 : index
    %c0_1 = arith.constant 0 : index
    %0 = tpu.strided_load %arg1[%c0, %c0_0, %c0_1] {strides = array<i32: 1, 4, 1>} : memref<1x2052x1xf32, #tpu.memory_space<vmem>>, vector<1x512x1xf32>
    %1 = vector.shape_cast %0 : vector<1x512x1xf32> to vector<512x1xf32>
    %c0_2 = arith.constant 0 : index
    %c0_3 = arith.constant 0 : index
    %2 = vector.load %arg2[%c0_2, %c0_3] : memref<5x16xf32, #tpu.memory_space<vmem>>, vector<1x16xf32>
    %3 = vector.broadcast %1 : vector<512x1xf32> to vector<512x16xf32>
    %4 = vector.broadcast %2 : vector<1x16xf32> to vector<512x16xf32>
    %5 = arith.mulf %3, %4 : vector<512x16xf32>
    %c0_4 = arith.constant 0 : index
    %c1 = arith.constant 1 : index
    %c0_5 = arith.constant 0 : index
    %6 = tpu.strided_load %arg1[%c0_4, %c1, %c0_5] {strides = array<i32: 1, 4, 1>} : memref<1x2052x1xf32, #tpu.memory_space<vmem>>, vector<1x512x1xf32>
    %7 = vector.shape_cast %6 : vector<1x512x1xf32> to vector<512x1xf32>
    %c1_6 = arith.constant 1 : index
    %c0_7 = arith.constant 0 : index
    %8 = vector.load %arg2[%c1_6, %c0_7] : memref<5x16xf32, #tpu.memory_space<vmem>>, vector<1x16xf32>
    %9 = vector.broadcast %7 : vector<512x1xf32> to vector<512x16xf32>
    %10 = vector.broadcast %8 : vector<1x16xf32> to vector<512x16xf32>
    %11 = arith.mulf %9, %10 : vector<512x16xf32>
    %12 = arith.addf %5, %11 : vector<512x16xf32>
    %c0_8 = arith.constant 0 : index
    %c2 = arith.constant 2 : index
    %c0_9 = arith.constant 0 : index
    %13 = tpu.strided_load %arg1[%c0_8, %c2, %c0_9] {strides = array<i32: 1, 4, 1>} : memref<1x2052x1xf32, #tpu.memory_space<vmem>>, vector<1x512x1xf32>
    %14 = vector.shape_cast %13 : vector<1x512x1xf32> to vector<512x1xf32>
    %c2_10 = arith.constant 2 : index
    %c0_11 = arith.constant 0 : index
    %15 = vector.load %arg2[%c2_10, %c0_11] : memref<5x16xf32, #tpu.memory_space<vmem>>, vector<1x16xf32>
    %16 = vector.broadcast %14 : vector<512x1xf32> to vector<512x16xf32>
    %17 = vector.broadcast %15 : vector<1x16xf32> to vector<512x16xf32>
    %18 = arith.mulf %16, %17 : vector<512x16xf32>
    %19 = arith.addf %12, %18 : vector<512x16xf32>
    %c0_12 = arith.constant 0 : index
    %c3 = arith.constant 3 : index
    %c0_13 = arith.constant 0 : index
    %20 = tpu.strided_load %arg1[%c0_12, %c3, %c0_13] {strides = array<i32: 1, 4, 1>} : memref<1x2052x1xf32, #tpu.memory_space<vmem>>, vector<1x512x1xf32>
    %21 = vector.shape_cast %20 : vector<1x512x1xf32> to vector<512x1xf32>
    %c3_14 = arith.constant 3 : index
    %c0_15 = arith.constant 0 : index
    %22 = vector.load %arg2[%c3_14, %c0_15] : memref<5x16xf32, #tpu.memory_space<vmem>>, vector<1x16xf32>
    %23 = vector.broadcast %21 : vector<512x1xf32> to vector<512x16xf32>
    %24 = vector.broadcast %22 : vector<1x16xf32> to vector<512x16xf32>
    %25 = arith.mulf %23, %24 : vector<512x16xf32>
    %26 = arith.addf %19, %25 : vector<512x16xf32>
    %c0_16 = arith.constant 0 : index
    %c4 = arith.constant 4 : index
    %c0_17 = arith.constant 0 : index
    %27 = tpu.strided_load %arg1[%c0_16, %c4, %c0_17] {strides = array<i32: 1, 4, 1>} : memref<1x2052x1xf32, #tpu.memory_space<vmem>>, vector<1x512x1xf32>
    %28 = vector.shape_cast %27 : vector<1x512x1xf32> to vector<512x1xf32>
    %c4_18 = arith.constant 4 : index
    %c0_19 = arith.constant 0 : index
    %29 = vector.load %arg2[%c4_18, %c0_19] : memref<5x16xf32, #tpu.memory_space<vmem>>, vector<1x16xf32>
    %30 = vector.broadcast %28 : vector<512x1xf32> to vector<512x16xf32>
    %31 = vector.broadcast %29 : vector<1x16xf32> to vector<512x16xf32>
    %32 = arith.mulf %30, %31 : vector<512x16xf32>
    %33 = arith.addf %26, %32 : vector<512x16xf32>
    %c0_20 = arith.constant 0 : index
    %c0_21 = arith.constant 0 : index
    %34 = vector.load %arg3[%c0_20, %c0_21] : memref<1x16xf32, #tpu.memory_space<vmem>>, vector<1x16xf32>
    %35 = vector.broadcast %34 : vector<1x16xf32> to vector<512x16xf32>
    %36 = arith.addf %33, %35 : vector<512x16xf32>
    %cst = arith.constant 0.000000e+00 : f32
    %37 = vector.broadcast %cst : f32 to vector<512x16xf32>
    %38 = arith.cmpf ogt, %36, %37 : vector<512x16xf32>
    %cst_22 = arith.constant 2.000000e-01 : f32
    %39 = vector.broadcast %cst_22 : f32 to vector<512x16xf32>
    %40 = arith.mulf %39, %36 : vector<512x16xf32>
    %41 = arith.select %38, %36, %40 : vector<512x16xi1>, vector<512x16xf32>
    %cst_23 = arith.constant 0.000000e+00 : f32
    %42 = vector.broadcast %cst_23 : f32 to vector<2x16xf32>
    %c0_24 = arith.constant 0 : index
    %c0_25 = arith.constant 0 : index
    %43 = vector.load %arg17[%c0_24, %c0_25] : memref<520x16xf32, #tpu.memory_space<vmem>>, vector<2x16xf32>
    tpu.vector_store %arg17[%c0_24, %c0_25], %42 {strides = array<i32>} : memref<520x16xf32, #tpu.memory_space<vmem>>, vector<2x16xf32>,
    %c2_26 = arith.constant 2 : index
    %c0_27 = arith.constant 0 : index
    %44 = vector.load %arg17[%c2_26, %c0_27] : memref<520x16xf32, #tpu.memory_space<vmem>>, vector<512x16xf32>
    tpu.vector_store %arg17[%c2_26, %c0_27], %41 {strides = array<i32>} : memref<520x16xf32, #tpu.memory_space<vmem>>, vector<512x16xf32>,
    %c514 = arith.constant 514 : index
    %c0_28 = arith.constant 0 : index
    %45 = vector.load %arg17[%c514, %c0_28] : memref<520x16xf32, #tpu.memory_space<vmem>>, vector<2x16xf32>
    tpu.vector_store %arg17[%c514, %c0_28], %42 {strides = array<i32>} : memref<520x16xf32, #tpu.memory_space<vmem>>, vector<2x16xf32>,
    %c0_29 = arith.constant 0 : index
    %c0_30 = arith.constant 0 : index
    %46 = tpu.strided_load %arg17[%c0_29, %c0_30] {strides = array<i32: 4, 1>} : memref<520x16xf32, #tpu.memory_space<vmem>>, vector<128x16xf32>
    %c0_31 = arith.constant 0 : index
    %c0_32 = arith.constant 0 : index
    %47 = vector.load %arg4[%c0_31, %c0_32] : memref<80x16xf32, #tpu.memory_space<vmem>>, vector<16x16xf32>
    %cst_33 = arith.constant dense<0.000000e+00> : vector<128x16xf32>
    %48 = tpu.matmul %46, %47, %cst_33 {dimension_numbers = #tpu.dot_dimension_numbers<[1], [0], [0], [1], [0, 0, 1, 1], [], []>} : vector<128x16xf32>, vector<16x16xf32>, vector<128x16xf32> -> vector<128x16xf32>
    %c1_34 = arith.constant 1 : index
    %c0_35 = arith.constant 0 : index
    %49 = tpu.strided_load %arg17[%c1_34, %c0_35] {strides = array<i32: 4, 1>} : memref<520x16xf32, #tpu.memory_space<vmem>>, vector<128x16xf32>
    %c16 = arith.constant 16 : index
    %c0_36 = arith.constant 0 : index
    %50 = vector.load %arg4[%c16, %c0_36] : memref<80x16xf32, #tpu.memory_space<vmem>>, vector<16x16xf32>
    %cst_37 = arith.constant dense<0.000000e+00> : vector<128x16xf32>
    %51 = tpu.matmul %49, %50, %cst_37 {dimension_numbers = #tpu.dot_dimension_numbers<[1], [0], [0], [1], [0, 0, 1, 1], [], []>} : vector<128x16xf32>, vector<16x16xf32>, vector<128x16xf32> -> vector<128x16xf32>
    %52 = arith.addf %48, %51 : vector<128x16xf32>
    %c2_38 = arith.constant 2 : index
    %c0_39 = arith.constant 0 : index
    %53 = tpu.strided_load %arg17[%c2_38, %c0_39] {strides = array<i32: 4, 1>} : memref<520x16xf32, #tpu.memory_space<vmem>>, vector<128x16xf32>
    %c32 = arith.constant 32 : index
    %c0_40 = arith.constant 0 : index
    %54 = vector.load %arg4[%c32, %c0_40] : memref<80x16xf32, #tpu.memory_space<vmem>>, vector<16x16xf32>
    %cst_41 = arith.constant dense<0.000000e+00> : vector<128x16xf32>
    %55 = tpu.matmul %53, %54, %cst_41 {dimension_numbers = #tpu.dot_dimension_numbers<[1], [0], [0], [1], [0, 0, 1, 1], [], []>} : vector<128x16xf32>, vector<16x16xf32>, vector<128x16xf32> -> vector<128x16xf32>
    %56 = arith.addf %52, %55 : vector<128x16xf32>
    %c3_42 = arith.constant 3 : index
    %c0_43 = arith.constant 0 : index
    %57 = tpu.strided_load %arg17[%c3_42, %c0_43] {strides = array<i32: 4, 1>} : memref<520x16xf32, #tpu.memory_space<vmem>>, vector<128x16xf32>
    %c48 = arith.constant 48 : index
    %c0_44 = arith.constant 0 : index
    %58 = vector.load %arg4[%c48, %c0_44] : memref<80x16xf32, #tpu.memory_space<vmem>>, vector<16x16xf32>
    %cst_45 = arith.constant dense<0.000000e+00> : vector<128x16xf32>
    %59 = tpu.matmul %57, %58, %cst_45 {dimension_numbers = #tpu.dot_dimension_numbers<[1], [0], [0], [1], [0, 0, 1, 1], [], []>} : vector<128x16xf32>, vector<16x16xf32>, vector<128x16xf32> -> vector<128x16xf32>
    %60 = arith.addf %56, %59 : vector<128x16xf32>
    %c4_46 = arith.constant 4 : index
    %c0_47 = arith.constant 0 : index
    %61 = tpu.strided_load %arg17[%c4_46, %c0_47] {strides = array<i32: 4, 1>} : memref<520x16xf32, #tpu.memory_space<vmem>>, vector<128x16xf32>
    %c64 = arith.constant 64 : index
    %c0_48 = arith.constant 0 : index
    %62 = vector.load %arg4[%c64, %c0_48] : memref<80x16xf32, #tpu.memory_space<vmem>>, vector<16x16xf32>
    %cst_49 = arith.constant dense<0.000000e+00> : vector<128x16xf32>
    %63 = tpu.matmul %61, %62, %cst_49 {dimension_numbers = #tpu.dot_dimension_numbers<[1], [0], [0], [1], [0, 0, 1, 1], [], []>} : vector<128x16xf32>, vector<16x16xf32>, vector<128x16xf32> -> vector<128x16xf32>
    %64 = arith.addf %60, %63 : vector<128x16xf32>
    %c0_50 = arith.constant 0 : index
    %c0_51 = arith.constant 0 : index
    %65 = vector.load %arg5[%c0_50, %c0_51] : memref<1x16xf32, #tpu.memory_space<vmem>>, vector<1x16xf32>
    %66 = vector.broadcast %65 : vector<1x16xf32> to vector<128x16xf32>
    %67 = arith.addf %64, %66 : vector<128x16xf32>
    %cst_52 = arith.constant 0.000000e+00 : f32
    %68 = vector.broadcast %cst_52 : f32 to vector<128x16xf32>
    %69 = arith.cmpf ogt, %67, %68 : vector<128x16xf32>
    %cst_53 = arith.constant 2.000000e-01 : f32
    %70 = vector.broadcast %cst_53 : f32 to vector<128x16xf32>
    %71 = arith.mulf %70, %67 : vector<128x16xf32>
    %72 = arith.select %69, %67, %71 : vector<128x16xi1>, vector<128x16xf32>
    %cst_54 = arith.constant 0.000000e+00 : f32
    %73 = vector.broadcast %cst_54 : f32 to vector<2x16xf32>
    %c0_55 = arith.constant 0 : index
    %c0_56 = arith.constant 0 : index
    %74 = vector.load %arg18[%c0_55, %c0_56] : memref<520x16xf32, #tpu.memory_space<vmem>>, vector<2x16xf32>
    tpu.vector_store %arg18[%c0_55, %c0_56], %73 {strides = array<i32>} : memref<520x16xf32, #tpu.memory_space<vmem>>, vector<2x16xf32>,
    %c2_57 = arith.constant 2 : index
    %c0_58 = arith.constant 0 : index
    %75 = vector.load %arg18[%c2_57, %c0_58] : memref<520x16xf32, #tpu.memory_space<vmem>>, vector<128x16xf32>
    tpu.vector_store %arg18[%c2_57, %c0_58], %72 {strides = array<i32>} : memref<520x16xf32, #tpu.memory_space<vmem>>, vector<128x16xf32>,
    %c130 = arith.constant 130 : index
    %c0_59 = arith.constant 0 : index
    %76 = vector.load %arg18[%c130, %c0_59] : memref<520x16xf32, #tpu.memory_space<vmem>>, vector<2x16xf32>
    tpu.vector_store %arg18[%c130, %c0_59], %73 {strides = array<i32>} : memref<520x16xf32, #tpu.memory_space<vmem>>, vector<2x16xf32>,
    %c0_60 = arith.constant 0 : index
    %c0_61 = arith.constant 0 : index
    %77 = tpu.strided_load %arg18[%c0_60, %c0_61] {strides = array<i32: 4, 1>} : memref<520x16xf32, #tpu.memory_space<vmem>>, vector<32x16xf32>
    %c0_62 = arith.constant 0 : index
    %c0_63 = arith.constant 0 : index
    %78 = vector.load %arg6[%c0_62, %c0_63] : memref<80x16xf32, #tpu.memory_space<vmem>>, vector<16x16xf32>
    %cst_64 = arith.constant dense<0.000000e+00> : vector<32x16xf32>
    %79 = tpu.matmul %77, %78, %cst_64 {dimension_numbers = #tpu.dot_dimension_numbers<[1], [0], [0], [1], [0, 0, 1, 1], [], []>} : vector<32x16xf32>, vector<16x16xf32>, vector<32x16xf32> -> vector<32x16xf32>
    %c1_65 = arith.constant 1 : index
    %c0_66 = arith.constant 0 : index
    %80 = tpu.strided_load %arg18[%c1_65, %c0_66] {strides = array<i32: 4, 1>} : memref<520x16xf32, #tpu.memory_space<vmem>>, vector<32x16xf32>
    %c16_67 = arith.constant 16 : index
    %c0_68 = arith.constant 0 : index
    %81 = vector.load %arg6[%c16_67, %c0_68] : memref<80x16xf32, #tpu.memory_space<vmem>>, vector<16x16xf32>
    %cst_69 = arith.constant dense<0.000000e+00> : vector<32x16xf32>
    %82 = tpu.matmul %80, %81, %cst_69 {dimension_numbers = #tpu.dot_dimension_numbers<[1], [0], [0], [1], [0, 0, 1, 1], [], []>} : vector<32x16xf32>, vector<16x16xf32>, vector<32x16xf32> -> vector<32x16xf32>
    %83 = arith.addf %79, %82 : vector<32x16xf32>
    %c2_70 = arith.constant 2 : index
    %c0_71 = arith.constant 0 : index
    %84 = tpu.strided_load %arg18[%c2_70, %c0_71] {strides = array<i32: 4, 1>} : memref<520x16xf32, #tpu.memory_space<vmem>>, vector<32x16xf32>
    %c32_72 = arith.constant 32 : index
    %c0_73 = arith.constant 0 : index
    %85 = vector.load %arg6[%c32_72, %c0_73] : memref<80x16xf32, #tpu.memory_space<vmem>>, vector<16x16xf32>
    %cst_74 = arith.constant dense<0.000000e+00> : vector<32x16xf32>
    %86 = tpu.matmul %84, %85, %cst_74 {dimension_numbers = #tpu.dot_dimension_numbers<[1], [0], [0], [1], [0, 0, 1, 1], [], []>} : vector<32x16xf32>, vector<16x16xf32>, vector<32x16xf32> -> vector<32x16xf32>
    %87 = arith.addf %83, %86 : vector<32x16xf32>
    %c3_75 = arith.constant 3 : index
    %c0_76 = arith.constant 0 : index
    %88 = tpu.strided_load %arg18[%c3_75, %c0_76] {strides = array<i32: 4, 1>} : memref<520x16xf32, #tpu.memory_space<vmem>>, vector<32x16xf32>
    %c48_77 = arith.constant 48 : index
    %c0_78 = arith.constant 0 : index
    %89 = vector.load %arg6[%c48_77, %c0_78] : memref<80x16xf32, #tpu.memory_space<vmem>>, vector<16x16xf32>
    %cst_79 = arith.constant dense<0.000000e+00> : vector<32x16xf32>
    %90 = tpu.matmul %88, %89, %cst_79 {dimension_numbers = #tpu.dot_dimension_numbers<[1], [0], [0], [1], [0, 0, 1, 1], [], []>} : vector<32x16xf32>, vector<16x16xf32>, vector<32x16xf32> -> vector<32x16xf32>
    %91 = arith.addf %87, %90 : vector<32x16xf32>
    %c4_80 = arith.constant 4 : index
    %c0_81 = arith.constant 0 : index
    %92 = tpu.strided_load %arg18[%c4_80, %c0_81] {strides = array<i32: 4, 1>} : memref<520x16xf32, #tpu.memory_space<vmem>>, vector<32x16xf32>
    %c64_82 = arith.constant 64 : index
    %c0_83 = arith.constant 0 : index
    %93 = vector.load %arg6[%c64_82, %c0_83] : memref<80x16xf32, #tpu.memory_space<vmem>>, vector<16x16xf32>
    %cst_84 = arith.constant dense<0.000000e+00> : vector<32x16xf32>
    %94 = tpu.matmul %92, %93, %cst_84 {dimension_numbers = #tpu.dot_dimension_numbers<[1], [0], [0], [1], [0, 0, 1, 1], [], []>} : vector<32x16xf32>, vector<16x16xf32>, vector<32x16xf32> -> vector<32x16xf32>
    %95 = arith.addf %91, %94 : vector<32x16xf32>
    %c0_85 = arith.constant 0 : index
    %c0_86 = arith.constant 0 : index
    %96 = vector.load %arg7[%c0_85, %c0_86] : memref<1x16xf32, #tpu.memory_space<vmem>>, vector<1x16xf32>
    %97 = vector.broadcast %96 : vector<1x16xf32> to vector<32x16xf32>
    %98 = arith.addf %95, %97 : vector<32x16xf32>
    %cst_87 = arith.constant 0.000000e+00 : f32
    %99 = vector.broadcast %cst_87 : f32 to vector<32x16xf32>
    %100 = arith.cmpf ogt, %98, %99 : vector<32x16xf32>
    %cst_88 = arith.constant 2.000000e-01 : f32
    %101 = vector.broadcast %cst_88 : f32 to vector<32x16xf32>
    %102 = arith.mulf %101, %98 : vector<32x16xf32>
    %103 = arith.select %100, %98, %102 : vector<32x16xi1>, vector<32x16xf32>
    %cst_89 = arith.constant 0.000000e+00 : f32
    %104 = vector.broadcast %cst_89 : f32 to vector<2x16xf32>
    %c0_90 = arith.constant 0 : index
    %c0_91 = arith.constant 0 : index
    %105 = vector.load %arg17[%c0_90, %c0_91] : memref<520x16xf32, #tpu.memory_space<vmem>>, vector<2x16xf32>
    tpu.vector_store %arg17[%c0_90, %c0_91], %104 {strides = array<i32>} : memref<520x16xf32, #tpu.memory_space<vmem>>, vector<2x16xf32>,
    %c2_92 = arith.constant 2 : index
    %c0_93 = arith.constant 0 : index
    %106 = vector.load %arg17[%c2_92, %c0_93] : memref<520x16xf32, #tpu.memory_space<vmem>>, vector<32x16xf32>
    tpu.vector_store %arg17[%c2_92, %c0_93], %103 {strides = array<i32>} : memref<520x16xf32, #tpu.memory_space<vmem>>, vector<32x16xf32>,
    %c34 = arith.constant 34 : index
    %c0_94 = arith.constant 0 : index
    %107 = vector.load %arg17[%c34, %c0_94] : memref<520x16xf32, #tpu.memory_space<vmem>>, vector<2x16xf32>
    tpu.vector_store %arg17[%c34, %c0_94], %104 {strides = array<i32>} : memref<520x16xf32, #tpu.memory_space<vmem>>, vector<2x16xf32>,
    %c0_95 = arith.constant 0 : index
    %c0_96 = arith.constant 0 : index
    %108 = tpu.strided_load %arg17[%c0_95, %c0_96] {strides = array<i32: 4, 1>} : memref<520x16xf32, #tpu.memory_space<vmem>>, vector<8x16xf32>
    %c0_97 = arith.constant 0 : index
    %c0_98 = arith.constant 0 : index
    %109 = vector.load %arg8[%c0_97, %c0_98] : memref<80x16xf32, #tpu.memory_space<vmem>>, vector<16x16xf32>
    %cst_99 = arith.constant dense<0.000000e+00> : vector<8x16xf32>
    %110 = tpu.matmul %108, %109, %cst_99 {dimension_numbers = #tpu.dot_dimension_numbers<[1], [0], [0], [1], [0, 0, 1, 1], [], []>} : vector<8x16xf32>, vector<16x16xf32>, vector<8x16xf32> -> vector<8x16xf32>
    %c1_100 = arith.constant 1 : index
    %c0_101 = arith.constant 0 : index
    %111 = tpu.strided_load %arg17[%c1_100, %c0_101] {strides = array<i32: 4, 1>} : memref<520x16xf32, #tpu.memory_space<vmem>>, vector<8x16xf32>
    %c16_102 = arith.constant 16 : index
    %c0_103 = arith.constant 0 : index
    %112 = vector.load %arg8[%c16_102, %c0_103] : memref<80x16xf32, #tpu.memory_space<vmem>>, vector<16x16xf32>
    %cst_104 = arith.constant dense<0.000000e+00> : vector<8x16xf32>
    %113 = tpu.matmul %111, %112, %cst_104 {dimension_numbers = #tpu.dot_dimension_numbers<[1], [0], [0], [1], [0, 0, 1, 1], [], []>} : vector<8x16xf32>, vector<16x16xf32>, vector<8x16xf32> -> vector<8x16xf32>
    %114 = arith.addf %110, %113 : vector<8x16xf32>
    %c2_105 = arith.constant 2 : index
    %c0_106 = arith.constant 0 : index
    %115 = tpu.strided_load %arg17[%c2_105, %c0_106] {strides = array<i32: 4, 1>} : memref<520x16xf32, #tpu.memory_space<vmem>>, vector<8x16xf32>
    %c32_107 = arith.constant 32 : index
    %c0_108 = arith.constant 0 : index
    %116 = vector.load %arg8[%c32_107, %c0_108] : memref<80x16xf32, #tpu.memory_space<vmem>>, vector<16x16xf32>
    %cst_109 = arith.constant dense<0.000000e+00> : vector<8x16xf32>
    %117 = tpu.matmul %115, %116, %cst_109 {dimension_numbers = #tpu.dot_dimension_numbers<[1], [0], [0], [1], [0, 0, 1, 1], [], []>} : vector<8x16xf32>, vector<16x16xf32>, vector<8x16xf32> -> vector<8x16xf32>
    %118 = arith.addf %114, %117 : vector<8x16xf32>
    %c3_110 = arith.constant 3 : index
    %c0_111 = arith.constant 0 : index
    %119 = tpu.strided_load %arg17[%c3_110, %c0_111] {strides = array<i32: 4, 1>} : memref<520x16xf32, #tpu.memory_space<vmem>>, vector<8x16xf32>
    %c48_112 = arith.constant 48 : index
    %c0_113 = arith.constant 0 : index
    %120 = vector.load %arg8[%c48_112, %c0_113] : memref<80x16xf32, #tpu.memory_space<vmem>>, vector<16x16xf32>
    %cst_114 = arith.constant dense<0.000000e+00> : vector<8x16xf32>
    %121 = tpu.matmul %119, %120, %cst_114 {dimension_numbers = #tpu.dot_dimension_numbers<[1], [0], [0], [1], [0, 0, 1, 1], [], []>} : vector<8x16xf32>, vector<16x16xf32>, vector<8x16xf32> -> vector<8x16xf32>
    %122 = arith.addf %118, %121 : vector<8x16xf32>
    %c4_115 = arith.constant 4 : index
    %c0_116 = arith.constant 0 : index
    %123 = tpu.strided_load %arg17[%c4_115, %c0_116] {strides = array<i32: 4, 1>} : memref<520x16xf32, #tpu.memory_space<vmem>>, vector<8x16xf32>
    %c64_117 = arith.constant 64 : index
    %c0_118 = arith.constant 0 : index
    %124 = vector.load %arg8[%c64_117, %c0_118] : memref<80x16xf32, #tpu.memory_space<vmem>>, vector<16x16xf32>
    %cst_119 = arith.constant dense<0.000000e+00> : vector<8x16xf32>
    %125 = tpu.matmul %123, %124, %cst_119 {dimension_numbers = #tpu.dot_dimension_numbers<[1], [0], [0], [1], [0, 0, 1, 1], [], []>} : vector<8x16xf32>, vector<16x16xf32>, vector<8x16xf32> -> vector<8x16xf32>
    %126 = arith.addf %122, %125 : vector<8x16xf32>
    %c0_120 = arith.constant 0 : index
    %c0_121 = arith.constant 0 : index
    %127 = vector.load %arg9[%c0_120, %c0_121] : memref<1x16xf32, #tpu.memory_space<vmem>>, vector<1x16xf32>
    %128 = vector.broadcast %127 : vector<1x16xf32> to vector<8x16xf32>
    %129 = arith.addf %126, %128 : vector<8x16xf32>
    %cst_122 = arith.constant 0.000000e+00 : f32
    %130 = vector.broadcast %cst_122 : f32 to vector<8x16xf32>
    %131 = arith.cmpf ogt, %129, %130 : vector<8x16xf32>
    %cst_123 = arith.constant 2.000000e-01 : f32
    %132 = vector.broadcast %cst_123 : f32 to vector<8x16xf32>
    %133 = arith.mulf %132, %129 : vector<8x16xf32>
    %134 = arith.select %131, %129, %133 : vector<8x16xi1>, vector<8x16xf32>
    %cst_124 = arith.constant 0.000000e+00 : f32
    %135 = vector.broadcast %cst_124 : f32 to vector<2x16xf32>
    %c0_125 = arith.constant 0 : index
    %c0_126 = arith.constant 0 : index
    %136 = vector.load %arg18[%c0_125, %c0_126] : memref<520x16xf32, #tpu.memory_space<vmem>>, vector<2x16xf32>
    tpu.vector_store %arg18[%c0_125, %c0_126], %135 {strides = array<i32>} : memref<520x16xf32, #tpu.memory_space<vmem>>, vector<2x16xf32>,
    %c2_127 = arith.constant 2 : index
    %c0_128 = arith.constant 0 : index
    %137 = vector.load %arg18[%c2_127, %c0_128] : memref<520x16xf32, #tpu.memory_space<vmem>>, vector<8x16xf32>
    tpu.vector_store %arg18[%c2_127, %c0_128], %134 {strides = array<i32>} : memref<520x16xf32, #tpu.memory_space<vmem>>, vector<8x16xf32>,
    %c10 = arith.constant 10 : index
    %c0_129 = arith.constant 0 : index
    %138 = vector.load %arg18[%c10, %c0_129] : memref<520x16xf32, #tpu.memory_space<vmem>>, vector<2x16xf32>
    tpu.vector_store %arg18[%c10, %c0_129], %135 {strides = array<i32>} : memref<520x16xf32, #tpu.memory_space<vmem>>, vector<2x16xf32>,
    %c0_130 = arith.constant 0 : index
    %c0_131 = arith.constant 0 : index
    %139 = tpu.strided_load %arg18[%c0_130, %c0_131] {strides = array<i32: 4, 1>} : memref<520x16xf32, #tpu.memory_space<vmem>>, vector<2x16xf32>
    %c0_132 = arith.constant 0 : index
    %c0_133 = arith.constant 0 : index
    %140 = vector.load %arg10[%c0_132, %c0_133] : memref<80x16xf32, #tpu.memory_space<vmem>>, vector<16x16xf32>
    %cst_134 = arith.constant dense<0.000000e+00> : vector<2x16xf32>
    %141 = tpu.matmul %139, %140, %cst_134 {dimension_numbers = #tpu.dot_dimension_numbers<[1], [0], [0], [1], [0, 0, 1, 1], [], []>} : vector<2x16xf32>, vector<16x16xf32>, vector<2x16xf32> -> vector<2x16xf32>
    %c1_135 = arith.constant 1 : index
    %c0_136 = arith.constant 0 : index
    %142 = tpu.strided_load %arg18[%c1_135, %c0_136] {strides = array<i32: 4, 1>} : memref<520x16xf32, #tpu.memory_space<vmem>>, vector<2x16xf32>
    %c16_137 = arith.constant 16 : index
    %c0_138 = arith.constant 0 : index
    %143 = vector.load %arg10[%c16_137, %c0_138] : memref<80x16xf32, #tpu.memory_space<vmem>>, vector<16x16xf32>
    %cst_139 = arith.constant dense<0.000000e+00> : vector<2x16xf32>
    %144 = tpu.matmul %142, %143, %cst_139 {dimension_numbers = #tpu.dot_dimension_numbers<[1], [0], [0], [1], [0, 0, 1, 1], [], []>} : vector<2x16xf32>, vector<16x16xf32>, vector<2x16xf32> -> vector<2x16xf32>
    %145 = arith.addf %141, %144 : vector<2x16xf32>
    %c2_140 = arith.constant 2 : index
    %c0_141 = arith.constant 0 : index
    %146 = tpu.strided_load %arg18[%c2_140, %c0_141] {strides = array<i32: 4, 1>} : memref<520x16xf32, #tpu.memory_space<vmem>>, vector<2x16xf32>
    %c32_142 = arith.constant 32 : index
    %c0_143 = arith.constant 0 : index
    %147 = vector.load %arg10[%c32_142, %c0_143] : memref<80x16xf32, #tpu.memory_space<vmem>>, vector<16x16xf32>
    %cst_144 = arith.constant dense<0.000000e+00> : vector<2x16xf32>
    %148 = tpu.matmul %146, %147, %cst_144 {dimension_numbers = #tpu.dot_dimension_numbers<[1], [0], [0], [1], [0, 0, 1, 1], [], []>} : vector<2x16xf32>, vector<16x16xf32>, vector<2x16xf32> -> vector<2x16xf32>
    %149 = arith.addf %145, %148 : vector<2x16xf32>
    %c3_145 = arith.constant 3 : index
    %c0_146 = arith.constant 0 : index
    %150 = tpu.strided_load %arg18[%c3_145, %c0_146] {strides = array<i32: 4, 1>} : memref<520x16xf32, #tpu.memory_space<vmem>>, vector<2x16xf32>
    %c48_147 = arith.constant 48 : index
    %c0_148 = arith.constant 0 : index
    %151 = vector.load %arg10[%c48_147, %c0_148] : memref<80x16xf32, #tpu.memory_space<vmem>>, vector<16x16xf32>
    %cst_149 = arith.constant dense<0.000000e+00> : vector<2x16xf32>
    %152 = tpu.matmul %150, %151, %cst_149 {dimension_numbers = #tpu.dot_dimension_numbers<[1], [0], [0], [1], [0, 0, 1, 1], [], []>} : vector<2x16xf32>, vector<16x16xf32>, vector<2x16xf32> -> vector<2x16xf32>
    %153 = arith.addf %149, %152 : vector<2x16xf32>
    %c4_150 = arith.constant 4 : index
    %c0_151 = arith.constant 0 : index
    %154 = tpu.strided_load %arg18[%c4_150, %c0_151] {strides = array<i32: 4, 1>} : memref<520x16xf32, #tpu.memory_space<vmem>>, vector<2x16xf32>
    %c64_152 = arith.constant 64 : index
    %c0_153 = arith.constant 0 : index
    %155 = vector.load %arg10[%c64_152, %c0_153] : memref<80x16xf32, #tpu.memory_space<vmem>>, vector<16x16xf32>
    %cst_154 = arith.constant dense<0.000000e+00> : vector<2x16xf32>
    %156 = tpu.matmul %154, %155, %cst_154 {dimension_numbers = #tpu.dot_dimension_numbers<[1], [0], [0], [1], [0, 0, 1, 1], [], []>} : vector<2x16xf32>, vector<16x16xf32>, vector<2x16xf32> -> vector<2x16xf32>
    %157 = arith.addf %153, %156 : vector<2x16xf32>
    %c0_155 = arith.constant 0 : index
    %c0_156 = arith.constant 0 : index
    %158 = vector.load %arg11[%c0_155, %c0_156] : memref<1x16xf32, #tpu.memory_space<vmem>>, vector<1x16xf32>
    %159 = vector.broadcast %158 : vector<1x16xf32> to vector<2x16xf32>
    %160 = arith.addf %157, %159 : vector<2x16xf32>
    %cst_157 = arith.constant 0.000000e+00 : f32
    %161 = vector.broadcast %cst_157 : f32 to vector<2x16xf32>
    %162 = arith.cmpf ogt, %160, %161 : vector<2x16xf32>
    %cst_158 = arith.constant 2.000000e-01 : f32
    %163 = vector.broadcast %cst_158 : f32 to vector<2x16xf32>
    %164 = arith.mulf %163, %160 : vector<2x16xf32>
    %165 = arith.select %162, %160, %164 : vector<2x16xi1>, vector<2x16xf32>
    %cst_159 = arith.constant 0.000000e+00 : f32
    %166 = vector.broadcast %cst_159 : f32 to vector<2x16xf32>
    %c0_160 = arith.constant 0 : index
    %c0_161 = arith.constant 0 : index
    %167 = vector.load %arg17[%c0_160, %c0_161] : memref<520x16xf32, #tpu.memory_space<vmem>>, vector<2x16xf32>
    tpu.vector_store %arg17[%c0_160, %c0_161], %166 {strides = array<i32>} : memref<520x16xf32, #tpu.memory_space<vmem>>, vector<2x16xf32>,
    %c2_162 = arith.constant 2 : index
    %c0_163 = arith.constant 0 : index
    %168 = vector.load %arg17[%c2_162, %c0_163] : memref<520x16xf32, #tpu.memory_space<vmem>>, vector<2x16xf32>
    tpu.vector_store %arg17[%c2_162, %c0_163], %165 {strides = array<i32>} : memref<520x16xf32, #tpu.memory_space<vmem>>, vector<2x16xf32>,
    %c4_164 = arith.constant 4 : index
    %c0_165 = arith.constant 0 : index
    %169 = vector.load %arg17[%c4_164, %c0_165] : memref<520x16xf32, #tpu.memory_space<vmem>>, vector<2x16xf32>
    tpu.vector_store %arg17[%c4_164, %c0_165], %166 {strides = array<i32>} : memref<520x16xf32, #tpu.memory_space<vmem>>, vector<2x16xf32>,
    %c0_166 = arith.constant 0 : index
    %c0_167 = arith.constant 0 : index
    %170 = tpu.strided_load %arg17[%c0_166, %c0_167] {strides = array<i32: 2, 1>} : memref<520x16xf32, #tpu.memory_space<vmem>>, vector<1x16xf32>
    %c0_168 = arith.constant 0 : index
    %c0_169 = arith.constant 0 : index
    %171 = vector.load %arg12[%c0_168, %c0_169] : memref<80x8xf32, #tpu.memory_space<vmem>>, vector<16x8xf32>
    %cst_170 = arith.constant dense<0.000000e+00> : vector<1x8xf32>
    %172 = tpu.matmul %170, %171, %cst_170 {dimension_numbers = #tpu.dot_dimension_numbers<[1], [0], [0], [1], [0, 0, 1, 1], [], []>} : vector<1x16xf32>, vector<16x8xf32>, vector<1x8xf32> -> vector<1x8xf32>
    %c1_171 = arith.constant 1 : index
    %c0_172 = arith.constant 0 : index
    %173 = tpu.strided_load %arg17[%c1_171, %c0_172] {strides = array<i32: 2, 1>} : memref<520x16xf32, #tpu.memory_space<vmem>>, vector<1x16xf32>
    %c16_173 = arith.constant 16 : index
    %c0_174 = arith.constant 0 : index
    %174 = vector.load %arg12[%c16_173, %c0_174] : memref<80x8xf32, #tpu.memory_space<vmem>>, vector<16x8xf32>
    %cst_175 = arith.constant dense<0.000000e+00> : vector<1x8xf32>
    %175 = tpu.matmul %173, %174, %cst_175 {dimension_numbers = #tpu.dot_dimension_numbers<[1], [0], [0], [1], [0, 0, 1, 1], [], []>} : vector<1x16xf32>, vector<16x8xf32>, vector<1x8xf32> -> vector<1x8xf32>
    %176 = arith.addf %172, %175 : vector<1x8xf32>
    %c2_176 = arith.constant 2 : index
    %c0_177 = arith.constant 0 : index
    %177 = tpu.strided_load %arg17[%c2_176, %c0_177] {strides = array<i32: 2, 1>} : memref<520x16xf32, #tpu.memory_space<vmem>>, vector<1x16xf32>
    %c32_178 = arith.constant 32 : index
    %c0_179 = arith.constant 0 : index
    %178 = vector.load %arg12[%c32_178, %c0_179] : memref<80x8xf32, #tpu.memory_space<vmem>>, vector<16x8xf32>
    %cst_180 = arith.constant dense<0.000000e+00> : vector<1x8xf32>
    %179 = tpu.matmul %177, %178, %cst_180 {dimension_numbers = #tpu.dot_dimension_numbers<[1], [0], [0], [1], [0, 0, 1, 1], [], []>} : vector<1x16xf32>, vector<16x8xf32>, vector<1x8xf32> -> vector<1x8xf32>
    %180 = arith.addf %176, %179 : vector<1x8xf32>
    %c3_181 = arith.constant 3 : index
    %c0_182 = arith.constant 0 : index
    %181 = tpu.strided_load %arg17[%c3_181, %c0_182] {strides = array<i32: 2, 1>} : memref<520x16xf32, #tpu.memory_space<vmem>>, vector<1x16xf32>
    %c48_183 = arith.constant 48 : index
    %c0_184 = arith.constant 0 : index
    %182 = vector.load %arg12[%c48_183, %c0_184] : memref<80x8xf32, #tpu.memory_space<vmem>>, vector<16x8xf32>
    %cst_185 = arith.constant dense<0.000000e+00> : vector<1x8xf32>
    %183 = tpu.matmul %181, %182, %cst_185 {dimension_numbers = #tpu.dot_dimension_numbers<[1], [0], [0], [1], [0, 0, 1, 1], [], []>} : vector<1x16xf32>, vector<16x8xf32>, vector<1x8xf32> -> vector<1x8xf32>
    %184 = arith.addf %180, %183 : vector<1x8xf32>
    %c4_186 = arith.constant 4 : index
    %c0_187 = arith.constant 0 : index
    %185 = tpu.strided_load %arg17[%c4_186, %c0_187] {strides = array<i32: 2, 1>} : memref<520x16xf32, #tpu.memory_space<vmem>>, vector<1x16xf32>
    %c64_188 = arith.constant 64 : index
    %c0_189 = arith.constant 0 : index
    %186 = vector.load %arg12[%c64_188, %c0_189] : memref<80x8xf32, #tpu.memory_space<vmem>>, vector<16x8xf32>
    %cst_190 = arith.constant dense<0.000000e+00> : vector<1x8xf32>
    %187 = tpu.matmul %185, %186, %cst_190 {dimension_numbers = #tpu.dot_dimension_numbers<[1], [0], [0], [1], [0, 0, 1, 1], [], []>} : vector<1x16xf32>, vector<16x8xf32>, vector<1x8xf32> -> vector<1x8xf32>
    %188 = arith.addf %184, %187 : vector<1x8xf32>
    %c0_191 = arith.constant 0 : index
    %c0_192 = arith.constant 0 : index
    %189 = vector.load %arg13[%c0_191, %c0_192] : memref<1x8xf32, #tpu.memory_space<vmem>>, vector<1x8xf32>
    %190 = arith.addf %188, %189 : vector<1x8xf32>
    %cst_193 = arith.constant 0.000000e+00 : f32
    %191 = vector.broadcast %cst_193 : f32 to vector<1x8xf32>
    %192 = arith.cmpf ogt, %190, %191 : vector<1x8xf32>
    %cst_194 = arith.constant 2.000000e-01 : f32
    %193 = vector.broadcast %cst_194 : f32 to vector<1x8xf32>
    %194 = arith.mulf %193, %190 : vector<1x8xf32>
    %195 = arith.select %192, %190, %194 : vector<1x8xi1>, vector<1x8xf32>
    %c0_195 = arith.constant 0 : index
    %c0_196 = arith.constant 0 : index
    %196 = vector.load %arg14[%c0_195, %c0_196] : memref<8x8xf32, #tpu.memory_space<vmem>>, vector<8x8xf32>
    %cst_197 = arith.constant dense<0.000000e+00> : vector<1x8xf32>
    %197 = tpu.matmul %195, %196, %cst_197 {dimension_numbers = #tpu.dot_dimension_numbers<[1], [0], [0], [1], [0, 0, 1, 1], [], []>} : vector<1x8xf32>, vector<8x8xf32>, vector<1x8xf32> -> vector<1x8xf32>
    %c0_198 = arith.constant 0 : index
    %c0_199 = arith.constant 0 : index
    %198 = vector.load %arg15[%c0_198, %c0_199] : memref<1x8xf32, #tpu.memory_space<vmem>>, vector<1x8xf32>
    %199 = arith.addf %197, %198 : vector<1x8xf32>
    %c0_200 = arith.constant 0 : index
    %c0_201 = arith.constant 0 : index
    %c0_202 = arith.constant 0 : index
    %200 = vector.load %arg16[%c0_200, %c0_201, %c0_202] : memref<1x1x8xf32, #tpu.memory_space<vmem>>, vector<1x1x8xf32>
    %201 = vector.shape_cast %200 : vector<1x1x8xf32> to vector<1x8xf32>
    %202 = vector.shape_cast %199 : vector<1x8xf32> to vector<1x1x8xf32>
    tpu.vector_store %arg16[%c0_200, %c0_201, %c0_202], %202 {strides = array<i32>} : memref<1x1x8xf32, #tpu.memory_space<vmem>>, vector<1x1x8xf32>,
    return
  }
  func.func @transform_0(%arg0: i32) -> (i32, i32, i32) {
    %c0_i32 = arith.constant 0 : i32
    %c0_i32_0 = arith.constant 0 : i32
    %c0_i32_1 = arith.constant 0 : i32
    return %arg0, %c0_i32, %c0_i32_0 : i32, i32, i32
  }
  func.func @transform_1(%arg0: i32) -> (i32, i32) {
    %c0_i32 = arith.constant 0 : i32
    %c0_i32_0 = arith.constant 0 : i32
    %c0_i32_1 = arith.constant 0 : i32
    return %c0_i32, %c0_i32_0 : i32, i32
  }
  func.func @transform_2(%arg0: i32) -> (i32, i32) {
    %c0_i32 = arith.constant 0 : i32
    %c0_i32_0 = arith.constant 0 : i32
    %c0_i32_1 = arith.constant 0 : i32
    return %c0_i32, %c0_i32_0 : i32, i32
  }
  func.func @transform_3(%arg0: i32) -> (i32, i32) {
    %c0_i32 = arith.constant 0 : i32
    %c0_i32_0 = arith.constant 0 : i32
    %c0_i32_1 = arith.constant 0 : i32
    return %c0_i32, %c0_i32_0 : i32, i32
  }
  func.func @transform_4(%arg0: i32) -> (i32, i32) {
    %c0_i32 = arith.constant 0 : i32
    %c0_i32_0 = arith.constant 0 : i32
    %c0_i32_1 = arith.constant 0 : i32
    return %c0_i32, %c0_i32_0 : i32, i32
  }
  func.func @transform_5(%arg0: i32) -> (i32, i32) {
    %c0_i32 = arith.constant 0 : i32
    %c0_i32_0 = arith.constant 0 : i32
    %c0_i32_1 = arith.constant 0 : i32
    return %c0_i32, %c0_i32_0 : i32, i32
  }
  func.func @transform_6(%arg0: i32) -> (i32, i32) {
    %c0_i32 = arith.constant 0 : i32
    %c0_i32_0 = arith.constant 0 : i32
    %c0_i32_1 = arith.constant 0 : i32
    return %c0_i32, %c0_i32_0 : i32, i32
  }
  func.func @transform_7(%arg0: i32) -> (i32, i32) {
    %c0_i32 = arith.constant 0 : i32
    %c0_i32_0 = arith.constant 0 : i32
    %c0_i32_1 = arith.constant 0 : i32
    return %c0_i32, %c0_i32_0 : i32, i32
  }
  func.func @transform_8(%arg0: i32) -> (i32, i32) {
    %c0_i32 = arith.constant 0 : i32
    %c0_i32_0 = arith.constant 0 : i32
    %c0_i32_1 = arith.constant 0 : i32
    return %c0_i32, %c0_i32_0 : i32, i32
  }
  func.func @transform_9(%arg0: i32) -> (i32, i32) {
    %c0_i32 = arith.constant 0 : i32
    %c0_i32_0 = arith.constant 0 : i32
    %c0_i32_1 = arith.constant 0 : i32
    return %c0_i32, %c0_i32_0 : i32, i32
  }
  func.func @transform_10(%arg0: i32) -> (i32, i32) {
    %c0_i32 = arith.constant 0 : i32
    %c0_i32_0 = arith.constant 0 : i32
    %c0_i32_1 = arith.constant 0 : i32
    return %c0_i32, %c0_i32_0 : i32, i32
  }
  func.func @transform_11(%arg0: i32) -> (i32, i32) {
    %c0_i32 = arith.constant 0 : i32
    %c0_i32_0 = arith.constant 0 : i32
    %c0_i32_1 = arith.constant 0 : i32
    return %c0_i32, %c0_i32_0 : i32, i32
  }
  func.func @transform_12(%arg0: i32) -> (i32, i32) {
    %c0_i32 = arith.constant 0 : i32
    %c0_i32_0 = arith.constant 0 : i32
    %c0_i32_1 = arith.constant 0 : i32
    return %c0_i32, %c0_i32_0 : i32, i32
  }
  func.func @transform_13(%arg0: i32) -> (i32, i32) {
    %c0_i32 = arith.constant 0 : i32
    %c0_i32_0 = arith.constant 0 : i32
    %c0_i32_1 = arith.constant 0 : i32
    return %c0_i32, %c0_i32_0 : i32, i32
  }
  func.func @transform_14(%arg0: i32) -> (i32, i32) {
    %c0_i32 = arith.constant 0 : i32
    %c0_i32_0 = arith.constant 0 : i32
    %c0_i32_1 = arith.constant 0 : i32
    return %c0_i32, %c0_i32_0 : i32, i32
  }
  func.func @transform_15(%arg0: i32) -> (i32, i32, i32) {
    %c0_i32 = arith.constant 0 : i32
    %c0_i32_0 = arith.constant 0 : i32
    %c0_i32_1 = arith.constant 0 : i32
    return %arg0, %c0_i32, %c0_i32_0 : i32, i32, i32
  }
}

</mosaic_0001>

<llo_original>
// kernel: encoder_forward.1
$region0: #{encoder_forward.1}
  #allocation0 [shape = 'u32[]', space=smem, size = 0x4, offset = 0x4, fixed_abs, tag = 'smem constant byte address 0x4 - core index']
  #allocation1 [shape = 'u32[144,128]{1,0:T(1,128)}', space=vmem, size = 0x12000, scoped, tag = 'internal scratch']
  #allocation2 [shape = 'f32[520,16]{1,0:T(8,128)}', space=vmem, size = 0x41000, scoped, tag = 'scratch operand']
  #allocation3 [shape = 'f32[520,16]{1,0:T(8,128)}', space=vmem, size = 0x41000, scoped, tag = 'scratch operand']
  %s0 = inlined_call_operand.vmem [shape: f32[2,2052,1], index: 0, kind: input, shape index: {}]
  %s1 = inlined_call_operand.vmem [shape: f32[5,16], index: 1, kind: input, shape index: {}]
  %s2 = inlined_call_operand.vmem [shape: f32[1,16], index: 2, kind: input, shape index: {}]
  %s3 = inlined_call_operand.vmem [shape: f32[80,16], index: 3, kind: input, shape index: {}]
  %s4 = inlined_call_operand.vmem [shape: f32[1,16], index: 4, kind: input, shape index: {}]
  %s5 = inlined_call_operand.vmem [shape: f32[80,16], index: 5, kind: input, shape index: {}]
  %s6 = inlined_call_operand.vmem [shape: f32[1,16], index: 6, kind: input, shape index: {}]
  %s7 = inlined_call_operand.vmem [shape: f32[80,16], index: 7, kind: input, shape index: {}]
  %s8 = inlined_call_operand.vmem [shape: f32[1,16], index: 8, kind: input, shape index: {}]
  %s9 = inlined_call_operand.vmem [shape: f32[80,16], index: 9, kind: input, shape index: {}]
  %s10 = inlined_call_operand.vmem [shape: f32[1,16], index: 10, kind: input, shape index: {}]
  %s11 = inlined_call_operand.vmem [shape: f32[80,8], index: 11, kind: input, shape index: {}]
  %s12 = inlined_call_operand.vmem [shape: f32[1,8], index: 12, kind: input, shape index: {}]
  %s13 = inlined_call_operand.vmem [shape: f32[8,8], index: 13, kind: input, shape index: {}]
  %s14 = inlined_call_operand.vmem [shape: f32[1,8], index: 14, kind: input, shape index: {}]
  %s15 = inlined_call_operand.hbm [shape: f32[2,1,8], index: 15, kind: output, shape index: {}]
  %s16 = sld [smem:[#allocation0]]
  $region93: #{encoder_forward.1} parent=0
    _
  %s18 = ssub.s32 1, %s16
  %s19 = scalar_select 0, %s18, %s16
  $region1: #{encoder_forward.1} parent=0
    #allocation4 [shape = 'u8[1024]{0}', space=vmem, size = 0x400, scoped, tag = 'output window, operand 0']
    #allocation5 [shape = 's32[2]{0}', space=sflag, size = 0x8, scoped, tag = 'scoped memory for encoder_forward.1']
    %20 = vsyncpa [#allocation5], 0
    %s21 = scalar_lea.sflag [#allocation5], 1
    %22 = vsyncpa %s21, 0
    loop: start=0, step=1, limit=4
    $region2: #{encoder_forward.1} parent=1 // loop_pre_header
      _
    $region3: #{encoder_forward.1} parent=1 // loop_header
      %s24 = sphi 0, %s28
      %p25 = scmp.ge.s32.totalorder %s24, 4
      %s34 = sphi 0, %s36
      %s37 = sphi 0, %s34
      %s38 = sphi 0, %s37
      %s54 = sphi 0, %s38
      %s58 = sphi 0, %s58
      %s60 = sphi 0, %s58
      %s61 = sphi 0, %s60
      %s75 = sphi 0, %s61
      %s79 = sphi 0, %s79
      %s81 = sphi 0, %s79
      %s82 = sphi 0, %s81
      %s96 = sphi 0, %s82
      %s100 = sphi 0, %s100
      %s102 = sphi 0, %s100
      %s103 = sphi 0, %s102
      %s117 = sphi 0, %s103
      %s121 = sphi 0, %s121
      %s123 = sphi 0, %s121
      %s124 = sphi 0, %s123
      %s138 = sphi 0, %s124
      %s142 = sphi 0, %s142
      %s144 = sphi 0, %s142
      %s145 = sphi 0, %s144
      %s159 = sphi 0, %s145
      %s163 = sphi 0, %s163
      %s165 = sphi 0, %s163
      %s166 = sphi 0, %s165
      %s180 = sphi 0, %s166
      %s184 = sphi 0, %s184
      %s186 = sphi 0, %s184
      %s187 = sphi 0, %s186
      %s201 = sphi 0, %s187
      %s205 = sphi 0, %s205
      %s207 = sphi 0, %s205
      %s208 = sphi 0, %s207
      %s222 = sphi 0, %s208
      %s226 = sphi 0, %s226
      %s228 = sphi 0, %s226
      %s229 = sphi 0, %s228
      %s243 = sphi 0, %s229
      %s247 = sphi 0, %s247
      %s249 = sphi 0, %s247
      %s250 = sphi 0, %s249
      %s264 = sphi 0, %s250
      %s268 = sphi 0, %s268
      %s270 = sphi 0, %s268
      %s271 = sphi 0, %s270
      %s285 = sphi 0, %s271
      %s289 = sphi 0, %s289
      %s291 = sphi 0, %s289
      %s292 = sphi 0, %s291
      %s306 = sphi 0, %s292
      %s310 = sphi 0, %s310
      %s312 = sphi 0, %s310
      %s313 = sphi 0, %s312
      %s327 = sphi 0, %s313
      %s331 = sphi 0, %s331
      %s333 = sphi 0, %s331
      %s334 = sphi 0, %s333
      %s348 = sphi 0, %s334
      %s354 = sphi 0, %s356
      %s357 = sphi 0, %s354
      %s358 = sphi 0, %s357
      %s374 = sphi 0, %s358
    $region4: #{encoder_forward.1} parent=1 // loop_header_branch
      %27 = sbr.rel (%p25) target = $region8
    $region5: #{encoder_forward.1} parent=1 // loop_body
      %s29 = ssub.s32 %s24, 1
      %s30 = ssub.s32 %s24, 2
      %s31 = sadd.s32 %s24, 1
      %s32 = ssub.s32 %s24, %s31
      %p33 = scmp.eq.s32.totalorder %s32, 0
      %s35 = sadd.s32 %s34, 1
      %s36 = scalar_select %p33, %s34, %s35
      %p39 = pneg %p33
      %p40 = scmp.eq.s32.totalorder %s24, 1
      %p41 = por %p39, %p40
      %p42 = scmp.ne.s32.totalorder %s34, %s37
      %p43 = scmp.eq.s32.totalorder %s24, 0
      %p44 = por %p42, %p43
      %p45 = scmp.ne.s32.totalorder %s34, %s37
      %p46 = scmp.eq.s32.totalorder %s29, 1
      %p47 = por %p45, %p46
      %p48 = scmp.ne.s32.totalorder %s37, %s38
      %p49 = scmp.eq.s32.totalorder %s29, 0
      %p50 = por %p48, %p49
      %p51 = scmp.ne.s32.totalorder %s37, %s38
      %p52 = scmp.eq.s32.totalorder %s30, 1
      %p53 = por %p51, %p52
      %p55 = scmp.ne.s32.totalorder %s38, %s54
      %p56 = scmp.eq.s32.totalorder %s30, 0
      %p57 = por %p55, %p56
      %s59 = sadd.s32 %s58, 1
      %p62 = scmp.eq.s32.totalorder %s24, 1
      %p63 = scmp.ne.s32.totalorder %s58, %s60
      %p64 = scmp.eq.s32.totalorder %s24, 0
      %p65 = por %p63, %p64
      %p66 = scmp.ne.s32.totalorder %s58, %s60
      %p67 = scmp.eq.s32.totalorder %s29, 1
      %p68 = por %p66, %p67
      %p69 = scmp.ne.s32.totalorder %s60, %s61
      %p70 = scmp.eq.s32.totalorder %s29, 0
      %p71 = por %p69, %p70
      %p72 = scmp.ne.s32.totalorder %s60, %s61
      %p73 = scmp.eq.s32.totalorder %s30, 1
      %p74 = por %p72, %p73
      %p76 = scmp.ne.s32.totalorder %s61, %s75
      %p77 = scmp.eq.s32.totalorder %s30, 0
      %p78 = por %p76, %p77
      %s80 = sadd.s32 %s79, 1
      %p83 = scmp.eq.s32.totalorder %s24, 1
      %p84 = scmp.ne.s32.totalorder %s79, %s81
      %p85 = scmp.eq.s32.totalorder %s24, 0
      %p86 = por %p84, %p85
      %p87 = scmp.ne.s32.totalorder %s79, %s81
      %p88 = scmp.eq.s32.totalorder %s29, 1
      %p89 = por %p87, %p88
      %p90 = scmp.ne.s32.totalorder %s81, %s82
      %p91 = scmp.eq.s32.totalorder %s29, 0
      %p92 = por %p90, %p91
      %p93 = scmp.ne.s32.totalorder %s81, %s82
      %p94 = scmp.eq.s32.totalorder %s30, 1
      %p95 = por %p93, %p94
      %p97 = scmp.ne.s32.totalorder %s82, %s96
      %p98 = scmp.eq.s32.totalorder %s30, 0
      %p99 = por %p97, %p98
      %s101 = sadd.s32 %s100, 1
      %p104 = scmp.eq.s32.totalorder %s24, 1
      %p105 = scmp.ne.s32.totalorder %s100, %s102
      %p106 = scmp.eq.s32.totalorder %s24, 0
      %p107 = por %p105, %p106
      %p108 = scmp.ne.s32.totalorder %s100, %s102
      %p109 = scmp.eq.s32.totalorder %s29, 1
      %p110 = por %p108, %p109
      %p111 = scmp.ne.s32.totalorder %s102, %s103
      %p112 = scmp.eq.s32.totalorder %s29, 0
      %p113 = por %p111, %p112
      %p114 = scmp.ne.s32.totalorder %s102, %s103
      %p115 = scmp.eq.s32.totalorder %s30, 1
      %p116 = por %p114, %p115
      %p118 = scmp.ne.s32.totalorder %s103, %s117
      %p119 = scmp.eq.s32.totalorder %s30, 0
      %p120 = por %p118, %p119
      %s122 = sadd.s32 %s121, 1
      %p125 = scmp.eq.s32.totalorder %s24, 1
      %p126 = scmp.ne.s32.totalorder %s121, %s123
      %p127 = scmp.eq.s32.totalorder %s24, 0
      %p128 = por %p126, %p127
      %p129 = scmp.ne.s32.totalorder %s121, %s123
      %p130 = scmp.eq.s32.totalorder %s29, 1
      %p131 = por %p129, %p130
      %p132 = scmp.ne.s32.totalorder %s123, %s124
      %p133 = scmp.eq.s32.totalorder %s29, 0
      %p134 = por %p132, %p133
      %p135 = scmp.ne.s32.totalorder %s123, %s124
      %p136 = scmp.eq.s32.totalorder %s30, 1
      %p137 = por %p135, %p136
      %p139 = scmp.ne.s32.totalorder %s124, %s138
      %p140 = scmp.eq.s32.totalorder %s30, 0
      %p141 = por %p139, %p140
      %s143 = sadd.s32 %s142, 1
      %p146 = scmp.eq.s32.totalorder %s24, 1
      %p147 = scmp.ne.s32.totalorder %s142, %s144
      %p148 = scmp.eq.s32.totalorder %s24, 0
      %p149 = por %p147, %p148
      %p150 = scmp.ne.s32.totalorder %s142, %s144
      %p151 = scmp.eq.s32.totalorder %s29, 1
      %p152 = por %p150, %p151
      %p153 = scmp.ne.s32.totalorder %s144, %s145
      %p154 = scmp.eq.s32.totalorder %s29, 0
      %p155 = por %p153, %p154
      %p156 = scmp.ne.s32.totalorder %s144, %s145
      %p157 = scmp.eq.s32.totalorder %s30, 1
      %p158 = por %p156, %p157
      %p160 = scmp.ne.s32.totalorder %s145, %s159
      %p161 = scmp.eq.s32.totalorder %s30, 0
      %p162 = por %p160, %p161
      %s164 = sadd.s32 %s163, 1
      %p167 = scmp.eq.s32.totalorder %s24, 1
      %p168 = scmp.ne.s32.totalorder %s163, %s165
      %p169 = scmp.eq.s32.totalorder %s24, 0
      %p170 = por %p168, %p169
      %p171 = scmp.ne.s32.totalorder %s163, %s165
      %p172 = scmp.eq.s32.totalorder %s29, 1
      %p173 = por %p171, %p172
      %p174 = scmp.ne.s32.totalorder %s165, %s166
      %p175 = scmp.eq.s32.totalorder %s29, 0
      %p176 = por %p174, %p175
      %p177 = scmp.ne.s32.totalorder %s165, %s166
      %p178 = scmp.eq.s32.totalorder %s30, 1
      %p179 = por %p177, %p178
      %p181 = scmp.ne.s32.totalorder %s166, %s180
      %p182 = scmp.eq.s32.totalorder %s30, 0
      %p183 = por %p181, %p182
      %s185 = sadd.s32 %s184, 1
      %p188 = scmp.eq.s32.totalorder %s24, 1
      %p189 = scmp.ne.s32.totalorder %s184, %s186
      %p190 = scmp.eq.s32.totalorder %s24, 0
      %p191 = por %p189, %p190
      %p192 = scmp.ne.s32.totalorder %s184, %s186
      %p193 = scmp.eq.s32.totalorder %s29, 1
      %p194 = por %p192, %p193
      %p195 = scmp.ne.s32.totalorder %s186, %s187
      %p196 = scmp.eq.s32.totalorder %s29, 0
      %p197 = por %p195, %p196
      %p198 = scmp.ne.s32.totalorder %s186, %s187
      %p199 = scmp.eq.s32.totalorder %s30, 1
      %p200 = por %p198, %p199
      %p202 = scmp.ne.s32.totalorder %s187, %s201
      %p203 = scmp.eq.s32.totalorder %s30, 0
      %p204 = por %p202, %p203
      %s206 = sadd.s32 %s205, 1
      %p209 = scmp.eq.s32.totalorder %s24, 1
      %p210 = scmp.ne.s32.totalorder %s205, %s207
      %p211 = scmp.eq.s32.totalorder %s24, 0
      %p212 = por %p210, %p211
      %p213 = scmp.ne.s32.totalorder %s205, %s207
      %p214 = scmp.eq.s32.totalorder %s29, 1
      %p215 = por %p213, %p214
      %p216 = scmp.ne.s32.totalorder %s207, %s208
      %p217 = scmp.eq.s32.totalorder %s29, 0
      %p218 = por %p216, %p217
      %p219 = scmp.ne.s32.totalorder %s207, %s208
      %p220 = scmp.eq.s32.totalorder %s30, 1
      %p221 = por %p219, %p220
      %p223 = scmp.ne.s32.totalorder %s208, %s222
      %p224 = scmp.eq.s32.totalorder %s30, 0
      %p225 = por %p223, %p224
      %s227 = sadd.s32 %s226, 1
      %p230 = scmp.eq.s32.totalorder %s24, 1
      %p231 = scmp.ne.s32.totalorder %s226, %s228
      %p232 = scmp.eq.s32.totalorder %s24, 0
      %p233 = por %p231, %p232
      %p234 = scmp.ne.s32.totalorder %s226, %s228
      %p235 = scmp.eq.s32.totalorder %s29, 1
      %p236 = por %p234, %p235
      %p237 = scmp.ne.s32.totalorder %s228, %s229
      %p238 = scmp.eq.s32.totalorder %s29, 0
      %p239 = por %p237, %p238
      %p240 = scmp.ne.s32.totalorder %s228, %s229
      %p241 = scmp.eq.s32.totalorder %s30, 1
      %p242 = por %p240, %p241
      %p244 = scmp.ne.s32.totalorder %s229, %s243
      %p245 = scmp.eq.s32.totalorder %s30, 0
      %p246 = por %p244, %p245
      %s248 = sadd.s32 %s247, 1
      %p251 = scmp.eq.s32.totalorder %s24, 1
      %p252 = scmp.ne.s32.totalorder %s247, %s249
      %p253 = scmp.eq.s32.totalorder %s24, 0
      %p254 = por %p252, %p253
      %p255 = scmp.ne.s32.totalorder %s247, %s249
      %p256 = scmp.eq.s32.totalorder %s29, 1
      %p257 = por %p255, %p256
      %p258 = scmp.ne.s32.totalorder %s249, %s250
      %p259 = scmp.eq.s32.totalorder %s29, 0
      %p260 = por %p258, %p259
      %p261 = scmp.ne.s32.totalorder %s249, %s250
      %p262 = scmp.eq.s32.totalorder %s30, 1
      %p263 = por %p261, %p262
      %p265 = scmp.ne.s32.totalorder %s250, %s264
      %p266 = scmp.eq.s32.totalorder %s30, 0
      %p267 = por %p265, %p266
      %s269 = sadd.s32 %s268, 1
      %p272 = scmp.eq.s32.totalorder %s24, 1
      %p273 = scmp.ne.s32.totalorder %s268, %s270
      %p274 = scmp.eq.s32.totalorder %s24, 0
      %p275 = por %p273, %p274
      %p276 = scmp.ne.s32.totalorder %s268, %s270
      %p277 = scmp.eq.s32.totalorder %s29, 1
      %p278 = por %p276, %p277
      %p279 = scmp.ne.s32.totalorder %s270, %s271
      %p280 = scmp.eq.s32.totalorder %s29, 0
      %p281 = por %p279, %p280
      %p282 = scmp.ne.s32.totalorder %s270, %s271
      %p283 = scmp.eq.s32.totalorder %s30, 1
      %p284 = por %p282, %p283
      %p286 = scmp.ne.s32.totalorder %s271, %s285
      %p287 = scmp.eq.s32.totalorder %s30, 0
      %p288 = por %p286, %p287
      %s290 = sadd.s32 %s289, 1
      %p293 = scmp.eq.s32.totalorder %s24, 1
      %p294 = scmp.ne.s32.totalorder %s289, %s291
      %p295 = scmp.eq.s32.totalorder %s24, 0
      %p296 = por %p294, %p295
      %p297 = scmp.ne.s32.totalorder %s289, %s291
      %p298 = scmp.eq.s32.totalorder %s29, 1
      %p299 = por %p297, %p298
      %p300 = scmp.ne.s32.totalorder %s291, %s292
      %p301 = scmp.eq.s32.totalorder %s29, 0
      %p302 = por %p300, %p301
      %p303 = scmp.ne.s32.totalorder %s291, %s292
      %p304 = scmp.eq.s32.totalorder %s30, 1
      %p305 = por %p303, %p304
      %p307 = scmp.ne.s32.totalorder %s292, %s306
      %p308 = scmp.eq.s32.totalorder %s30, 0
      %p309 = por %p307, %p308
      %s311 = sadd.s32 %s310, 1
      %p314 = scmp.eq.s32.totalorder %s24, 1
      %p315 = scmp.ne.s32.totalorder %s310, %s312
      %p316 = scmp.eq.s32.totalorder %s24, 0
      %p317 = por %p315, %p316
      %p318 = scmp.ne.s32.totalorder %s310, %s312
      %p319 = scmp.eq.s32.totalorder %s29, 1
      %p320 = por %p318, %p319
      %p321 = scmp.ne.s32.totalorder %s312, %s313
      %p322 = scmp.eq.s32.totalorder %s29, 0
      %p323 = por %p321, %p322
      %p324 = scmp.ne.s32.totalorder %s312, %s313
      %p325 = scmp.eq.s32.totalorder %s30, 1
      %p326 = por %p324, %p325
      %p328 = scmp.ne.s32.totalorder %s313, %s327
      %p329 = scmp.eq.s32.totalorder %s30, 0
      %p330 = por %p328, %p329
      %s332 = sadd.s32 %s331, 1
      %p335 = scmp.eq.s32.totalorder %s24, 1
      %p336 = scmp.ne.s32.totalorder %s331, %s333
      %p337 = scmp.eq.s32.totalorder %s24, 0
      %p338 = por %p336, %p337
      %p339 = scmp.ne.s32.totalorder %s331, %s333
      %p340 = scmp.eq.s32.totalorder %s29, 1
      %p341 = por %p339, %p340
      %p342 = scmp.ne.s32.totalorder %s333, %s334
      %p343 = scmp.eq.s32.totalorder %s29, 0
      %p344 = por %p342, %p343
      %p345 = scmp.ne.s32.totalorder %s333, %s334
      %p346 = scmp.eq.s32.totalorder %s30, 1
      %p347 = por %p345, %p346
      %p349 = scmp.ne.s32.totalorder %s334, %s348
      %p350 = scmp.eq.s32.totalorder %s30, 0
      %p351 = por %p349, %p350
      %s352 = ssub.s32 %s24, %s31
      %p353 = scmp.eq.s32.totalorder %s352, 0
      %s355 = sadd.s32 %s354, 1
      %s356 = scalar_select %p353, %s354, %s355
      %p359 = pneg %p353
      %p360 = scmp.eq.s32.totalorder %s24, 1
      %p361 = por %p359, %p360
      %p362 = scmp.ne.s32.totalorder %s354, %s357
      %p363 = scmp.eq.s32.totalorder %s24, 0
      %p364 = por %p362, %p363
      %p365 = scmp.ne.s32.totalorder %s354, %s357
      %p366 = scmp.eq.s32.totalorder %s29, 1
      %p367 = por %p365, %p366
      %p368 = scmp.ne.s32.totalorder %s357, %s358
      %p369 = scmp.eq.s32.totalorder %s29, 0
      %p370 = por %p368, %p369
      %p371 = scmp.ne.s32.totalorder %s357, %s358
      %p372 = scmp.eq.s32.totalorder %s30, 1
      %p373 = por %p371, %p372
      %p375 = scmp.ne.s32.totalorder %s358, %s374
      %p376 = scmp.eq.s32.totalorder %s30, 0
      %p377 = por %p375, %p376
      %p378 = scmp.le.s32.totalorder 1, %s24
      %p379 = scmp.lt.s32.totalorder %s24, 3
      %p380 = pnand %p378, %p379
      %p381 = pneg %p380
      // Predicated region
      $region9: #{encoder_forward.1} parent=5 // pred_check
        _
      $region10: #{encoder_forward.1} parent=5 // pred_check_branch
        %383 = sbr.rel (%p380) target = $region12
      $region11: #{encoder_forward.1} parent=5 // pred_region
        %s384 = ssub.s32 %s24, 1
        // Predicated region
        $region13: #{encoder_forward.1} parent=11 // pred_check
          %p385 = pneg %p71
        $region14: #{encoder_forward.1} parent=11 // pred_check_branch
          %387 = sbr.rel (%p385) target = $region16
        $region15: #{encoder_forward.1} parent=11 // pred_region
          _
        $region16: #{encoder_forward.1} parent=11 // pred_fallthru
          _
        // Predicated region
        $region17: #{encoder_forward.1} parent=11 // pred_check
          %p388 = pneg %p92
        $region18: #{encoder_forward.1} parent=11 // pred_check_branch
          %390 = sbr.rel (%p388) target = $region20
        $region19: #{encoder_forward.1} parent=11 // pred_region
          _
        $region20: #{encoder_forward.1} parent=11 // pred_fallthru
          _
        // Predicated region
        $region21: #{encoder_forward.1} parent=11 // pred_check
          %p391 = pneg %p113
        $region22: #{encoder_forward.1} parent=11 // pred_check_branch
          %393 = sbr.rel (%p391) target = $region24
        $region23: #{encoder_forward.1} parent=11 // pred_region
          _
        $region24: #{encoder_forward.1} parent=11 // pred_fallthru
          _
        // Predicated region
        $region25: #{encoder_forward.1} parent=11 // pred_check
          %p394 = pneg %p134
        $region26: #{encoder_forward.1} parent=11 // pred_check_branch
          %396 = sbr.rel (%p394) target = $region28
        $region27: #{encoder_forward.1} parent=11 // pred_region
          _
        $region28: #{encoder_forward.1} parent=11 // pred_fallthru
          _
        // Predicated region
        $region29: #{encoder_forward.1} parent=11 // pred_check
          %p397 = pneg %p155
        $region30: #{encoder_forward.1} parent=11 // pred_check_branch
          %399 = sbr.rel (%p397) target = $region32
        $region31: #{encoder_forward.1} parent=11 // pred_region
          _
        $region32: #{encoder_forward.1} parent=11 // pred_fallthru
          _
        // Predicated region
        $region33: #{encoder_forward.1} parent=11 // pred_check
          %p400 = pneg %p176
        $region34: #{encoder_forward.1} parent=11 // pred_check_branch
          %402 = sbr.rel (%p400) target = $region36
        $region35: #{encoder_forward.1} parent=11 // pred_region
          _
        $region36: #{encoder_forward.1} parent=11 // pred_fallthru
          _
        // Predicated region
        $region37: #{encoder_forward.1} parent=11 // pred_check
          %p403 = pneg %p197
        $region38: #{encoder_forward.1} parent=11 // pred_check_branch
          %405 = sbr.rel (%p403) target = $region40
        $region39: #{encoder_forward.1} parent=11 // pred_region
          _
        $region40: #{encoder_forward.1} parent=11 // pred_fallthru
          _
        // Predicated region
        $region41: #{encoder_forward.1} parent=11 // pred_check
          %p406 = pneg %p218
        $region42: #{encoder_forward.1} parent=11 // pred_check_branch
          %408 = sbr.rel (%p406) target = $region44
        $region43: #{encoder_forward.1} parent=11 // pred_region
          _
        $region44: #{encoder_forward.1} parent=11 // pred_fallthru
          _
        // Predicated region
        $region45: #{encoder_forward.1} parent=11 // pred_check
          %p409 = pneg %p239
        $region46: #{encoder_forward.1} parent=11 // pred_check_branch
          %411 = sbr.rel (%p409) target = $region48
        $region47: #{encoder_forward.1} parent=11 // pred_region
          _
        $region48: #{encoder_forward.1} parent=11 // pred_fallthru
          _
        // Predicated region
        $region49: #{encoder_forward.1} parent=11 // pred_check
          %p412 = pneg %p260
        $region50: #{encoder_forward.1} parent=11 // pred_check_branch
          %414 = sbr.rel (%p412) target = $region52
        $region51: #{encoder_forward.1} parent=11 // pred_region
          _
        $region52: #{encoder_forward.1} parent=11 // pred_fallthru
          _
        // Predicated region
        $region53: #{encoder_forward.1} parent=11 // pred_check
          %p415 = pneg %p281
        $region54: #{encoder_forward.1} parent=11 // pred_check_branch
          %417 = sbr.rel (%p415) target = $region56
        $region55: #{encoder_forward.1} parent=11 // pred_region
          _
        $region56: #{encoder_forward.1} parent=11 // pred_fallthru
          _
        // Predicated region
        $region57: #{encoder_forward.1} parent=11 // pred_check
          %p418 = pneg %p302
        $region58: #{encoder_forward.1} parent=11 // pred_check_branch
          %420 = sbr.rel (%p418) target = $region60
        $region59: #{encoder_forward.1} parent=11 // pred_region
          _
        $region60: #{encoder_forward.1} parent=11 // pred_fallthru
          _
        // Predicated region
        $region61: #{encoder_forward.1} parent=11 // pred_check
          %p421 = pneg %p323
        $region62: #{encoder_forward.1} parent=11 // pred_check_branch
          %423 = sbr.rel (%p421) target = $region64
        $region63: #{encoder_forward.1} parent=11 // pred_region
          _
        $region64: #{encoder_forward.1} parent=11 // pred_fallthru
          _
        // Predicated region
        $region65: #{encoder_forward.1} parent=11 // pred_check
          %p424 = pneg %p344
        $region66: #{encoder_forward.1} parent=11 // pred_check_branch
          %426 = sbr.rel (%p424) target = $region68
        $region67: #{encoder_forward.1} parent=11 // pred_region
          _
        $region68: #{encoder_forward.1} parent=11 // pred_fallthru
          _
      $region12: #{encoder_forward.1} parent=5 // pred_fallthru
        _
      %p427 = scmp.lt.s32.totalorder %s24, 2
      // Predicated region
      $region69: #{encoder_forward.1} parent=5 // pred_check
        %p428 = pneg %p427
      $region70: #{encoder_forward.1} parent=5 // pred_check_branch
        %430 = sbr.rel (%p428) target = $region72
      $region71: #{encoder_forward.1} parent=5 // pred_region
        // Predicated region
        $region73: #{encoder_forward.1} parent=71 // pred_check
          %p431 = pneg %p44
        $region74: #{encoder_forward.1} parent=71 // pred_check_branch
          %433 = sbr.rel (%p431) target = $region76
        $region75: #{encoder_forward.1} parent=71 // pred_region
          %p434 = scmp.lt.s32.totalorder %s24, 1
          %s435 = scalar_select %p434, %s24, 1
          %s436 = smul.addr %s435, 257
          %s437 = smul.addr %s436, 8
          %s438 = scalar_lea.vmem %s0, %s437
        $region76: #{encoder_forward.1} parent=71 // pred_fallthru
          _
      $region72: #{encoder_forward.1} parent=5 // pred_fallthru
        _
      %p439 = scmp.le.s32.totalorder 1, %s24
      %p440 = scmp.lt.s32.totalorder %s24, 3
      %p441 = pnand %p439, %p440
      %p442 = pneg %p441
      // Predicated region
      $region77: #{encoder_forward.1} parent=5 // pred_check
        _
      $region78: #{encoder_forward.1} parent=5 // pred_check_branch
        %444 = sbr.rel (%p441) target = $region80
      $region79: #{encoder_forward.1} parent=5 // pred_region
        %s445 = ssub.s32 %s24, 1
        %p446 = scmp.lt.s32.totalorder %s29, 1
        %s447 = scalar_select %p446, %s29, 1
        %s448 = smul.addr %s447, 257
        %s449 = smul.addr %s448, 8
        %s450 = scalar_lea.vmem %s0, %s449
        %p451 = pneg %p50
        %p452 = pneg %p47
        %p453 = pneg %p71
        %p454 = pneg %p68
        %p455 = pneg %p92
        %p456 = pneg %p89
        %p457 = pneg %p113
        %p458 = pneg %p110
        %p459 = pneg %p134
        %p460 = pneg %p131
        %p461 = pneg %p155
        %p462 = pneg %p152
        %p463 = pneg %p176
        %p464 = pneg %p173
        %p465 = pneg %p197
        %p466 = pneg %p194
        %p467 = pneg %p218
        %p468 = pneg %p215
        %p469 = pneg %p239
        %p470 = pneg %p236
        %p471 = pneg %p260
        %p472 = pneg %p257
        %p473 = pneg %p281
        %p474 = pneg %p278
        %p475 = pneg %p302
        %p476 = pneg %p299
        %p477 = pneg %p323
        %p478 = pneg %p320
        %p479 = pneg %p344
        %p480 = pneg %p341
        %p481 = pneg %p370
        %p482 = pneg %p367
        %s483 = sand.u32 %s357, 1
        %s484 = scalar_lea.sflag [#allocation5], %s483
        %s485 = sand.u32 %s357, 1
        %s486 = scalar_lea.vmem [#allocation4], %s485
        %p487 = scmp.lt.s32.totalorder %s29, 1
        %s488 = scalar_select %p487, %s29, 1
        %s489 = smul.addr %s488, 257
        %s490 = smul.addr %s489, 8
        %s491 = scalar_lea.vmem %s0, %s490
        %v492 = vld [vmem:[%s491] ss:$4 sm:$0xff]
        %s493 = scalar_lea.vmem %s491, 32
        %v494 = vld [vmem:[%s493] ss:$4 sm:$0xff]
        %s495 = scalar_lea.vmem %s491, 64
        %v496 = vld [vmem:[%s495] ss:$4 sm:$0xff]
        %s497 = scalar_lea.vmem %s491, 96
        %v498 = vld [vmem:[%s497] ss:$4 sm:$0xff]
        %s499 = scalar_lea.vmem %s491, 128
        %v500 = vld [vmem:[%s499] ss:$4 sm:$0xff]
        %s501 = scalar_lea.vmem %s491, 160
        %v502 = vld [vmem:[%s501] ss:$4 sm:$0xff]
        %s503 = scalar_lea.vmem %s491, 192
        %v504 = vld [vmem:[%s503] ss:$4 sm:$0xff]
        %s505 = scalar_lea.vmem %s491, 224
        %v506 = vld [vmem:[%s505] ss:$4 sm:$0xff]
        %s507 = scalar_lea.vmem %s491, 256
        %v508 = vld [vmem:[%s507] ss:$4 sm:$0xff]
        %s509 = scalar_lea.vmem %s491, 288
        %v510 = vld [vmem:[%s509] ss:$4 sm:$0xff]
        %s511 = scalar_lea.vmem %s491, 320
        %v512 = vld [vmem:[%s511] ss:$4 sm:$0xff]
        %s513 = scalar_lea.vmem %s491, 352
        %v514 = vld [vmem:[%s513] ss:$4 sm:$0xff]
        %s515 = scalar_lea.vmem %s491, 384
        %v516 = vld [vmem:[%s515] ss:$4 sm:$0xff]
        %s517 = scalar_lea.vmem %s491, 416
        %v518 = vld [vmem:[%s517] ss:$4 sm:$0xff]
        %s519 = scalar_lea.vmem %s491, 448
        %v520 = vld [vmem:[%s519] ss:$4 sm:$0xff]
        %s521 = scalar_lea.vmem %s491, 480
        %v522 = vld [vmem:[%s521] ss:$4 sm:$0xff]
        %s523 = scalar_lea.vmem %s491, 512
        %v524 = vld [vmem:[%s523] ss:$4 sm:$0xff]
        %s525 = scalar_lea.vmem %s491, 544
        %v526 = vld [vmem:[%s525] ss:$4 sm:$0xff]
        %s527 = scalar_lea.vmem %s491, 576
        %v528 = vld [vmem:[%s527] ss:$4 sm:$0xff]
        %s529 = scalar_lea.vmem %s491, 608
        %v530 = vld [vmem:[%s529] ss:$4 sm:$0xff]
        %s531 = scalar_lea.vmem %s491, 640
        %v532 = vld [vmem:[%s531] ss:$4 sm:$0xff]
        %s533 = scalar_lea.vmem %s491, 672
        %v534 = vld [vmem:[%s533] ss:$4 sm:$0xff]
        %s535 = scalar_lea.vmem %s491, 704
        %v536 = vld [vmem:[%s535] ss:$4 sm:$0xff]
        %s537 = scalar_lea.vmem %s491, 736
        %v538 = vld [vmem:[%s537] ss:$4 sm:$0xff]
        %s539 = scalar_lea.vmem %s491, 768
        %v540 = vld [vmem:[%s539] ss:$4 sm:$0xff]
        %s541 = scalar_lea.vmem %s491, 800
        %v542 = vld [vmem:[%s541] ss:$4 sm:$0xff]
        %s543 = scalar_lea.vmem %s491, 832
        %v544 = vld [vmem:[%s543] ss:$4 sm:$0xff]
        %s545 = scalar_lea.vmem %s491, 864
        %v546 = vld [vmem:[%s545] ss:$4 sm:$0xff]
        %s547 = scalar_lea.vmem %s491, 896
        %v548 = vld [vmem:[%s547] ss:$4 sm:$0xff]
        %s549 = scalar_lea.vmem %s491, 928
        %v550 = vld [vmem:[%s549] ss:$4 sm:$0xff]
        %s551 = scalar_lea.vmem %s491, 960
        %v552 = vld [vmem:[%s551] ss:$4 sm:$0xff]
        %s553 = scalar_lea.vmem %s491, 992
        %v554 = vld [vmem:[%s553] ss:$4 sm:$0xff]
        %s555 = scalar_lea.vmem %s491, 1024
        %v556 = vld [vmem:[%s555] ss:$4 sm:$0xff]
        %s557 = scalar_lea.vmem %s491, 1056
        %v558 = vld [vmem:[%s557] ss:$4 sm:$0xff]
        %s559 = scalar_lea.vmem %s491, 1088
        %v560 = vld [vmem:[%s559] ss:$4 sm:$0xff]
        %s561 = scalar_lea.vmem %s491, 1120
        %v562 = vld [vmem:[%s561] ss:$4 sm:$0xff]
        %s563 = scalar_lea.vmem %s491, 1152
        %v564 = vld [vmem:[%s563] ss:$4 sm:$0xff]
        %s565 = scalar_lea.vmem %s491, 1184
        %v566 = vld [vmem:[%s565] ss:$4 sm:$0xff]
        %s567 = scalar_lea.vmem %s491, 1216
        %v568 = vld [vmem:[%s567] ss:$4 sm:$0xff]
        %s569 = scalar_lea.vmem %s491, 1248
        %v570 = vld [vmem:[%s569] ss:$4 sm:$0xff]
        %s571 = scalar_lea.vmem %s491, 1280
        %v572 = vld [vmem:[%s571] ss:$4 sm:$0xff]
        %s573 = scalar_lea.vmem %s491, 1312
        %v574 = vld [vmem:[%s573] ss:$4 sm:$0xff]
        %s575 = scalar_lea.vmem %s491, 1344
        %v576 = vld [vmem:[%s575] ss:$4 sm:$0xff]
        %s577 = scalar_lea.vmem %s491, 1376
        %v578 = vld [vmem:[%s577] ss:$4 sm:$0xff]
        %s579 = scalar_lea.vmem %s491, 1408
        %v580 = vld [vmem:[%s579] ss:$4 sm:$0xff]
        %s581 = scalar_lea.vmem %s491, 1440
        %v582 = vld [vmem:[%s581] ss:$4 sm:$0xff]
        %s583 = scalar_lea.vmem %s491, 1472
        %v584 = vld [vmem:[%s583] ss:$4 sm:$0xff]
        %s585 = scalar_lea.vmem %s491, 1504
        %v586 = vld [vmem:[%s585] ss:$4 sm:$0xff]
        %s587 = scalar_lea.vmem %s491, 1536
        %v588 = vld [vmem:[%s587] ss:$4 sm:$0xff]
        %s589 = scalar_lea.vmem %s491, 1568
        %v590 = vld [vmem:[%s589] ss:$4 sm:$0xff]
        %s591 = scalar_lea.vmem %s491, 1600
        %v592 = vld [vmem:[%s591] ss:$4 sm:$0xff]
        %s593 = scalar_lea.vmem %s491, 1632
        %v594 = vld [vmem:[%s593] ss:$4 sm:$0xff]
        %s595 = scalar_lea.vmem %s491, 1664
        %v596 = vld [vmem:[%s595] ss:$4 sm:$0xff]
        %s597 = scalar_lea.vmem %s491, 1696
        %v598 = vld [vmem:[%s597] ss:$4 sm:$0xff]
        %s599 = scalar_lea.vmem %s491, 1728
        %v600 = vld [vmem:[%s599] ss:$4 sm:$0xff]
        %s601 = scalar_lea.vmem %s491, 1760
        %v602 = vld [vmem:[%s601] ss:$4 sm:$0xff]
        %s603 = scalar_lea.vmem %s491, 1792
        %v604 = vld [vmem:[%s603] ss:$4 sm:$0xff]
        %s605 = scalar_lea.vmem %s491, 1824
        %v606 = vld [vmem:[%s605] ss:$4 sm:$0xff]
        %s607 = scalar_lea.vmem %s491, 1856
        %v608 = vld [vmem:[%s607] ss:$4 sm:$0xff]
        %s609 = scalar_lea.vmem %s491, 1888
        %v610 = vld [vmem:[%s609] ss:$4 sm:$0xff]
        %s611 = scalar_lea.vmem %s491, 1920
        %v612 = vld [vmem:[%s611] ss:$4 sm:$0xff]
        %s613 = scalar_lea.vmem %s491, 1952
        %v614 = vld [vmem:[%s613] ss:$4 sm:$0xff]
        %s615 = scalar_lea.vmem %s491, 1984
        %v616 = vld [vmem:[%s615] ss:$4 sm:$0xff]
        %s617 = scalar_lea.vmem %s491, 2016
        %v618 = vld [vmem:[%s617] ss:$4 sm:$0xff]
        %v619 = vld [vmem:[%s1] sm:$0x1]
        %621 = vset.pattern.permute.xlu0 0
        %622 = vperm.xlu0 %621, %v492
        %v623 = vpop.permute.xlu0 %622
        %626 = vset.pattern.permute.xlu0 0
        %627 = vperm.xlu0 %626, %v494
        %v628 = vpop.permute.xlu0 %627
        %631 = vset.pattern.permute.xlu0 0
        %632 = vperm.xlu0 %631, %v496
        %v633 = vpop.permute.xlu0 %632
        %636 = vset.pattern.permute.xlu0 0
        %637 = vperm.xlu0 %636, %v498
        %v638 = vpop.permute.xlu0 %637
        %641 = vset.pattern.permute.xlu0 0
        %642 = vperm.xlu0 %641, %v500
        %v643 = vpop.permute.xlu0 %642
        %646 = vset.pattern.permute.xlu0 0
        %647 = vperm.xlu0 %646, %v502
        %v648 = vpop.permute.xlu0 %647
        %651 = vset.pattern.permute.xlu0 0
        %652 = vperm.xlu0 %651, %v504
        %v653 = vpop.permute.xlu0 %652
        %656 = vset.pattern.permute.xlu0 0
        %657 = vperm.xlu0 %656, %v506
        %v658 = vpop.permute.xlu0 %657
        %661 = vset.pattern.permute.xlu0 0
        %662 = vperm.xlu0 %661, %v508
        %v663 = vpop.permute.xlu0 %662
        %666 = vset.pattern.permute.xlu0 0
        %667 = vperm.xlu0 %666, %v510
        %v668 = vpop.permute.xlu0 %667
        %671 = vset.pattern.permute.xlu0 0
        %672 = vperm.xlu0 %671, %v512
        %v673 = vpop.permute.xlu0 %672
        %676 = vset.pattern.permute.xlu0 0
        %677 = vperm.xlu0 %676, %v514
        %v678 = vpop.permute.xlu0 %677
        %681 = vset.pattern.permute.xlu0 0
        %682 = vperm.xlu0 %681, %v516
        %v683 = vpop.permute.xlu0 %682
        %686 = vset.pattern.permute.xlu0 0
        %687 = vperm.xlu0 %686, %v518
        %v688 = vpop.permute.xlu0 %687
        %691 = vset.pattern.permute.xlu0 0
        %692 = vperm.xlu0 %691, %v520
        %v693 = vpop.permute.xlu0 %692
        %696 = vset.pattern.permute.xlu0 0
        %697 = vperm.xlu0 %696, %v522
        %v698 = vpop.permute.xlu0 %697
        %701 = vset.pattern.permute.xlu0 0
        %702 = vperm.xlu0 %701, %v524
        %v703 = vpop.permute.xlu0 %702
        %706 = vset.pattern.permute.xlu0 0
        %707 = vperm.xlu0 %706, %v526
        %v708 = vpop.permute.xlu0 %707
        %711 = vset.pattern.permute.xlu0 0
        %712 = vperm.xlu0 %711, %v528
        %v713 = vpop.permute.xlu0 %712
        %716 = vset.pattern.permute.xlu0 0
        %717 = vperm.xlu0 %716, %v530
        %v718 = vpop.permute.xlu0 %717
        %721 = vset.pattern.permute.xlu0 0
        %722 = vperm.xlu0 %721, %v532
        %v723 = vpop.permute.xlu0 %722
        %726 = vset.pattern.permute.xlu0 0
        %727 = vperm.xlu0 %726, %v534
        %v728 = vpop.permute.xlu0 %727
        %731 = vset.pattern.permute.xlu0 0
        %732 = vperm.xlu0 %731, %v536
        %v733 = vpop.permute.xlu0 %732
        %736 = vset.pattern.permute.xlu0 0
        %737 = vperm.xlu0 %736, %v538
        %v738 = vpop.permute.xlu0 %737
        %741 = vset.pattern.permute.xlu0 0
        %742 = vperm.xlu0 %741, %v540
        %v743 = vpop.permute.xlu0 %742
        %746 = vset.pattern.permute.xlu0 0
        %747 = vperm.xlu0 %746, %v542
        %v748 = vpop.permute.xlu0 %747
        %751 = vset.pattern.permute.xlu0 0
        %752 = vperm.xlu0 %751, %v544
        %v753 = vpop.permute.xlu0 %752
        %756 = vset.pattern.permute.xlu0 0
        %757 = vperm.xlu0 %756, %v546
        %v758 = vpop.permute.xlu0 %757
        %761 = vset.pattern.permute.xlu0 0
        %762 = vperm.xlu0 %761, %v548
        %v763 = vpop.permute.xlu0 %762
        %766 = vset.pattern.permute.xlu0 0
        %767 = vperm.xlu0 %766, %v550
        %v768 = vpop.permute.xlu0 %767
        %771 = vset.pattern.permute.xlu0 0
        %772 = vperm.xlu0 %771, %v552
        %v773 = vpop.permute.xlu0 %772
        %776 = vset.pattern.permute.xlu0 0
        %777 = vperm.xlu0 %776, %v554
        %v778 = vpop.permute.xlu0 %777
        %781 = vset.pattern.permute.xlu0 0
        %782 = vperm.xlu0 %781, %v556
        %v783 = vpop.permute.xlu0 %782
        %786 = vset.pattern.permute.xlu0 0
        %787 = vperm.xlu0 %786, %v558
        %v788 = vpop.permute.xlu0 %787
        %791 = vset.pattern.permute.xlu0 0
        %792 = vperm.xlu0 %791, %v560
        %v793 = vpop.permute.xlu0 %792
        %796 = vset.pattern.permute.xlu0 0
        %797 = vperm.xlu0 %796, %v562
        %v798 = vpop.permute.xlu0 %797
        %801 = vset.pattern.permute.xlu0 0
        %802 = vperm.xlu0 %801, %v564
        %v803 = vpop.permute.xlu0 %802
        %806 = vset.pattern.permute.xlu0 0
        %807 = vperm.xlu0 %806, %v566
        %v808 = vpop.permute.xlu0 %807
        %811 = vset.pattern.permute.xlu0 0
        %812 = vperm.xlu0 %811, %v568
        %v813 = vpop.permute.xlu0 %812
        %816 = vset.pattern.permute.xlu0 0
        %817 = vperm.xlu0 %816, %v570
        %v818 = vpop.permute.xlu0 %817
        %821 = vset.pattern.permute.xlu0 0
        %822 = vperm.xlu0 %821, %v572
        %v823 = vpop.permute.xlu0 %822
        %826 = vset.pattern.permute.xlu0 0
        %827 = vperm.xlu0 %826, %v574
        %v828 = vpop.permute.xlu0 %827
        %831 = vset.pattern.permute.xlu0 0
        %832 = vperm.xlu0 %831, %v576
        %v833 = vpop.permute.xlu0 %832
        %836 = vset.pattern.permute.xlu0 0
        %837 = vperm.xlu0 %836, %v578
        %v838 = vpop.permute.xlu0 %837
        %841 = vset.pattern.permute.xlu0 0
        %842 = vperm.xlu0 %841, %v580
        %v843 = vpop.permute.xlu0 %842
        %846 = vset.pattern.permute.xlu0 0
        %847 = vperm.xlu0 %846, %v582
        %v848 = vpop.permute.xlu0 %847
        %851 = vset.pattern.permute.xlu0 0
        %852 = vperm.xlu0 %851, %v584
        %v853 = vpop.permute.xlu0 %852
        %856 = vset.pattern.permute.xlu0 0
        %857 = vperm.xlu0 %856, %v586
        %v858 = vpop.permute.xlu0 %857
        %861 = vset.pattern.permute.xlu0 0
        %862 = vperm.xlu0 %861, %v588
        %v863 = vpop.permute.xlu0 %862
        %866 = vset.pattern.permute.xlu0 0
        %867 = vperm.xlu0 %866, %v590
        %v868 = vpop.permute.xlu0 %867
        %871 = vset.pattern.permute.xlu0 0
        %872 = vperm.xlu0 %871, %v592
        %v873 = vpop.permute.xlu0 %872
        %876 = vset.pattern.permute.xlu0 0
        %877 = vperm.xlu0 %876, %v594
        %v878 = vpop.permute.xlu0 %877
        %881 = vset.pattern.permute.xlu0 0
        %882 = vperm.xlu0 %881, %v596
        %v883 = vpop.permute.xlu0 %882
        %886 = vset.pattern.permute.xlu0 0
        %887 = vperm.xlu0 %886, %v598
        %v888 = vpop.permute.xlu0 %887
        %891 = vset.pattern.permute.xlu0 0
        %892 = vperm.xlu0 %891, %v600
        %v893 = vpop.permute.xlu0 %892
        %896 = vset.pattern.permute.xlu0 0
        %897 = vperm.xlu0 %896, %v602
        %v898 = vpop.permute.xlu0 %897
        %901 = vset.pattern.permute.xlu0 0
        %902 = vperm.xlu0 %901, %v604
        %v903 = vpop.permute.xlu0 %902
        %906 = vset.pattern.permute.xlu0 0
        %907 = vperm.xlu0 %906, %v606
        %v908 = vpop.permute.xlu0 %907
        %911 = vset.pattern.permute.xlu0 0
        %912 = vperm.xlu0 %911, %v608
        %v913 = vpop.permute.xlu0 %912
        %916 = vset.pattern.permute.xlu0 0
        %917 = vperm.xlu0 %916, %v610
        %v918 = vpop.permute.xlu0 %917
        %921 = vset.pattern.permute.xlu0 0
        %922 = vperm.xlu0 %921, %v612
        %v923 = vpop.permute.xlu0 %922
        %926 = vset.pattern.permute.xlu0 0
        %927 = vperm.xlu0 %926, %v614
        %v928 = vpop.permute.xlu0 %927
        %931 = vset.pattern.permute.xlu0 0
        %932 = vperm.xlu0 %931, %v616
        %v933 = vpop.permute.xlu0 %932
        %936 = vset.pattern.permute.xlu0 0
        %937 = vperm.xlu0 %936, %v618
        %v938 = vpop.permute.xlu0 %937
        %v940 = vlaneseq
        %v941 = vshrl.u32 %v940, 7
        %v942 = vsub.s32 0, %v941
        %v943 = vrot.slane %v619, %v942
        %v944 = vmul.f32 %v623, %v943
        %v945 = vmul.f32 %v628, %v943
        %v946 = vmul.f32 %v633, %v943
        %v947 = vmul.f32 %v638, %v943
        %v948 = vmul.f32 %v643, %v943
        %v949 = vmul.f32 %v648, %v943
        %v950 = vmul.f32 %v653, %v943
        %v951 = vmul.f32 %v658, %v943
        %v952 = vmul.f32 %v663, %v943
        %v953 = vmul.f32 %v668, %v943
        %v954 = vmul.f32 %v673, %v943
        %v955 = vmul.f32 %v678, %v943
        %v956 = vmul.f32 %v683, %v943
        %v957 = vmul.f32 %v688, %v943
        %v958 = vmul.f32 %v693, %v943
        %v959 = vmul.f32 %v698, %v943
        %v960 = vmul.f32 %v703, %v943
        %v961 = vmul.f32 %v708, %v943
        %v962 = vmul.f32 %v713, %v943
        %v963 = vmul.f32 %v718, %v943
        %v964 = vmul.f32 %v723, %v943
        %v965 = vmul.f32 %v728, %v943
        %v966 = vmul.f32 %v733, %v943
        %v967 = vmul.f32 %v738, %v943
        %v968 = vmul.f32 %v743, %v943
        %v969 = vmul.f32 %v748, %v943
        %v970 = vmul.f32 %v753, %v943
        %v971 = vmul.f32 %v758, %v943
        %v972 = vmul.f32 %v763, %v943
        %v973 = vmul.f32 %v768, %v943
        %v974 = vmul.f32 %v773, %v943
        %v975 = vmul.f32 %v778, %v943
        %v976 = vmul.f32 %v783, %v943
        %v977 = vmul.f32 %v788, %v943
        %v978 = vmul.f32 %v793, %v943
        %v979 = vmul.f32 %v798, %v943
        %v980 = vmul.f32 %v803, %v943
        %v981 = vmul.f32 %v808, %v943
        %v982 = vmul.f32 %v813, %v943
        %v983 = vmul.f32 %v818, %v943
        %v984 = vmul.f32 %v823, %v943
        %v985 = vmul.f32 %v828, %v943
        %v986 = vmul.f32 %v833, %v943
        %v987 = vmul.f32 %v838, %v943
        %v988 = vmul.f32 %v843, %v943
        %v989 = vmul.f32 %v848, %v943
        %v990 = vmul.f32 %v853, %v943
        %v991 = vmul.f32 %v858, %v943
        %v992 = vmul.f32 %v863, %v943
        %v993 = vmul.f32 %v868, %v943
        %v994 = vmul.f32 %v873, %v943
        %v995 = vmul.f32 %v878, %v943
        %v996 = vmul.f32 %v883, %v943
        %v997 = vmul.f32 %v888, %v943
        %v998 = vmul.f32 %v893, %v943
        %v999 = vmul.f32 %v898, %v943
        %v1000 = vmul.f32 %v903, %v943
        %v1001 = vmul.f32 %v908, %v943
        %v1002 = vmul.f32 %v913, %v943
        %v1003 = vmul.f32 %v918, %v943
        %v1004 = vmul.f32 %v923, %v943
        %v1005 = vmul.f32 %v928, %v943
        %v1006 = vmul.f32 %v933, %v943
        %v1007 = vmul.f32 %v938, %v943
        %s1008 = scalar_lea.vmem %s491, 1
        %v1009 = vld [vmem:[%s1008] ss:$4 sm:$0xff]
        %s1010 = scalar_lea.vmem %s491, 33
        %v1011 = vld [vmem:[%s1010] ss:$4 sm:$0xff]
        %s1012 = scalar_lea.vmem %s491, 65
        %v1013 = vld [vmem:[%s1012] ss:$4 sm:$0xff]
        %s1014 = scalar_lea.vmem %s491, 97
        %v1015 = vld [vmem:[%s1014] ss:$4 sm:$0xff]
        %s1016 = scalar_lea.vmem %s491, 129
        %v1017 = vld [vmem:[%s1016] ss:$4 sm:$0xff]
        %s1018 = scalar_lea.vmem %s491, 161
        %v1019 = vld [vmem:[%s1018] ss:$4 sm:$0xff]
        %s1020 = scalar_lea.vmem %s491, 193
        %v1021 = vld [vmem:[%s1020] ss:$4 sm:$0xff]
        %s1022 = scalar_lea.vmem %s491, 225
        %v1023 = vld [vmem:[%s1022] ss:$4 sm:$0xff]
        %s1024 = scalar_lea.vmem %s491, 257
        %v1025 = vld [vmem:[%s1024] ss:$4 sm:$0xff]
        %s1026 = scalar_lea.vmem %s491, 289
        %v1027 = vld [vmem:[%s1026] ss:$4 sm:$0xff]
        %s1028 = scalar_lea.vmem %s491, 321
        %v1029 = vld [vmem:[%s1028] ss:$4 sm:$0xff]
        %s1030 = scalar_lea.vmem %s491, 353
        %v1031 = vld [vmem:[%s1030] ss:$4 sm:$0xff]
        %s1032 = scalar_lea.vmem %s491, 385
        %v1033 = vld [vmem:[%s1032] ss:$4 sm:$0xff]
        %s1034 = scalar_lea.vmem %s491, 417
        %v1035 = vld [vmem:[%s1034] ss:$4 sm:$0xff]
        %s1036 = scalar_lea.vmem %s491, 449
        %v1037 = vld [vmem:[%s1036] ss:$4 sm:$0xff]
        %s1038 = scalar_lea.vmem %s491, 481
        %v1039 = vld [vmem:[%s1038] ss:$4 sm:$0xff]
        %s1040 = scalar_lea.vmem %s491, 513
        %v1041 = vld [vmem:[%s1040] ss:$4 sm:$0xff]
        %s1042 = scalar_lea.vmem %s491, 545
        %v1043 = vld [vmem:[%s1042] ss:$4 sm:$0xff]
        %s1044 = scalar_lea.vmem %s491, 577
        %v1045 = vld [vmem:[%s1044] ss:$4 sm:$0xff]
        %s1046 = scalar_lea.vmem %s491, 609
        %v1047 = vld [vmem:[%s1046] ss:$4 sm:$0xff]
        %s1048 = scalar_lea.vmem %s491, 641
        %v1049 = vld [vmem:[%s1048] ss:$4 sm:$0xff]
        %s1050 = scalar_lea.vmem %s491, 673
        %v1051 = vld [vmem:[%s1050] ss:$4 sm:$0xff]
        %s1052 = scalar_lea.vmem %s491, 705
        %v1053 = vld [vmem:[%s1052] ss:$4 sm:$0xff]
        %s1054 = scalar_lea.vmem %s491, 737
        %v1055 = vld [vmem:[%s1054] ss:$4 sm:$0xff]
        %s1056 = scalar_lea.vmem %s491, 769
        %v1057 = vld [vmem:[%s1056] ss:$4 sm:$0xff]
        %s1058 = scalar_lea.vmem %s491, 801
        %v1059 = vld [vmem:[%s1058] ss:$4 sm:$0xff]
        %s1060 = scalar_lea.vmem %s491, 833
        %v1061 = vld [vmem:[%s1060] ss:$4 sm:$0xff]
        %s1062 = scalar_lea.vmem %s491, 865
        %v1063 = vld [vmem:[%s1062] ss:$4 sm:$0xff]
        %s1064 = scalar_lea.vmem %s491, 897
        %v1065 = vld [vmem:[%s1064] ss:$4 sm:$0xff]
        %s1066 = scalar_lea.vmem %s491, 929
        %v1067 = vld [vmem:[%s1066] ss:$4 sm:$0xff]
        %s1068 = scalar_lea.vmem %s491, 961
        %v1069 = vld [vmem:[%s1068] ss:$4 sm:$0xff]
        %s1070 = scalar_lea.vmem %s491, 993
        %v1071 = vld [vmem:[%s1070] ss:$4 sm:$0xff]
        %s1072 = scalar_lea.vmem %s491, 1025
        %v1073 = vld [vmem:[%s1072] ss:$4 sm:$0xff]
        %s1074 = scalar_lea.vmem %s491, 1057
        %v1075 = vld [vmem:[%s1074] ss:$4 sm:$0xff]
        %s1076 = scalar_lea.vmem %s491, 1089
        %v1077 = vld [vmem:[%s1076] ss:$4 sm:$0xff]
        %s1078 = scalar_lea.vmem %s491, 1121
        %v1079 = vld [vmem:[%s1078] ss:$4 sm:$0xff]
        %s1080 = scalar_lea.vmem %s491, 1153
        %v1081 = vld [vmem:[%s1080] ss:$4 sm:$0xff]
        %s1082 = scalar_lea.vmem %s491, 1185
        %v1083 = vld [vmem:[%s1082] ss:$4 sm:$0xff]
        %s1084 = scalar_lea.vmem %s491, 1217
        %v1085 = vld [vmem:[%s1084] ss:$4 sm:$0xff]
        %s1086 = scalar_lea.vmem %s491, 1249
        %v1087 = vld [vmem:[%s1086] ss:$4 sm:$0xff]
        %s1088 = scalar_lea.vmem %s491, 1281
        %v1089 = vld [vmem:[%s1088] ss:$4 sm:$0xff]
        %s1090 = scalar_lea.vmem %s491, 1313
        %v1091 = vld [vmem:[%s1090] ss:$4 sm:$0xff]
        %s1092 = scalar_lea.vmem %s491, 1345
        %v1093 = vld [vmem:[%s1092] ss:$4 sm:$0xff]
        %s1094 = scalar_lea.vmem %s491, 1377
        %v1095 = vld [vmem:[%s1094] ss:$4 sm:$0xff]
        %s1096 = scalar_lea.vmem %s491, 1409
        %v1097 = vld [vmem:[%s1096] ss:$4 sm:$0xff]
        %s1098 = scalar_lea.vmem %s491, 1441
        %v1099 = vld [vmem:[%s1098] ss:$4 sm:$0xff]
        %s1100 = scalar_lea.vmem %s491, 1473
        %v1101 = vld [vmem:[%s1100] ss:$4 sm:$0xff]
        %s1102 = scalar_lea.vmem %s491, 1505
        %v1103 = vld [vmem:[%s1102] ss:$4 sm:$0xff]
        %s1104 = scalar_lea.vmem %s491, 1537
        %v1105 = vld [vmem:[%s1104] ss:$4 sm:$0xff]
        %s1106 = scalar_lea.vmem %s491, 1569
        %v1107 = vld [vmem:[%s1106] ss:$4 sm:$0xff]
        %s1108 = scalar_lea.vmem %s491, 1601
        %v1109 = vld [vmem:[%s1108] ss:$4 sm:$0xff]
        %s1110 = scalar_lea.vmem %s491, 1633
        %v1111 = vld [vmem:[%s1110] ss:$4 sm:$0xff]
        %s1112 = scalar_lea.vmem %s491, 1665
        %v1113 = vld [vmem:[%s1112] ss:$4 sm:$0xff]
        %s1114 = scalar_lea.vmem %s491, 1697
        %v1115 = vld [vmem:[%s1114] ss:$4 sm:$0xff]
        %s1116 = scalar_lea.vmem %s491, 1729
        %v1117 = vld [vmem:[%s1116] ss:$4 sm:$0xff]
        %s1118 = scalar_lea.vmem %s491, 1761
        %v1119 = vld [vmem:[%s1118] ss:$4 sm:$0xff]
        %s1120 = scalar_lea.vmem %s491, 1793
        %v1121 = vld [vmem:[%s1120] ss:$4 sm:$0xff]
        %s1122 = scalar_lea.vmem %s491, 1825
        %v1123 = vld [vmem:[%s1122] ss:$4 sm:$0xff]
        %s1124 = scalar_lea.vmem %s491, 1857
        %v1125 = vld [vmem:[%s1124] ss:$4 sm:$0xff]
        %s1126 = scalar_lea.vmem %s491, 1889
        %v1127 = vld [vmem:[%s1126] ss:$4 sm:$0xff]
        %s1128 = scalar_lea.vmem %s491, 1921
        %v1129 = vld [vmem:[%s1128] ss:$4 sm:$0xff]
        %s1130 = scalar_lea.vmem %s491, 1953
        %v1131 = vld [vmem:[%s1130] ss:$4 sm:$0xff]
        %s1132 = scalar_lea.vmem %s491, 1985
        %v1133 = vld [vmem:[%s1132] ss:$4 sm:$0xff]
        %s1134 = scalar_lea.vmem %s491, 2017
        %v1135 = vld [vmem:[%s1134] ss:$4 sm:$0xff]
        %v1136 = vld [vmem:[%s1 + $0x1] sm:$0x1]
        %1138 = vset.pattern.permute.xlu0 0
        %1139 = vperm.xlu0 %1138, %v1009
        %v1140 = vpop.permute.xlu0 %1139
        %1143 = vset.pattern.permute.xlu0 0
        %1144 = vperm.xlu0 %1143, %v1011
        %v1145 = vpop.permute.xlu0 %1144
        %1148 = vset.pattern.permute.xlu0 0
        %1149 = vperm.xlu0 %1148, %v1013
        %v1150 = vpop.permute.xlu0 %1149
        %1153 = vset.pattern.permute.xlu0 0
        %1154 = vperm.xlu0 %1153, %v1015
        %v1155 = vpop.permute.xlu0 %1154
        %1158 = vset.pattern.permute.xlu0 0
        %1159 = vperm.xlu0 %1158, %v1017
        %v1160 = vpop.permute.xlu0 %1159
        %1163 = vset.pattern.permute.xlu0 0
        %1164 = vperm.xlu0 %1163, %v1019
        %v1165 = vpop.permute.xlu0 %1164
        %1168 = vset.pattern.permute.xlu0 0
        %1169 = vperm.xlu0 %1168, %v1021
        %v1170 = vpop.permute.xlu0 %1169
        %1173 = vset.pattern.permute.xlu0 0
        %1174 = vperm.xlu0 %1173, %v1023
        %v1175 = vpop.permute.xlu0 %1174
        %1178 = vset.pattern.permute.xlu0 0
        %1179 = vperm.xlu0 %1178, %v1025
        %v1180 = vpop.permute.xlu0 %1179
        %1183 = vset.pattern.permute.xlu0 0
        %1184 = vperm.xlu0 %1183, %v1027
        %v1185 = vpop.permute.xlu0 %1184
        %1188 = vset.pattern.permute.xlu0 0
        %1189 = vperm.xlu0 %1188, %v1029
        %v1190 = vpop.permute.xlu0 %1189
        %1193 = vset.pattern.permute.xlu0 0
        %1194 = vperm.xlu0 %1193, %v1031
        %v1195 = vpop.permute.xlu0 %1194
        %1198 = vset.pattern.permute.xlu0 0
        %1199 = vperm.xlu0 %1198, %v1033
        %v1200 = vpop.permute.xlu0 %1199
        %1203 = vset.pattern.permute.xlu0 0
        %1204 = vperm.xlu0 %1203, %v1035
        %v1205 = vpop.permute.xlu0 %1204
        %1208 = vset.pattern.permute.xlu0 0
        %1209 = vperm.xlu0 %1208, %v1037
        %v1210 = vpop.permute.xlu0 %1209
        %1213 = vset.pattern.permute.xlu0 0
        %1214 = vperm.xlu0 %1213, %v1039
        %v1215 = vpop.permute.xlu0 %1214
        %1218 = vset.pattern.permute.xlu0 0
        %1219 = vperm.xlu0 %1218, %v1041
        %v1220 = vpop.permute.xlu0 %1219
        %1223 = vset.pattern.permute.xlu0 0
        %1224 = vperm.xlu0 %1223, %v1043
        %v1225 = vpop.permute.xlu0 %1224
        %1228 = vset.pattern.permute.xlu0 0
        %1229 = vperm.xlu0 %1228, %v1045
        %v1230 = vpop.permute.xlu0 %1229
        %1233 = vset.pattern.permute.xlu0 0
        %1234 = vperm.xlu0 %1233, %v1047
        %v1235 = vpop.permute.xlu0 %1234
        %1238 = vset.pattern.permute.xlu0 0
        %1239 = vperm.xlu0 %1238, %v1049
        %v1240 = vpop.permute.xlu0 %1239
        %1243 = vset.pattern.permute.xlu0 0
        %1244 = vperm.xlu0 %1243, %v1051
        %v1245 = vpop.permute.xlu0 %1244
        %1248 = vset.pattern.permute.xlu0 0
        %1249 = vperm.xlu0 %1248, %v1053
        %v1250 = vpop.permute.xlu0 %1249
        %1253 = vset.pattern.permute.xlu0 0
        %1254 = vperm.xlu0 %1253, %v1055
        %v1255 = vpop.permute.xlu0 %1254
        %1258 = vset.pattern.permute.xlu0 0
        %1259 = vperm.xlu0 %1258, %v1057
        %v1260 = vpop.permute.xlu0 %1259
        %1263 = vset.pattern.permute.xlu0 0
        %1264 = vperm.xlu0 %1263, %v1059
        %v1265 = vpop.permute.xlu0 %1264
        %1268 = vset.pattern.permute.xlu0 0
        %1269 = vperm.xlu0 %1268, %v1061
        %v1270 = vpop.permute.xlu0 %1269
        %1273 = vset.pattern.permute.xlu0 0
        %1274 = vperm.xlu0 %1273, %v1063
        %v1275 = vpop.permute.xlu0 %1274
        %1278 = vset.pattern.permute.xlu0 0
        %1279 = vperm.xlu0 %1278, %v1065
        %v1280 = vpop.permute.xlu0 %1279
        %1283 = vset.pattern.permute.xlu0 0
        %1284 = vperm.xlu0 %1283, %v1067
        %v1285 = vpop.permute.xlu0 %1284
        %1288 = vset.pattern.permute.xlu0 0
        %1289 = vperm.xlu0 %1288, %v1069
        %v1290 = vpop.permute.xlu0 %1289
        %1293 = vset.pattern.permute.xlu0 0
        %1294 = vperm.xlu0 %1293, %v1071
        %v1295 = vpop.permute.xlu0 %1294
        %1298 = vset.pattern.permute.xlu0 0
        %1299 = vperm.xlu0 %1298, %v1073
        %v1300 = vpop.permute.xlu0 %1299
        %1303 = vset.pattern.permute.xlu0 0
        %1304 = vperm.xlu0 %1303, %v1075
        %v1305 = vpop.permute.xlu0 %1304
        %1308 = vset.pattern.permute.xlu0 0
        %1309 = vperm.xlu0 %1308, %v1077
        %v1310 = vpop.permute.xlu0 %1309
        %1313 = vset.pattern.permute.xlu0 0
        %1314 = vperm.xlu0 %1313, %v1079
        %v1315 = vpop.permute.xlu0 %1314
        %1318 = vset.pattern.permute.xlu0 0
        %1319 = vperm.xlu0 %1318, %v1081
        %v1320 = vpop.permute.xlu0 %1319
        %1323 = vset.pattern.permute.xlu0 0
        %1324 = vperm.xlu0 %1323, %v1083
        %v1325 = vpop.permute.xlu0 %1324
        %1328 = vset.pattern.permute.xlu0 0
        %1329 = vperm.xlu0 %1328, %v1085
        %v1330 = vpop.permute.xlu0 %1329
        %1333 = vset.pattern.permute.xlu0 0
        %1334 = vperm.xlu0 %1333, %v1087
        %v1335 = vpop.permute.xlu0 %1334
        %1338 = vset.pattern.permute.xlu0 0
        %1339 = vperm.xlu0 %1338, %v1089
        %v1340 = vpop.permute.xlu0 %1339
        %1343 = vset.pattern.permute.xlu0 0
        %1344 = vperm.xlu0 %1343, %v1091
        %v1345 = vpop.permute.xlu0 %1344
        %1348 = vset.pattern.permute.xlu0 0
        %1349 = vperm.xlu0 %1348, %v1093
        %v1350 = vpop.permute.xlu0 %1349
        %1353 = vset.pattern.permute.xlu0 0
        %1354 = vperm.xlu0 %1353, %v1095
        %v1355 = vpop.permute.xlu0 %1354
        %1358 = vset.pattern.permute.xlu0 0
        %1359 = vperm.xlu0 %1358, %v1097
        %v1360 = vpop.permute.xlu0 %1359
        %1363 = vset.pattern.permute.xlu0 0
        %1364 = vperm.xlu0 %1363, %v1099
        %v1365 = vpop.permute.xlu0 %1364
        %1368 = vset.pattern.permute.xlu0 0
        %1369 = vperm.xlu0 %1368, %v1101
        %v1370 = vpop.permute.xlu0 %1369
        %1373 = vset.pattern.permute.xlu0 0
        %1374 = vperm.xlu0 %1373, %v1103
        %v1375 = vpop.permute.xlu0 %1374
        %1378 = vset.pattern.permute.xlu0 0
        %1379 = vperm.xlu0 %1378, %v1105
        %v1380 = vpop.permute.xlu0 %1379
        %1383 = vset.pattern.permute.xlu0 0
        %1384 = vperm.xlu0 %1383, %v1107
        %v1385 = vpop.permute.xlu0 %1384
        %1388 = vset.pattern.permute.xlu0 0
        %1389 = vperm.xlu0 %1388, %v1109
        %v1390 = vpop.permute.xlu0 %1389
        %1393 = vset.pattern.permute.xlu0 0
        %1394 = vperm.xlu0 %1393, %v1111
        %v1395 = vpop.permute.xlu0 %1394
        %1398 = vset.pattern.permute.xlu0 0
        %1399 = vperm.xlu0 %1398, %v1113
        %v1400 = vpop.permute.xlu0 %1399
        %1403 = vset.pattern.permute.xlu0 0
        %1404 = vperm.xlu0 %1403, %v1115
        %v1405 = vpop.permute.xlu0 %1404
        %1408 = vset.pattern.permute.xlu0 0
        %1409 = vperm.xlu0 %1408, %v1117
        %v1410 = vpop.permute.xlu0 %1409
        %1413 = vset.pattern.permute.xlu0 0
        %1414 = vperm.xlu0 %1413, %v1119
        %v1415 = vpop.permute.xlu0 %1414
        %1418 = vset.pattern.permute.xlu0 0
        %1419 = vperm.xlu0 %1418, %v1121
        %v1420 = vpop.permute.xlu0 %1419
        %1423 = vset.pattern.permute.xlu0 0
        %1424 = vperm.xlu0 %1423, %v1123
        %v1425 = vpop.permute.xlu0 %1424
        %1428 = vset.pattern.permute.xlu0 0
        %1429 = vperm.xlu0 %1428, %v1125
        %v1430 = vpop.permute.xlu0 %1429
        %1433 = vset.pattern.permute.xlu0 0
        %1434 = vperm.xlu0 %1433, %v1127
        %v1435 = vpop.permute.xlu0 %1434
        %1438 = vset.pattern.permute.xlu0 0
        %1439 = vperm.xlu0 %1438, %v1129
        %v1440 = vpop.permute.xlu0 %1439
        %1443 = vset.pattern.permute.xlu0 0
        %1444 = vperm.xlu0 %1443, %v1131
        %v1445 = vpop.permute.xlu0 %1444
        %1448 = vset.pattern.permute.xlu0 0
        %1449 = vperm.xlu0 %1448, %v1133
        %v1450 = vpop.permute.xlu0 %1449
        %1453 = vset.pattern.permute.xlu0 0
        %1454 = vperm.xlu0 %1453, %v1135
        %v1455 = vpop.permute.xlu0 %1454
        %v1457 = vlaneseq
        %v1458 = vshrl.u32 %v1457, 7
        %v1459 = vsub.s32 0, %v1458
        %v1460 = vrot.slane %v1136, %v1459
        %v1461 = vmul.f32 %v1140, %v1460
        %v1462 = vmul.f32 %v1145, %v1460
        %v1463 = vmul.f32 %v1150, %v1460
        %v1464 = vmul.f32 %v1155, %v1460
        %v1465 = vmul.f32 %v1160, %v1460
        %v1466 = vmul.f32 %v1165, %v1460
        %v1467 = vmul.f32 %v1170, %v1460
        %v1468 = vmul.f32 %v1175, %v1460
        %v1469 = vmul.f32 %v1180, %v1460
        %v1470 = vmul.f32 %v1185, %v1460
        %v1471 = vmul.f32 %v1190, %v1460
        %v1472 = vmul.f32 %v1195, %v1460
        %v1473 = vmul.f32 %v1200, %v1460
        %v1474 = vmul.f32 %v1205, %v1460
        %v1475 = vmul.f32 %v1210, %v1460
        %v1476 = vmul.f32 %v1215, %v1460
        %v1477 = vmul.f32 %v1220, %v1460
        %v1478 = vmul.f32 %v1225, %v1460
        %v1479 = vmul.f32 %v1230, %v1460
        %v1480 = vmul.f32 %v1235, %v1460
        %v1481 = vmul.f32 %v1240, %v1460
        %v1482 = vmul.f32 %v1245, %v1460
        %v1483 = vmul.f32 %v1250, %v1460
        %v1484 = vmul.f32 %v1255, %v1460
        %v1485 = vmul.f32 %v1260, %v1460
        %v1486 = vmul.f32 %v1265, %v1460
        %v1487 = vmul.f32 %v1270, %v1460
        %v1488 = vmul.f32 %v1275, %v1460
        %v1489 = vmul.f32 %v1280, %v1460
        %v1490 = vmul.f32 %v1285, %v1460
        %v1491 = vmul.f32 %v1290, %v1460
        %v1492 = vmul.f32 %v1295, %v1460
        %v1493 = vmul.f32 %v1300, %v1460
        %v1494 = vmul.f32 %v1305, %v1460
        %v1495 = vmul.f32 %v1310, %v1460
        %v1496 = vmul.f32 %v1315, %v1460
        %v1497 = vmul.f32 %v1320, %v1460
        %v1498 = vmul.f32 %v1325, %v1460
        %v1499 = vmul.f32 %v1330, %v1460
        %v1500 = vmul.f32 %v1335, %v1460
        %v1501 = vmul.f32 %v1340, %v1460
        %v1502 = vmul.f32 %v1345, %v1460
        %v1503 = vmul.f32 %v1350, %v1460
        %v1504 = vmul.f32 %v1355, %v1460
        %v1505 = vmul.f32 %v1360, %v1460
        %v1506 = vmul.f32 %v1365, %v1460
        %v1507 = vmul.f32 %v1370, %v1460
        %v1508 = vmul.f32 %v1375, %v1460
        %v1509 = vmul.f32 %v1380, %v1460
        %v1510 = vmul.f32 %v1385, %v1460
        %v1511 = vmul.f32 %v1390, %v1460
        %v1512 = vmul.f32 %v1395, %v1460
        %v1513 = vmul.f32 %v1400, %v1460
        %v1514 = vmul.f32 %v1405, %v1460
        %v1515 = vmul.f32 %v1410, %v1460
        %v1516 = vmul.f32 %v1415, %v1460
        %v1517 = vmul.f32 %v1420, %v1460
        %v1518 = vmul.f32 %v1425, %v1460
        %v1519 = vmul.f32 %v1430, %v1460
        %v1520 = vmul.f32 %v1435, %v1460
        %v1521 = vmul.f32 %v1440, %v1460
        %v1522 = vmul.f32 %v1445, %v1460
        %v1523 = vmul.f32 %v1450, %v1460
        %v1524 = vmul.f32 %v1455, %v1460
        %v1525 = vadd.f32 %v944, %v1461
        %v1526 = vadd.f32 %v945, %v1462
        %v1527 = vadd.f32 %v946, %v1463
        %v1528 = vadd.f32 %v947, %v1464
        %v1529 = vadd.f32 %v948, %v1465
        %v1530 = vadd.f32 %v949, %v1466
        %v1531 = vadd.f32 %v950, %v1467
        %v1532 = vadd.f32 %v951, %v1468
        %v1533 = vadd.f32 %v952, %v1469
        %v1534 = vadd.f32 %v953, %v1470
        %v1535 = vadd.f32 %v954, %v1471
        %v1536 = vadd.f32 %v955, %v1472
        %v1537 = vadd.f32 %v956, %v1473
        %v1538 = vadd.f32 %v957, %v1474
        %v1539 = vadd.f32 %v958, %v1475
        %v1540 = vadd.f32 %v959, %v1476
        %v1541 = vadd.f32 %v960, %v1477
        %v1542 = vadd.f32 %v961, %v1478
        %v1543 = vadd.f32 %v962, %v1479
        %v1544 = vadd.f32 %v963, %v1480
        %v1545 = vadd.f32 %v964, %v1481
        %v1546 = vadd.f32 %v965, %v1482
        %v1547 = vadd.f32 %v966, %v1483
        %v1548 = vadd.f32 %v967, %v1484
        %v1549 = vadd.f32 %v968, %v1485
        %v1550 = vadd.f32 %v969, %v1486
        %v1551 = vadd.f32 %v970, %v1487
        %v1552 = vadd.f32 %v971, %v1488
        %v1553 = vadd.f32 %v972, %v1489
        %v1554 = vadd.f32 %v973, %v1490
        %v1555 = vadd.f32 %v974, %v1491
        %v1556 = vadd.f32 %v975, %v1492
        %v1557 = vadd.f32 %v976, %v1493
        %v1558 = vadd.f32 %v977, %v1494
        %v1559 = vadd.f32 %v978, %v1495
        %v1560 = vadd.f32 %v979, %v1496
        %v1561 = vadd.f32 %v980, %v1497
        %v1562 = vadd.f32 %v981, %v1498
        %v1563 = vadd.f32 %v982, %v1499
        %v1564 = vadd.f32 %v983, %v1500
        %v1565 = vadd.f32 %v984, %v1501
        %v1566 = vadd.f32 %v985, %v1502
        %v1567 = vadd.f32 %v986, %v1503
        %v1568 = vadd.f32 %v987, %v1504
        %v1569 = vadd.f32 %v988, %v1505
        %v1570 = vadd.f32 %v989, %v1506
        %v1571 = vadd.f32 %v990, %v1507
        %v1572 = vadd.f32 %v991, %v1508
        %v1573 = vadd.f32 %v992, %v1509
        %v1574 = vadd.f32 %v993, %v1510
        %v1575 = vadd.f32 %v994, %v1511
        %v1576 = vadd.f32 %v995, %v1512
        %v1577 = vadd.f32 %v996, %v1513
        %v1578 = vadd.f32 %v997, %v1514
        %v1579 = vadd.f32 %v998, %v1515
        %v1580 = vadd.f32 %v999, %v1516
        %v1581 = vadd.f32 %v1000, %v1517
        %v1582 = vadd.f32 %v1001, %v1518
        %v1583 = vadd.f32 %v1002, %v1519
        %v1584 = vadd.f32 %v1003, %v1520
        %v1585 = vadd.f32 %v1004, %v1521
        %v1586 = vadd.f32 %v1005, %v1522
        %v1587 = vadd.f32 %v1006, %v1523
        %v1588 = vadd.f32 %v1007, %v1524
        %s1589 = scalar_lea.vmem %s491, 2
        %v1590 = vld [vmem:[%s1589] ss:$4 sm:$0xff]
        %s1591 = scalar_lea.vmem %s491, 34
        %v1592 = vld [vmem:[%s1591] ss:$4 sm:$0xff]
        %s1593 = scalar_lea.vmem %s491, 66
        %v1594 = vld [vmem:[%s1593] ss:$4 sm:$0xff]
        %s1595 = scalar_lea.vmem %s491, 98
        %v1596 = vld [vmem:[%s1595] ss:$4 sm:$0xff]
        %s1597 = scalar_lea.vmem %s491, 130
        %v1598 = vld [vmem:[%s1597] ss:$4 sm:$0xff]
        %s1599 = scalar_lea.vmem %s491, 162
        %v1600 = vld [vmem:[%s1599] ss:$4 sm:$0xff]
        %s1601 = scalar_lea.vmem %s491, 194
        %v1602 = vld [vmem:[%s1601] ss:$4 sm:$0xff]
        %s1603 = scalar_lea.vmem %s491, 226
        %v1604 = vld [vmem:[%s1603] ss:$4 sm:$0xff]
        %s1605 = scalar_lea.vmem %s491, 258
        %v1606 = vld [vmem:[%s1605] ss:$4 sm:$0xff]
        %s1607 = scalar_lea.vmem %s491, 290
        %v1608 = vld [vmem:[%s1607] ss:$4 sm:$0xff]
        %s1609 = scalar_lea.vmem %s491, 322
        %v1610 = vld [vmem:[%s1609] ss:$4 sm:$0xff]
        %s1611 = scalar_lea.vmem %s491, 354
        %v1612 = vld [vmem:[%s1611] ss:$4 sm:$0xff]
        %s1613 = scalar_lea.vmem %s491, 386
        %v1614 = vld [vmem:[%s1613] ss:$4 sm:$0xff]
        %s1615 = scalar_lea.vmem %s491, 418
        %v1616 = vld [vmem:[%s1615] ss:$4 sm:$0xff]
        %s1617 = scalar_lea.vmem %s491, 450
        %v1618 = vld [vmem:[%s1617] ss:$4 sm:$0xff]
        %s1619 = scalar_lea.vmem %s491, 482
        %v1620 = vld [vmem:[%s1619] ss:$4 sm:$0xff]
        %s1621 = scalar_lea.vmem %s491, 514
        %v1622 = vld [vmem:[%s1621] ss:$4 sm:$0xff]
        %s1623 = scalar_lea.vmem %s491, 546
        %v1624 = vld [vmem:[%s1623] ss:$4 sm:$0xff]
        %s1625 = scalar_lea.vmem %s491, 578
        %v1626 = vld [vmem:[%s1625] ss:$4 sm:$0xff]
        %s1627 = scalar_lea.vmem %s491, 610
        %v1628 = vld [vmem:[%s1627] ss:$4 sm:$0xff]
        %s1629 = scalar_lea.vmem %s491, 642
        %v1630 = vld [vmem:[%s1629] ss:$4 sm:$0xff]
        %s1631 = scalar_lea.vmem %s491, 674
        %v1632 = vld [vmem:[%s1631] ss:$4 sm:$0xff]
        %s1633 = scalar_lea.vmem %s491, 706
        %v1634 = vld [vmem:[%s1633] ss:$4 sm:$0xff]
        %s1635 = scalar_lea.vmem %s491, 738
        %v1636 = vld [vmem:[%s1635] ss:$4 sm:$0xff]
        %s1637 = scalar_lea.vmem %s491, 770
        %v1638 = vld [vmem:[%s1637] ss:$4 sm:$0xff]
        %s1639 = scalar_lea.vmem %s491, 802
        %v1640 = vld [vmem:[%s1639] ss:$4 sm:$0xff]
        %s1641 = scalar_lea.vmem %s491, 834
        %v1642 = vld [vmem:[%s1641] ss:$4 sm:$0xff]
        %s1643 = scalar_lea.vmem %s491, 866
        %v1644 = vld [vmem:[%s1643] ss:$4 sm:$0xff]
        %s1645 = scalar_lea.vmem %s491, 898
        %v1646 = vld [vmem:[%s1645] ss:$4 sm:$0xff]
        %s1647 = scalar_lea.vmem %s491, 930
        %v1648 = vld [vmem:[%s1647] ss:$4 sm:$0xff]
        %s1649 = scalar_lea.vmem %s491, 962
        %v1650 = vld [vmem:[%s1649] ss:$4 sm:$0xff]
        %s1651 = scalar_lea.vmem %s491, 994
        %v1652 = vld [vmem:[%s1651] ss:$4 sm:$0xff]
        %s1653 = scalar_lea.vmem %s491, 1026
        %v1654 = vld [vmem:[%s1653] ss:$4 sm:$0xff]
        %s1655 = scalar_lea.vmem %s491, 1058
        %v1656 = vld [vmem:[%s1655] ss:$4 sm:$0xff]
        %s1657 = scalar_lea.vmem %s491, 1090
        %v1658 = vld [vmem:[%s1657] ss:$4 sm:$0xff]
        %s1659 = scalar_lea.vmem %s491, 1122
        %v1660 = vld [vmem:[%s1659] ss:$4 sm:$0xff]
        %s1661 = scalar_lea.vmem %s491, 1154
        %v1662 = vld [vmem:[%s1661] ss:$4 sm:$0xff]
        %s1663 = scalar_lea.vmem %s491, 1186
        %v1664 = vld [vmem:[%s1663] ss:$4 sm:$0xff]
        %s1665 = scalar_lea.vmem %s491, 1218
        %v1666 = vld [vmem:[%s1665] ss:$4 sm:$0xff]
        %s1667 = scalar_lea.vmem %s491, 1250
        %v1668 = vld [vmem:[%s1667] ss:$4 sm:$0xff]
        %s1669 = scalar_lea.vmem %s491, 1282
        %v1670 = vld [vmem:[%s1669] ss:$4 sm:$0xff]
        %s1671 = scalar_lea.vmem %s491, 1314
        %v1672 = vld [vmem:[%s1671] ss:$4 sm:$0xff]
        %s1673 = scalar_lea.vmem %s491, 1346
        %v1674 = vld [vmem:[%s1673] ss:$4 sm:$0xff]
        %s1675 = scalar_lea.vmem %s491, 1378
        %v1676 = vld [vmem:[%s1675] ss:$4 sm:$0xff]
        %s1677 = scalar_lea.vmem %s491, 1410
        %v1678 = vld [vmem:[%s1677] ss:$4 sm:$0xff]
        %s1679 = scalar_lea.vmem %s491, 1442
        %v1680 = vld [vmem:[%s1679] ss:$4 sm:$0xff]
        %s1681 = scalar_lea.vmem %s491, 1474
        %v1682 = vld [vmem:[%s1681] ss:$4 sm:$0xff]
        %s1683 = scalar_lea.vmem %s491, 1506
        %v1684 = vld [vmem:[%s1683] ss:$4 sm:$0xff]
        %s1685 = scalar_lea.vmem %s491, 1538
        %v1686 = vld [vmem:[%s1685] ss:$4 sm:$0xff]
        %s1687 = scalar_lea.vmem %s491, 1570
        %v1688 = vld [vmem:[%s1687] ss:$4 sm:$0xff]
        %s1689 = scalar_lea.vmem %s491, 1602
        %v1690 = vld [vmem:[%s1689] ss:$4 sm:$0xff]
        %s1691 = scalar_lea.vmem %s491, 1634
        %v1692 = vld [vmem:[%s1691] ss:$4 sm:$0xff]
        %s1693 = scalar_lea.vmem %s491, 1666
        %v1694 = vld [vmem:[%s1693] ss:$4 sm:$0xff]
        %s1695 = scalar_lea.vmem %s491, 1698
        %v1696 = vld [vmem:[%s1695] ss:$4 sm:$0xff]
        %s1697 = scalar_lea.vmem %s491, 1730
        %v1698 = vld [vmem:[%s1697] ss:$4 sm:$0xff]
        %s1699 = scalar_lea.vmem %s491, 1762
        %v1700 = vld [vmem:[%s1699] ss:$4 sm:$0xff]
        %s1701 = scalar_lea.vmem %s491, 1794
        %v1702 = vld [vmem:[%s1701] ss:$4 sm:$0xff]
        %s1703 = scalar_lea.vmem %s491, 1826
        %v1704 = vld [vmem:[%s1703] ss:$4 sm:$0xff]
        %s1705 = scalar_lea.vmem %s491, 1858
        %v1706 = vld [vmem:[%s1705] ss:$4 sm:$0xff]
        %s1707 = scalar_lea.vmem %s491, 1890
        %v1708 = vld [vmem:[%s1707] ss:$4 sm:$0xff]
        %s1709 = scalar_lea.vmem %s491, 1922
        %v1710 = vld [vmem:[%s1709] ss:$4 sm:$0xff]
        %s1711 = scalar_lea.vmem %s491, 1954
        %v1712 = vld [vmem:[%s1711] ss:$4 sm:$0xff]
        %s1713 = scalar_lea.vmem %s491, 1986
        %v1714 = vld [vmem:[%s1713] ss:$4 sm:$0xff]
        %s1715 = scalar_lea.vmem %s491, 2018
        %v1716 = vld [vmem:[%s1715] ss:$4 sm:$0xff]
        %v1717 = vld [vmem:[%s1 + $0x2] sm:$0x1]
        %1719 = vset.pattern.permute.xlu0 0
        %1720 = vperm.xlu0 %1719, %v1590
        %v1721 = vpop.permute.xlu0 %1720
        %1724 = vset.pattern.permute.xlu0 0
        %1725 = vperm.xlu0 %1724, %v1592
        %v1726 = vpop.permute.xlu0 %1725
        %1729 = vset.pattern.permute.xlu0 0
        %1730 = vperm.xlu0 %1729, %v1594
        %v1731 = vpop.permute.xlu0 %1730
        %1734 = vset.pattern.permute.xlu0 0
        %1735 = vperm.xlu0 %1734, %v1596
        %v1736 = vpop.permute.xlu0 %1735
        %1739 = vset.pattern.permute.xlu0 0
        %1740 = vperm.xlu0 %1739, %v1598
        %v1741 = vpop.permute.xlu0 %1740
        %1744 = vset.pattern.permute.xlu0 0
        %1745 = vperm.xlu0 %1744, %v1600
        %v1746 = vpop.permute.xlu0 %1745
        %1749 = vset.pattern.permute.xlu0 0
        %1750 = vperm.xlu0 %1749, %v1602
        %v1751 = vpop.permute.xlu0 %1750
        %1754 = vset.pattern.permute.xlu0 0
        %1755 = vperm.xlu0 %1754, %v1604
        %v1756 = vpop.permute.xlu0 %1755
        %1759 = vset.pattern.permute.xlu0 0
        %1760 = vperm.xlu0 %1759, %v1606
        %v1761 = vpop.permute.xlu0 %1760
        %1764 = vset.pattern.permute.xlu0 0
        %1765 = vperm.xlu0 %1764, %v1608
        %v1766 = vpop.permute.xlu0 %1765
        %1769 = vset.pattern.permute.xlu0 0
        %1770 = vperm.xlu0 %1769, %v1610
        %v1771 = vpop.permute.xlu0 %1770
        %1774 = vset.pattern.permute.xlu0 0
        %1775 = vperm.xlu0 %1774, %v1612
        %v1776 = vpop.permute.xlu0 %1775
        %1779 = vset.pattern.permute.xlu0 0
        %1780 = vperm.xlu0 %1779, %v1614
        %v1781 = vpop.permute.xlu0 %1780
        %1784 = vset.pattern.permute.xlu0 0
        %1785 = vperm.xlu0 %1784, %v1616
        %v1786 = vpop.permute.xlu0 %1785
        %1789 = vset.pattern.permute.xlu0 0
        %1790 = vperm.xlu0 %1789, %v1618
        %v1791 = vpop.permute.xlu0 %1790
        %1794 = vset.pattern.permute.xlu0 0
        %1795 = vperm.xlu0 %1794, %v1620
        %v1796 = vpop.permute.xlu0 %1795
        %1799 = vset.pattern.permute.xlu0 0
        %1800 = vperm.xlu0 %1799, %v1622
        %v1801 = vpop.permute.xlu0 %1800
        %1804 = vset.pattern.permute.xlu0 0
        %1805 = vperm.xlu0 %1804, %v1624
        %v1806 = vpop.permute.xlu0 %1805
        %1809 = vset.pattern.permute.xlu0 0
        %1810 = vperm.xlu0 %1809, %v1626
        %v1811 = vpop.permute.xlu0 %1810
        %1814 = vset.pattern.permute.xlu0 0
        %1815 = vperm.xlu0 %1814, %v1628
        %v1816 = vpop.permute.xlu0 %1815
        %1819 = vset.pattern.permute.xlu0 0
        %1820 = vperm.xlu0 %1819, %v1630
        %v1821 = vpop.permute.xlu0 %1820
        %1824 = vset.pattern.permute.xlu0 0
        %1825 = vperm.xlu0 %1824, %v1632
        %v1826 = vpop.permute.xlu0 %1825
        %1829 = vset.pattern.permute.xlu0 0
        %1830 = vperm.xlu0 %1829, %v1634
        %v1831 = vpop.permute.xlu0 %1830
        %1834 = vset.pattern.permute.xlu0 0
        %1835 = vperm.xlu0 %1834, %v1636
        %v1836 = vpop.permute.xlu0 %1835
        %1839 = vset.pattern.permute.xlu0 0
        %1840 = vperm.xlu0 %1839, %v1638
        %v1841 = vpop.permute.xlu0 %1840
        %1844 = vset.pattern.permute.xlu0 0
        %1845 = vperm.xlu0 %1844, %v1640
        %v1846 = vpop.permute.xlu0 %1845
        %1849 = vset.pattern.permute.xlu0 0
        %1850 = vperm.xlu0 %1849, %v1642
        %v1851 = vpop.permute.xlu0 %1850
        %1854 = vset.pattern.permute.xlu0 0
        %1855 = vperm.xlu0 %1854, %v1644
        %v1856 = vpop.permute.xlu0 %1855
        %1859 = vset.pattern.permute.xlu0 0
        %1860 = vperm.xlu0 %1859, %v1646
        %v1861 = vpop.permute.xlu0 %1860
        %1864 = vset.pattern.permute.xlu0 0
        %1865 = vperm.xlu0 %1864, %v1648
        %v1866 = vpop.permute.xlu0 %1865
        %1869 = vset.pattern.permute.xlu0 0
        %1870 = vperm.xlu0 %1869, %v1650
        %v1871 = vpop.permute.xlu0 %1870
        %1874 = vset.pattern.permute.xlu0 0
        %1875 = vperm.xlu0 %1874, %v1652
        %v1876 = vpop.permute.xlu0 %1875
        %1879 = vset.pattern.permute.xlu0 0
        %1880 = vperm.xlu0 %1879, %v1654
        %v1881 = vpop.permute.xlu0 %1880
        %1884 = vset.pattern.permute.xlu0 0
        %1885 = vperm.xlu0 %1884, %v1656
        %v1886 = vpop.permute.xlu0 %1885
        %1889 = vset.pattern.permute.xlu0 0
        %1890 = vperm.xlu0 %1889, %v1658
        %v1891 = vpop.permute.xlu0 %1890
        %1894 = vset.pattern.permute.xlu0 0
        %1895 = vperm.xlu0 %1894, %v1660
        %v1896 = vpop.permute.xlu0 %1895
        %1899 = vset.pattern.permute.xlu0 0
        %1900 = vperm.xlu0 %1899, %v1662
        %v1901 = vpop.permute.xlu0 %1900
        %1904 = vset.pattern.permute.xlu0 0
        %1905 = vperm.xlu0 %1904, %v1664
        %v1906 = vpop.permute.xlu0 %1905
        %1909 = vset.pattern.permute.xlu0 0
        %1910 = vperm.xlu0 %1909, %v1666
        %v1911 = vpop.permute.xlu0 %1910
        %1914 = vset.pattern.permute.xlu0 0
        %1915 = vperm.xlu0 %1914, %v1668
        %v1916 = vpop.permute.xlu0 %1915
        %1919 = vset.pattern.permute.xlu0 0
        %1920 = vperm.xlu0 %1919, %v1670
        %v1921 = vpop.permute.xlu0 %1920
        %1924 = vset.pattern.permute.xlu0 0
        %1925 = vperm.xlu0 %1924, %v1672
        %v1926 = vpop.permute.xlu0 %1925
        %1929 = vset.pattern.permute.xlu0 0
        %1930 = vperm.xlu0 %1929, %v1674
        %v1931 = vpop.permute.xlu0 %1930
        %1934 = vset.pattern.permute.xlu0 0
        %1935 = vperm.xlu0 %1934, %v1676
        %v1936 = vpop.permute.xlu0 %1935
        %1939 = vset.pattern.permute.xlu0 0
        %1940 = vperm.xlu0 %1939, %v1678
        %v1941 = vpop.permute.xlu0 %1940
        %1944 = vset.pattern.permute.xlu0 0
        %1945 = vperm.xlu0 %1944, %v1680
        %v1946 = vpop.permute.xlu0 %1945
        %1949 = vset.pattern.permute.xlu0 0
        %1950 = vperm.xlu0 %1949, %v1682
        %v1951 = vpop.permute.xlu0 %1950
        %1954 = vset.pattern.permute.xlu0 0
        %1955 = vperm.xlu0 %1954, %v1684
        %v1956 = vpop.permute.xlu0 %1955
        %1959 = vset.pattern.permute.xlu0 0
        %1960 = vperm.xlu0 %1959, %v1686
        %v1961 = vpop.permute.xlu0 %1960
        %1964 = vset.pattern.permute.xlu0 0
        %1965 = vperm.xlu0 %1964, %v1688
        %v1966 = vpop.permute.xlu0 %1965
        %1969 = vset.pattern.permute.xlu0 0
        %1970 = vperm.xlu0 %1969, %v1690
        %v1971 = vpop.permute.xlu0 %1970
        %1974 = vset.pattern.permute.xlu0 0
        %1975 = vperm.xlu0 %1974, %v1692
        %v1976 = vpop.permute.xlu0 %1975
        %1979 = vset.pattern.permute.xlu0 0
        %1980 = vperm.xlu0 %1979, %v1694
        %v1981 = vpop.permute.xlu0 %1980
        %1984 = vset.pattern.permute.xlu0 0
        %1985 = vperm.xlu0 %1984, %v1696
        %v1986 = vpop.permute.xlu0 %1985
        %1989 = vset.pattern.permute.xlu0 0
        %1990 = vperm.xlu0 %1989, %v1698
        %v1991 = vpop.permute.xlu0 %1990
        %1994 = vset.pattern.permute.xlu0 0
        %1995 = vperm.xlu0 %1994, %v1700
        %v1996 = vpop.permute.xlu0 %1995
        %1999 = vset.pattern.permute.xlu0 0
        %2000 = vperm.xlu0 %1999, %v1702
        %v2001 = vpop.permute.xlu0 %2000
        %2004 = vset.pattern.permute.xlu0 0
        %2005 = vperm.xlu0 %2004, %v1704
        %v2006 = vpop.permute.xlu0 %2005
        %2009 = vset.pattern.permute.xlu0 0
        %2010 = vperm.xlu0 %2009, %v1706
        %v2011 = vpop.permute.xlu0 %2010
        %2014 = vset.pattern.permute.xlu0 0
        %2015 = vperm.xlu0 %2014, %v1708
        %v2016 = vpop.permute.xlu0 %2015
        %2019 = vset.pattern.permute.xlu0 0
        %2020 = vperm.xlu0 %2019, %v1710
        %v2021 = vpop.permute.xlu0 %2020
        %2024 = vset.pattern.permute.xlu0 0
        %2025 = vperm.xlu0 %2024, %v1712
        %v2026 = vpop.permute.xlu0 %2025
        %2029 = vset.pattern.permute.xlu0 0
        %2030 = vperm.xlu0 %2029, %v1714
        %v2031 = vpop.permute.xlu0 %2030
        %2034 = vset.pattern.permute.xlu0 0
        %2035 = vperm.xlu0 %2034, %v1716
        %v2036 = vpop.permute.xlu0 %2035
        %v2038 = vlaneseq
        %v2039 = vshrl.u32 %v2038, 7
        %v2040 = vsub.s32 0, %v2039
        %v2041 = vrot.slane %v1717, %v2040
        %v2042 = vmul.f32 %v1721, %v2041
        %v2043 = vmul.f32 %v1726, %v2041
        %v2044 = vmul.f32 %v1731, %v2041
        %v2045 = vmul.f32 %v1736, %v2041
        %v2046 = vmul.f32 %v1741, %v2041
        %v2047 = vmul.f32 %v1746, %v2041
        %v2048 = vmul.f32 %v1751, %v2041
        %v2049 = vmul.f32 %v1756, %v2041
        %v2050 = vmul.f32 %v1761, %v2041
        %v2051 = vmul.f32 %v1766, %v2041
        %v2052 = vmul.f32 %v1771, %v2041
        %v2053 = vmul.f32 %v1776, %v2041
        %v2054 = vmul.f32 %v1781, %v2041
        %v2055 = vmul.f32 %v1786, %v2041
        %v2056 = vmul.f32 %v1791, %v2041
        %v2057 = vmul.f32 %v1796, %v2041
        %v2058 = vmul.f32 %v1801, %v2041
        %v2059 = vmul.f32 %v1806, %v2041
        %v2060 = vmul.f32 %v1811, %v2041
        %v2061 = vmul.f32 %v1816, %v2041
        %v2062 = vmul.f32 %v1821, %v2041
        %v2063 = vmul.f32 %v1826, %v2041
        %v2064 = vmul.f32 %v1831, %v2041
        %v2065 = vmul.f32 %v1836, %v2041
        %v2066 = vmul.f32 %v1841, %v2041
        %v2067 = vmul.f32 %v1846, %v2041
        %v2068 = vmul.f32 %v1851, %v2041
        %v2069 = vmul.f32 %v1856, %v2041
        %v2070 = vmul.f32 %v1861, %v2041
        %v2071 = vmul.f32 %v1866, %v2041
        %v2072 = vmul.f32 %v1871, %v2041
        %v2073 = vmul.f32 %v1876, %v2041
        %v2074 = vmul.f32 %v1881, %v2041
        %v2075 = vmul.f32 %v1886, %v2041
        %v2076 = vmul.f32 %v1891, %v2041
        %v2077 = vmul.f32 %v1896, %v2041
        %v2078 = vmul.f32 %v1901, %v2041
        %v2079 = vmul.f32 %v1906, %v2041
        %v2080 = vmul.f32 %v1911, %v2041
        %v2081 = vmul.f32 %v1916, %v2041
        %v2082 = vmul.f32 %v1921, %v2041
        %v2083 = vmul.f32 %v1926, %v2041
        %v2084 = vmul.f32 %v1931, %v2041
        %v2085 = vmul.f32 %v1936, %v2041
        %v2086 = vmul.f32 %v1941, %v2041
        %v2087 = vmul.f32 %v1946, %v2041
        %v2088 = vmul.f32 %v1951, %v2041
        %v2089 = vmul.f32 %v1956, %v2041
        %v2090 = vmul.f32 %v1961, %v2041
        %v2091 = vmul.f32 %v1966, %v2041
        %v2092 = vmul.f32 %v1971, %v2041
        %v2093 = vmul.f32 %v1976, %v2041
        %v2094 = vmul.f32 %v1981, %v2041
        %v2095 = vmul.f32 %v1986, %v2041
        %v2096 = vmul.f32 %v1991, %v2041
        %v2097 = vmul.f32 %v1996, %v2041
        %v2098 = vmul.f32 %v2001, %v2041
        %v2099 = vmul.f32 %v2006, %v2041
        %v2100 = vmul.f32 %v2011, %v2041
        %v2101 = vmul.f32 %v2016, %v2041
        %v2102 = vmul.f32 %v2021, %v2041
        %v2103 = vmul.f32 %v2026, %v2041
        %v2104 = vmul.f32 %v2031, %v2041
        %v2105 = vmul.f32 %v2036, %v2041
        %v2106 = vadd.f32 %v1525, %v2042
        %v2107 = vadd.f32 %v1526, %v2043
        %v2108 = vadd.f32 %v1527, %v2044
        %v2109 = vadd.f32 %v1528, %v2045
        %v2110 = vadd.f32 %v1529, %v2046
        %v2111 = vadd.f32 %v1530, %v2047
        %v2112 = vadd.f32 %v1531, %v2048
        %v2113 = vadd.f32 %v1532, %v2049
        %v2114 = vadd.f32 %v1533, %v2050
        %v2115 = vadd.f32 %v1534, %v2051
        %v2116 = vadd.f32 %v1535, %v2052
        %v2117 = vadd.f32 %v1536, %v2053
        %v2118 = vadd.f32 %v1537, %v2054
        %v2119 = vadd.f32 %v1538, %v2055
        %v2120 = vadd.f32 %v1539, %v2056
        %v2121 = vadd.f32 %v1540, %v2057
        %v2122 = vadd.f32 %v1541, %v2058
        %v2123 = vadd.f32 %v1542, %v2059
        %v2124 = vadd.f32 %v1543, %v2060
        %v2125 = vadd.f32 %v1544, %v2061
        %v2126 = vadd.f32 %v1545, %v2062
        %v2127 = vadd.f32 %v1546, %v2063
        %v2128 = vadd.f32 %v1547, %v2064
        %v2129 = vadd.f32 %v1548, %v2065
        %v2130 = vadd.f32 %v1549, %v2066
        %v2131 = vadd.f32 %v1550, %v2067
        %v2132 = vadd.f32 %v1551, %v2068
        %v2133 = vadd.f32 %v1552, %v2069
        %v2134 = vadd.f32 %v1553, %v2070
        %v2135 = vadd.f32 %v1554, %v2071
        %v2136 = vadd.f32 %v1555, %v2072
        %v2137 = vadd.f32 %v1556, %v2073
        %v2138 = vadd.f32 %v1557, %v2074
        %v2139 = vadd.f32 %v1558, %v2075
        %v2140 = vadd.f32 %v1559, %v2076
        %v2141 = vadd.f32 %v1560, %v2077
        %v2142 = vadd.f32 %v1561, %v2078
        %v2143 = vadd.f32 %v1562, %v2079
        %v2144 = vadd.f32 %v1563, %v2080
        %v2145 = vadd.f32 %v1564, %v2081
        %v2146 = vadd.f32 %v1565, %v2082
        %v2147 = vadd.f32 %v1566, %v2083
        %v2148 = vadd.f32 %v1567, %v2084
        %v2149 = vadd.f32 %v1568, %v2085
        %v2150 = vadd.f32 %v1569, %v2086
        %v2151 = vadd.f32 %v1570, %v2087
        %v2152 = vadd.f32 %v1571, %v2088
        %v2153 = vadd.f32 %v1572, %v2089
        %v2154 = vadd.f32 %v1573, %v2090
        %v2155 = vadd.f32 %v1574, %v2091
        %v2156 = vadd.f32 %v1575, %v2092
        %v2157 = vadd.f32 %v1576, %v2093
        %v2158 = vadd.f32 %v1577, %v2094
        %v2159 = vadd.f32 %v1578, %v2095
        %v2160 = vadd.f32 %v1579, %v2096
        %v2161 = vadd.f32 %v1580, %v2097
        %v2162 = vadd.f32 %v1581, %v2098
        %v2163 = vadd.f32 %v1582, %v2099
        %v2164 = vadd.f32 %v1583, %v2100
        %v2165 = vadd.f32 %v1584, %v2101
        %v2166 = vadd.f32 %v1585, %v2102
        %v2167 = vadd.f32 %v1586, %v2103
        %v2168 = vadd.f32 %v1587, %v2104
        %v2169 = vadd.f32 %v1588, %v2105
        %s2170 = scalar_lea.vmem %s491, 3
        %v2171 = vld [vmem:[%s2170] ss:$4 sm:$0xff]
        %s2172 = scalar_lea.vmem %s491, 35
        %v2173 = vld [vmem:[%s2172] ss:$4 sm:$0xff]
        %s2174 = scalar_lea.vmem %s491, 67
        %v2175 = vld [vmem:[%s2174] ss:$4 sm:$0xff]
        %s2176 = scalar_lea.vmem %s491, 99
        %v2177 = vld [vmem:[%s2176] ss:$4 sm:$0xff]
        %s2178 = scalar_lea.vmem %s491, 131
        %v2179 = vld [vmem:[%s2178] ss:$4 sm:$0xff]
        %s2180 = scalar_lea.vmem %s491, 163
        %v2181 = vld [vmem:[%s2180] ss:$4 sm:$0xff]
        %s2182 = scalar_lea.vmem %s491, 195
        %v2183 = vld [vmem:[%s2182] ss:$4 sm:$0xff]
        %s2184 = scalar_lea.vmem %s491, 227
        %v2185 = vld [vmem:[%s2184] ss:$4 sm:$0xff]
        %s2186 = scalar_lea.vmem %s491, 259
        %v2187 = vld [vmem:[%s2186] ss:$4 sm:$0xff]
        %s2188 = scalar_lea.vmem %s491, 291
        %v2189 = vld [vmem:[%s2188] ss:$4 sm:$0xff]
        %s2190 = scalar_lea.vmem %s491, 323
        %v2191 = vld [vmem:[%s2190] ss:$4 sm:$0xff]
        %s2192 = scalar_lea.vmem %s491, 355
        %v2193 = vld [vmem:[%s2192] ss:$4 sm:$0xff]
        %s2194 = scalar_lea.vmem %s491, 387
        %v2195 = vld [vmem:[%s2194] ss:$4 sm:$0xff]
        %s2196 = scalar_lea.vmem %s491, 419
        %v2197 = vld [vmem:[%s2196] ss:$4 sm:$0xff]
        %s2198 = scalar_lea.vmem %s491, 451
        %v2199 = vld [vmem:[%s2198] ss:$4 sm:$0xff]
        %s2200 = scalar_lea.vmem %s491, 483
        %v2201 = vld [vmem:[%s2200] ss:$4 sm:$0xff]
        %s2202 = scalar_lea.vmem %s491, 515
        %v2203 = vld [vmem:[%s2202] ss:$4 sm:$0xff]
        %s2204 = scalar_lea.vmem %s491, 547
        %v2205 = vld [vmem:[%s2204] ss:$4 sm:$0xff]
        %s2206 = scalar_lea.vmem %s491, 579
        %v2207 = vld [vmem:[%s2206] ss:$4 sm:$0xff]
        %s2208 = scalar_lea.vmem %s491, 611
        %v2209 = vld [vmem:[%s2208] ss:$4 sm:$0xff]
        %s2210 = scalar_lea.vmem %s491, 643
        %v2211 = vld [vmem:[%s2210] ss:$4 sm:$0xff]
        %s2212 = scalar_lea.vmem %s491, 675
        %v2213 = vld [vmem:[%s2212] ss:$4 sm:$0xff]
        %s2214 = scalar_lea.vmem %s491, 707
        %v2215 = vld [vmem:[%s2214] ss:$4 sm:$0xff]
        %s2216 = scalar_lea.vmem %s491, 739
        %v2217 = vld [vmem:[%s2216] ss:$4 sm:$0xff]
        %s2218 = scalar_lea.vmem %s491, 771
        %v2219 = vld [vmem:[%s2218] ss:$4 sm:$0xff]
        %s2220 = scalar_lea.vmem %s491, 803
        %v2221 = vld [vmem:[%s2220] ss:$4 sm:$0xff]
        %s2222 = scalar_lea.vmem %s491, 835
        %v2223 = vld [vmem:[%s2222] ss:$4 sm:$0xff]
        %s2224 = scalar_lea.vmem %s491, 867
        %v2225 = vld [vmem:[%s2224] ss:$4 sm:$0xff]
        %s2226 = scalar_lea.vmem %s491, 899
        %v2227 = vld [vmem:[%s2226] ss:$4 sm:$0xff]
        %s2228 = scalar_lea.vmem %s491, 931
        %v2229 = vld [vmem:[%s2228] ss:$4 sm:$0xff]
        %s2230 = scalar_lea.vmem %s491, 963
        %v2231 = vld [vmem:[%s2230] ss:$4 sm:$0xff]
        %s2232 = scalar_lea.vmem %s491, 995
        %v2233 = vld [vmem:[%s2232] ss:$4 sm:$0xff]
        %s2234 = scalar_lea.vmem %s491, 1027
        %v2235 = vld [vmem:[%s2234] ss:$4 sm:$0xff]
        %s2236 = scalar_lea.vmem %s491, 1059
        %v2237 = vld [vmem:[%s2236] ss:$4 sm:$0xff]
        %s2238 = scalar_lea.vmem %s491, 1091
        %v2239 = vld [vmem:[%s2238] ss:$4 sm:$0xff]
        %s2240 = scalar_lea.vmem %s491, 1123
        %v2241 = vld [vmem:[%s2240] ss:$4 sm:$0xff]
        %s2242 = scalar_lea.vmem %s491, 1155
        %v2243 = vld [vmem:[%s2242] ss:$4 sm:$0xff]
        %s2244 = scalar_lea.vmem %s491, 1187
        %v2245 = vld [vmem:[%s2244] ss:$4 sm:$0xff]
        %s2246 = scalar_lea.vmem %s491, 1219
        %v2247 = vld [vmem:[%s2246] ss:$4 sm:$0xff]
        %s2248 = scalar_lea.vmem %s491, 1251
        %v2249 = vld [vmem:[%s2248] ss:$4 sm:$0xff]
        %s2250 = scalar_lea.vmem %s491, 1283
        %v2251 = vld [vmem:[%s2250] ss:$4 sm:$0xff]
        %s2252 = scalar_lea.vmem %s491, 1315
        %v2253 = vld [vmem:[%s2252] ss:$4 sm:$0xff]
        %s2254 = scalar_lea.vmem %s491, 1347
        %v2255 = vld [vmem:[%s2254] ss:$4 sm:$0xff]
        %s2256 = scalar_lea.vmem %s491, 1379
        %v2257 = vld [vmem:[%s2256] ss:$4 sm:$0xff]
        %s2258 = scalar_lea.vmem %s491, 1411
        %v2259 = vld [vmem:[%s2258] ss:$4 sm:$0xff]
        %s2260 = scalar_lea.vmem %s491, 1443
        %v2261 = vld [vmem:[%s2260] ss:$4 sm:$0xff]
        %s2262 = scalar_lea.vmem %s491, 1475
        %v2263 = vld [vmem:[%s2262] ss:$4 sm:$0xff]
        %s2264 = scalar_lea.vmem %s491, 1507
        %v2265 = vld [vmem:[%s2264] ss:$4 sm:$0xff]
        %s2266 = scalar_lea.vmem %s491, 1539
        %v2267 = vld [vmem:[%s2266] ss:$4 sm:$0xff]
        %s2268 = scalar_lea.vmem %s491, 1571
        %v2269 = vld [vmem:[%s2268] ss:$4 sm:$0xff]
        %s2270 = scalar_lea.vmem %s491, 1603
        %v2271 = vld [vmem:[%s2270] ss:$4 sm:$0xff]
        %s2272 = scalar_lea.vmem %s491, 1635
        %v2273 = vld [vmem:[%s2272] ss:$4 sm:$0xff]
        %s2274 = scalar_lea.vmem %s491, 1667
        %v2275 = vld [vmem:[%s2274] ss:$4 sm:$0xff]
        %s2276 = scalar_lea.vmem %s491, 1699
        %v2277 = vld [vmem:[%s2276] ss:$4 sm:$0xff]
        %s2278 = scalar_lea.vmem %s491, 1731
        %v2279 = vld [vmem:[%s2278] ss:$4 sm:$0xff]
        %s2280 = scalar_lea.vmem %s491, 1763
        %v2281 = vld [vmem:[%s2280] ss:$4 sm:$0xff]
        %s2282 = scalar_lea.vmem %s491, 1795
        %v2283 = vld [vmem:[%s2282] ss:$4 sm:$0xff]
        %s2284 = scalar_lea.vmem %s491, 1827
        %v2285 = vld [vmem:[%s2284] ss:$4 sm:$0xff]
        %s2286 = scalar_lea.vmem %s491, 1859
        %v2287 = vld [vmem:[%s2286] ss:$4 sm:$0xff]
        %s2288 = scalar_lea.vmem %s491, 1891
        %v2289 = vld [vmem:[%s2288] ss:$4 sm:$0xff]
        %s2290 = scalar_lea.vmem %s491, 1923
        %v2291 = vld [vmem:[%s2290] ss:$4 sm:$0xff]
        %s2292 = scalar_lea.vmem %s491, 1955
        %v2293 = vld [vmem:[%s2292] ss:$4 sm:$0xff]
        %s2294 = scalar_lea.vmem %s491, 1987
        %v2295 = vld [vmem:[%s2294] ss:$4 sm:$0xff]
        %s2296 = scalar_lea.vmem %s491, 2019
        %v2297 = vld [vmem:[%s2296] ss:$4 sm:$0xff]
        %v2298 = vld [vmem:[%s1 + $0x3] sm:$0x1]
        %2300 = vset.pattern.permute.xlu0 0
        %2301 = vperm.xlu0 %2300, %v2171
        %v2302 = vpop.permute.xlu0 %2301
        %2305 = vset.pattern.permute.xlu0 0
        %2306 = vperm.xlu0 %2305, %v2173
        %v2307 = vpop.permute.xlu0 %2306
        %2310 = vset.pattern.permute.xlu0 0
        %2311 = vperm.xlu0 %2310, %v2175
        %v2312 = vpop.permute.xlu0 %2311
        %2315 = vset.pattern.permute.xlu0 0
        %2316 = vperm.xlu0 %2315, %v2177
        %v2317 = vpop.permute.xlu0 %2316
        %2320 = vset.pattern.permute.xlu0 0
        %2321 = vperm.xlu0 %2320, %v2179
        %v2322 = vpop.permute.xlu0 %2321
        %2325 = vset.pattern.permute.xlu0 0
        %2326 = vperm.xlu0 %2325, %v2181
        %v2327 = vpop.permute.xlu0 %2326
        %2330 = vset.pattern.permute.xlu0 0
        %2331 = vperm.xlu0 %2330, %v2183
        %v2332 = vpop.permute.xlu0 %2331
        %2335 = vset.pattern.permute.xlu0 0
        %2336 = vperm.xlu0 %2335, %v2185
        %v2337 = vpop.permute.xlu0 %2336
        %2340 = vset.pattern.permute.xlu0 0
        %2341 = vperm.xlu0 %2340, %v2187
        %v2342 = vpop.permute.xlu0 %2341
        %2345 = vset.pattern.permute.xlu0 0
        %2346 = vperm.xlu0 %2345, %v2189
        %v2347 = vpop.permute.xlu0 %2346
        %2350 = vset.pattern.permute.xlu0 0
        %2351 = vperm.xlu0 %2350, %v2191
        %v2352 = vpop.permute.xlu0 %2351
        %2355 = vset.pattern.permute.xlu0 0
        %2356 = vperm.xlu0 %2355, %v2193
        %v2357 = vpop.permute.xlu0 %2356
        %2360 = vset.pattern.permute.xlu0 0
        %2361 = vperm.xlu0 %2360, %v2195
        %v2362 = vpop.permute.xlu0 %2361
        %2365 = vset.pattern.permute.xlu0 0
        %2366 = vperm.xlu0 %2365, %v2197
        %v2367 = vpop.permute.xlu0 %2366
        %2370 = vset.pattern.permute.xlu0 0
        %2371 = vperm.xlu0 %2370, %v2199
        %v2372 = vpop.permute.xlu0 %2371
        %2375 = vset.pattern.permute.xlu0 0
        %2376 = vperm.xlu0 %2375, %v2201
        %v2377 = vpop.permute.xlu0 %2376
        %2380 = vset.pattern.permute.xlu0 0
        %2381 = vperm.xlu0 %2380, %v2203
        %v2382 = vpop.permute.xlu0 %2381
        %2385 = vset.pattern.permute.xlu0 0
        %2386 = vperm.xlu0 %2385, %v2205
        %v2387 = vpop.permute.xlu0 %2386
        %2390 = vset.pattern.permute.xlu0 0
        %2391 = vperm.xlu0 %2390, %v2207
        %v2392 = vpop.permute.xlu0 %2391
        %2395 = vset.pattern.permute.xlu0 0
        %2396 = vperm.xlu0 %2395, %v2209
        %v2397 = vpop.permute.xlu0 %2396
        %2400 = vset.pattern.permute.xlu0 0
        %2401 = vperm.xlu0 %2400, %v2211
        %v2402 = vpop.permute.xlu0 %2401
        %2405 = vset.pattern.permute.xlu0 0
        %2406 = vperm.xlu0 %2405, %v2213
        %v2407 = vpop.permute.xlu0 %2406
        %2410 = vset.pattern.permute.xlu0 0
        %2411 = vperm.xlu0 %2410, %v2215
        %v2412 = vpop.permute.xlu0 %2411
        %2415 = vset.pattern.permute.xlu0 0
        %2416 = vperm.xlu0 %2415, %v2217
        %v2417 = vpop.permute.xlu0 %2416
        %2420 = vset.pattern.permute.xlu0 0
        %2421 = vperm.xlu0 %2420, %v2219
        %v2422 = vpop.permute.xlu0 %2421
        %2425 = vset.pattern.permute.xlu0 0
        %2426 = vperm.xlu0 %2425, %v2221
        %v2427 = vpop.permute.xlu0 %2426
        %2430 = vset.pattern.permute.xlu0 0
        %2431 = vperm.xlu0 %2430, %v2223
        %v2432 = vpop.permute.xlu0 %2431
        %2435 = vset.pattern.permute.xlu0 0
        %2436 = vperm.xlu0 %2435, %v2225
        %v2437 = vpop.permute.xlu0 %2436
        %2440 = vset.pattern.permute.xlu0 0
        %2441 = vperm.xlu0 %2440, %v2227
        %v2442 = vpop.permute.xlu0 %2441
        %2445 = vset.pattern.permute.xlu0 0
        %2446 = vperm.xlu0 %2445, %v2229
        %v2447 = vpop.permute.xlu0 %2446
        %2450 = vset.pattern.permute.xlu0 0
        %2451 = vperm.xlu0 %2450, %v2231
        %v2452 = vpop.permute.xlu0 %2451
        %2455 = vset.pattern.permute.xlu0 0
        %2456 = vperm.xlu0 %2455, %v2233
        %v2457 = vpop.permute.xlu0 %2456
        %2460 = vset.pattern.permute.xlu0 0
        %2461 = vperm.xlu0 %2460, %v2235
        %v2462 = vpop.permute.xlu0 %2461
        %2465 = vset.pattern.permute.xlu0 0
        %2466 = vperm.xlu0 %2465, %v2237
        %v2467 = vpop.permute.xlu0 %2466
        %2470 = vset.pattern.permute.xlu0 0
        %2471 = vperm.xlu0 %2470, %v2239
        %v2472 = vpop.permute.xlu0 %2471
        %2475 = vset.pattern.permute.xlu0 0
        %2476 = vperm.xlu0 %2475, %v2241
        %v2477 = vpop.permute.xlu0 %2476
        %2480 = vset.pattern.permute.xlu0 0
        %2481 = vperm.xlu0 %2480, %v2243
        %v2482 = vpop.permute.xlu0 %2481
        %2485 = vset.pattern.permute.xlu0 0
        %2486 = vperm.xlu0 %2485, %v2245
        %v2487 = vpop.permute.xlu0 %2486
        %2490 = vset.pattern.permute.xlu0 0
        %2491 = vperm.xlu0 %2490, %v2247
        %v2492 = vpop.permute.xlu0 %2491
        %2495 = vset.pattern.permute.xlu0 0
        %2496 = vperm.xlu0 %2495, %v2249
        %v2497 = vpop.permute.xlu0 %2496
        %2500 = vset.pattern.permute.xlu0 0
        %2501 = vperm.xlu0 %2500, %v2251
        %v2502 = vpop.permute.xlu0 %2501
        %2505 = vset.pattern.permute.xlu0 0
        %2506 = vperm.xlu0 %2505, %v2253
        %v2507 = vpop.permute.xlu0 %2506
        %2510 = vset.pattern.permute.xlu0 0
        %2511 = vperm.xlu0 %2510, %v2255
        %v2512 = vpop.permute.xlu0 %2511
        %2515 = vset.pattern.permute.xlu0 0
        %2516 = vperm.xlu0 %2515, %v2257
        %v2517 = vpop.permute.xlu0 %2516
        %2520 = vset.pattern.permute.xlu0 0
        %2521 = vperm.xlu0 %2520, %v2259
        %v2522 = vpop.permute.xlu0 %2521
        %2525 = vset.pattern.permute.xlu0 0
        %2526 = vperm.xlu0 %2525, %v2261
        %v2527 = vpop.permute.xlu0 %2526
        %2530 = vset.pattern.permute.xlu0 0
        %2531 = vperm.xlu0 %2530, %v2263
        %v2532 = vpop.permute.xlu0 %2531
        %2535 = vset.pattern.permute.xlu0 0
        %2536 = vperm.xlu0 %2535, %v2265
        %v2537 = vpop.permute.xlu0 %2536
        %2540 = vset.pattern.permute.xlu0 0
        %2541 = vperm.xlu0 %2540, %v2267
        %v2542 = vpop.permute.xlu0 %2541
        %2545 = vset.pattern.permute.xlu0 0
        %2546 = vperm.xlu0 %2545, %v2269
        %v2547 = vpop.permute.xlu0 %2546
        %2550 = vset.pattern.permute.xlu0 0
        %2551 = vperm.xlu0 %2550, %v2271
        %v2552 = vpop.permute.xlu0 %2551
        %2555 = vset.pattern.permute.xlu0 0
        %2556 = vperm.xlu0 %2555, %v2273
        %v2557 = vpop.permute.xlu0 %2556
        %2560 = vset.pattern.permute.xlu0 0
        %2561 = vperm.xlu0 %2560, %v2275
        %v2562 = vpop.permute.xlu0 %2561
        %2565 = vset.pattern.permute.xlu0 0
        %2566 = vperm.xlu0 %2565, %v2277
        %v2567 = vpop.permute.xlu0 %2566
        %2570 = vset.pattern.permute.xlu0 0
        %2571 = vperm.xlu0 %2570, %v2279
        %v2572 = vpop.permute.xlu0 %2571
        %2575 = vset.pattern.permute.xlu0 0
        %2576 = vperm.xlu0 %2575, %v2281
        %v2577 = vpop.permute.xlu0 %2576
        %2580 = vset.pattern.permute.xlu0 0
        %2581 = vperm.xlu0 %2580, %v2283
        %v2582 = vpop.permute.xlu0 %2581
        %2585 = vset.pattern.permute.xlu0 0
        %2586 = vperm.xlu0 %2585, %v2285
        %v2587 = vpop.permute.xlu0 %2586
        %2590 = vset.pattern.permute.xlu0 0
        %2591 = vperm.xlu0 %2590, %v2287
        %v2592 = vpop.permute.xlu0 %2591
        %2595 = vset.pattern.permute.xlu0 0
        %2596 = vperm.xlu0 %2595, %v2289
        %v2597 = vpop.permute.xlu0 %2596
        %2600 = vset.pattern.permute.xlu0 0
        %2601 = vperm.xlu0 %2600, %v2291
        %v2602 = vpop.permute.xlu0 %2601
        %2605 = vset.pattern.permute.xlu0 0
        %2606 = vperm.xlu0 %2605, %v2293
        %v2607 = vpop.permute.xlu0 %2606
        %2610 = vset.pattern.permute.xlu0 0
        %2611 = vperm.xlu0 %2610, %v2295
        %v2612 = vpop.permute.xlu0 %2611
        %2615 = vset.pattern.permute.xlu0 0
        %2616 = vperm.xlu0 %2615, %v2297
        %v2617 = vpop.permute.xlu0 %2616
        %v2619 = vlaneseq
        %v2620 = vshrl.u32 %v2619, 7
        %v2621 = vsub.s32 0, %v2620
        %v2622 = vrot.slane %v2298, %v2621
        %v2623 = vmul.f32 %v2302, %v2622
        %v2624 = vmul.f32 %v2307, %v2622
        %v2625 = vmul.f32 %v2312, %v2622
        %v2626 = vmul.f32 %v2317, %v2622
        %v2627 = vmul.f32 %v2322, %v2622
        %v2628 = vmul.f32 %v2327, %v2622
        %v2629 = vmul.f32 %v2332, %v2622
        %v2630 = vmul.f32 %v2337, %v2622
        %v2631 = vmul.f32 %v2342, %v2622
        %v2632 = vmul.f32 %v2347, %v2622
        %v2633 = vmul.f32 %v2352, %v2622
        %v2634 = vmul.f32 %v2357, %v2622
        %v2635 = vmul.f32 %v2362, %v2622
        %v2636 = vmul.f32 %v2367, %v2622
        %v2637 = vmul.f32 %v2372, %v2622
        %v2638 = vmul.f32 %v2377, %v2622
        %v2639 = vmul.f32 %v2382, %v2622
        %v2640 = vmul.f32 %v2387, %v2622
        %v2641 = vmul.f32 %v2392, %v2622
        %v2642 = vmul.f32 %v2397, %v2622
        %v2643 = vmul.f32 %v2402, %v2622
        %v2644 = vmul.f32 %v2407, %v2622
        %v2645 = vmul.f32 %v2412, %v2622
        %v2646 = vmul.f32 %v2417, %v2622
        %v2647 = vmul.f32 %v2422, %v2622
        %v2648 = vmul.f32 %v2427, %v2622
        %v2649 = vmul.f32 %v2432, %v2622
        %v2650 = vmul.f32 %v2437, %v2622
        %v2651 = vmul.f32 %v2442, %v2622
        %v2652 = vmul.f32 %v2447, %v2622
        %v2653 = vmul.f32 %v2452, %v2622
        %v2654 = vmul.f32 %v2457, %v2622
        %v2655 = vmul.f32 %v2462, %v2622
        %v2656 = vmul.f32 %v2467, %v2622
        %v2657 = vmul.f32 %v2472, %v2622
        %v2658 = vmul.f32 %v2477, %v2622
        %v2659 = vmul.f32 %v2482, %v2622
        %v2660 = vmul.f32 %v2487, %v2622
        %v2661 = vmul.f32 %v2492, %v2622
        %v2662 = vmul.f32 %v2497, %v2622
        %v2663 = vmul.f32 %v2502, %v2622
        %v2664 = vmul.f32 %v2507, %v2622
        %v2665 = vmul.f32 %v2512, %v2622
        %v2666 = vmul.f32 %v2517, %v2622
        %v2667 = vmul.f32 %v2522, %v2622
        %v2668 = vmul.f32 %v2527, %v2622
        %v2669 = vmul.f32 %v2532, %v2622
        %v2670 = vmul.f32 %v2537, %v2622
        %v2671 = vmul.f32 %v2542, %v2622
        %v2672 = vmul.f32 %v2547, %v2622
        %v2673 = vmul.f32 %v2552, %v2622
        %v2674 = vmul.f32 %v2557, %v2622
        %v2675 = vmul.f32 %v2562, %v2622
        %v2676 = vmul.f32 %v2567, %v2622
        %v2677 = vmul.f32 %v2572, %v2622
        %v2678 = vmul.f32 %v2577, %v2622
        %v2679 = vmul.f32 %v2582, %v2622
        %v2680 = vmul.f32 %v2587, %v2622
        %v2681 = vmul.f32 %v2592, %v2622
        %v2682 = vmul.f32 %v2597, %v2622
        %v2683 = vmul.f32 %v2602, %v2622
        %v2684 = vmul.f32 %v2607, %v2622
        %v2685 = vmul.f32 %v2612, %v2622
        %v2686 = vmul.f32 %v2617, %v2622
        %v2687 = vadd.f32 %v2106, %v2623
        %v2688 = vadd.f32 %v2107, %v2624
        %v2689 = vadd.f32 %v2108, %v2625
        %v2690 = vadd.f32 %v2109, %v2626
        %v2691 = vadd.f32 %v2110, %v2627
        %v2692 = vadd.f32 %v2111, %v2628
        %v2693 = vadd.f32 %v2112, %v2629
        %v2694 = vadd.f32 %v2113, %v2630
        %v2695 = vadd.f32 %v2114, %v2631
        %v2696 = vadd.f32 %v2115, %v2632
        %v2697 = vadd.f32 %v2116, %v2633
        %v2698 = vadd.f32 %v2117, %v2634
        %v2699 = vadd.f32 %v2118, %v2635
        %v2700 = vadd.f32 %v2119, %v2636
        %v2701 = vadd.f32 %v2120, %v2637
        %v2702 = vadd.f32 %v2121, %v2638
        %v2703 = vadd.f32 %v2122, %v2639
        %v2704 = vadd.f32 %v2123, %v2640
        %v2705 = vadd.f32 %v2124, %v2641
        %v2706 = vadd.f32 %v2125, %v2642
        %v2707 = vadd.f32 %v2126, %v2643
        %v2708 = vadd.f32 %v2127, %v2644
        %v2709 = vadd.f32 %v2128, %v2645
        %v2710 = vadd.f32 %v2129, %v2646
        %v2711 = vadd.f32 %v2130, %v2647
        %v2712 = vadd.f32 %v2131, %v2648
        %v2713 = vadd.f32 %v2132, %v2649
        %v2714 = vadd.f32 %v2133, %v2650
        %v2715 = vadd.f32 %v2134, %v2651
        %v2716 = vadd.f32 %v2135, %v2652
        %v2717 = vadd.f32 %v2136, %v2653
        %v2718 = vadd.f32 %v2137, %v2654
        %v2719 = vadd.f32 %v2138, %v2655
        %v2720 = vadd.f32 %v2139, %v2656
        %v2721 = vadd.f32 %v2140, %v2657
        %v2722 = vadd.f32 %v2141, %v2658
        %v2723 = vadd.f32 %v2142, %v2659
        %v2724 = vadd.f32 %v2143, %v2660
        %v2725 = vadd.f32 %v2144, %v2661
        %v2726 = vadd.f32 %v2145, %v2662
        %v2727 = vadd.f32 %v2146, %v2663
        %v2728 = vadd.f32 %v2147, %v2664
        %v2729 = vadd.f32 %v2148, %v2665
        %v2730 = vadd.f32 %v2149, %v2666
        %v2731 = vadd.f32 %v2150, %v2667
        %v2732 = vadd.f32 %v2151, %v2668
        %v2733 = vadd.f32 %v2152, %v2669
        %v2734 = vadd.f32 %v2153, %v2670
        %v2735 = vadd.f32 %v2154, %v2671
        %v2736 = vadd.f32 %v2155, %v2672
        %v2737 = vadd.f32 %v2156, %v2673
        %v2738 = vadd.f32 %v2157, %v2674
        %v2739 = vadd.f32 %v2158, %v2675
        %v2740 = vadd.f32 %v2159, %v2676
        %v2741 = vadd.f32 %v2160, %v2677
        %v2742 = vadd.f32 %v2161, %v2678
        %v2743 = vadd.f32 %v2162, %v2679
        %v2744 = vadd.f32 %v2163, %v2680
        %v2745 = vadd.f32 %v2164, %v2681
        %v2746 = vadd.f32 %v2165, %v2682
        %v2747 = vadd.f32 %v2166, %v2683
        %v2748 = vadd.f32 %v2167, %v2684
        %v2749 = vadd.f32 %v2168, %v2685
        %v2750 = vadd.f32 %v2169, %v2686
        %s2751 = scalar_lea.vmem %s491, 4
        %v2752 = vld [vmem:[%s2751] ss:$4 sm:$0xff]
        %s2753 = scalar_lea.vmem %s491, 36
        %v2754 = vld [vmem:[%s2753] ss:$4 sm:$0xff]
        %s2755 = scalar_lea.vmem %s491, 68
        %v2756 = vld [vmem:[%s2755] ss:$4 sm:$0xff]
        %s2757 = scalar_lea.vmem %s491, 100
        %v2758 = vld [vmem:[%s2757] ss:$4 sm:$0xff]
        %s2759 = scalar_lea.vmem %s491, 132
        %v2760 = vld [vmem:[%s2759] ss:$4 sm:$0xff]
        %s2761 = scalar_lea.vmem %s491, 164
        %v2762 = vld [vmem:[%s2761] ss:$4 sm:$0xff]
        %s2763 = scalar_lea.vmem %s491, 196
        %v2764 = vld [vmem:[%s2763] ss:$4 sm:$0xff]
        %s2765 = scalar_lea.vmem %s491, 228
        %v2766 = vld [vmem:[%s2765] ss:$4 sm:$0xff]
        %s2767 = scalar_lea.vmem %s491, 260
        %v2768 = vld [vmem:[%s2767] ss:$4 sm:$0xff]
        %s2769 = scalar_lea.vmem %s491, 292
        %v2770 = vld [vmem:[%s2769] ss:$4 sm:$0xff]
        %s2771 = scalar_lea.vmem %s491, 324
        %v2772 = vld [vmem:[%s2771] ss:$4 sm:$0xff]
        %s2773 = scalar_lea.vmem %s491, 356
        %v2774 = vld [vmem:[%s2773] ss:$4 sm:$0xff]
        %s2775 = scalar_lea.vmem %s491, 388
        %v2776 = vld [vmem:[%s2775] ss:$4 sm:$0xff]
        %s2777 = scalar_lea.vmem %s491, 420
        %v2778 = vld [vmem:[%s2777] ss:$4 sm:$0xff]
        %s2779 = scalar_lea.vmem %s491, 452
        %v2780 = vld [vmem:[%s2779] ss:$4 sm:$0xff]
        %s2781 = scalar_lea.vmem %s491, 484
        %v2782 = vld [vmem:[%s2781] ss:$4 sm:$0xff]
        %s2783 = scalar_lea.vmem %s491, 516
        %v2784 = vld [vmem:[%s2783] ss:$4 sm:$0xff]
        %s2785 = scalar_lea.vmem %s491, 548
        %v2786 = vld [vmem:[%s2785] ss:$4 sm:$0xff]
        %s2787 = scalar_lea.vmem %s491, 580
        %v2788 = vld [vmem:[%s2787] ss:$4 sm:$0xff]
        %s2789 = scalar_lea.vmem %s491, 612
        %v2790 = vld [vmem:[%s2789] ss:$4 sm:$0xff]
        %s2791 = scalar_lea.vmem %s491, 644
        %v2792 = vld [vmem:[%s2791] ss:$4 sm:$0xff]
        %s2793 = scalar_lea.vmem %s491, 676
        %v2794 = vld [vmem:[%s2793] ss:$4 sm:$0xff]
        %s2795 = scalar_lea.vmem %s491, 708
        %v2796 = vld [vmem:[%s2795] ss:$4 sm:$0xff]
        %s2797 = scalar_lea.vmem %s491, 740
        %v2798 = vld [vmem:[%s2797] ss:$4 sm:$0xff]
        %s2799 = scalar_lea.vmem %s491, 772
        %v2800 = vld [vmem:[%s2799] ss:$4 sm:$0xff]
        %s2801 = scalar_lea.vmem %s491, 804
        %v2802 = vld [vmem:[%s2801] ss:$4 sm:$0xff]
        %s2803 = scalar_lea.vmem %s491, 836
        %v2804 = vld [vmem:[%s2803] ss:$4 sm:$0xff]
        %s2805 = scalar_lea.vmem %s491, 868
        %v2806 = vld [vmem:[%s2805] ss:$4 sm:$0xff]
        %s2807 = scalar_lea.vmem %s491, 900
        %v2808 = vld [vmem:[%s2807] ss:$4 sm:$0xff]
        %s2809 = scalar_lea.vmem %s491, 932
        %v2810 = vld [vmem:[%s2809] ss:$4 sm:$0xff]
        %s2811 = scalar_lea.vmem %s491, 964
        %v2812 = vld [vmem:[%s2811] ss:$4 sm:$0xff]
        %s2813 = scalar_lea.vmem %s491, 996
        %v2814 = vld [vmem:[%s2813] ss:$4 sm:$0xff]
        %s2815 = scalar_lea.vmem %s491, 1028
        %v2816 = vld [vmem:[%s2815] ss:$4 sm:$0xff]
        %s2817 = scalar_lea.vmem %s491, 1060
        %v2818 = vld [vmem:[%s2817] ss:$4 sm:$0xff]
        %s2819 = scalar_lea.vmem %s491, 1092
        %v2820 = vld [vmem:[%s2819] ss:$4 sm:$0xff]
        %s2821 = scalar_lea.vmem %s491, 1124
        %v2822 = vld [vmem:[%s2821] ss:$4 sm:$0xff]
        %s2823 = scalar_lea.vmem %s491, 1156
        %v2824 = vld [vmem:[%s2823] ss:$4 sm:$0xff]
        %s2825 = scalar_lea.vmem %s491, 1188
        %v2826 = vld [vmem:[%s2825] ss:$4 sm:$0xff]
        %s2827 = scalar_lea.vmem %s491, 1220
        %v2828 = vld [vmem:[%s2827] ss:$4 sm:$0xff]
        %s2829 = scalar_lea.vmem %s491, 1252
        %v2830 = vld [vmem:[%s2829] ss:$4 sm:$0xff]
        %s2831 = scalar_lea.vmem %s491, 1284
        %v2832 = vld [vmem:[%s2831] ss:$4 sm:$0xff]
        %s2833 = scalar_lea.vmem %s491, 1316
        %v2834 = vld [vmem:[%s2833] ss:$4 sm:$0xff]
        %s2835 = scalar_lea.vmem %s491, 1348
        %v2836 = vld [vmem:[%s2835] ss:$4 sm:$0xff]
        %s2837 = scalar_lea.vmem %s491, 1380
        %v2838 = vld [vmem:[%s2837] ss:$4 sm:$0xff]
        %s2839 = scalar_lea.vmem %s491, 1412
        %v2840 = vld [vmem:[%s2839] ss:$4 sm:$0xff]
        %s2841 = scalar_lea.vmem %s491, 1444
        %v2842 = vld [vmem:[%s2841] ss:$4 sm:$0xff]
        %s2843 = scalar_lea.vmem %s491, 1476
        %v2844 = vld [vmem:[%s2843] ss:$4 sm:$0xff]
        %s2845 = scalar_lea.vmem %s491, 1508
        %v2846 = vld [vmem:[%s2845] ss:$4 sm:$0xff]
        %s2847 = scalar_lea.vmem %s491, 1540
        %v2848 = vld [vmem:[%s2847] ss:$4 sm:$0xff]
        %s2849 = scalar_lea.vmem %s491, 1572
        %v2850 = vld [vmem:[%s2849] ss:$4 sm:$0xff]
        %s2851 = scalar_lea.vmem %s491, 1604
        %v2852 = vld [vmem:[%s2851] ss:$4 sm:$0xff]
        %s2853 = scalar_lea.vmem %s491, 1636
        %v2854 = vld [vmem:[%s2853] ss:$4 sm:$0xff]
        %s2855 = scalar_lea.vmem %s491, 1668
        %v2856 = vld [vmem:[%s2855] ss:$4 sm:$0xff]
        %s2857 = scalar_lea.vmem %s491, 1700
        %v2858 = vld [vmem:[%s2857] ss:$4 sm:$0xff]
        %s2859 = scalar_lea.vmem %s491, 1732
        %v2860 = vld [vmem:[%s2859] ss:$4 sm:$0xff]
        %s2861 = scalar_lea.vmem %s491, 1764
        %v2862 = vld [vmem:[%s2861] ss:$4 sm:$0xff]
        %s2863 = scalar_lea.vmem %s491, 1796
        %v2864 = vld [vmem:[%s2863] ss:$4 sm:$0xff]
        %s2865 = scalar_lea.vmem %s491, 1828
        %v2866 = vld [vmem:[%s2865] ss:$4 sm:$0xff]
        %s2867 = scalar_lea.vmem %s491, 1860
        %v2868 = vld [vmem:[%s2867] ss:$4 sm:$0xff]
        %s2869 = scalar_lea.vmem %s491, 1892
        %v2870 = vld [vmem:[%s2869] ss:$4 sm:$0xff]
        %s2871 = scalar_lea.vmem %s491, 1924
        %v2872 = vld [vmem:[%s2871] ss:$4 sm:$0xff]
        %s2873 = scalar_lea.vmem %s491, 1956
        %v2874 = vld [vmem:[%s2873] ss:$4 sm:$0xff]
        %s2875 = scalar_lea.vmem %s491, 1988
        %v2876 = vld [vmem:[%s2875] ss:$4 sm:$0xff]
        %s2877 = scalar_lea.vmem %s491, 2020
        %v2878 = vld [vmem:[%s2877] ss:$4 sm:$0xff]
        %v2879 = vld [vmem:[%s1 + $0x4] sm:$0x1]
        %2881 = vset.pattern.permute.xlu0 0
        %2882 = vperm.xlu0 %2881, %v2752
        %v2883 = vpop.permute.xlu0 %2882
        %2886 = vset.pattern.permute.xlu0 0
        %2887 = vperm.xlu0 %2886, %v2754
        %v2888 = vpop.permute.xlu0 %2887
        %2891 = vset.pattern.permute.xlu0 0
        %2892 = vperm.xlu0 %2891, %v2756
        %v2893 = vpop.permute.xlu0 %2892
        %2896 = vset.pattern.permute.xlu0 0
        %2897 = vperm.xlu0 %2896, %v2758
        %v2898 = vpop.permute.xlu0 %2897
        %2901 = vset.pattern.permute.xlu0 0
        %2902 = vperm.xlu0 %2901, %v2760
        %v2903 = vpop.permute.xlu0 %2902
        %2906 = vset.pattern.permute.xlu0 0
        %2907 = vperm.xlu0 %2906, %v2762
        %v2908 = vpop.permute.xlu0 %2907
        %2911 = vset.pattern.permute.xlu0 0
        %2912 = vperm.xlu0 %2911, %v2764
        %v2913 = vpop.permute.xlu0 %2912
        %2916 = vset.pattern.permute.xlu0 0
        %2917 = vperm.xlu0 %2916, %v2766
        %v2918 = vpop.permute.xlu0 %2917
        %2921 = vset.pattern.permute.xlu0 0
        %2922 = vperm.xlu0 %2921, %v2768
        %v2923 = vpop.permute.xlu0 %2922
        %2926 = vset.pattern.permute.xlu0 0
        %2927 = vperm.xlu0 %2926, %v2770
        %v2928 = vpop.permute.xlu0 %2927
        %2931 = vset.pattern.permute.xlu0 0
        %2932 = vperm.xlu0 %2931, %v2772
        %v2933 = vpop.permute.xlu0 %2932
        %2936 = vset.pattern.permute.xlu0 0
        %2937 = vperm.xlu0 %2936, %v2774
        %v2938 = vpop.permute.xlu0 %2937
        %2941 = vset.pattern.permute.xlu0 0
        %2942 = vperm.xlu0 %2941, %v2776
        %v2943 = vpop.permute.xlu0 %2942
        %2946 = vset.pattern.permute.xlu0 0
        %2947 = vperm.xlu0 %2946, %v2778
        %v2948 = vpop.permute.xlu0 %2947
        %2951 = vset.pattern.permute.xlu0 0
        %2952 = vperm.xlu0 %2951, %v2780
        %v2953 = vpop.permute.xlu0 %2952
        %2956 = vset.pattern.permute.xlu0 0
        %2957 = vperm.xlu0 %2956, %v2782
        %v2958 = vpop.permute.xlu0 %2957
        %2961 = vset.pattern.permute.xlu0 0
        %2962 = vperm.xlu0 %2961, %v2784
        %v2963 = vpop.permute.xlu0 %2962
        %2966 = vset.pattern.permute.xlu0 0
        %2967 = vperm.xlu0 %2966, %v2786
        %v2968 = vpop.permute.xlu0 %2967
        %2971 = vset.pattern.permute.xlu0 0
        %2972 = vperm.xlu0 %2971, %v2788
        %v2973 = vpop.permute.xlu0 %2972
        %2976 = vset.pattern.permute.xlu0 0
        %2977 = vperm.xlu0 %2976, %v2790
        %v2978 = vpop.permute.xlu0 %2977
        %2981 = vset.pattern.permute.xlu0 0
        %2982 = vperm.xlu0 %2981, %v2792
        %v2983 = vpop.permute.xlu0 %2982
        %2986 = vset.pattern.permute.xlu0 0
        %2987 = vperm.xlu0 %2986, %v2794
        %v2988 = vpop.permute.xlu0 %2987
        %2991 = vset.pattern.permute.xlu0 0
        %2992 = vperm.xlu0 %2991, %v2796
        %v2993 = vpop.permute.xlu0 %2992
        %2996 = vset.pattern.permute.xlu0 0
        %2997 = vperm.xlu0 %2996, %v2798
        %v2998 = vpop.permute.xlu0 %2997
        %3001 = vset.pattern.permute.xlu0 0
        %3002 = vperm.xlu0 %3001, %v2800
        %v3003 = vpop.permute.xlu0 %3002
        %3006 = vset.pattern.permute.xlu0 0
        %3007 = vperm.xlu0 %3006, %v2802
        %v3008 = vpop.permute.xlu0 %3007
        %3011 = vset.pattern.permute.xlu0 0
        %3012 = vperm.xlu0 %3011, %v2804
        %v3013 = vpop.permute.xlu0 %3012
        %3016 = vset.pattern.permute.xlu0 0
        %3017 = vperm.xlu0 %3016, %v2806
        %v3018 = vpop.permute.xlu0 %3017
        %3021 = vset.pattern.permute.xlu0 0
        %3022 = vperm.xlu0 %3021, %v2808
        %v3023 = vpop.permute.xlu0 %3022
        %3026 = vset.pattern.permute.xlu0 0
        %3027 = vperm.xlu0 %3026, %v2810
        %v3028 = vpop.permute.xlu0 %3027
        %3031 = vset.pattern.permute.xlu0 0
        %3032 = vperm.xlu0 %3031, %v2812
        %v3033 = vpop.permute.xlu0 %3032
        %3036 = vset.pattern.permute.xlu0 0
        %3037 = vperm.xlu0 %3036, %v2814
        %v3038 = vpop.permute.xlu0 %3037
        %3041 = vset.pattern.permute.xlu0 0
        %3042 = vperm.xlu0 %3041, %v2816
        %v3043 = vpop.permute.xlu0 %3042
        %3046 = vset.pattern.permute.xlu0 0
        %3047 = vperm.xlu0 %3046, %v2818
        %v3048 = vpop.permute.xlu0 %3047
        %3051 = vset.pattern.permute.xlu0 0
        %3052 = vperm.xlu0 %3051, %v2820
        %v3053 = vpop.permute.xlu0 %3052
        %3056 = vset.pattern.permute.xlu0 0
        %3057 = vperm.xlu0 %3056, %v2822
        %v3058 = vpop.permute.xlu0 %3057
        %3061 = vset.pattern.permute.xlu0 0
        %3062 = vperm.xlu0 %3061, %v2824
        %v3063 = vpop.permute.xlu0 %3062
        %3066 = vset.pattern.permute.xlu0 0
        %3067 = vperm.xlu0 %3066, %v2826
        %v3068 = vpop.permute.xlu0 %3067
        %3071 = vset.pattern.permute.xlu0 0
        %3072 = vperm.xlu0 %3071, %v2828
        %v3073 = vpop.permute.xlu0 %3072
        %3076 = vset.pattern.permute.xlu0 0
        %3077 = vperm.xlu0 %3076, %v2830
        %v3078 = vpop.permute.xlu0 %3077
        %3081 = vset.pattern.permute.xlu0 0
        %3082 = vperm.xlu0 %3081, %v2832
        %v3083 = vpop.permute.xlu0 %3082
        %3086 = vset.pattern.permute.xlu0 0
        %3087 = vperm.xlu0 %3086, %v2834
        %v3088 = vpop.permute.xlu0 %3087
        %3091 = vset.pattern.permute.xlu0 0
        %3092 = vperm.xlu0 %3091, %v2836
        %v3093 = vpop.permute.xlu0 %3092
        %3096 = vset.pattern.permute.xlu0 0
        %3097 = vperm.xlu0 %3096, %v2838
        %v3098 = vpop.permute.xlu0 %3097
        %3101 = vset.pattern.permute.xlu0 0
        %3102 = vperm.xlu0 %3101, %v2840
        %v3103 = vpop.permute.xlu0 %3102
        %3106 = vset.pattern.permute.xlu0 0
        %3107 = vperm.xlu0 %3106, %v2842
        %v3108 = vpop.permute.xlu0 %3107
        %3111 = vset.pattern.permute.xlu0 0
        %3112 = vperm.xlu0 %3111, %v2844
        %v3113 = vpop.permute.xlu0 %3112
        %3116 = vset.pattern.permute.xlu0 0
        %3117 = vperm.xlu0 %3116, %v2846
        %v3118 = vpop.permute.xlu0 %3117
        %3121 = vset.pattern.permute.xlu0 0
        %3122 = vperm.xlu0 %3121, %v2848
        %v3123 = vpop.permute.xlu0 %3122
        %3126 = vset.pattern.permute.xlu0 0
        %3127 = vperm.xlu0 %3126, %v2850
        %v3128 = vpop.permute.xlu0 %3127
        %3131 = vset.pattern.permute.xlu0 0
        %3132 = vperm.xlu0 %3131, %v2852
        %v3133 = vpop.permute.xlu0 %3132
        %3136 = vset.pattern.permute.xlu0 0
        %3137 = vperm.xlu0 %3136, %v2854
        %v3138 = vpop.permute.xlu0 %3137
        %3141 = vset.pattern.permute.xlu0 0
        %3142 = vperm.xlu0 %3141, %v2856
        %v3143 = vpop.permute.xlu0 %3142
        %3146 = vset.pattern.permute.xlu0 0
        %3147 = vperm.xlu0 %3146, %v2858
        %v3148 = vpop.permute.xlu0 %3147
        %3151 = vset.pattern.permute.xlu0 0
        %3152 = vperm.xlu0 %3151, %v2860
        %v3153 = vpop.permute.xlu0 %3152
        %3156 = vset.pattern.permute.xlu0 0
        %3157 = vperm.xlu0 %3156, %v2862
        %v3158 = vpop.permute.xlu0 %3157
        %3161 = vset.pattern.permute.xlu0 0
        %3162 = vperm.xlu0 %3161, %v2864
        %v3163 = vpop.permute.xlu0 %3162
        %3166 = vset.pattern.permute.xlu0 0
        %3167 = vperm.xlu0 %3166, %v2866
        %v3168 = vpop.permute.xlu0 %3167
        %3171 = vset.pattern.permute.xlu0 0
        %3172 = vperm.xlu0 %3171, %v2868
        %v3173 = vpop.permute.xlu0 %3172
        %3176 = vset.pattern.permute.xlu0 0
        %3177 = vperm.xlu0 %3176, %v2870
        %v3178 = vpop.permute.xlu0 %3177
        %3181 = vset.pattern.permute.xlu0 0
        %3182 = vperm.xlu0 %3181, %v2872
        %v3183 = vpop.permute.xlu0 %3182
        %3186 = vset.pattern.permute.xlu0 0
        %3187 = vperm.xlu0 %3186, %v2874
        %v3188 = vpop.permute.xlu0 %3187
        %3191 = vset.pattern.permute.xlu0 0
        %3192 = vperm.xlu0 %3191, %v2876
        %v3193 = vpop.permute.xlu0 %3192
        %3196 = vset.pattern.permute.xlu0 0
        %3197 = vperm.xlu0 %3196, %v2878
        %v3198 = vpop.permute.xlu0 %3197
        %v3200 = vlaneseq
        %v3201 = vshrl.u32 %v3200, 7
        %v3202 = vsub.s32 0, %v3201
        %v3203 = vrot.slane %v2879, %v3202
        %v3204 = vmul.f32 %v2883, %v3203
        %v3205 = vmul.f32 %v2888, %v3203
        %v3206 = vmul.f32 %v2893, %v3203
        %v3207 = vmul.f32 %v2898, %v3203
        %v3208 = vmul.f32 %v2903, %v3203
        %v3209 = vmul.f32 %v2908, %v3203
        %v3210 = vmul.f32 %v2913, %v3203
        %v3211 = vmul.f32 %v2918, %v3203
        %v3212 = vmul.f32 %v2923, %v3203
        %v3213 = vmul.f32 %v2928, %v3203
        %v3214 = vmul.f32 %v2933, %v3203
        %v3215 = vmul.f32 %v2938, %v3203
        %v3216 = vmul.f32 %v2943, %v3203
        %v3217 = vmul.f32 %v2948, %v3203
        %v3218 = vmul.f32 %v2953, %v3203
        %v3219 = vmul.f32 %v2958, %v3203
        %v3220 = vmul.f32 %v2963, %v3203
        %v3221 = vmul.f32 %v2968, %v3203
        %v3222 = vmul.f32 %v2973, %v3203
        %v3223 = vmul.f32 %v2978, %v3203
        %v3224 = vmul.f32 %v2983, %v3203
        %v3225 = vmul.f32 %v2988, %v3203
        %v3226 = vmul.f32 %v2993, %v3203
        %v3227 = vmul.f32 %v2998, %v3203
        %v3228 = vmul.f32 %v3003, %v3203
        %v3229 = vmul.f32 %v3008, %v3203
        %v3230 = vmul.f32 %v3013, %v3203
        %v3231 = vmul.f32 %v3018, %v3203
        %v3232 = vmul.f32 %v3023, %v3203
        %v3233 = vmul.f32 %v3028, %v3203
        %v3234 = vmul.f32 %v3033, %v3203
        %v3235 = vmul.f32 %v3038, %v3203
        %v3236 = vmul.f32 %v3043, %v3203
        %v3237 = vmul.f32 %v3048, %v3203
        %v3238 = vmul.f32 %v3053, %v3203
        %v3239 = vmul.f32 %v3058, %v3203
        %v3240 = vmul.f32 %v3063, %v3203
        %v3241 = vmul.f32 %v3068, %v3203
        %v3242 = vmul.f32 %v3073, %v3203
        %v3243 = vmul.f32 %v3078, %v3203
        %v3244 = vmul.f32 %v3083, %v3203
        %v3245 = vmul.f32 %v3088, %v3203
        %v3246 = vmul.f32 %v3093, %v3203
        %v3247 = vmul.f32 %v3098, %v3203
        %v3248 = vmul.f32 %v3103, %v3203
        %v3249 = vmul.f32 %v3108, %v3203
        %v3250 = vmul.f32 %v3113, %v3203
        %v3251 = vmul.f32 %v3118, %v3203
        %v3252 = vmul.f32 %v3123, %v3203
        %v3253 = vmul.f32 %v3128, %v3203
        %v3254 = vmul.f32 %v3133, %v3203
        %v3255 = vmul.f32 %v3138, %v3203
        %v3256 = vmul.f32 %v3143, %v3203
        %v3257 = vmul.f32 %v3148, %v3203
        %v3258 = vmul.f32 %v3153, %v3203
        %v3259 = vmul.f32 %v3158, %v3203
        %v3260 = vmul.f32 %v3163, %v3203
        %v3261 = vmul.f32 %v3168, %v3203
        %v3262 = vmul.f32 %v3173, %v3203
        %v3263 = vmul.f32 %v3178, %v3203
        %v3264 = vmul.f32 %v3183, %v3203
        %v3265 = vmul.f32 %v3188, %v3203
        %v3266 = vmul.f32 %v3193, %v3203
        %v3267 = vmul.f32 %v3198, %v3203
        %v3268 = vadd.f32 %v2687, %v3204
        %v3269 = vadd.f32 %v2688, %v3205
        %v3270 = vadd.f32 %v2689, %v3206
        %v3271 = vadd.f32 %v2690, %v3207
        %v3272 = vadd.f32 %v2691, %v3208
        %v3273 = vadd.f32 %v2692, %v3209
        %v3274 = vadd.f32 %v2693, %v3210
        %v3275 = vadd.f32 %v2694, %v3211
        %v3276 = vadd.f32 %v2695, %v3212
        %v3277 = vadd.f32 %v2696, %v3213
        %v3278 = vadd.f32 %v2697, %v3214
        %v3279 = vadd.f32 %v2698, %v3215
        %v3280 = vadd.f32 %v2699, %v3216
        %v3281 = vadd.f32 %v2700, %v3217
        %v3282 = vadd.f32 %v2701, %v3218
        %v3283 = vadd.f32 %v2702, %v3219
        %v3284 = vadd.f32 %v2703, %v3220
        %v3285 = vadd.f32 %v2704, %v3221
        %v3286 = vadd.f32 %v2705, %v3222
        %v3287 = vadd.f32 %v2706, %v3223
        %v3288 = vadd.f32 %v2707, %v3224
        %v3289 = vadd.f32 %v2708, %v3225
        %v3290 = vadd.f32 %v2709, %v3226
        %v3291 = vadd.f32 %v2710, %v3227
        %v3292 = vadd.f32 %v2711, %v3228
        %v3293 = vadd.f32 %v2712, %v3229
        %v3294 = vadd.f32 %v2713, %v3230
        %v3295 = vadd.f32 %v2714, %v3231
        %v3296 = vadd.f32 %v2715, %v3232
        %v3297 = vadd.f32 %v2716, %v3233
        %v3298 = vadd.f32 %v2717, %v3234
        %v3299 = vadd.f32 %v2718, %v3235
        %v3300 = vadd.f32 %v2719, %v3236
        %v3301 = vadd.f32 %v2720, %v3237
        %v3302 = vadd.f32 %v2721, %v3238
        %v3303 = vadd.f32 %v2722, %v3239
        %v3304 = vadd.f32 %v2723, %v3240
        %v3305 = vadd.f32 %v2724, %v3241
        %v3306 = vadd.f32 %v2725, %v3242
        %v3307 = vadd.f32 %v2726, %v3243
        %v3308 = vadd.f32 %v2727, %v3244
        %v3309 = vadd.f32 %v2728, %v3245
        %v3310 = vadd.f32 %v2729, %v3246
        %v3311 = vadd.f32 %v2730, %v3247
        %v3312 = vadd.f32 %v2731, %v3248
        %v3313 = vadd.f32 %v2732, %v3249
        %v3314 = vadd.f32 %v2733, %v3250
        %v3315 = vadd.f32 %v2734, %v3251
        %v3316 = vadd.f32 %v2735, %v3252
        %v3317 = vadd.f32 %v2736, %v3253
        %v3318 = vadd.f32 %v2737, %v3254
        %v3319 = vadd.f32 %v2738, %v3255
        %v3320 = vadd.f32 %v2739, %v3256
        %v3321 = vadd.f32 %v2740, %v3257
        %v3322 = vadd.f32 %v2741, %v3258
        %v3323 = vadd.f32 %v2742, %v3259
        %v3324 = vadd.f32 %v2743, %v3260
        %v3325 = vadd.f32 %v2744, %v3261
        %v3326 = vadd.f32 %v2745, %v3262
        %v3327 = vadd.f32 %v2746, %v3263
        %v3328 = vadd.f32 %v2747, %v3264
        %v3329 = vadd.f32 %v2748, %v3265
        %v3330 = vadd.f32 %v2749, %v3266
        %v3331 = vadd.f32 %v2750, %v3267
        %v3332 = vld [vmem:[%s2] sm:$0x1]
        %v3334 = vlaneseq
        %v3335 = vshrl.u32 %v3334, 7
        %v3336 = vsub.s32 0, %v3335
        %v3337 = vrot.slane %v3332, %v3336
        %v3339 = vadd.f32 %v3268, %v3337
        %v3340 = vadd.f32 %v3269, %v3337
        %v3341 = vadd.f32 %v3270, %v3337
        %v3342 = vadd.f32 %v3271, %v3337
        %v3343 = vadd.f32 %v3272, %v3337
        %v3344 = vadd.f32 %v3273, %v3337
        %v3345 = vadd.f32 %v3274, %v3337
        %v3346 = vadd.f32 %v3275, %v3337
        %v3347 = vadd.f32 %v3276, %v3337
        %v3348 = vadd.f32 %v3277, %v3337
        %v3349 = vadd.f32 %v3278, %v3337
        %v3350 = vadd.f32 %v3279, %v3337
        %v3351 = vadd.f32 %v3280, %v3337
        %v3352 = vadd.f32 %v3281, %v3337
        %v3353 = vadd.f32 %v3282, %v3337
        %v3354 = vadd.f32 %v3283, %v3337
        %v3355 = vadd.f32 %v3284, %v3337
        %v3356 = vadd.f32 %v3285, %v3337
        %v3357 = vadd.f32 %v3286, %v3337
        %v3358 = vadd.f32 %v3287, %v3337
        %v3359 = vadd.f32 %v3288, %v3337
        %v3360 = vadd.f32 %v3289, %v3337
        %v3361 = vadd.f32 %v3290, %v3337
        %v3362 = vadd.f32 %v3291, %v3337
        %v3363 = vadd.f32 %v3292, %v3337
        %v3364 = vadd.f32 %v3293, %v3337
        %v3365 = vadd.f32 %v3294, %v3337
        %v3366 = vadd.f32 %v3295, %v3337
        %v3367 = vadd.f32 %v3296, %v3337
        %v3368 = vadd.f32 %v3297, %v3337
        %v3369 = vadd.f32 %v3298, %v3337
        %v3370 = vadd.f32 %v3299, %v3337
        %v3371 = vadd.f32 %v3300, %v3337
        %v3372 = vadd.f32 %v3301, %v3337
        %v3373 = vadd.f32 %v3302, %v3337
        %v3374 = vadd.f32 %v3303, %v3337
        %v3375 = vadd.f32 %v3304, %v3337
        %v3376 = vadd.f32 %v3305, %v3337
        %v3377 = vadd.f32 %v3306, %v3337
        %v3378 = vadd.f32 %v3307, %v3337
        %v3379 = vadd.f32 %v3308, %v3337
        %v3380 = vadd.f32 %v3309, %v3337
        %v3381 = vadd.f32 %v3310, %v3337
        %v3382 = vadd.f32 %v3311, %v3337
        %v3383 = vadd.f32 %v3312, %v3337
        %v3384 = vadd.f32 %v3313, %v3337
        %v3385 = vadd.f32 %v3314, %v3337
        %v3386 = vadd.f32 %v3315, %v3337
        %v3387 = vadd.f32 %v3316, %v3337
        %v3388 = vadd.f32 %v3317, %v3337
        %v3389 = vadd.f32 %v3318, %v3337
        %v3390 = vadd.f32 %v3319, %v3337
        %v3391 = vadd.f32 %v3320, %v3337
        %v3392 = vadd.f32 %v3321, %v3337
        %v3393 = vadd.f32 %v3322, %v3337
        %v3394 = vadd.f32 %v3323, %v3337
        %v3395 = vadd.f32 %v3324, %v3337
        %v3396 = vadd.f32 %v3325, %v3337
        %v3397 = vadd.f32 %v3326, %v3337
        %v3398 = vadd.f32 %v3327, %v3337
        %v3399 = vadd.f32 %v3328, %v3337
        %v3400 = vadd.f32 %v3329, %v3337
        %v3401 = vadd.f32 %v3330, %v3337
        %v3402 = vadd.f32 %v3331, %v3337
        %vm3403 = vcmp.gt.f32.partialorder %v3339, 0.0
        %vm3404 = vcmp.gt.f32.partialorder %v3340, 0.0
        %vm3405 = vcmp.gt.f32.partialorder %v3341, 0.0
        %vm3406 = vcmp.gt.f32.partialorder %v3342, 0.0
        %vm3407 = vcmp.gt.f32.partialorder %v3343, 0.0
        %vm3408 = vcmp.gt.f32.partialorder %v3344, 0.0
        %vm3409 = vcmp.gt.f32.partialorder %v3345, 0.0
        %vm3410 = vcmp.gt.f32.partialorder %v3346, 0.0
        %vm3411 = vcmp.gt.f32.partialorder %v3347, 0.0
        %vm3412 = vcmp.gt.f32.partialorder %v3348, 0.0
        %vm3413 = vcmp.gt.f32.partialorder %v3349, 0.0
        %vm3414 = vcmp.gt.f32.partialorder %v3350, 0.0
        %vm3415 = vcmp.gt.f32.partialorder %v3351, 0.0
        %vm3416 = vcmp.gt.f32.partialorder %v3352, 0.0
        %vm3417 = vcmp.gt.f32.partialorder %v3353, 0.0
        %vm3418 = vcmp.gt.f32.partialorder %v3354, 0.0
        %vm3419 = vcmp.gt.f32.partialorder %v3355, 0.0
        %vm3420 = vcmp.gt.f32.partialorder %v3356, 0.0
        %vm3421 = vcmp.gt.f32.partialorder %v3357, 0.0
        %vm3422 = vcmp.gt.f32.partialorder %v3358, 0.0
        %vm3423 = vcmp.gt.f32.partialorder %v3359, 0.0
        %vm3424 = vcmp.gt.f32.partialorder %v3360, 0.0
        %vm3425 = vcmp.gt.f32.partialorder %v3361, 0.0
        %vm3426 = vcmp.gt.f32.partialorder %v3362, 0.0
        %vm3427 = vcmp.gt.f32.partialorder %v3363, 0.0
        %vm3428 = vcmp.gt.f32.partialorder %v3364, 0.0
        %vm3429 = vcmp.gt.f32.partialorder %v3365, 0.0
        %vm3430 = vcmp.gt.f32.partialorder %v3366, 0.0
        %vm3431 = vcmp.gt.f32.partialorder %v3367, 0.0
        %vm3432 = vcmp.gt.f32.partialorder %v3368, 0.0
        %vm3433 = vcmp.gt.f32.partialorder %v3369, 0.0
        %vm3434 = vcmp.gt.f32.partialorder %v3370, 0.0
        %vm3435 = vcmp.gt.f32.partialorder %v3371, 0.0
        %vm3436 = vcmp.gt.f32.partialorder %v3372, 0.0
        %vm3437 = vcmp.gt.f32.partialorder %v3373, 0.0
        %vm3438 = vcmp.gt.f32.partialorder %v3374, 0.0
        %vm3439 = vcmp.gt.f32.partialorder %v3375, 0.0
        %vm3440 = vcmp.gt.f32.partialorder %v3376, 0.0
        %vm3441 = vcmp.gt.f32.partialorder %v3377, 0.0
        %vm3442 = vcmp.gt.f32.partialorder %v3378, 0.0
        %vm3443 = vcmp.gt.f32.partialorder %v3379, 0.0
        %vm3444 = vcmp.gt.f32.partialorder %v3380, 0.0
        %vm3445 = vcmp.gt.f32.partialorder %v3381, 0.0
        %vm3446 = vcmp.gt.f32.partialorder %v3382, 0.0
        %vm3447 = vcmp.gt.f32.partialorder %v3383, 0.0
        %vm3448 = vcmp.gt.f32.partialorder %v3384, 0.0
        %vm3449 = vcmp.gt.f32.partialorder %v3385, 0.0
        %vm3450 = vcmp.gt.f32.partialorder %v3386, 0.0
        %vm3451 = vcmp.gt.f32.partialorder %v3387, 0.0
        %vm3452 = vcmp.gt.f32.partialorder %v3388, 0.0
        %vm3453 = vcmp.gt.f32.partialorder %v3389, 0.0
        %vm3454 = vcmp.gt.f32.partialorder %v3390, 0.0
        %vm3455 = vcmp.gt.f32.partialorder %v3391, 0.0
        %vm3456 = vcmp.gt.f32.partialorder %v3392, 0.0
        %vm3457 = vcmp.gt.f32.partialorder %v3393, 0.0
        %vm3458 = vcmp.gt.f32.partialorder %v3394, 0.0
        %vm3459 = vcmp.gt.f32.partialorder %v3395, 0.0
        %vm3460 = vcmp.gt.f32.partialorder %v3396, 0.0
        %vm3461 = vcmp.gt.f32.partialorder %v3397, 0.0
        %vm3462 = vcmp.gt.f32.partialorder %v3398, 0.0
        %vm3463 = vcmp.gt.f32.partialorder %v3399, 0.0
        %vm3464 = vcmp.gt.f32.partialorder %v3400, 0.0
        %vm3465 = vcmp.gt.f32.partialorder %v3401, 0.0
        %vm3466 = vcmp.gt.f32.partialorder %v3402, 0.0
        %v3467 = vmul.f32 %v3339, 0.2
        %v3468 = vmul.f32 %v3340, 0.2
        %v3469 = vmul.f32 %v3341, 0.2
        %v3470 = vmul.f32 %v3342, 0.2
        %v3471 = vmul.f32 %v3343, 0.2
        %v3472 = vmul.f32 %v3344, 0.2
        %v3473 = vmul.f32 %v3345, 0.2
        %v3474 = vmul.f32 %v3346, 0.2
        %v3475 = vmul.f32 %v3347, 0.2
        %v3476 = vmul.f32 %v3348, 0.2
        %v3477 = vmul.f32 %v3349, 0.2
        %v3478 = vmul.f32 %v3350, 0.2
        %v3479 = vmul.f32 %v3351, 0.2
        %v3480 = vmul.f32 %v3352, 0.2
        %v3481 = vmul.f32 %v3353, 0.2
        %v3482 = vmul.f32 %v3354, 0.2
        %v3483 = vmul.f32 %v3355, 0.2
        %v3484 = vmul.f32 %v3356, 0.2
        %v3485 = vmul.f32 %v3357, 0.2
        %v3486 = vmul.f32 %v3358, 0.2
        %v3487 = vmul.f32 %v3359, 0.2
        %v3488 = vmul.f32 %v3360, 0.2
        %v3489 = vmul.f32 %v3361, 0.2
        %v3490 = vmul.f32 %v3362, 0.2
        %v3491 = vmul.f32 %v3363, 0.2
        %v3492 = vmul.f32 %v3364, 0.2
        %v3493 = vmul.f32 %v3365, 0.2
        %v3494 = vmul.f32 %v3366, 0.2
        %v3495 = vmul.f32 %v3367, 0.2
        %v3496 = vmul.f32 %v3368, 0.2
        %v3497 = vmul.f32 %v3369, 0.2
        %v3498 = vmul.f32 %v3370, 0.2
        %v3499 = vmul.f32 %v3371, 0.2
        %v3500 = vmul.f32 %v3372, 0.2
        %v3501 = vmul.f32 %v3373, 0.2
        %v3502 = vmul.f32 %v3374, 0.2
        %v3503 = vmul.f32 %v3375, 0.2
        %v3504 = vmul.f32 %v3376, 0.2
        %v3505 = vmul.f32 %v3377, 0.2
        %v3506 = vmul.f32 %v3378, 0.2
        %v3507 = vmul.f32 %v3379, 0.2
        %v3508 = vmul.f32 %v3380, 0.2
        %v3509 = vmul.f32 %v3381, 0.2
        %v3510 = vmul.f32 %v3382, 0.2
        %v3511 = vmul.f32 %v3383, 0.2
        %v3512 = vmul.f32 %v3384, 0.2
        %v3513 = vmul.f32 %v3385, 0.2
        %v3514 = vmul.f32 %v3386, 0.2
        %v3515 = vmul.f32 %v3387, 0.2
        %v3516 = vmul.f32 %v3388, 0.2
        %v3517 = vmul.f32 %v3389, 0.2
        %v3518 = vmul.f32 %v3390, 0.2
        %v3519 = vmul.f32 %v3391, 0.2
        %v3520 = vmul.f32 %v3392, 0.2
        %v3521 = vmul.f32 %v3393, 0.2
        %v3522 = vmul.f32 %v3394, 0.2
        %v3523 = vmul.f32 %v3395, 0.2
        %v3524 = vmul.f32 %v3396, 0.2
        %v3525 = vmul.f32 %v3397, 0.2
        %v3526 = vmul.f32 %v3398, 0.2
        %v3527 = vmul.f32 %v3399, 0.2
        %v3528 = vmul.f32 %v3400, 0.2
        %v3529 = vmul.f32 %v3401, 0.2
        %v3530 = vmul.f32 %v3402, 0.2
        %v3531 = vsel %vm3403, %v3339, %v3467
        %v3532 = vsel %vm3404, %v3340, %v3468
        %v3533 = vsel %vm3405, %v3341, %v3469
        %v3534 = vsel %vm3406, %v3342, %v3470
        %v3535 = vsel %vm3407, %v3343, %v3471
        %v3536 = vsel %vm3408, %v3344, %v3472
        %v3537 = vsel %vm3409, %v3345, %v3473
        %v3538 = vsel %vm3410, %v3346, %v3474
        %v3539 = vsel %vm3411, %v3347, %v3475
        %v3540 = vsel %vm3412, %v3348, %v3476
        %v3541 = vsel %vm3413, %v3349, %v3477
        %v3542 = vsel %vm3414, %v3350, %v3478
        %v3543 = vsel %vm3415, %v3351, %v3479
        %v3544 = vsel %vm3416, %v3352, %v3480
        %v3545 = vsel %vm3417, %v3353, %v3481
        %v3546 = vsel %vm3418, %v3354, %v3482
        %v3547 = vsel %vm3419, %v3355, %v3483
        %v3548 = vsel %vm3420, %v3356, %v3484
        %v3549 = vsel %vm3421, %v3357, %v3485
        %v3550 = vsel %vm3422, %v3358, %v3486
        %v3551 = vsel %vm3423, %v3359, %v3487
        %v3552 = vsel %vm3424, %v3360, %v3488
        %v3553 = vsel %vm3425, %v3361, %v3489
        %v3554 = vsel %vm3426, %v3362, %v3490
        %v3555 = vsel %vm3427, %v3363, %v3491
        %v3556 = vsel %vm3428, %v3364, %v3492
        %v3557 = vsel %vm3429, %v3365, %v3493
        %v3558 = vsel %vm3430, %v3366, %v3494
        %v3559 = vsel %vm3431, %v3367, %v3495
        %v3560 = vsel %vm3432, %v3368, %v3496
        %v3561 = vsel %vm3433, %v3369, %v3497
        %v3562 = vsel %vm3434, %v3370, %v3498
        %v3563 = vsel %vm3435, %v3371, %v3499
        %v3564 = vsel %vm3436, %v3372, %v3500
        %v3565 = vsel %vm3437, %v3373, %v3501
        %v3566 = vsel %vm3438, %v3374, %v3502
        %v3567 = vsel %vm3439, %v3375, %v3503
        %v3568 = vsel %vm3440, %v3376, %v3504
        %v3569 = vsel %vm3441, %v3377, %v3505
        %v3570 = vsel %vm3442, %v3378, %v3506
        %v3571 = vsel %vm3443, %v3379, %v3507
        %v3572 = vsel %vm3444, %v3380, %v3508
        %v3573 = vsel %vm3445, %v3381, %v3509
        %v3574 = vsel %vm3446, %v3382, %v3510
        %v3575 = vsel %vm3447, %v3383, %v3511
        %v3576 = vsel %vm3448, %v3384, %v3512
        %v3577 = vsel %vm3449, %v3385, %v3513
        %v3578 = vsel %vm3450, %v3386, %v3514
        %v3579 = vsel %vm3451, %v3387, %v3515
        %v3580 = vsel %vm3452, %v3388, %v3516
        %v3581 = vsel %vm3453, %v3389, %v3517
        %v3582 = vsel %vm3454, %v3390, %v3518
        %v3583 = vsel %vm3455, %v3391, %v3519
        %v3584 = vsel %vm3456, %v3392, %v3520
        %v3585 = vsel %vm3457, %v3393, %v3521
        %v3586 = vsel %vm3458, %v3394, %v3522
        %v3587 = vsel %vm3459, %v3395, %v3523
        %v3588 = vsel %vm3460, %v3396, %v3524
        %v3589 = vsel %vm3461, %v3397, %v3525
        %v3590 = vsel %vm3462, %v3398, %v3526
        %v3591 = vsel %vm3463, %v3399, %v3527
        %v3592 = vsel %vm3464, %v3400, %v3528
        %v3593 = vsel %vm3465, %v3401, %v3529
        %v3594 = vsel %vm3466, %v3402, %v3530
        %vm3595 = vcmask 123904
        %3596 = vst.msk [vmem:[#allocation2] sm:$0x3] %vm3595, 0.0
        %vm3597 = vcmask 130048
        %3598 = vst.msk [vmem:[#allocation2 + $0x2] sm:$0xff] %vm3597, %v3531
        %3599 = vst.msk [vmem:[#allocation2 + $0xa] sm:$0xff] %vm3597, %v3532
        %3600 = vst.msk [vmem:[#allocation2 + $0x12] sm:$0xff] %vm3597, %v3533
        %3601 = vst.msk [vmem:[#allocation2 + $0x1a] sm:$0xff] %vm3597, %v3534
        %3602 = vst.msk [vmem:[#allocation2 + $0x22] sm:$0xff] %vm3597, %v3535
        %3603 = vst.msk [vmem:[#allocation2 + $0x2a] sm:$0xff] %vm3597, %v3536
        %3604 = vst.msk [vmem:[#allocation2 + $0x32] sm:$0xff] %vm3597, %v3537
        %3605 = vst.msk [vmem:[#allocation2 + $0x3a] sm:$0xff] %vm3597, %v3538
        %3606 = vst.msk [vmem:[#allocation2 + $0x42] sm:$0xff] %vm3597, %v3539
        %3607 = vst.msk [vmem:[#allocation2 + $0x4a] sm:$0xff] %vm3597, %v3540
        %3608 = vst.msk [vmem:[#allocation2 + $0x52] sm:$0xff] %vm3597, %v3541
        %3609 = vst.msk [vmem:[#allocation2 + $0x5a] sm:$0xff] %vm3597, %v3542
        %3610 = vst.msk [vmem:[#allocation2 + $0x62] sm:$0xff] %vm3597, %v3543
        %3611 = vst.msk [vmem:[#allocation2 + $0x6a] sm:$0xff] %vm3597, %v3544
        %3612 = vst.msk [vmem:[#allocation2 + $0x72] sm:$0xff] %vm3597, %v3545
        %3613 = vst.msk [vmem:[#allocation2 + $0x7a] sm:$0xff] %vm3597, %v3546
        %3614 = vst.msk [vmem:[#allocation2 + $0x82] sm:$0xff] %vm3597, %v3547
        %3615 = vst.msk [vmem:[#allocation2 + $0x8a] sm:$0xff] %vm3597, %v3548
        %3616 = vst.msk [vmem:[#allocation2 + $0x92] sm:$0xff] %vm3597, %v3549
        %3617 = vst.msk [vmem:[#allocation2 + $0x9a] sm:$0xff] %vm3597, %v3550
        %3618 = vst.msk [vmem:[#allocation2 + $0xa2] sm:$0xff] %vm3597, %v3551
        %3619 = vst.msk [vmem:[#allocation2 + $0xaa] sm:$0xff] %vm3597, %v3552
        %3620 = vst.msk [vmem:[#allocation2 + $0xb2] sm:$0xff] %vm3597, %v3553
        %3621 = vst.msk [vmem:[#allocation2 + $0xba] sm:$0xff] %vm3597, %v3554
        %3622 = vst.msk [vmem:[#allocation2 + $0xc2] sm:$0xff] %vm3597, %v3555
        %3623 = vst.msk [vmem:[#allocation2 + $0xca] sm:$0xff] %vm3597, %v3556
        %3624 = vst.msk [vmem:[#allocation2 + $0xd2] sm:$0xff] %vm3597, %v3557
        %3625 = vst.msk [vmem:[#allocation2 + $0xda] sm:$0xff] %vm3597, %v3558
        %3626 = vst.msk [vmem:[#allocation2 + $0xe2] sm:$0xff] %vm3597, %v3559
        %3627 = vst.msk [vmem:[#allocation2 + $0xea] sm:$0xff] %vm3597, %v3560
        %3628 = vst.msk [vmem:[#allocation2 + $0xf2] sm:$0xff] %vm3597, %v3561
        %3629 = vst.msk [vmem:[#allocation2 + $0xfa] sm:$0xff] %vm3597, %v3562
        %3630 = vst.msk [vmem:[#allocation2 + $0x102] sm:$0xff] %vm3597, %v3563
        %3631 = vst.msk [vmem:[#allocation2 + $0x10a] sm:$0xff] %vm3597, %v3564
        %3632 = vst.msk [vmem:[#allocation2 + $0x112] sm:$0xff] %vm3597, %v3565
        %3633 = vst.msk [vmem:[#allocation2 + $0x11a] sm:$0xff] %vm3597, %v3566
        %3634 = vst.msk [vmem:[#allocation2 + $0x122] sm:$0xff] %vm3597, %v3567
        %3635 = vst.msk [vmem:[#allocation2 + $0x12a] sm:$0xff] %vm3597, %v3568
        %3636 = vst.msk [vmem:[#allocation2 + $0x132] sm:$0xff] %vm3597, %v3569
        %3637 = vst.msk [vmem:[#allocation2 + $0x13a] sm:$0xff] %vm3597, %v3570
        %3638 = vst.msk [vmem:[#allocation2 + $0x142] sm:$0xff] %vm3597, %v3571
        %3639 = vst.msk [vmem:[#allocation2 + $0x14a] sm:$0xff] %vm3597, %v3572
        %3640 = vst.msk [vmem:[#allocation2 + $0x152] sm:$0xff] %vm3597, %v3573
        %3641 = vst.msk [vmem:[#allocation2 + $0x15a] sm:$0xff] %vm3597, %v3574
        %3642 = vst.msk [vmem:[#allocation2 + $0x162] sm:$0xff] %vm3597, %v3575
        %3643 = vst.msk [vmem:[#allocation2 + $0x16a] sm:$0xff] %vm3597, %v3576
        %3644 = vst.msk [vmem:[#allocation2 + $0x172] sm:$0xff] %vm3597, %v3577
        %3645 = vst.msk [vmem:[#allocation2 + $0x17a] sm:$0xff] %vm3597, %v3578
        %3646 = vst.msk [vmem:[#allocation2 + $0x182] sm:$0xff] %vm3597, %v3579
        %3647 = vst.msk [vmem:[#allocation2 + $0x18a] sm:$0xff] %vm3597, %v3580
        %3648 = vst.msk [vmem:[#allocation2 + $0x192] sm:$0xff] %vm3597, %v3581
        %3649 = vst.msk [vmem:[#allocation2 + $0x19a] sm:$0xff] %vm3597, %v3582
        %3650 = vst.msk [vmem:[#allocation2 + $0x1a2] sm:$0xff] %vm3597, %v3583
        %3651 = vst.msk [vmem:[#allocation2 + $0x1aa] sm:$0xff] %vm3597, %v3584
        %3652 = vst.msk [vmem:[#allocation2 + $0x1b2] sm:$0xff] %vm3597, %v3585
        %3653 = vst.msk [vmem:[#allocation2 + $0x1ba] sm:$0xff] %vm3597, %v3586
        %3654 = vst.msk [vmem:[#allocation2 + $0x1c2] sm:$0xff] %vm3597, %v3587
        %3655 = vst.msk [vmem:[#allocation2 + $0x1ca] sm:$0xff] %vm3597, %v3588
        %3656 = vst.msk [vmem:[#allocation2 + $0x1d2] sm:$0xff] %vm3597, %v3589
        %3657 = vst.msk [vmem:[#allocation2 + $0x1da] sm:$0xff] %vm3597, %v3590
        %3658 = vst.msk [vmem:[#allocation2 + $0x1e2] sm:$0xff] %vm3597, %v3591
        %3659 = vst.msk [vmem:[#allocation2 + $0x1ea] sm:$0xff] %vm3597, %v3592
        %3660 = vst.msk [vmem:[#allocation2 + $0x1f2] sm:$0xff] %vm3597, %v3593
        %3661 = vst.msk [vmem:[#allocation2 + $0x1fa] sm:$0xff] %vm3597, %v3594
        %3662 = vst.msk [vmem:[#allocation2 + $0x202] sm:$0x3] %vm3595, 0.0
        %v3663 = vld [vmem:[#allocation2] ss:$4 sm:$0xff]
        %s3664 = scalar_lea.vmem [#allocation2], 32
        %v3665 = vld [vmem:[%s3664] ss:$4 sm:$0xff]
        %s3666 = scalar_lea.vmem [#allocation2], 64
        %v3667 = vld [vmem:[%s3666] ss:$4 sm:$0xff]
        %s3668 = scalar_lea.vmem [#allocation2], 96
        %v3669 = vld [vmem:[%s3668] ss:$4 sm:$0xff]
        %s3670 = scalar_lea.vmem [#allocation2], 128
        %v3671 = vld [vmem:[%s3670] ss:$4 sm:$0xff]
        %s3672 = scalar_lea.vmem [#allocation2], 160
        %v3673 = vld [vmem:[%s3672] ss:$4 sm:$0xff]
        %s3674 = scalar_lea.vmem [#allocation2], 192
        %v3675 = vld [vmem:[%s3674] ss:$4 sm:$0xff]
        %s3676 = scalar_lea.vmem [#allocation2], 224
        %v3677 = vld [vmem:[%s3676] ss:$4 sm:$0xff]
        %s3678 = scalar_lea.vmem [#allocation2], 256
        %v3679 = vld [vmem:[%s3678] ss:$4 sm:$0xff]
        %s3680 = scalar_lea.vmem [#allocation2], 288
        %v3681 = vld [vmem:[%s3680] ss:$4 sm:$0xff]
        %s3682 = scalar_lea.vmem [#allocation2], 320
        %v3683 = vld [vmem:[%s3682] ss:$4 sm:$0xff]
        %s3684 = scalar_lea.vmem [#allocation2], 352
        %v3685 = vld [vmem:[%s3684] ss:$4 sm:$0xff]
        %s3686 = scalar_lea.vmem [#allocation2], 384
        %v3687 = vld [vmem:[%s3686] ss:$4 sm:$0xff]
        %s3688 = scalar_lea.vmem [#allocation2], 416
        %v3689 = vld [vmem:[%s3688] ss:$4 sm:$0xff]
        %s3690 = scalar_lea.vmem [#allocation2], 448
        %v3691 = vld [vmem:[%s3690] ss:$4 sm:$0xff]
        %s3692 = scalar_lea.vmem [#allocation2], 480
        %v3693 = vld [vmem:[%s3692] ss:$4 sm:$0xff]
        %v3694 = vld [vmem:[%s3] sm:$0xff]
        %v3695 = vld [vmem:[%s3 + $0x8] sm:$0xff]
        %s3696 = scalar_lea.vmem [#allocation2], 1
        %v3697 = vld [vmem:[%s3696] ss:$4 sm:$0xff]
        %s3698 = scalar_lea.vmem [#allocation2], 33
        %v3699 = vld [vmem:[%s3698] ss:$4 sm:$0xff]
        %s3700 = scalar_lea.vmem [#allocation2], 65
        %v3701 = vld [vmem:[%s3700] ss:$4 sm:$0xff]
        %s3702 = scalar_lea.vmem [#allocation2], 97
        %v3703 = vld [vmem:[%s3702] ss:$4 sm:$0xff]
        %s3704 = scalar_lea.vmem [#allocation2], 129
        %v3705 = vld [vmem:[%s3704] ss:$4 sm:$0xff]
        %s3706 = scalar_lea.vmem [#allocation2], 161
        %v3707 = vld [vmem:[%s3706] ss:$4 sm:$0xff]
        %s3708 = scalar_lea.vmem [#allocation2], 193
        %v3709 = vld [vmem:[%s3708] ss:$4 sm:$0xff]
        %s3710 = scalar_lea.vmem [#allocation2], 225
        %v3711 = vld [vmem:[%s3710] ss:$4 sm:$0xff]
        %s3712 = scalar_lea.vmem [#allocation2], 257
        %v3713 = vld [vmem:[%s3712] ss:$4 sm:$0xff]
        %s3714 = scalar_lea.vmem [#allocation2], 289
        %v3715 = vld [vmem:[%s3714] ss:$4 sm:$0xff]
        %s3716 = scalar_lea.vmem [#allocation2], 321
        %v3717 = vld [vmem:[%s3716] ss:$4 sm:$0xff]
        %s3718 = scalar_lea.vmem [#allocation2], 353
        %v3719 = vld [vmem:[%s3718] ss:$4 sm:$0xff]
        %s3720 = scalar_lea.vmem [#allocation2], 385
        %v3721 = vld [vmem:[%s3720] ss:$4 sm:$0xff]
        %s3722 = scalar_lea.vmem [#allocation2], 417
        %v3723 = vld [vmem:[%s3722] ss:$4 sm:$0xff]
        %s3724 = scalar_lea.vmem [#allocation2], 449
        %v3725 = vld [vmem:[%s3724] ss:$4 sm:$0xff]
        %s3726 = scalar_lea.vmem [#allocation2], 481
        %v3727 = vld [vmem:[%s3726] ss:$4 sm:$0xff]
        %v3728 = vld [vmem:[%s3 + $0x10] sm:$0xff]
        %v3729 = vld [vmem:[%s3 + $0x18] sm:$0xff]
        %v3731 = vsel %vm3597, %v3697, 0
        %v3734 = vsel %vm3597, %v3699, 0
        %v3737 = vsel %vm3597, %v3701, 0
        %v3740 = vsel %vm3597, %v3703, 0
        %v3743 = vsel %vm3597, %v3705, 0
        %v3746 = vsel %vm3597, %v3707, 0
        %v3749 = vsel %vm3597, %v3709, 0
        %v3752 = vsel %vm3597, %v3711, 0
        %v3755 = vsel %vm3597, %v3713, 0
        %v3758 = vsel %vm3597, %v3715, 0
        %v3761 = vsel %vm3597, %v3717, 0
        %v3764 = vsel %vm3597, %v3719, 0
        %v3767 = vsel %vm3597, %v3721, 0
        %v3770 = vsel %vm3597, %v3723, 0
        %v3773 = vsel %vm3597, %v3725, 0
        %v3776 = vsel %vm3597, %v3727, 0
        %3778 = vmatprep.subr.mxu0 0.0
        %3779 = vmatpush1.msra.mxu0 %v3728
        %3780 = vmatprep.subr.mxu0 0.0
        %3781 = vmatpush1.msra.mxu0 %v3729
        %3782 = vmatprep.subr.mxu0 0.0
        %3783 = vmatpush1.msra.mxu0 0.0
        %3784 = vmatprep.subr.mxu0 0.0
        %3785 = vmatpush1.msra.mxu0 0.0
        %3786 = vmatprep.subr.mxu0 0.0
        %3787 = vmatpush1.msra.mxu0 0.0
        %3788 = vmatprep.subr.mxu0 0.0
        %3789 = vmatpush1.msra.mxu0 0.0
        %3790 = vmatprep.subr.mxu0 0.0
        %3791 = vmatpush1.msra.mxu0 0.0
        %3792 = vmatprep.subr.mxu0 0.0
        %3793 = vmatpush1.msra.mxu0 0.0
        %3794 = vmatprep.subr.mxu0 0.0
        %3795 = vmatpush1.msra.mxu0 0.0
        %3796 = vmatprep.subr.mxu0 0.0
        %3797 = vmatpush1.msra.mxu0 0.0
        %3798 = vmatprep.subr.mxu0 0.0
        %3799 = vmatpush1.msra.mxu0 0.0
        %3800 = vmatprep.subr.mxu0 0.0
        %3801 = vmatpush1.msra.mxu0 0.0
        %3802 = vmatprep.subr.mxu0 0.0
        %3803 = vmatpush1.msra.mxu0 0.0
        %3804 = vmatprep.subr.mxu0 0.0
        %3805 = vmatpush1.msra.mxu0 0.0
        %3806 = vmatprep.subr.mxu0 0.0
        %3807 = vmatpush1.msra.mxu0 0.0
        %3808 = vmatprep.subr.mxu0 0.0
        %3809 = vmatpush1.msra.mxu0 0.0
        %3810 = vmatprep.subr.mxu0 0.0
        %3811 = vmatpush1.msra.mxu0 0.0
        %3812 = vmatprep.subr.mxu0 0.0
        %3813 = vmatpush1.msra.mxu0 0.0
        %3814 = vmatprep.subr.mxu0 0.0
        %3815 = vmatpush1.msra.mxu0 0.0
        %3816 = vmatprep.subr.mxu0 0.0
        %3817 = vmatpush1.msra.mxu0 0.0
        %3818 = vmatprep.subr.mxu0 0.0
        %3819 = vmatpush1.msra.mxu0 0.0
        %3820 = vmatprep.subr.mxu0 0.0
        %3821 = vmatpush1.msra.mxu0 0.0
        %3822 = vmatprep.subr.mxu0 0.0
        %3823 = vmatpush1.msra.mxu0 0.0
        %3824 = vmatprep.subr.mxu0 0.0
        %3825 = vmatpush1.msra.mxu0 0.0
        %3826 = vmatprep.subr.mxu0 0.0
        %3827 = vmatpush1.msra.mxu0 0.0
        %3828 = vmatprep.subr.mxu0 0.0
        %3829 = vmatpush1.msra.mxu0 0.0
        %3830 = vmatprep.subr.mxu0 0.0
        %3831 = vmatpush1.msra.mxu0 0.0
        %3832 = vmatprep.subr.mxu0 0.0
        %3833 = vmatpush1.msra.mxu0 0.0
        %3834 = vmatprep.subr.mxu0 0.0
        %3835 = vmatpush1.msra.mxu0 0.0
        %3836 = vmatprep.subr.mxu0 0.0
        %3837 = vmatpush1.msra.mxu0 0.0
        %3838 = vmatprep.subr.mxu0 0.0
        %3839 = vmatpush1.msra.mxu0 0.0
        %3840 = vmatprep.subr.mxu0 0.0
        %3841 = vmatpush1.msra.mxu0 0.0
        %3842 = vmatprep.mubr.f32.mxu0 0.0
        %3843 = vmatmul.mubr.f32.gmra.mrb[0].mxu0 %v3731
        %v3844 = vpop.f32.mrb[0].mxu0
        %v3845 = vadd.f32 0.0, %v3844
        %v3846 = vpop.f32.mrb[0].mxu0
        %3847 = vmatprep.mubr.f32.mxu0 0.0
        %3848 = vmatmul.mubr.f32.gmra.mrb[0].mxu0 %v3734
        %v3849 = vpop.f32.mrb[0].mxu0
        %v3850 = vadd.f32 0.0, %v3849
        %v3851 = vpop.f32.mrb[0].mxu0
        %3852 = vmatprep.mubr.f32.mxu0 0.0
        %3853 = vmatmul.mubr.f32.gmra.mrb[0].mxu0 %v3737
        %v3854 = vpop.f32.mrb[0].mxu0
        %v3855 = vadd.f32 0.0, %v3854
        %v3856 = vpop.f32.mrb[0].mxu0
        %3857 = vmatprep.mubr.f32.mxu0 0.0
        %3858 = vmatmul.mubr.f32.gmra.mrb[0].mxu0 %v3740
        %v3859 = vpop.f32.mrb[0].mxu0
        %v3860 = vadd.f32 0.0, %v3859
        %v3861 = vpop.f32.mrb[0].mxu0
        %3862 = vmatprep.mubr.f32.mxu0 0.0
        %3863 = vmatmul.mubr.f32.gmra.mrb[0].mxu0 %v3743
        %v3864 = vpop.f32.mrb[0].mxu0
        %v3865 = vadd.f32 0.0, %v3864
        %v3866 = vpop.f32.mrb[0].mxu0
        %3867 = vmatprep.mubr.f32.mxu0 0.0
        %3868 = vmatmul.mubr.f32.gmra.mrb[0].mxu0 %v3746
        %v3869 = vpop.f32.mrb[0].mxu0
        %v3870 = vadd.f32 0.0, %v3869
        %v3871 = vpop.f32.mrb[0].mxu0
        %3872 = vmatprep.mubr.f32.mxu0 0.0
        %3873 = vmatmul.mubr.f32.gmra.mrb[0].mxu0 %v3749
        %v3874 = vpop.f32.mrb[0].mxu0
        %v3875 = vadd.f32 0.0, %v3874
        %v3876 = vpop.f32.mrb[0].mxu0
        %3877 = vmatprep.mubr.f32.mxu0 0.0
        %3878 = vmatmul.mubr.f32.gmra.mrb[0].mxu0 %v3752
        %v3879 = vpop.f32.mrb[0].mxu0
        %v3880 = vadd.f32 0.0, %v3879
        %v3881 = vpop.f32.mrb[0].mxu0
        %3882 = vmatprep.mubr.f32.mxu0 0.0
        %3883 = vmatmul.mubr.f32.gmra.mrb[0].mxu0 %v3755
        %v3884 = vpop.f32.mrb[0].mxu0
        %v3885 = vadd.f32 0.0, %v3884
        %v3886 = vpop.f32.mrb[0].mxu0
        %3887 = vmatprep.mubr.f32.mxu0 0.0
        %3888 = vmatmul.mubr.f32.gmra.mrb[0].mxu0 %v3758
        %v3889 = vpop.f32.mrb[0].mxu0
        %v3890 = vadd.f32 0.0, %v3889
        %v3891 = vpop.f32.mrb[0].mxu0
        %3892 = vmatprep.mubr.f32.mxu0 0.0
        %3893 = vmatmul.mubr.f32.gmra.mrb[0].mxu0 %v3761
        %v3894 = vpop.f32.mrb[0].mxu0
        %v3895 = vadd.f32 0.0, %v3894
        %v3896 = vpop.f32.mrb[0].mxu0
        %3897 = vmatprep.mubr.f32.mxu0 0.0
        %3898 = vmatmul.mubr.f32.gmra.mrb[0].mxu0 %v3764
        %v3899 = vpop.f32.mrb[0].mxu0
        %v3900 = vadd.f32 0.0, %v3899
        %v3901 = vpop.f32.mrb[0].mxu0
        %3902 = vmatprep.mubr.f32.mxu0 0.0
        %3903 = vmatmul.mubr.f32.gmra.mrb[0].mxu0 %v3767
        %v3904 = vpop.f32.mrb[0].mxu0
        %v3905 = vadd.f32 0.0, %v3904
        %v3906 = vpop.f32.mrb[0].mxu0
        %3907 = vmatprep.mubr.f32.mxu0 0.0
        %3908 = vmatmul.mubr.f32.gmra.mrb[0].mxu0 %v3770
        %v3909 = vpop.f32.mrb[0].mxu0
        %v3910 = vadd.f32 0.0, %v3909
        %v3911 = vpop.f32.mrb[0].mxu0
        %3912 = vmatprep.mubr.f32.mxu0 0.0
        %3913 = vmatmul.mubr.f32.gmra.mrb[0].mxu0 %v3773
        %v3914 = vpop.f32.mrb[0].mxu0
        %v3915 = vadd.f32 0.0, %v3914
        %v3916 = vpop.f32.mrb[0].mxu0
        %3917 = vmatprep.mubr.f32.mxu0 0.0
        %3918 = vmatmul.mubr.f32.gmra.mrb[0].mxu0 %v3776
        %v3919 = vpop.f32.mrb[0].mxu0
        %v3920 = vadd.f32 0.0, %v3919
        %v3921 = vpop.f32.mrb[0].mxu0
        %3922 = vdwg.mxu0
        %v3924 = vsel %vm3597, %v3663, 0
        %v3927 = vsel %vm3597, %v3665, 0
        %v3930 = vsel %vm3597, %v3667, 0
        %v3933 = vsel %vm3597, %v3669, 0
        %v3936 = vsel %vm3597, %v3671, 0
        %v3939 = vsel %vm3597, %v3673, 0
        %v3942 = vsel %vm3597, %v3675, 0
        %v3945 = vsel %vm3597, %v3677, 0
        %v3948 = vsel %vm3597, %v3679, 0
        %v3951 = vsel %vm3597, %v3681, 0
        %v3954 = vsel %vm3597, %v3683, 0
        %v3957 = vsel %vm3597, %v3685, 0
        %v3960 = vsel %vm3597, %v3687, 0
        %v3963 = vsel %vm3597, %v3689, 0
        %v3966 = vsel %vm3597, %v3691, 0
        %v3969 = vsel %vm3597, %v3693, 0
        %3971 = vmatprep.subr.mxu0 0.0
        %3972 = vmatpush1.msra.mxu0 %v3694
        %3973 = vmatprep.subr.mxu0 0.0
        %3974 = vmatpush1.msra.mxu0 %v3695
        %3975 = vmatprep.subr.mxu0 0.0
        %3976 = vmatpush1.msra.mxu0 0.0
        %3977 = vmatprep.subr.mxu0 0.0
        %3978 = vmatpush1.msra.mxu0 0.0
        %3979 = vmatprep.subr.mxu0 0.0
        %3980 = vmatpush1.msra.mxu0 0.0
        %3981 = vmatprep.subr.mxu0 0.0
        %3982 = vmatpush1.msra.mxu0 0.0
        %3983 = vmatprep.subr.mxu0 0.0
        %3984 = vmatpush1.msra.mxu0 0.0
        %3985 = vmatprep.subr.mxu0 0.0
        %3986 = vmatpush1.msra.mxu0 0.0
        %3987 = vmatprep.subr.mxu0 0.0
        %3988 = vmatpush1.msra.mxu0 0.0
        %3989 = vmatprep.subr.mxu0 0.0
        %3990 = vmatpush1.msra.mxu0 0.0
        %3991 = vmatprep.subr.mxu0 0.0
        %3992 = vmatpush1.msra.mxu0 0.0
        %3993 = vmatprep.subr.mxu0 0.0
        %3994 = vmatpush1.msra.mxu0 0.0
        %3995 = vmatprep.subr.mxu0 0.0
        %3996 = vmatpush1.msra.mxu0 0.0
        %3997 = vmatprep.subr.mxu0 0.0
        %3998 = vmatpush1.msra.mxu0 0.0
        %3999 = vmatprep.subr.mxu0 0.0
        %4000 = vmatpush1.msra.mxu0 0.0
        %4001 = vmatprep.subr.mxu0 0.0
        %4002 = vmatpush1.msra.mxu0 0.0
        %4003 = vmatprep.subr.mxu0 0.0
        %4004 = vmatpush1.msra.mxu0 0.0
        %4005 = vmatprep.subr.mxu0 0.0
        %4006 = vmatpush1.msra.mxu0 0.0
        %4007 = vmatprep.subr.mxu0 0.0
        %4008 = vmatpush1.msra.mxu0 0.0
        %4009 = vmatprep.subr.mxu0 0.0
        %4010 = vmatpush1.msra.mxu0 0.0
        %4011 = vmatprep.subr.mxu0 0.0
        %4012 = vmatpush1.msra.mxu0 0.0
        %4013 = vmatprep.subr.mxu0 0.0
        %4014 = vmatpush1.msra.mxu0 0.0
        %4015 = vmatprep.subr.mxu0 0.0
        %4016 = vmatpush1.msra.mxu0 0.0
        %4017 = vmatprep.subr.mxu0 0.0
        %4018 = vmatpush1.msra.mxu0 0.0
        %4019 = vmatprep.subr.mxu0 0.0
        %4020 = vmatpush1.msra.mxu0 0.0
        %4021 = vmatprep.subr.mxu0 0.0
        %4022 = vmatpush1.msra.mxu0 0.0
        %4023 = vmatprep.subr.mxu0 0.0
        %4024 = vmatpush1.msra.mxu0 0.0
        %4025 = vmatprep.subr.mxu0 0.0
        %4026 = vmatpush1.msra.mxu0 0.0
        %4027 = vmatprep.subr.mxu0 0.0
        %4028 = vmatpush1.msra.mxu0 0.0
        %4029 = vmatprep.subr.mxu0 0.0
        %4030 = vmatpush1.msra.mxu0 0.0
        %4031 = vmatprep.subr.mxu0 0.0
        %4032 = vmatpush1.msra.mxu0 0.0
        %4033 = vmatprep.subr.mxu0 0.0
        %4034 = vmatpush1.msra.mxu0 0.0
        %4035 = vmatprep.mubr.f32.mxu0 0.0
        %4036 = vmatmul.mubr.f32.gmra.mrb[0].mxu0 %v3924
        %v4037 = vpop.f32.mrb[0].mxu0
        %v4038 = vadd.f32 %v3845, %v4037
        %v4039 = vpop.f32.mrb[0].mxu0
        %4040 = vmatprep.mubr.f32.mxu0 0.0
        %4041 = vmatmul.mubr.f32.gmra.mrb[0].mxu0 %v3927
        %v4042 = vpop.f32.mrb[0].mxu0
        %v4043 = vadd.f32 %v3850, %v4042
        %v4044 = vpop.f32.mrb[0].mxu0
        %4045 = vmatprep.mubr.f32.mxu0 0.0
        %4046 = vmatmul.mubr.f32.gmra.mrb[0].mxu0 %v3930
        %v4047 = vpop.f32.mrb[0].mxu0
        %v4048 = vadd.f32 %v3855, %v4047
        %v4049 = vpop.f32.mrb[0].mxu0
        %4050 = vmatprep.mubr.f32.mxu0 0.0
        %4051 = vmatmul.mubr.f32.gmra.mrb[0].mxu0 %v3933
        %v4052 = vpop.f32.mrb[0].mxu0
        %v4053 = vadd.f32 %v3860, %v4052
        %v4054 = vpop.f32.mrb[0].mxu0
        %4055 = vmatprep.mubr.f32.mxu0 0.0
        %4056 = vmatmul.mubr.f32.gmra.mrb[0].mxu0 %v3936
        %v4057 = vpop.f32.mrb[0].mxu0
        %v4058 = vadd.f32 %v3865, %v4057
        %v4059 = vpop.f32.mrb[0].mxu0
        %4060 = vmatprep.mubr.f32.mxu0 0.0
        %4061 = vmatmul.mubr.f32.gmra.mrb[0].mxu0 %v3939
        %v4062 = vpop.f32.mrb[0].mxu0
        %v4063 = vadd.f32 %v3870, %v4062
        %v4064 = vpop.f32.mrb[0].mxu0
        %4065 = vmatprep.mubr.f32.mxu0 0.0
        %4066 = vmatmul.mubr.f32.gmra.mrb[0].mxu0 %v3942
        %v4067 = vpop.f32.mrb[0].mxu0
        %v4068 = vadd.f32 %v3875, %v4067
        %v4069 = vpop.f32.mrb[0].mxu0
        %4070 = vmatprep.mubr.f32.mxu0 0.0
        %4071 = vmatmul.mubr.f32.gmra.mrb[0].mxu0 %v3945
        %v4072 = vpop.f32.mrb[0].mxu0
        %v4073 = vadd.f32 %v3880, %v4072
        %v4074 = vpop.f32.mrb[0].mxu0
        %4075 = vmatprep.mubr.f32.mxu0 0.0
        %4076 = vmatmul.mubr.f32.gmra.mrb[0].mxu0 %v3948
        %v4077 = vpop.f32.mrb[0].mxu0
        %v4078 = vadd.f32 %v3885, %v4077
        %v4079 = vpop.f32.mrb[0].mxu0
        %4080 = vmatprep.mubr.f32.mxu0 0.0
        %4081 = vmatmul.mubr.f32.gmra.mrb[0].mxu0 %v3951
        %v4082 = vpop.f32.mrb[0].mxu0
        %v4083 = vadd.f32 %v3890, %v4082
        %v4084 = vpop.f32.mrb[0].mxu0
        %4085 = vmatprep.mubr.f32.mxu0 0.0
        %4086 = vmatmul.mubr.f32.gmra.mrb[0].mxu0 %v3954
        %v4087 = vpop.f32.mrb[0].mxu0
        %v4088 = vadd.f32 %v3895, %v4087
        %v4089 = vpop.f32.mrb[0].mxu0
        %4090 = vmatprep.mubr.f32.mxu0 0.0
        %4091 = vmatmul.mubr.f32.gmra.mrb[0].mxu0 %v3957
        %v4092 = vpop.f32.mrb[0].mxu0
        %v4093 = vadd.f32 %v3900, %v4092
        %v4094 = vpop.f32.mrb[0].mxu0
        %4095 = vmatprep.mubr.f32.mxu0 0.0
        %4096 = vmatmul.mubr.f32.gmra.mrb[0].mxu0 %v3960
        %v4097 = vpop.f32.mrb[0].mxu0
        %v4098 = vadd.f32 %v3905, %v4097
        %v4099 = vpop.f32.mrb[0].mxu0
        %4100 = vmatprep.mubr.f32.mxu0 0.0
        %4101 = vmatmul.mubr.f32.gmra.mrb[0].mxu0 %v3963
        %v4102 = vpop.f32.mrb[0].mxu0
        %v4103 = vadd.f32 %v3910, %v4102
        %v4104 = vpop.f32.mrb[0].mxu0
        %4105 = vmatprep.mubr.f32.mxu0 0.0
        %4106 = vmatmul.mubr.f32.gmra.mrb[0].mxu0 %v3966
        %v4107 = vpop.f32.mrb[0].mxu0
        %v4108 = vadd.f32 %v3915, %v4107
        %v4109 = vpop.f32.mrb[0].mxu0
        %4110 = vmatprep.mubr.f32.mxu0 0.0
        %4111 = vmatmul.mubr.f32.gmra.mrb[0].mxu0 %v3969
        %v4112 = vpop.f32.mrb[0].mxu0
        %v4113 = vadd.f32 %v3920, %v4112
        %v4114 = vpop.f32.mrb[0].mxu0
        %4115 = vdwg.mxu0
        %s4116 = scalar_lea.vmem [#allocation2], 2
        %v4117 = vld [vmem:[%s4116] ss:$4 sm:$0xff]
        %s4118 = scalar_lea.vmem [#allocation2], 34
        %v4119 = vld [vmem:[%s4118] ss:$4 sm:$0xff]
        %s4120 = scalar_lea.vmem [#allocation2], 66
        %v4121 = vld [vmem:[%s4120] ss:$4 sm:$0xff]
        %s4122 = scalar_lea.vmem [#allocation2], 98
        %v4123 = vld [vmem:[%s4122] ss:$4 sm:$0xff]
        %s4124 = scalar_lea.vmem [#allocation2], 130
        %v4125 = vld [vmem:[%s4124] ss:$4 sm:$0xff]
        %s4126 = scalar_lea.vmem [#allocation2], 162
        %v4127 = vld [vmem:[%s4126] ss:$4 sm:$0xff]
        %s4128 = scalar_lea.vmem [#allocation2], 194
        %v4129 = vld [vmem:[%s4128] ss:$4 sm:$0xff]
        %s4130 = scalar_lea.vmem [#allocation2], 226
        %v4131 = vld [vmem:[%s4130] ss:$4 sm:$0xff]
        %s4132 = scalar_lea.vmem [#allocation2], 258
        %v4133 = vld [vmem:[%s4132] ss:$4 sm:$0xff]
        %s4134 = scalar_lea.vmem [#allocation2], 290
        %v4135 = vld [vmem:[%s4134] ss:$4 sm:$0xff]
        %s4136 = scalar_lea.vmem [#allocation2], 322
        %v4137 = vld [vmem:[%s4136] ss:$4 sm:$0xff]
        %s4138 = scalar_lea.vmem [#allocation2], 354
        %v4139 = vld [vmem:[%s4138] ss:$4 sm:$0xff]
        %s4140 = scalar_lea.vmem [#allocation2], 386
        %v4141 = vld [vmem:[%s4140] ss:$4 sm:$0xff]
        %s4142 = scalar_lea.vmem [#allocation2], 418
        %v4143 = vld [vmem:[%s4142] ss:$4 sm:$0xff]
        %s4144 = scalar_lea.vmem [#allocation2], 450
        %v4145 = vld [vmem:[%s4144] ss:$4 sm:$0xff]
        %s4146 = scalar_lea.vmem [#allocation2], 482
        %v4147 = vld [vmem:[%s4146] ss:$4 sm:$0xff]
        %v4148 = vld [vmem:[%s3 + $0x20] sm:$0xff]
        %v4149 = vld [vmem:[%s3 + $0x28] sm:$0xff]
        %v4151 = vsel %vm3597, %v4117, 0
        %v4154 = vsel %vm3597, %v4119, 0
        %v4157 = vsel %vm3597, %v4121, 0
        %v4160 = vsel %vm3597, %v4123, 0
        %v4163 = vsel %vm3597, %v4125, 0
        %v4166 = vsel %vm3597, %v4127, 0
        %v4169 = vsel %vm3597, %v4129, 0
        %v4172 = vsel %vm3597, %v4131, 0
        %v4175 = vsel %vm3597, %v4133, 0
        %v4178 = vsel %vm3597, %v4135, 0
        %v4181 = vsel %vm3597, %v4137, 0
        %v4184 = vsel %vm3597, %v4139, 0
        %v4187 = vsel %vm3597, %v4141, 0
        %v4190 = vsel %vm3597, %v4143, 0
        %v4193 = vsel %vm3597, %v4145, 0
        %v4196 = vsel %vm3597, %v4147, 0
        %4198 = vmatprep.subr.mxu0 0.0
        %4199 = vmatpush1.msra.mxu0 %v4148
        %4200 = vmatprep.subr.mxu0 0.0
        %4201 = vmatpush1.msra.mxu0 %v4149
        %4202 = vmatprep.subr.mxu0 0.0
        %4203 = vmatpush1.msra.mxu0 0.0
        %4204 = vmatprep.subr.mxu0 0.0
        %4205 = vmatpush1.msra.mxu0 0.0
        %4206 = vmatprep.subr.mxu0 0.0
        %4207 = vmatpush1.msra.mxu0 0.0
        %4208 = vmatprep.subr.mxu0 0.0
        %4209 = vmatpush1.msra.mxu0 0.0
        %4210 = vmatprep.subr.mxu0 0.0
        %4211 = vmatpush1.msra.mxu0 0.0
        %4212 = vmatprep.subr.mxu0 0.0
        %4213 = vmatpush1.msra.mxu0 0.0
        %4214 = vmatprep.subr.mxu0 0.0
        %4215 = vmatpush1.msra.mxu0 0.0
        %4216 = vmatprep.subr.mxu0 0.0
        %4217 = vmatpush1.msra.mxu0 0.0
        %4218 = vmatprep.subr.mxu0 0.0
        %4219 = vmatpush1.msra.mxu0 0.0
        %4220 = vmatprep.subr.mxu0 0.0
        %4221 = vmatpush1.msra.mxu0 0.0
        %4222 = vmatprep.subr.mxu0 0.0
        %4223 = vmatpush1.msra.mxu0 0.0
        %4224 = vmatprep.subr.mxu0 0.0
        %4225 = vmatpush1.msra.mxu0 0.0
        %4226 = vmatprep.subr.mxu0 0.0
        %4227 = vmatpush1.msra.mxu0 0.0
        %4228 = vmatprep.subr.mxu0 0.0
        %4229 = vmatpush1.msra.mxu0 0.0
        %4230 = vmatprep.subr.mxu0 0.0
        %4231 = vmatpush1.msra.mxu0 0.0
        %4232 = vmatprep.subr.mxu0 0.0
        %4233 = vmatpush1.msra.mxu0 0.0
        %4234 = vmatprep.subr.mxu0 0.0
        %4235 = vmatpush1.msra.mxu0 0.0
        %4236 = vmatprep.subr.mxu0 0.0
        %4237 = vmatpush1.msra.mxu0 0.0
        %4238 = vmatprep.subr.mxu0 0.0
        %4239 = vmatpush1.msra.mxu0 0.0
        %4240 = vmatprep.subr.mxu0 0.0
        %4241 = vmatpush1.msra.mxu0 0.0
        %4242 = vmatprep.subr.mxu0 0.0
        %4243 = vmatpush1.msra.mxu0 0.0
        %4244 = vmatprep.subr.mxu0 0.0
        %4245 = vmatpush1.msra.mxu0 0.0
        %4246 = vmatprep.subr.mxu0 0.0
        %4247 = vmatpush1.msra.mxu0 0.0
        %4248 = vmatprep.subr.mxu0 0.0
        %4249 = vmatpush1.msra.mxu0 0.0
        %4250 = vmatprep.subr.mxu0 0.0
        %4251 = vmatpush1.msra.mxu0 0.0
        %4252 = vmatprep.subr.mxu0 0.0
        %4253 = vmatpush1.msra.mxu0 0.0
        %4254 = vmatprep.subr.mxu0 0.0
        %4255 = vmatpush1.msra.mxu0 0.0
        %4256 = vmatprep.subr.mxu0 0.0
        %4257 = vmatpush1.msra.mxu0 0.0
        %4258 = vmatprep.subr.mxu0 0.0
        %4259 = vmatpush1.msra.mxu0 0.0
        %4260 = vmatprep.subr.mxu0 0.0
        %4261 = vmatpush1.msra.mxu0 0.0
        %4262 = vmatprep.mubr.f32.mxu0 0.0
        %4263 = vmatmul.mubr.f32.gmra.mrb[0].mxu0 %v4151
        %v4264 = vpop.f32.mrb[0].mxu0
        %v4265 = vadd.f32 0.0, %v4264
        %v4266 = vpop.f32.mrb[0].mxu0
        %4267 = vmatprep.mubr.f32.mxu0 0.0
        %4268 = vmatmul.mubr.f32.gmra.mrb[0].mxu0 %v4154
        %v4269 = vpop.f32.mrb[0].mxu0
        %v4270 = vadd.f32 0.0, %v4269
        %v4271 = vpop.f32.mrb[0].mxu0
        %4272 = vmatprep.mubr.f32.mxu0 0.0
        %4273 = vmatmul.mubr.f32.gmra.mrb[0].mxu0 %v4157
        %v4274 = vpop.f32.mrb[0].mxu0
        %v4275 = vadd.f32 0.0, %v4274
        %v4276 = vpop.f32.mrb[0].mxu0
        %4277 = vmatprep.mubr.f32.mxu0 0.0
        %4278 = vmatmul.mubr.f32.gmra.mrb[0].mxu0 %v4160
        %v4279 = vpop.f32.mrb[0].mxu0
        %v4280 = vadd.f32 0.0, %v4279
        %v4281 = vpop.f32.mrb[0].mxu0
        %4282 = vmatprep.mubr.f32.mxu0 0.0
        %4283 = vmatmul.mubr.f32.gmra.mrb[0].mxu0 %v4163
        %v4284 = vpop.f32.mrb[0].mxu0
        %v4285 = vadd.f32 0.0, %v4284
        %v4286 = vpop.f32.mrb[0].mxu0
        %4287 = vmatprep.mubr.f32.mxu0 0.0
        %4288 = vmatmul.mubr.f32.gmra.mrb[0].mxu0 %v4166
        %v4289 = vpop.f32.mrb[0].mxu0
        %v4290 = vadd.f32 0.0, %v4289
        %v4291 = vpop.f32.mrb[0].mxu0
        %4292 = vmatprep.mubr.f32.mxu0 0.0
        %4293 = vmatmul.mubr.f32.gmra.mrb[0].mxu0 %v4169
        %v4294 = vpop.f32.mrb[0].mxu0
        %v4295 = vadd.f32 0.0, %v4294
        %v4296 = vpop.f32.mrb[0].mxu0
        %4297 = vmatprep.mubr.f32.mxu0 0.0
        %4298 = vmatmul.mubr.f32.gmra.mrb[0].mxu0 %v4172
        %v4299 = vpop.f32.mrb[0].mxu0
        %v4300 = vadd.f32 0.0, %v4299
        %v4301 = vpop.f32.mrb[0].mxu0
        %4302 = vmatprep.mubr.f32.mxu0 0.0
        %4303 = vmatmul.mubr.f32.gmra.mrb[0].mxu0 %v4175
        %v4304 = vpop.f32.mrb[0].mxu0
        %v4305 = vadd.f32 0.0, %v4304
        %v4306 = vpop.f32.mrb[0].mxu0
        %4307 = vmatprep.mubr.f32.mxu0 0.0
        %4308 = vmatmul.mubr.f32.gmra.mrb[0].mxu0 %v4178
        %v4309 = vpop.f32.mrb[0].mxu0
        %v4310 = vadd.f32 0.0, %v4309
        %v4311 = vpop.f32.mrb[0].mxu0
        %4312 = vmatprep.mubr.f32.mxu0 0.0
        %4313 = vmatmul.mubr.f32.gmra.mrb[0].mxu0 %v4181
        %v4314 = vpop.f32.mrb[0].mxu0
        %v4315 = vadd.f32 0.0, %v4314
        %v4316 = vpop.f32.mrb[0].mxu0
        %4317 = vmatprep.mubr.f32.mxu0 0.0
        %4318 = vmatmul.mubr.f32.gmra.mrb[0].mxu0 %v4184
        %v4319 = vpop.f32.mrb[0].mxu0
        %v4320 = vadd.f32 0.0, %v4319
        %v4321 = vpop.f32.mrb[0].mxu0
        %4322 = vmatprep.mubr.f32.mxu0 0.0
        %4323 = vmatmul.mubr.f32.gmra.mrb[0].mxu0 %v4187
        %v4324 = vpop.f32.mrb[0].mxu0
        %v4325 = vadd.f32 0.0, %v4324
        %v4326 = vpop.f32.mrb[0].mxu0
        %4327 = vmatprep.mubr.f32.mxu0 0.0
        %4328 = vmatmul.mubr.f32.gmra.mrb[0].mxu0 %v4190
        %v4329 = vpop.f32.mrb[0].mxu0
        %v4330 = vadd.f32 0.0, %v4329
        %v4331 = vpop.f32.mrb[0].mxu0
        %4332 = vmatprep.mubr.f32.mxu0 0.0
        %4333 = vmatmul.mubr.f32.gmra.mrb[0].mxu0 %v4193
        %v4334 = vpop.f32.mrb[0].mxu0
        %v4335 = vadd.f32 0.0, %v4334
        %v4336 = vpop.f32.mrb[0].mxu0
        %4337 = vmatprep.mubr.f32.mxu0 0.0
        %4338 = vmatmul.mubr.f32.gmra.mrb[0].mxu0 %v4196
        %v4339 = vpop.f32.mrb[0].mxu0
        %v4340 = vadd.f32 0.0, %v4339
        %v4341 = vpop.f32.mrb[0].mxu0
        %4342 = vdwg.mxu0
        %v4343 = vadd.f32 %v4038, %v4265
        %v4344 = vadd.f32 %v4043, %v4270
        %v4345 = vadd.f32 %v4048, %v4275
        %v4346 = vadd.f32 %v4053, %v4280
        %v4347 = vadd.f32 %v4058, %v4285
        %v4348 = vadd.f32 %v4063, %v4290
        %v4349 = vadd.f32 %v4068, %v4295
        %v4350 = vadd.f32 %v4073, %v4300
        %v4351 = vadd.f32 %v4078, %v4305
        %v4352 = vadd.f32 %v4083, %v4310
        %v4353 = vadd.f32 %v4088, %v4315
        %v4354 = vadd.f32 %v4093, %v4320
        %v4355 = vadd.f32 %v4098, %v4325
        %v4356 = vadd.f32 %v4103, %v4330
        %v4357 = vadd.f32 %v4108, %v4335
        %v4358 = vadd.f32 %v4113, %v4340
        %s4359 = scalar_lea.vmem [#allocation2], 3
        %v4360 = vld [vmem:[%s4359] ss:$4 sm:$0xff]
        %s4361 = scalar_lea.vmem [#allocation2], 35
        %v4362 = vld [vmem:[%s4361] ss:$4 sm:$0xff]
        %s4363 = scalar_lea.vmem [#allocation2], 67
        %v4364 = vld [vmem:[%s4363] ss:$4 sm:$0xff]
        %s4365 = scalar_lea.vmem [#allocation2], 99
        %v4366 = vld [vmem:[%s4365] ss:$4 sm:$0xff]
        %s4367 = scalar_lea.vmem [#allocation2], 131
        %v4368 = vld [vmem:[%s4367] ss:$4 sm:$0xff]
        %s4369 = scalar_lea.vmem [#allocation2], 163
        %v4370 = vld [vmem:[%s4369] ss:$4 sm:$0xff]
        %s4371 = scalar_lea.vmem [#allocation2], 195
        %v4372 = vld [vmem:[%s4371] ss:$4 sm:$0xff]
        %s4373 = scalar_lea.vmem [#allocation2], 227
        %v4374 = vld [vmem:[%s4373] ss:$4 sm:$0xff]
        %s4375 = scalar_lea.vmem [#allocation2], 259
        %v4376 = vld [vmem:[%s4375] ss:$4 sm:$0xff]
        %s4377 = scalar_lea.vmem [#allocation2], 291
        %v4378 = vld [vmem:[%s4377] ss:$4 sm:$0xff]
        %s4379 = scalar_lea.vmem [#allocation2], 323
        %v4380 = vld [vmem:[%s4379] ss:$4 sm:$0xff]
        %s4381 = scalar_lea.vmem [#allocation2], 355
        %v4382 = vld [vmem:[%s4381] ss:$4 sm:$0xff]
        %s4383 = scalar_lea.vmem [#allocation2], 387
        %v4384 = vld [vmem:[%s4383] ss:$4 sm:$0xff]
        %s4385 = scalar_lea.vmem [#allocation2], 419
        %v4386 = vld [vmem:[%s4385] ss:$4 sm:$0xff]
        %s4387 = scalar_lea.vmem [#allocation2], 451
        %v4388 = vld [vmem:[%s4387] ss:$4 sm:$0xff]
        %s4389 = scalar_lea.vmem [#allocation2], 483
        %v4390 = vld [vmem:[%s4389] ss:$4 sm:$0xff]
        %v4391 = vld [vmem:[%s3 + $0x30] sm:$0xff]
        %v4392 = vld [vmem:[%s3 + $0x38] sm:$0xff]
        %v4394 = vsel %vm3597, %v4360, 0
        %v4397 = vsel %vm3597, %v4362, 0
        %v4400 = vsel %vm3597, %v4364, 0
        %v4403 = vsel %vm3597, %v4366, 0
        %v4406 = vsel %vm3597, %v4368, 0
        %v4409 = vsel %vm3597, %v4370, 0
        %v4412 = vsel %vm3597, %v4372, 0
        %v4415 = vsel %vm3597, %v4374, 0
        %v4418 = vsel %vm3597, %v4376, 0
        %v4421 = vsel %vm3597, %v4378, 0
        %v4424 = vsel %vm3597, %v4380, 0
        %v4427 = vsel %vm3597, %v4382, 0
        %v4430 = vsel %vm3597, %v4384, 0
        %v4433 = vsel %vm3597, %v4386, 0
        %v4436 = vsel %vm3597, %v4388, 0
        %v4439 = vsel %vm3597, %v4390, 0
        %4441 = vmatprep.subr.mxu0 0.0
        %4442 = vmatpush1.msra.mxu0 %v4391
        %4443 = vmatprep.subr.mxu0 0.0
        %4444 = vmatpush1.msra.mxu0 %v4392
        %4445 = vmatprep.subr.mxu0 0.0
        %4446 = vmatpush1.msra.mxu0 0.0
        %4447 = vmatprep.subr.mxu0 0.0
        %4448 = vmatpush1.msra.mxu0 0.0
        %4449 = vmatprep.subr.mxu0 0.0
        %4450 = vmatpush1.msra.mxu0 0.0
        %4451 = vmatprep.subr.mxu0 0.0
        %4452 = vmatpush1.msra.mxu0 0.0
        %4453 = vmatprep.subr.mxu0 0.0
        %4454 = vmatpush1.msra.mxu0 0.0
        %4455 = vmatprep.subr.mxu0 0.0
        %4456 = vmatpush1.msra.mxu0 0.0
        %4457 = vmatprep.subr.mxu0 0.0
        %4458 = vmatpush1.msra.mxu0 0.0
        %4459 = vmatprep.subr.mxu0 0.0
        %4460 = vmatpush1.msra.mxu0 0.0
        %4461 = vmatprep.subr.mxu0 0.0
        %4462 = vmatpush1.msra.mxu0 0.0
        %4463 = vmatprep.subr.mxu0 0.0
        %4464 = vmatpush1.msra.mxu0 0.0
        %4465 = vmatprep.subr.mxu0 0.0
        %4466 = vmatpush1.msra.mxu0 0.0
        %4467 = vmatprep.subr.mxu0 0.0
        %4468 = vmatpush1.msra.mxu0 0.0
        %4469 = vmatprep.subr.mxu0 0.0
        %4470 = vmatpush1.msra.mxu0 0.0
        %4471 = vmatprep.subr.mxu0 0.0
        %4472 = vmatpush1.msra.mxu0 0.0
        %4473 = vmatprep.subr.mxu0 0.0
        %4474 = vmatpush1.msra.mxu0 0.0
        %4475 = vmatprep.subr.mxu0 0.0
        %4476 = vmatpush1.msra.mxu0 0.0
        %4477 = vmatprep.subr.mxu0 0.0
        %4478 = vmatpush1.msra.mxu0 0.0
        %4479 = vmatprep.subr.mxu0 0.0
        %4480 = vmatpush1.msra.mxu0 0.0
        %4481 = vmatprep.subr.mxu0 0.0
        %4482 = vmatpush1.msra.mxu0 0.0
        %4483 = vmatprep.subr.mxu0 0.0
        %4484 = vmatpush1.msra.mxu0 0.0
        %4485 = vmatprep.subr.mxu0 0.0
        %4486 = vmatpush1.msra.mxu0 0.0
        %4487 = vmatprep.subr.mxu0 0.0
        %4488 = vmatpush1.msra.mxu0 0.0
        %4489 = vmatprep.subr.mxu0 0.0
        %4490 = vmatpush1.msra.mxu0 0.0
        %4491 = vmatprep.subr.mxu0 0.0
        %4492 = vmatpush1.msra.mxu0 0.0
        %4493 = vmatprep.subr.mxu0 0.0
        %4494 = vmatpush1.msra.mxu0 0.0
        %4495 = vmatprep.subr.mxu0 0.0
        %4496 = vmatpush1.msra.mxu0 0.0
        %4497 = vmatprep.subr.mxu0 0.0
        %4498 = vmatpush1.msra.mxu0 0.0
        %4499 = vmatprep.subr.mxu0 0.0
        %4500 = vmatpush1.msra.mxu0 0.0
        %4501 = vmatprep.subr.mxu0 0.0
        %4502 = vmatpush1.msra.mxu0 0.0
        %4503 = vmatprep.subr.mxu0 0.0
        %4504 = vmatpush1.msra.mxu0 0.0
        %4505 = vmatprep.mubr.f32.mxu0 0.0
        %4506 = vmatmul.mubr.f32.gmra.mrb[0].mxu0 %v4394
        %v4507 = vpop.f32.mrb[0].mxu0
        %v4508 = vadd.f32 0.0, %v4507
        %v4509 = vpop.f32.mrb[0].mxu0
        %4510 = vmatprep.mubr.f32.mxu0 0.0
        %4511 = vmatmul.mubr.f32.gmra.mrb[0].mxu0 %v4397
        %v4512 = vpop.f32.mrb[0].mxu0
        %v4513 = vadd.f32 0.0, %v4512
        %v4514 = vpop.f32.mrb[0].mxu0
        %4515 = vmatprep.mubr.f32.mxu0 0.0
        %4516 = vmatmul.mubr.f32.gmra.mrb[0].mxu0 %v4400
        %v4517 = vpop.f32.mrb[0].mxu0
        %v4518 = vadd.f32 0.0, %v4517
        %v4519 = vpop.f32.mrb[0].mxu0
        %4520 = vmatprep.mubr.f32.mxu0 0.0
        %4521 = vmatmul.mubr.f32.gmra.mrb[0].mxu0 %v4403
        %v4522 = vpop.f32.mrb[0].mxu0
        %v4523 = vadd.f32 0.0, %v4522
        %v4524 = vpop.f32.mrb[0].mxu0
        %4525 = vmatprep.mubr.f32.mxu0 0.0
        %4526 = vmatmul.mubr.f32.gmra.mrb[0].mxu0 %v4406
        %v4527 = vpop.f32.mrb[0].mxu0
        %v4528 = vadd.f32 0.0, %v4527
        %v4529 = vpop.f32.mrb[0].mxu0
        %4530 = vmatprep.mubr.f32.mxu0 0.0
        %4531 = vmatmul.mubr.f32.gmra.mrb[0].mxu0 %v4409
        %v4532 = vpop.f32.mrb[0].mxu0
        %v4533 = vadd.f32 0.0, %v4532
        %v4534 = vpop.f32.mrb[0].mxu0
        %4535 = vmatprep.mubr.f32.mxu0 0.0
        %4536 = vmatmul.mubr.f32.gmra.mrb[0].mxu0 %v4412
        %v4537 = vpop.f32.mrb[0].mxu0
        %v4538 = vadd.f32 0.0, %v4537
        %v4539 = vpop.f32.mrb[0].mxu0
        %4540 = vmatprep.mubr.f32.mxu0 0.0
        %4541 = vmatmul.mubr.f32.gmra.mrb[0].mxu0 %v4415
        %v4542 = vpop.f32.mrb[0].mxu0
        %v4543 = vadd.f32 0.0, %v4542
        %v4544 = vpop.f32.mrb[0].mxu0
        %4545 = vmatprep.mubr.f32.mxu0 0.0
        %4546 = vmatmul.mubr.f32.gmra.mrb[0].mxu0 %v4418
        %v4547 = vpop.f32.mrb[0].mxu0
        %v4548 = vadd.f32 0.0, %v4547
        %v4549 = vpop.f32.mrb[0].mxu0
        %4550 = vmatprep.mubr.f32.mxu0 0.0
        %4551 = vmatmul.mubr.f32.gmra.mrb[0].mxu0 %v4421
        %v4552 = vpop.f32.mrb[0].mxu0
        %v4553 = vadd.f32 0.0, %v4552
        %v4554 = vpop.f32.mrb[0].mxu0
        %4555 = vmatprep.mubr.f32.mxu0 0.0
        %4556 = vmatmul.mubr.f32.gmra.mrb[0].mxu0 %v4424
        %v4557 = vpop.f32.mrb[0].mxu0
        %v4558 = vadd.f32 0.0, %v4557
        %v4559 = vpop.f32.mrb[0].mxu0
        %4560 = vmatprep.mubr.f32.mxu0 0.0
        %4561 = vmatmul.mubr.f32.gmra.mrb[0].mxu0 %v4427
        %v4562 = vpop.f32.mrb[0].mxu0
        %v4563 = vadd.f32 0.0, %v4562
        %v4564 = vpop.f32.mrb[0].mxu0
        %4565 = vmatprep.mubr.f32.mxu0 0.0
        %4566 = vmatmul.mubr.f32.gmra.mrb[0].mxu0 %v4430
        %v4567 = vpop.f32.mrb[0].mxu0
        %v4568 = vadd.f32 0.0, %v4567
        %v4569 = vpop.f32.mrb[0].mxu0
        %4570 = vmatprep.mubr.f32.mxu0 0.0
        %4571 = vmatmul.mubr.f32.gmra.mrb[0].mxu0 %v4433
        %v4572 = vpop.f32.mrb[0].mxu0
        %v4573 = vadd.f32 0.0, %v4572
        %v4574 = vpop.f32.mrb[0].mxu0
        %4575 = vmatprep.mubr.f32.mxu0 0.0
        %4576 = vmatmul.mubr.f32.gmra.mrb[0].mxu0 %v4436
        %v4577 = vpop.f32.mrb[0].mxu0
        %v4578 = vadd.f32 0.0, %v4577
        %v4579 = vpop.f32.mrb[0].mxu0
        %4580 = vmatprep.mubr.f32.mxu0 0.0
        %4581 = vmatmul.mubr.f32.gmra.mrb[0].mxu0 %v4439
        %v4582 = vpop.f32.mrb[0].mxu0
        %v4583 = vadd.f32 0.0, %v4582
        %v4584 = vpop.f32.mrb[0].mxu0
        %4585 = vdwg.mxu0
        %v4586 = vadd.f32 %v4343, %v4508
        %v4587 = vadd.f32 %v4344, %v4513
        %v4588 = vadd.f32 %v4345, %v4518
        %v4589 = vadd.f32 %v4346, %v4523
        %v4590 = vadd.f32 %v4347, %v4528
        %v4591 = vadd.f32 %v4348, %v4533
        %v4592 = vadd.f32 %v4349, %v4538
        %v4593 = vadd.f32 %v4350, %v4543
        %v4594 = vadd.f32 %v4351, %v4548
        %v4595 = vadd.f32 %v4352, %v4553
        %v4596 = vadd.f32 %v4353, %v4558
        %v4597 = vadd.f32 %v4354, %v4563
        %v4598 = vadd.f32 %v4355, %v4568
        %v4599 = vadd.f32 %v4356, %v4573
        %v4600 = vadd.f32 %v4357, %v4578
        %v4601 = vadd.f32 %v4358, %v4583
        %s4602 = scalar_lea.vmem [#allocation2], 4
        %v4603 = vld [vmem:[%s4602] ss:$4 sm:$0xff]
        %s4604 = scalar_lea.vmem [#allocation2], 36
        %v4605 = vld [vmem:[%s4604] ss:$4 sm:$0xff]
        %s4606 = scalar_lea.vmem [#allocation2], 68
        %v4607 = vld [vmem:[%s4606] ss:$4 sm:$0xff]
        %s4608 = scalar_lea.vmem [#allocation2], 100
        %v4609 = vld [vmem:[%s4608] ss:$4 sm:$0xff]
        %s4610 = scalar_lea.vmem [#allocation2], 132
        %v4611 = vld [vmem:[%s4610] ss:$4 sm:$0xff]
        %s4612 = scalar_lea.vmem [#allocation2], 164
        %v4613 = vld [vmem:[%s4612] ss:$4 sm:$0xff]
        %s4614 = scalar_lea.vmem [#allocation2], 196
        %v4615 = vld [vmem:[%s4614] ss:$4 sm:$0xff]
        %s4616 = scalar_lea.vmem [#allocation2], 228
        %v4617 = vld [vmem:[%s4616] ss:$4 sm:$0xff]
        %s4618 = scalar_lea.vmem [#allocation2], 260
        %v4619 = vld [vmem:[%s4618] ss:$4 sm:$0xff]
        %s4620 = scalar_lea.vmem [#allocation2], 292
        %v4621 = vld [vmem:[%s4620] ss:$4 sm:$0xff]
        %s4622 = scalar_lea.vmem [#allocation2], 324
        %v4623 = vld [vmem:[%s4622] ss:$4 sm:$0xff]
        %s4624 = scalar_lea.vmem [#allocation2], 356
        %v4625 = vld [vmem:[%s4624] ss:$4 sm:$0xff]
        %s4626 = scalar_lea.vmem [#allocation2], 388
        %v4627 = vld [vmem:[%s4626] ss:$4 sm:$0xff]
        %s4628 = scalar_lea.vmem [#allocation2], 420
        %v4629 = vld [vmem:[%s4628] ss:$4 sm:$0xff]
        %s4630 = scalar_lea.vmem [#allocation2], 452
        %v4631 = vld [vmem:[%s4630] ss:$4 sm:$0xff]
        %s4632 = scalar_lea.vmem [#allocation2], 484
        %v4633 = vld [vmem:[%s4632] ss:$4 sm:$0xff]
        %v4634 = vld [vmem:[%s3 + $0x40] sm:$0xff]
        %v4635 = vld [vmem:[%s3 + $0x48] sm:$0xff]
        %v4637 = vsel %vm3597, %v4603, 0
        %v4640 = vsel %vm3597, %v4605, 0
        %v4643 = vsel %vm3597, %v4607, 0
        %v4646 = vsel %vm3597, %v4609, 0
        %v4649 = vsel %vm3597, %v4611, 0
        %v4652 = vsel %vm3597, %v4613, 0
        %v4655 = vsel %vm3597, %v4615, 0
        %v4658 = vsel %vm3597, %v4617, 0
        %v4661 = vsel %vm3597, %v4619, 0
        %v4664 = vsel %vm3597, %v4621, 0
        %v4667 = vsel %vm3597, %v4623, 0
        %v4670 = vsel %vm3597, %v4625, 0
        %v4673 = vsel %vm3597, %v4627, 0
        %v4676 = vsel %vm3597, %v4629, 0
        %v4679 = vsel %vm3597, %v4631, 0
        %v4682 = vsel %vm3597, %v4633, 0
        %4684 = vmatprep.subr.mxu0 0.0
        %4685 = vmatpush1.msra.mxu0 %v4634
        %4686 = vmatprep.subr.mxu0 0.0
        %4687 = vmatpush1.msra.mxu0 %v4635
        %4688 = vmatprep.subr.mxu0 0.0
        %4689 = vmatpush1.msra.mxu0 0.0
        %4690 = vmatprep.subr.mxu0 0.0
        %4691 = vmatpush1.msra.mxu0 0.0
        %4692 = vmatprep.subr.mxu0 0.0
        %4693 = vmatpush1.msra.mxu0 0.0
        %4694 = vmatprep.subr.mxu0 0.0
        %4695 = vmatpush1.msra.mxu0 0.0
        %4696 = vmatprep.subr.mxu0 0.0
        %4697 = vmatpush1.msra.mxu0 0.0
        %4698 = vmatprep.subr.mxu0 0.0
        %4699 = vmatpush1.msra.mxu0 0.0
        %4700 = vmatprep.subr.mxu0 0.0
        %4701 = vmatpush1.msra.mxu0 0.0
        %4702 = vmatprep.subr.mxu0 0.0
        %4703 = vmatpush1.msra.mxu0 0.0
        %4704 = vmatprep.subr.mxu0 0.0
        %4705 = vmatpush1.msra.mxu0 0.0
        %4706 = vmatprep.subr.mxu0 0.0
        %4707 = vmatpush1.msra.mxu0 0.0
        %4708 = vmatprep.subr.mxu0 0.0
        %4709 = vmatpush1.msra.mxu0 0.0
        %4710 = vmatprep.subr.mxu0 0.0
        %4711 = vmatpush1.msra.mxu0 0.0
        %4712 = vmatprep.subr.mxu0 0.0
        %4713 = vmatpush1.msra.mxu0 0.0
        %4714 = vmatprep.subr.mxu0 0.0
        %4715 = vmatpush1.msra.mxu0 0.0
        %4716 = vmatprep.subr.mxu0 0.0
        %4717 = vmatpush1.msra.mxu0 0.0
        %4718 = vmatprep.subr.mxu0 0.0
        %4719 = vmatpush1.msra.mxu0 0.0
        %4720 = vmatprep.subr.mxu0 0.0
        %4721 = vmatpush1.msra.mxu0 0.0
        %4722 = vmatprep.subr.mxu0 0.0
        %4723 = vmatpush1.msra.mxu0 0.0
        %4724 = vmatprep.subr.mxu0 0.0
        %4725 = vmatpush1.msra.mxu0 0.0
        %4726 = vmatprep.subr.mxu0 0.0
        %4727 = vmatpush1.msra.mxu0 0.0
        %4728 = vmatprep.subr.mxu0 0.0
        %4729 = vmatpush1.msra.mxu0 0.0
        %4730 = vmatprep.subr.mxu0 0.0
        %4731 = vmatpush1.msra.mxu0 0.0
        %4732 = vmatprep.subr.mxu0 0.0
        %4733 = vmatpush1.msra.mxu0 0.0
        %4734 = vmatprep.subr.mxu0 0.0
        %4735 = vmatpush1.msra.mxu0 0.0
        %4736 = vmatprep.subr.mxu0 0.0
        %4737 = vmatpush1.msra.mxu0 0.0
        %4738 = vmatprep.subr.mxu0 0.0
        %4739 = vmatpush1.msra.mxu0 0.0
        %4740 = vmatprep.subr.mxu0 0.0
        %4741 = vmatpush1.msra.mxu0 0.0
        %4742 = vmatprep.subr.mxu0 0.0
        %4743 = vmatpush1.msra.mxu0 0.0
        %4744 = vmatprep.subr.mxu0 0.0
        %4745 = vmatpush1.msra.mxu0 0.0
        %4746 = vmatprep.subr.mxu0 0.0
        %4747 = vmatpush1.msra.mxu0 0.0
        %4748 = vmatprep.mubr.f32.mxu0 0.0
        %4749 = vmatmul.mubr.f32.gmra.mrb[0].mxu0 %v4637
        %v4750 = vpop.f32.mrb[0].mxu0
        %v4751 = vadd.f32 0.0, %v4750
        %v4752 = vpop.f32.mrb[0].mxu0
        %4753 = vmatprep.mubr.f32.mxu0 0.0
        %4754 = vmatmul.mubr.f32.gmra.mrb[0].mxu0 %v4640
        %v4755 = vpop.f32.mrb[0].mxu0
        %v4756 = vadd.f32 0.0, %v4755
        %v4757 = vpop.f32.mrb[0].mxu0
        %4758 = vmatprep.mubr.f32.mxu0 0.0
        %4759 = vmatmul.mubr.f32.gmra.mrb[0].mxu0 %v4643
        %v4760 = vpop.f32.mrb[0].mxu0
        %v4761 = vadd.f32 0.0, %v4760
        %v4762 = vpop.f32.mrb[0].mxu0
        %4763 = vmatprep.mubr.f32.mxu0 0.0
        %4764 = vmatmul.mubr.f32.gmra.mrb[0].mxu0 %v4646
        %v4765 = vpop.f32.mrb[0].mxu0
        %v4766 = vadd.f32 0.0, %v4765
        %v4767 = vpop.f32.mrb[0].mxu0
        %4768 = vmatprep.mubr.f32.mxu0 0.0
        %4769 = vmatmul.mubr.f32.gmra.mrb[0].mxu0 %v4649
        %v4770 = vpop.f32.mrb[0].mxu0
        %v4771 = vadd.f32 0.0, %v4770
        %v4772 = vpop.f32.mrb[0].mxu0
        %4773 = vmatprep.mubr.f32.mxu0 0.0
        %4774 = vmatmul.mubr.f32.gmra.mrb[0].mxu0 %v4652
        %v4775 = vpop.f32.mrb[0].mxu0
        %v4776 = vadd.f32 0.0, %v4775
        %v4777 = vpop.f32.mrb[0].mxu0
        %4778 = vmatprep.mubr.f32.mxu0 0.0
        %4779 = vmatmul.mubr.f32.gmra.mrb[0].mxu0 %v4655
        %v4780 = vpop.f32.mrb[0].mxu0
        %v4781 = vadd.f32 0.0, %v4780
        %v4782 = vpop.f32.mrb[0].mxu0
        %4783 = vmatprep.mubr.f32.mxu0 0.0
        %4784 = vmatmul.mubr.f32.gmra.mrb[0].mxu0 %v4658
        %v4785 = vpop.f32.mrb[0].mxu0
        %v4786 = vadd.f32 0.0, %v4785
        %v4787 = vpop.f32.mrb[0].mxu0
        %4788 = vmatprep.mubr.f32.mxu0 0.0
        %4789 = vmatmul.mubr.f32.gmra.mrb[0].mxu0 %v4661
        %v4790 = vpop.f32.mrb[0].mxu0
        %v4791 = vadd.f32 0.0, %v4790
        %v4792 = vpop.f32.mrb[0].mxu0
        %4793 = vmatprep.mubr.f32.mxu0 0.0
        %4794 = vmatmul.mubr.f32.gmra.mrb[0].mxu0 %v4664
        %v4795 = vpop.f32.mrb[0].mxu0
        %v4796 = vadd.f32 0.0, %v4795
        %v4797 = vpop.f32.mrb[0].mxu0
        %4798 = vmatprep.mubr.f32.mxu0 0.0
        %4799 = vmatmul.mubr.f32.gmra.mrb[0].mxu0 %v4667
        %v4800 = vpop.f32.mrb[0].mxu0
        %v4801 = vadd.f32 0.0, %v4800
        %v4802 = vpop.f32.mrb[0].mxu0
        %4803 = vmatprep.mubr.f32.mxu0 0.0
        %4804 = vmatmul.mubr.f32.gmra.mrb[0].mxu0 %v4670
        %v4805 = vpop.f32.mrb[0].mxu0
        %v4806 = vadd.f32 0.0, %v4805
        %v4807 = vpop.f32.mrb[0].mxu0
        %4808 = vmatprep.mubr.f32.mxu0 0.0
        %4809 = vmatmul.mubr.f32.gmra.mrb[0].mxu0 %v4673
        %v4810 = vpop.f32.mrb[0].mxu0
        %v4811 = vadd.f32 0.0, %v4810
        %v4812 = vpop.f32.mrb[0].mxu0
        %4813 = vmatprep.mubr.f32.mxu0 0.0
        %4814 = vmatmul.mubr.f32.gmra.mrb[0].mxu0 %v4676
        %v4815 = vpop.f32.mrb[0].mxu0
        %v4816 = vadd.f32 0.0, %v4815
        %v4817 = vpop.f32.mrb[0].mxu0
        %4818 = vmatprep.mubr.f32.mxu0 0.0
        %4819 = vmatmul.mubr.f32.gmra.mrb[0].mxu0 %v4679
        %v4820 = vpop.f32.mrb[0].mxu0
        %v4821 = vadd.f32 0.0, %v4820
        %v4822 = vpop.f32.mrb[0].mxu0
        %4823 = vmatprep.mubr.f32.mxu0 0.0
        %4824 = vmatmul.mubr.f32.gmra.mrb[0].mxu0 %v4682
        %v4825 = vpop.f32.mrb[0].mxu0
        %v4826 = vadd.f32 0.0, %v4825
        %v4827 = vpop.f32.mrb[0].mxu0
        %4828 = vdwg.mxu0
        %v4829 = vadd.f32 %v4586, %v4751
        %v4830 = vadd.f32 %v4587, %v4756
        %v4831 = vadd.f32 %v4588, %v4761
        %v4832 = vadd.f32 %v4589, %v4766
        %v4833 = vadd.f32 %v4590, %v4771
        %v4834 = vadd.f32 %v4591, %v4776
        %v4835 = vadd.f32 %v4592, %v4781
        %v4836 = vadd.f32 %v4593, %v4786
        %v4837 = vadd.f32 %v4594, %v4791
        %v4838 = vadd.f32 %v4595, %v4796
        %v4839 = vadd.f32 %v4596, %v4801
        %v4840 = vadd.f32 %v4597, %v4806
        %v4841 = vadd.f32 %v4598, %v4811
        %v4842 = vadd.f32 %v4599, %v4816
        %v4843 = vadd.f32 %v4600, %v4821
        %v4844 = vadd.f32 %v4601, %v4826
        %v4845 = vld [vmem:[%s4] sm:$0x1]
        %v4847 = vlaneseq
        %v4848 = vshrl.u32 %v4847, 7
        %v4849 = vsub.s32 0, %v4848
        %v4850 = vrot.slane %v4845, %v4849
        %v4852 = vadd.f32 %v4829, %v4850
        %v4853 = vadd.f32 %v4830, %v4850
        %v4854 = vadd.f32 %v4831, %v4850
        %v4855 = vadd.f32 %v4832, %v4850
        %v4856 = vadd.f32 %v4833, %v4850
        %v4857 = vadd.f32 %v4834, %v4850
        %v4858 = vadd.f32 %v4835, %v4850
        %v4859 = vadd.f32 %v4836, %v4850
        %v4860 = vadd.f32 %v4837, %v4850
        %v4861 = vadd.f32 %v4838, %v4850
        %v4862 = vadd.f32 %v4839, %v4850
        %v4863 = vadd.f32 %v4840, %v4850
        %v4864 = vadd.f32 %v4841, %v4850
        %v4865 = vadd.f32 %v4842, %v4850
        %v4866 = vadd.f32 %v4843, %v4850
        %v4867 = vadd.f32 %v4844, %v4850
        %vm4868 = vcmp.gt.f32.partialorder %v4852, 0.0
        %vm4869 = vcmp.gt.f32.partialorder %v4853, 0.0
        %vm4870 = vcmp.gt.f32.partialorder %v4854, 0.0
        %vm4871 = vcmp.gt.f32.partialorder %v4855, 0.0
        %vm4872 = vcmp.gt.f32.partialorder %v4856, 0.0
        %vm4873 = vcmp.gt.f32.partialorder %v4857, 0.0
        %vm4874 = vcmp.gt.f32.partialorder %v4858, 0.0
        %vm4875 = vcmp.gt.f32.partialorder %v4859, 0.0
        %vm4876 = vcmp.gt.f32.partialorder %v4860, 0.0
        %vm4877 = vcmp.gt.f32.partialorder %v4861, 0.0
        %vm4878 = vcmp.gt.f32.partialorder %v4862, 0.0
        %vm4879 = vcmp.gt.f32.partialorder %v4863, 0.0
        %vm4880 = vcmp.gt.f32.partialorder %v4864, 0.0
        %vm4881 = vcmp.gt.f32.partialorder %v4865, 0.0
        %vm4882 = vcmp.gt.f32.partialorder %v4866, 0.0
        %vm4883 = vcmp.gt.f32.partialorder %v4867, 0.0
        %v4884 = vmul.f32 %v4852, 0.2
        %v4885 = vmul.f32 %v4853, 0.2
        %v4886 = vmul.f32 %v4854, 0.2
        %v4887 = vmul.f32 %v4855, 0.2
        %v4888 = vmul.f32 %v4856, 0.2
        %v4889 = vmul.f32 %v4857, 0.2
        %v4890 = vmul.f32 %v4858, 0.2
        %v4891 = vmul.f32 %v4859, 0.2
        %v4892 = vmul.f32 %v4860, 0.2
        %v4893 = vmul.f32 %v4861, 0.2
        %v4894 = vmul.f32 %v4862, 0.2
        %v4895 = vmul.f32 %v4863, 0.2
        %v4896 = vmul.f32 %v4864, 0.2
        %v4897 = vmul.f32 %v4865, 0.2
        %v4898 = vmul.f32 %v4866, 0.2
        %v4899 = vmul.f32 %v4867, 0.2
        %v4900 = vsel %vm4868, %v4852, %v4884
        %v4901 = vsel %vm4869, %v4853, %v4885
        %v4902 = vsel %vm4870, %v4854, %v4886
        %v4903 = vsel %vm4871, %v4855, %v4887
        %v4904 = vsel %vm4872, %v4856, %v4888
        %v4905 = vsel %vm4873, %v4857, %v4889
        %v4906 = vsel %vm4874, %v4858, %v4890
        %v4907 = vsel %vm4875, %v4859, %v4891
        %v4908 = vsel %vm4876, %v4860, %v4892
        %v4909 = vsel %vm4877, %v4861, %v4893
        %v4910 = vsel %vm4878, %v4862, %v4894
        %v4911 = vsel %vm4879, %v4863, %v4895
        %v4912 = vsel %vm4880, %v4864, %v4896
        %v4913 = vsel %vm4881, %v4865, %v4897
        %v4914 = vsel %vm4882, %v4866, %v4898
        %v4915 = vsel %vm4883, %v4867, %v4899
        %4916 = vst.msk [vmem:[#allocation3] sm:$0x3] %vm3595, 0.0
        %4917 = vst.msk [vmem:[#allocation3 + $0x2] sm:$0xff] %vm3597, %v4900
        %4918 = vst.msk [vmem:[#allocation3 + $0xa] sm:$0xff] %vm3597, %v4901
        %4919 = vst.msk [vmem:[#allocation3 + $0x12] sm:$0xff] %vm3597, %v4902
        %4920 = vst.msk [vmem:[#allocation3 + $0x1a] sm:$0xff] %vm3597, %v4903
        %4921 = vst.msk [vmem:[#allocation3 + $0x22] sm:$0xff] %vm3597, %v4904
        %4922 = vst.msk [vmem:[#allocation3 + $0x2a] sm:$0xff] %vm3597, %v4905
        %4923 = vst.msk [vmem:[#allocation3 + $0x32] sm:$0xff] %vm3597, %v4906
        %4924 = vst.msk [vmem:[#allocation3 + $0x3a] sm:$0xff] %vm3597, %v4907
        %4925 = vst.msk [vmem:[#allocation3 + $0x42] sm:$0xff] %vm3597, %v4908
        %4926 = vst.msk [vmem:[#allocation3 + $0x4a] sm:$0xff] %vm3597, %v4909
        %4927 = vst.msk [vmem:[#allocation3 + $0x52] sm:$0xff] %vm3597, %v4910
        %4928 = vst.msk [vmem:[#allocation3 + $0x5a] sm:$0xff] %vm3597, %v4911
        %4929 = vst.msk [vmem:[#allocation3 + $0x62] sm:$0xff] %vm3597, %v4912
        %4930 = vst.msk [vmem:[#allocation3 + $0x6a] sm:$0xff] %vm3597, %v4913
        %4931 = vst.msk [vmem:[#allocation3 + $0x72] sm:$0xff] %vm3597, %v4914
        %4932 = vst.msk [vmem:[#allocation3 + $0x7a] sm:$0xff] %vm3597, %v4915
        %4933 = vst.msk [vmem:[#allocation3 + $0x82] sm:$0x3] %vm3595, 0.0
        %v4934 = vld [vmem:[#allocation3] ss:$4 sm:$0xff]
        %s4935 = scalar_lea.vmem [#allocation3], 32
        %v4936 = vld [vmem:[%s4935] ss:$4 sm:$0xff]
        %s4937 = scalar_lea.vmem [#allocation3], 64
        %v4938 = vld [vmem:[%s4937] ss:$4 sm:$0xff]
        %s4939 = scalar_lea.vmem [#allocation3], 96
        %v4940 = vld [vmem:[%s4939] ss:$4 sm:$0xff]
        %v4941 = vld [vmem:[%s5] sm:$0xff]
        %v4942 = vld [vmem:[%s5 + $0x8] sm:$0xff]
        %s4943 = scalar_lea.vmem [#allocation3], 1
        %v4944 = vld [vmem:[%s4943] ss:$4 sm:$0xff]
        %s4945 = scalar_lea.vmem [#allocation3], 33
        %v4946 = vld [vmem:[%s4945] ss:$4 sm:$0xff]
        %s4947 = scalar_lea.vmem [#allocation3], 65
        %v4948 = vld [vmem:[%s4947] ss:$4 sm:$0xff]
        %s4949 = scalar_lea.vmem [#allocation3], 97
        %v4950 = vld [vmem:[%s4949] ss:$4 sm:$0xff]
        %v4951 = vld [vmem:[%s5 + $0x10] sm:$0xff]
        %v4952 = vld [vmem:[%s5 + $0x18] sm:$0xff]
        %v4954 = vsel %vm3597, %v4944, 0
        %v4957 = vsel %vm3597, %v4946, 0
        %v4960 = vsel %vm3597, %v4948, 0
        %v4963 = vsel %vm3597, %v4950, 0
        %4965 = vmatprep.subr.mxu0 0.0
        %4966 = vmatpush1.msra.mxu0 %v4951
        %4967 = vmatprep.subr.mxu0 0.0
        %4968 = vmatpush1.msra.mxu0 %v4952
        %4969 = vmatprep.subr.mxu0 0.0
        %4970 = vmatpush1.msra.mxu0 0.0
        %4971 = vmatprep.subr.mxu0 0.0
        %4972 = vmatpush1.msra.mxu0 0.0
        %4973 = vmatprep.subr.mxu0 0.0
        %4974 = vmatpush1.msra.mxu0 0.0
        %4975 = vmatprep.subr.mxu0 0.0
        %4976 = vmatpush1.msra.mxu0 0.0
        %4977 = vmatprep.subr.mxu0 0.0
        %4978 = vmatpush1.msra.mxu0 0.0
        %4979 = vmatprep.subr.mxu0 0.0
        %4980 = vmatpush1.msra.mxu0 0.0
        %4981 = vmatprep.subr.mxu0 0.0
        %4982 = vmatpush1.msra.mxu0 0.0
        %4983 = vmatprep.subr.mxu0 0.0
        %4984 = vmatpush1.msra.mxu0 0.0
        %4985 = vmatprep.subr.mxu0 0.0
        %4986 = vmatpush1.msra.mxu0 0.0
        %4987 = vmatprep.subr.mxu0 0.0
        %4988 = vmatpush1.msra.mxu0 0.0
        %4989 = vmatprep.subr.mxu0 0.0
        %4990 = vmatpush1.msra.mxu0 0.0
        %4991 = vmatprep.subr.mxu0 0.0
        %4992 = vmatpush1.msra.mxu0 0.0
        %4993 = vmatprep.subr.mxu0 0.0
        %4994 = vmatpush1.msra.mxu0 0.0
        %4995 = vmatprep.subr.mxu0 0.0
        %4996 = vmatpush1.msra.mxu0 0.0
        %4997 = vmatprep.subr.mxu0 0.0
        %4998 = vmatpush1.msra.mxu0 0.0
        %4999 = vmatprep.subr.mxu0 0.0
        %5000 = vmatpush1.msra.mxu0 0.0
        %5001 = vmatprep.subr.mxu0 0.0
        %5002 = vmatpush1.msra.mxu0 0.0
        %5003 = vmatprep.subr.mxu0 0.0
        %5004 = vmatpush1.msra.mxu0 0.0
        %5005 = vmatprep.subr.mxu0 0.0
        %5006 = vmatpush1.msra.mxu0 0.0
        %5007 = vmatprep.subr.mxu0 0.0
        %5008 = vmatpush1.msra.mxu0 0.0
        %5009 = vmatprep.subr.mxu0 0.0
        %5010 = vmatpush1.msra.mxu0 0.0
        %5011 = vmatprep.subr.mxu0 0.0
        %5012 = vmatpush1.msra.mxu0 0.0
        %5013 = vmatprep.subr.mxu0 0.0
        %5014 = vmatpush1.msra.mxu0 0.0
        %5015 = vmatprep.subr.mxu0 0.0
        %5016 = vmatpush1.msra.mxu0 0.0
        %5017 = vmatprep.subr.mxu0 0.0
        %5018 = vmatpush1.msra.mxu0 0.0
        %5019 = vmatprep.subr.mxu0 0.0
        %5020 = vmatpush1.msra.mxu0 0.0
        %5021 = vmatprep.subr.mxu0 0.0
        %5022 = vmatpush1.msra.mxu0 0.0
        %5023 = vmatprep.subr.mxu0 0.0
        %5024 = vmatpush1.msra.mxu0 0.0
        %5025 = vmatprep.subr.mxu0 0.0
        %5026 = vmatpush1.msra.mxu0 0.0
        %5027 = vmatprep.subr.mxu0 0.0
        %5028 = vmatpush1.msra.mxu0 0.0
        %5029 = vmatprep.mubr.f32.mxu0 0.0
        %5030 = vmatmul.mubr.f32.gmra.mrb[0].mxu0 %v4954
        %v5031 = vpop.f32.mrb[0].mxu0
        %v5032 = vadd.f32 0.0, %v5031
        %v5033 = vpop.f32.mrb[0].mxu0
        %5034 = vmatprep.mubr.f32.mxu0 0.0
        %5035 = vmatmul.mubr.f32.gmra.mrb[0].mxu0 %v4957
        %v5036 = vpop.f32.mrb[0].mxu0
        %v5037 = vadd.f32 0.0, %v5036
        %v5038 = vpop.f32.mrb[0].mxu0
        %5039 = vmatprep.mubr.f32.mxu0 0.0
        %5040 = vmatmul.mubr.f32.gmra.mrb[0].mxu0 %v4960
        %v5041 = vpop.f32.mrb[0].mxu0
        %v5042 = vadd.f32 0.0, %v5041
        %v5043 = vpop.f32.mrb[0].mxu0
        %5044 = vmatprep.mubr.f32.mxu0 0.0
        %5045 = vmatmul.mubr.f32.gmra.mrb[0].mxu0 %v4963
        %v5046 = vpop.f32.mrb[0].mxu0
        %v5047 = vadd.f32 0.0, %v5046
        %v5048 = vpop.f32.mrb[0].mxu0
        %5049 = vdwg.mxu0
        %v5051 = vsel %vm3597, %v4934, 0
        %v5054 = vsel %vm3597, %v4936, 0
        %v5057 = vsel %vm3597, %v4938, 0
        %v5060 = vsel %vm3597, %v4940, 0
        %5062 = vmatprep.subr.mxu0 0.0
        %5063 = vmatpush1.msra.mxu0 %v4941
        %5064 = vmatprep.subr.mxu0 0.0
        %5065 = vmatpush1.msra.mxu0 %v4942
        %5066 = vmatprep.subr.mxu0 0.0
        %5067 = vmatpush1.msra.mxu0 0.0
        %5068 = vmatprep.subr.mxu0 0.0
        %5069 = vmatpush1.msra.mxu0 0.0
        %5070 = vmatprep.subr.mxu0 0.0
        %5071 = vmatpush1.msra.mxu0 0.0
        %5072 = vmatprep.subr.mxu0 0.0
        %5073 = vmatpush1.msra.mxu0 0.0
        %5074 = vmatprep.subr.mxu0 0.0
        %5075 = vmatpush1.msra.mxu0 0.0
        %5076 = vmatprep.subr.mxu0 0.0
        %5077 = vmatpush1.msra.mxu0 0.0
        %5078 = vmatprep.subr.mxu0 0.0
        %5079 = vmatpush1.msra.mxu0 0.0
        %5080 = vmatprep.subr.mxu0 0.0
        %5081 = vmatpush1.msra.mxu0 0.0
        %5082 = vmatprep.subr.mxu0 0.0
        %5083 = vmatpush1.msra.mxu0 0.0
        %5084 = vmatprep.subr.mxu0 0.0
        %5085 = vmatpush1.msra.mxu0 0.0
        %5086 = vmatprep.subr.mxu0 0.0
        %5087 = vmatpush1.msra.mxu0 0.0
        %5088 = vmatprep.subr.mxu0 0.0
        %5089 = vmatpush1.msra.mxu0 0.0
        %5090 = vmatprep.subr.mxu0 0.0
        %5091 = vmatpush1.msra.mxu0 0.0
        %5092 = vmatprep.subr.mxu0 0.0
        %5093 = vmatpush1.msra.mxu0 0.0
        %5094 = vmatprep.subr.mxu0 0.0
        %5095 = vmatpush1.msra.mxu0 0.0
        %5096 = vmatprep.subr.mxu0 0.0
        %5097 = vmatpush1.msra.mxu0 0.0
        %5098 = vmatprep.subr.mxu0 0.0
        %5099 = vmatpush1.msra.mxu0 0.0
        %5100 = vmatprep.subr.mxu0 0.0
        %5101 = vmatpush1.msra.mxu0 0.0
        %5102 = vmatprep.subr.mxu0 0.0
        %5103 = vmatpush1.msra.mxu0 0.0
        %5104 = vmatprep.subr.mxu0 0.0
        %5105 = vmatpush1.msra.mxu0 0.0
        %5106 = vmatprep.subr.mxu0 0.0
        %5107 = vmatpush1.msra.mxu0 0.0
        %5108 = vmatprep.subr.mxu0 0.0
        %5109 = vmatpush1.msra.mxu0 0.0
        %5110 = vmatprep.subr.mxu0 0.0
        %5111 = vmatpush1.msra.mxu0 0.0
        %5112 = vmatprep.subr.mxu0 0.0
        %5113 = vmatpush1.msra.mxu0 0.0
        %5114 = vmatprep.subr.mxu0 0.0
        %5115 = vmatpush1.msra.mxu0 0.0
        %5116 = vmatprep.subr.mxu0 0.0
        %5117 = vmatpush1.msra.mxu0 0.0
        %5118 = vmatprep.subr.mxu0 0.0
        %5119 = vmatpush1.msra.mxu0 0.0
        %5120 = vmatprep.subr.mxu0 0.0
        %5121 = vmatpush1.msra.mxu0 0.0
        %5122 = vmatprep.subr.mxu0 0.0
        %5123 = vmatpush1.msra.mxu0 0.0
        %5124 = vmatprep.subr.mxu0 0.0
        %5125 = vmatpush1.msra.mxu0 0.0
        %5126 = vmatprep.mubr.f32.mxu0 0.0
        %5127 = vmatmul.mubr.f32.gmra.mrb[0].mxu0 %v5051
        %v5128 = vpop.f32.mrb[0].mxu0
        %v5129 = vadd.f32 %v5032, %v5128
        %v5130 = vpop.f32.mrb[0].mxu0
        %5131 = vmatprep.mubr.f32.mxu0 0.0
        %5132 = vmatmul.mubr.f32.gmra.mrb[0].mxu0 %v5054
        %v5133 = vpop.f32.mrb[0].mxu0
        %v5134 = vadd.f32 %v5037, %v5133
        %v5135 = vpop.f32.mrb[0].mxu0
        %5136 = vmatprep.mubr.f32.mxu0 0.0
        %5137 = vmatmul.mubr.f32.gmra.mrb[0].mxu0 %v5057
        %v5138 = vpop.f32.mrb[0].mxu0
        %v5139 = vadd.f32 %v5042, %v5138
        %v5140 = vpop.f32.mrb[0].mxu0
        %5141 = vmatprep.mubr.f32.mxu0 0.0
        %5142 = vmatmul.mubr.f32.gmra.mrb[0].mxu0 %v5060
        %v5143 = vpop.f32.mrb[0].mxu0
        %v5144 = vadd.f32 %v5047, %v5143
        %v5145 = vpop.f32.mrb[0].mxu0
        %5146 = vdwg.mxu0
        %s5147 = scalar_lea.vmem [#allocation3], 2
        %v5148 = vld [vmem:[%s5147] ss:$4 sm:$0xff]
        %s5149 = scalar_lea.vmem [#allocation3], 34
        %v5150 = vld [vmem:[%s5149] ss:$4 sm:$0xff]
        %s5151 = scalar_lea.vmem [#allocation3], 66
        %v5152 = vld [vmem:[%s5151] ss:$4 sm:$0xff]
        %s5153 = scalar_lea.vmem [#allocation3], 98
        %v5154 = vld [vmem:[%s5153] ss:$4 sm:$0xff]
        %v5155 = vld [vmem:[%s5 + $0x20] sm:$0xff]
        %v5156 = vld [vmem:[%s5 + $0x28] sm:$0xff]
        %v5158 = vsel %vm3597, %v5148, 0
        %v5161 = vsel %vm3597, %v5150, 0
        %v5164 = vsel %vm3597, %v5152, 0
        %v5167 = vsel %vm3597, %v5154, 0
        %5169 = vmatprep.subr.mxu0 0.0
        %5170 = vmatpush1.msra.mxu0 %v5155
        %5171 = vmatprep.subr.mxu0 0.0
        %5172 = vmatpush1.msra.mxu0 %v5156
        %5173 = vmatprep.subr.mxu0 0.0
        %5174 = vmatpush1.msra.mxu0 0.0
        %5175 = vmatprep.subr.mxu0 0.0
        %5176 = vmatpush1.msra.mxu0 0.0
        %5177 = vmatprep.subr.mxu0 0.0
        %5178 = vmatpush1.msra.mxu0 0.0
        %5179 = vmatprep.subr.mxu0 0.0
        %5180 = vmatpush1.msra.mxu0 0.0
        %5181 = vmatprep.subr.mxu0 0.0
        %5182 = vmatpush1.msra.mxu0 0.0
        %5183 = vmatprep.subr.mxu0 0.0
        %5184 = vmatpush1.msra.mxu0 0.0
        %5185 = vmatprep.subr.mxu0 0.0
        %5186 = vmatpush1.msra.mxu0 0.0
        %5187 = vmatprep.subr.mxu0 0.0
        %5188 = vmatpush1.msra.mxu0 0.0
        %5189 = vmatprep.subr.mxu0 0.0
        %5190 = vmatpush1.msra.mxu0 0.0
        %5191 = vmatprep.subr.mxu0 0.0
        %5192 = vmatpush1.msra.mxu0 0.0
        %5193 = vmatprep.subr.mxu0 0.0
        %5194 = vmatpush1.msra.mxu0 0.0
        %5195 = vmatprep.subr.mxu0 0.0
        %5196 = vmatpush1.msra.mxu0 0.0
        %5197 = vmatprep.subr.mxu0 0.0
        %5198 = vmatpush1.msra.mxu0 0.0
        %5199 = vmatprep.subr.mxu0 0.0
        %5200 = vmatpush1.msra.mxu0 0.0
        %5201 = vmatprep.subr.mxu0 0.0
        %5202 = vmatpush1.msra.mxu0 0.0
        %5203 = vmatprep.subr.mxu0 0.0
        %5204 = vmatpush1.msra.mxu0 0.0
        %5205 = vmatprep.subr.mxu0 0.0
        %5206 = vmatpush1.msra.mxu0 0.0
        %5207 = vmatprep.subr.mxu0 0.0
        %5208 = vmatpush1.msra.mxu0 0.0
        %5209 = vmatprep.subr.mxu0 0.0
        %5210 = vmatpush1.msra.mxu0 0.0
        %5211 = vmatprep.subr.mxu0 0.0
        %5212 = vmatpush1.msra.mxu0 0.0
        %5213 = vmatprep.subr.mxu0 0.0
        %5214 = vmatpush1.msra.mxu0 0.0
        %5215 = vmatprep.subr.mxu0 0.0
        %5216 = vmatpush1.msra.mxu0 0.0
        %5217 = vmatprep.subr.mxu0 0.0
        %5218 = vmatpush1.msra.mxu0 0.0
        %5219 = vmatprep.subr.mxu0 0.0
        %5220 = vmatpush1.msra.mxu0 0.0
        %5221 = vmatprep.subr.mxu0 0.0
        %5222 = vmatpush1.msra.mxu0 0.0
        %5223 = vmatprep.subr.mxu0 0.0
        %5224 = vmatpush1.msra.mxu0 0.0
        %5225 = vmatprep.subr.mxu0 0.0
        %5226 = vmatpush1.msra.mxu0 0.0
        %5227 = vmatprep.subr.mxu0 0.0
        %5228 = vmatpush1.msra.mxu0 0.0
        %5229 = vmatprep.subr.mxu0 0.0
        %5230 = vmatpush1.msra.mxu0 0.0
        %5231 = vmatprep.subr.mxu0 0.0
        %5232 = vmatpush1.msra.mxu0 0.0
        %5233 = vmatprep.mubr.f32.mxu0 0.0
        %5234 = vmatmul.mubr.f32.gmra.mrb[0].mxu0 %v5158
        %v5235 = vpop.f32.mrb[0].mxu0
        %v5236 = vadd.f32 0.0, %v5235
        %v5237 = vpop.f32.mrb[0].mxu0
        %5238 = vmatprep.mubr.f32.mxu0 0.0
        %5239 = vmatmul.mubr.f32.gmra.mrb[0].mxu0 %v5161
        %v5240 = vpop.f32.mrb[0].mxu0
        %v5241 = vadd.f32 0.0, %v5240
        %v5242 = vpop.f32.mrb[0].mxu0
        %5243 = vmatprep.mubr.f32.mxu0 0.0
        %5244 = vmatmul.mubr.f32.gmra.mrb[0].mxu0 %v5164
        %v5245 = vpop.f32.mrb[0].mxu0
        %v5246 = vadd.f32 0.0, %v5245
        %v5247 = vpop.f32.mrb[0].mxu0
        %5248 = vmatprep.mubr.f32.mxu0 0.0
        %5249 = vmatmul.mubr.f32.gmra.mrb[0].mxu0 %v5167
        %v5250 = vpop.f32.mrb[0].mxu0
        %v5251 = vadd.f32 0.0, %v5250
        %v5252 = vpop.f32.mrb[0].mxu0
        %5253 = vdwg.mxu0
        %v5254 = vadd.f32 %v5129, %v5236
        %v5255 = vadd.f32 %v5134, %v5241
        %v5256 = vadd.f32 %v5139, %v5246
        %v5257 = vadd.f32 %v5144, %v5251
        %s5258 = scalar_lea.vmem [#allocation3], 3
        %v5259 = vld [vmem:[%s5258] ss:$4 sm:$0xff]
        %s5260 = scalar_lea.vmem [#allocation3], 35
        %v5261 = vld [vmem:[%s5260] ss:$4 sm:$0xff]
        %s5262 = scalar_lea.vmem [#allocation3], 67
        %v5263 = vld [vmem:[%s5262] ss:$4 sm:$0xff]
        %s5264 = scalar_lea.vmem [#allocation3], 99
        %v5265 = vld [vmem:[%s5264] ss:$4 sm:$0xff]
        %v5266 = vld [vmem:[%s5 + $0x30] sm:$0xff]
        %v5267 = vld [vmem:[%s5 + $0x38] sm:$0xff]
        %v5269 = vsel %vm3597, %v5259, 0
        %v5272 = vsel %vm3597, %v5261, 0
        %v5275 = vsel %vm3597, %v5263, 0
        %v5278 = vsel %vm3597, %v5265, 0
        %5280 = vmatprep.subr.mxu0 0.0
        %5281 = vmatpush1.msra.mxu0 %v5266
        %5282 = vmatprep.subr.mxu0 0.0
        %5283 = vmatpush1.msra.mxu0 %v5267
        %5284 = vmatprep.subr.mxu0 0.0
        %5285 = vmatpush1.msra.mxu0 0.0
        %5286 = vmatprep.subr.mxu0 0.0
        %5287 = vmatpush1.msra.mxu0 0.0
        %5288 = vmatprep.subr.mxu0 0.0
        %5289 = vmatpush1.msra.mxu0 0.0
        %5290 = vmatprep.subr.mxu0 0.0
        %5291 = vmatpush1.msra.mxu0 0.0
        %5292 = vmatprep.subr.mxu0 0.0
        %5293 = vmatpush1.msra.mxu0 0.0
        %5294 = vmatprep.subr.mxu0 0.0
        %5295 = vmatpush1.msra.mxu0 0.0
        %5296 = vmatprep.subr.mxu0 0.0
        %5297 = vmatpush1.msra.mxu0 0.0
        %5298 = vmatprep.subr.mxu0 0.0
        %5299 = vmatpush1.msra.mxu0 0.0
        %5300 = vmatprep.subr.mxu0 0.0
        %5301 = vmatpush1.msra.mxu0 0.0
        %5302 = vmatprep.subr.mxu0 0.0
        %5303 = vmatpush1.msra.mxu0 0.0
        %5304 = vmatprep.subr.mxu0 0.0
        %5305 = vmatpush1.msra.mxu0 0.0
        %5306 = vmatprep.subr.mxu0 0.0
        %5307 = vmatpush1.msra.mxu0 0.0
        %5308 = vmatprep.subr.mxu0 0.0
        %5309 = vmatpush1.msra.mxu0 0.0
        %5310 = vmatprep.subr.mxu0 0.0
        %5311 = vmatpush1.msra.mxu0 0.0
        %5312 = vmatprep.subr.mxu0 0.0
        %5313 = vmatpush1.msra.mxu0 0.0
        %5314 = vmatprep.subr.mxu0 0.0
        %5315 = vmatpush1.msra.mxu0 0.0
        %5316 = vmatprep.subr.mxu0 0.0
        %5317 = vmatpush1.msra.mxu0 0.0
        %5318 = vmatprep.subr.mxu0 0.0
        %5319 = vmatpush1.msra.mxu0 0.0
        %5320 = vmatprep.subr.mxu0 0.0
        %5321 = vmatpush1.msra.mxu0 0.0
        %5322 = vmatprep.subr.mxu0 0.0
        %5323 = vmatpush1.msra.mxu0 0.0
        %5324 = vmatprep.subr.mxu0 0.0
        %5325 = vmatpush1.msra.mxu0 0.0
        %5326 = vmatprep.subr.mxu0 0.0
        %5327 = vmatpush1.msra.mxu0 0.0
        %5328 = vmatprep.subr.mxu0 0.0
        %5329 = vmatpush1.msra.mxu0 0.0
        %5330 = vmatprep.subr.mxu0 0.0
        %5331 = vmatpush1.msra.mxu0 0.0
        %5332 = vmatprep.subr.mxu0 0.0
        %5333 = vmatpush1.msra.mxu0 0.0
        %5334 = vmatprep.subr.mxu0 0.0
        %5335 = vmatpush1.msra.mxu0 0.0
        %5336 = vmatprep.subr.mxu0 0.0
        %5337 = vmatpush1.msra.mxu0 0.0
        %5338 = vmatprep.subr.mxu0 0.0
        %5339 = vmatpush1.msra.mxu0 0.0
        %5340 = vmatprep.subr.mxu0 0.0
        %5341 = vmatpush1.msra.mxu0 0.0
        %5342 = vmatprep.subr.mxu0 0.0
        %5343 = vmatpush1.msra.mxu0 0.0
        %5344 = vmatprep.mubr.f32.mxu0 0.0
        %5345 = vmatmul.mubr.f32.gmra.mrb[0].mxu0 %v5269
        %v5346 = vpop.f32.mrb[0].mxu0
        %v5347 = vadd.f32 0.0, %v5346
        %v5348 = vpop.f32.mrb[0].mxu0
        %5349 = vmatprep.mubr.f32.mxu0 0.0
        %5350 = vmatmul.mubr.f32.gmra.mrb[0].mxu0 %v5272
        %v5351 = vpop.f32.mrb[0].mxu0
        %v5352 = vadd.f32 0.0, %v5351
        %v5353 = vpop.f32.mrb[0].mxu0
        %5354 = vmatprep.mubr.f32.mxu0 0.0
        %5355 = vmatmul.mubr.f32.gmra.mrb[0].mxu0 %v5275
        %v5356 = vpop.f32.mrb[0].mxu0
        %v5357 = vadd.f32 0.0, %v5356
        %v5358 = vpop.f32.mrb[0].mxu0
        %5359 = vmatprep.mubr.f32.mxu0 0.0
        %5360 = vmatmul.mubr.f32.gmra.mrb[0].mxu0 %v5278
        %v5361 = vpop.f32.mrb[0].mxu0
        %v5362 = vadd.f32 0.0, %v5361
        %v5363 = vpop.f32.mrb[0].mxu0
        %5364 = vdwg.mxu0
        %v5365 = vadd.f32 %v5254, %v5347
        %v5366 = vadd.f32 %v5255, %v5352
        %v5367 = vadd.f32 %v5256, %v5357
        %v5368 = vadd.f32 %v5257, %v5362
        %s5369 = scalar_lea.vmem [#allocation3], 4
        %v5370 = vld [vmem:[%s5369] ss:$4 sm:$0xff]
        %s5371 = scalar_lea.vmem [#allocation3], 36
        %v5372 = vld [vmem:[%s5371] ss:$4 sm:$0xff]
        %s5373 = scalar_lea.vmem [#allocation3], 68
        %v5374 = vld [vmem:[%s5373] ss:$4 sm:$0xff]
        %s5375 = scalar_lea.vmem [#allocation3], 100
        %v5376 = vld [vmem:[%s5375] ss:$4 sm:$0xff]
        %v5377 = vld [vmem:[%s5 + $0x40] sm:$0xff]
        %v5378 = vld [vmem:[%s5 + $0x48] sm:$0xff]
        %v5380 = vsel %vm3597, %v5370, 0
        %v5383 = vsel %vm3597, %v5372, 0
        %v5386 = vsel %vm3597, %v5374, 0
        %v5389 = vsel %vm3597, %v5376, 0
        %5391 = vmatprep.subr.mxu0 0.0
        %5392 = vmatpush1.msra.mxu0 %v5377
        %5393 = vmatprep.subr.mxu0 0.0
        %5394 = vmatpush1.msra.mxu0 %v5378
        %5395 = vmatprep.subr.mxu0 0.0
        %5396 = vmatpush1.msra.mxu0 0.0
        %5397 = vmatprep.subr.mxu0 0.0
        %5398 = vmatpush1.msra.mxu0 0.0
        %5399 = vmatprep.subr.mxu0 0.0
        %5400 = vmatpush1.msra.mxu0 0.0
        %5401 = vmatprep.subr.mxu0 0.0
        %5402 = vmatpush1.msra.mxu0 0.0
        %5403 = vmatprep.subr.mxu0 0.0
        %5404 = vmatpush1.msra.mxu0 0.0
        %5405 = vmatprep.subr.mxu0 0.0
        %5406 = vmatpush1.msra.mxu0 0.0
        %5407 = vmatprep.subr.mxu0 0.0
        %5408 = vmatpush1.msra.mxu0 0.0
        %5409 = vmatprep.subr.mxu0 0.0
        %5410 = vmatpush1.msra.mxu0 0.0
        %5411 = vmatprep.subr.mxu0 0.0
        %5412 = vmatpush1.msra.mxu0 0.0
        %5413 = vmatprep.subr.mxu0 0.0
        %5414 = vmatpush1.msra.mxu0 0.0
        %5415 = vmatprep.subr.mxu0 0.0
        %5416 = vmatpush1.msra.mxu0 0.0
        %5417 = vmatprep.subr.mxu0 0.0
        %5418 = vmatpush1.msra.mxu0 0.0
        %5419 = vmatprep.subr.mxu0 0.0
        %5420 = vmatpush1.msra.mxu0 0.0
        %5421 = vmatprep.subr.mxu0 0.0
        %5422 = vmatpush1.msra.mxu0 0.0
        %5423 = vmatprep.subr.mxu0 0.0
        %5424 = vmatpush1.msra.mxu0 0.0
        %5425 = vmatprep.subr.mxu0 0.0
        %5426 = vmatpush1.msra.mxu0 0.0
        %5427 = vmatprep.subr.mxu0 0.0
        %5428 = vmatpush1.msra.mxu0 0.0
        %5429 = vmatprep.subr.mxu0 0.0
        %5430 = vmatpush1.msra.mxu0 0.0
        %5431 = vmatprep.subr.mxu0 0.0
        %5432 = vmatpush1.msra.mxu0 0.0
        %5433 = vmatprep.subr.mxu0 0.0
        %5434 = vmatpush1.msra.mxu0 0.0
        %5435 = vmatprep.subr.mxu0 0.0
        %5436 = vmatpush1.msra.mxu0 0.0
        %5437 = vmatprep.subr.mxu0 0.0
        %5438 = vmatpush1.msra.mxu0 0.0
        %5439 = vmatprep.subr.mxu0 0.0
        %5440 = vmatpush1.msra.mxu0 0.0
        %5441 = vmatprep.subr.mxu0 0.0
        %5442 = vmatpush1.msra.mxu0 0.0
        %5443 = vmatprep.subr.mxu0 0.0
        %5444 = vmatpush1.msra.mxu0 0.0
        %5445 = vmatprep.subr.mxu0 0.0
        %5446 = vmatpush1.msra.mxu0 0.0
        %5447 = vmatprep.subr.mxu0 0.0
        %5448 = vmatpush1.msra.mxu0 0.0
        %5449 = vmatprep.subr.mxu0 0.0
        %5450 = vmatpush1.msra.mxu0 0.0
        %5451 = vmatprep.subr.mxu0 0.0
        %5452 = vmatpush1.msra.mxu0 0.0
        %5453 = vmatprep.subr.mxu0 0.0
        %5454 = vmatpush1.msra.mxu0 0.0
        %5455 = vmatprep.mubr.f32.mxu0 0.0
        %5456 = vmatmul.mubr.f32.gmra.mrb[0].mxu0 %v5380
        %v5457 = vpop.f32.mrb[0].mxu0
        %v5458 = vadd.f32 0.0, %v5457
        %v5459 = vpop.f32.mrb[0].mxu0
        %5460 = vmatprep.mubr.f32.mxu0 0.0
        %5461 = vmatmul.mubr.f32.gmra.mrb[0].mxu0 %v5383
        %v5462 = vpop.f32.mrb[0].mxu0
        %v5463 = vadd.f32 0.0, %v5462
        %v5464 = vpop.f32.mrb[0].mxu0
        %5465 = vmatprep.mubr.f32.mxu0 0.0
        %5466 = vmatmul.mubr.f32.gmra.mrb[0].mxu0 %v5386
        %v5467 = vpop.f32.mrb[0].mxu0
        %v5468 = vadd.f32 0.0, %v5467
        %v5469 = vpop.f32.mrb[0].mxu0
        %5470 = vmatprep.mubr.f32.mxu0 0.0
        %5471 = vmatmul.mubr.f32.gmra.mrb[0].mxu0 %v5389
        %v5472 = vpop.f32.mrb[0].mxu0
        %v5473 = vadd.f32 0.0, %v5472
        %v5474 = vpop.f32.mrb[0].mxu0
        %5475 = vdwg.mxu0
        %v5476 = vadd.f32 %v5365, %v5458
        %v5477 = vadd.f32 %v5366, %v5463
        %v5478 = vadd.f32 %v5367, %v5468
        %v5479 = vadd.f32 %v5368, %v5473
        %v5480 = vld [vmem:[%s6] sm:$0x1]
        %v5482 = vlaneseq
        %v5483 = vshrl.u32 %v5482, 7
        %v5484 = vsub.s32 0, %v5483
        %v5485 = vrot.slane %v5480, %v5484
        %v5487 = vadd.f32 %v5476, %v5485
        %v5488 = vadd.f32 %v5477, %v5485
        %v5489 = vadd.f32 %v5478, %v5485
        %v5490 = vadd.f32 %v5479, %v5485
        %vm5491 = vcmp.gt.f32.partialorder %v5487, 0.0
        %vm5492 = vcmp.gt.f32.partialorder %v5488, 0.0
        %vm5493 = vcmp.gt.f32.partialorder %v5489, 0.0
        %vm5494 = vcmp.gt.f32.partialorder %v5490, 0.0
        %v5495 = vmul.f32 %v5487, 0.2
        %v5496 = vmul.f32 %v5488, 0.2
        %v5497 = vmul.f32 %v5489, 0.2
        %v5498 = vmul.f32 %v5490, 0.2
        %v5499 = vsel %vm5491, %v5487, %v5495
        %v5500 = vsel %vm5492, %v5488, %v5496
        %v5501 = vsel %vm5493, %v5489, %v5497
        %v5502 = vsel %vm5494, %v5490, %v5498
        %5503 = vst.msk [vmem:[#allocation2] sm:$0x3] %vm3595, 0.0
        %5504 = vst.msk [vmem:[#allocation2 + $0x2] sm:$0xff] %vm3597, %v5499
        %5505 = vst.msk [vmem:[#allocation2 + $0xa] sm:$0xff] %vm3597, %v5500
        %5506 = vst.msk [vmem:[#allocation2 + $0x12] sm:$0xff] %vm3597, %v5501
        %5507 = vst.msk [vmem:[#allocation2 + $0x1a] sm:$0xff] %vm3597, %v5502
        %5508 = vst.msk [vmem:[#allocation2 + $0x22] sm:$0x3] %vm3595, 0.0
        %v5509 = vld [vmem:[#allocation2] ss:$4 sm:$0xff]
        %v5510 = vld [vmem:[%s7] sm:$0xff]
        %v5511 = vld [vmem:[%s7 + $0x8] sm:$0xff]
        %v5512 = vld [vmem:[%s3696] ss:$4 sm:$0xff]
        %v5513 = vld [vmem:[%s7 + $0x10] sm:$0xff]
        %v5514 = vld [vmem:[%s7 + $0x18] sm:$0xff]
        %v5516 = vsel %vm3597, %v5512, 0
        %5518 = vmatprep.subr.mxu0 0.0
        %5519 = vmatpush1.msra.mxu0 %v5513
        %5520 = vmatprep.subr.mxu0 0.0
        %5521 = vmatpush1.msra.mxu0 %v5514
        %5522 = vmatprep.subr.mxu0 0.0
        %5523 = vmatpush1.msra.mxu0 0.0
        %5524 = vmatprep.subr.mxu0 0.0
        %5525 = vmatpush1.msra.mxu0 0.0
        %5526 = vmatprep.subr.mxu0 0.0
        %5527 = vmatpush1.msra.mxu0 0.0
        %5528 = vmatprep.subr.mxu0 0.0
        %5529 = vmatpush1.msra.mxu0 0.0
        %5530 = vmatprep.subr.mxu0 0.0
        %5531 = vmatpush1.msra.mxu0 0.0
        %5532 = vmatprep.subr.mxu0 0.0
        %5533 = vmatpush1.msra.mxu0 0.0
        %5534 = vmatprep.subr.mxu0 0.0
        %5535 = vmatpush1.msra.mxu0 0.0
        %5536 = vmatprep.subr.mxu0 0.0
        %5537 = vmatpush1.msra.mxu0 0.0
        %5538 = vmatprep.subr.mxu0 0.0
        %5539 = vmatpush1.msra.mxu0 0.0
        %5540 = vmatprep.subr.mxu0 0.0
        %5541 = vmatpush1.msra.mxu0 0.0
        %5542 = vmatprep.subr.mxu0 0.0
        %5543 = vmatpush1.msra.mxu0 0.0
        %5544 = vmatprep.subr.mxu0 0.0
        %5545 = vmatpush1.msra.mxu0 0.0
        %5546 = vmatprep.subr.mxu0 0.0
        %5547 = vmatpush1.msra.mxu0 0.0
        %5548 = vmatprep.subr.mxu0 0.0
        %5549 = vmatpush1.msra.mxu0 0.0
        %5550 = vmatprep.subr.mxu0 0.0
        %5551 = vmatpush1.msra.mxu0 0.0
        %5552 = vmatprep.subr.mxu0 0.0
        %5553 = vmatpush1.msra.mxu0 0.0
        %5554 = vmatprep.subr.mxu0 0.0
        %5555 = vmatpush1.msra.mxu0 0.0
        %5556 = vmatprep.subr.mxu0 0.0
        %5557 = vmatpush1.msra.mxu0 0.0
        %5558 = vmatprep.subr.mxu0 0.0
        %5559 = vmatpush1.msra.mxu0 0.0
        %5560 = vmatprep.subr.mxu0 0.0
        %5561 = vmatpush1.msra.mxu0 0.0
        %5562 = vmatprep.subr.mxu0 0.0
        %5563 = vmatpush1.msra.mxu0 0.0
        %5564 = vmatprep.subr.mxu0 0.0
        %5565 = vmatpush1.msra.mxu0 0.0
        %5566 = vmatprep.subr.mxu0 0.0
        %5567 = vmatpush1.msra.mxu0 0.0
        %5568 = vmatprep.subr.mxu0 0.0
        %5569 = vmatpush1.msra.mxu0 0.0
        %5570 = vmatprep.subr.mxu0 0.0
        %5571 = vmatpush1.msra.mxu0 0.0
        %5572 = vmatprep.subr.mxu0 0.0
        %5573 = vmatpush1.msra.mxu0 0.0
        %5574 = vmatprep.subr.mxu0 0.0
        %5575 = vmatpush1.msra.mxu0 0.0
        %5576 = vmatprep.subr.mxu0 0.0
        %5577 = vmatpush1.msra.mxu0 0.0
        %5578 = vmatprep.subr.mxu0 0.0
        %5579 = vmatpush1.msra.mxu0 0.0
        %5580 = vmatprep.subr.mxu0 0.0
        %5581 = vmatpush1.msra.mxu0 0.0
        %5582 = vmatprep.mubr.f32.mxu0 0.0
        %5583 = vmatmul.mubr.f32.gmra.mrb[0].mxu0 %v5516
        %v5584 = vpop.f32.mrb[0].mxu0
        %v5585 = vadd.f32 0.0, %v5584
        %v5586 = vpop.f32.mrb[0].mxu0
        %5587 = vdwg.mxu0
        %v5589 = vsel %vm3597, %v5509, 0
        %5591 = vmatprep.subr.mxu0 0.0
        %5592 = vmatpush1.msra.mxu0 %v5510
        %5593 = vmatprep.subr.mxu0 0.0
        %5594 = vmatpush1.msra.mxu0 %v5511
        %5595 = vmatprep.subr.mxu0 0.0
        %5596 = vmatpush1.msra.mxu0 0.0
        %5597 = vmatprep.subr.mxu0 0.0
        %5598 = vmatpush1.msra.mxu0 0.0
        %5599 = vmatprep.subr.mxu0 0.0
        %5600 = vmatpush1.msra.mxu0 0.0
        %5601 = vmatprep.subr.mxu0 0.0
        %5602 = vmatpush1.msra.mxu0 0.0
        %5603 = vmatprep.subr.mxu0 0.0
        %5604 = vmatpush1.msra.mxu0 0.0
        %5605 = vmatprep.subr.mxu0 0.0
        %5606 = vmatpush1.msra.mxu0 0.0
        %5607 = vmatprep.subr.mxu0 0.0
        %5608 = vmatpush1.msra.mxu0 0.0
        %5609 = vmatprep.subr.mxu0 0.0
        %5610 = vmatpush1.msra.mxu0 0.0
        %5611 = vmatprep.subr.mxu0 0.0
        %5612 = vmatpush1.msra.mxu0 0.0
        %5613 = vmatprep.subr.mxu0 0.0
        %5614 = vmatpush1.msra.mxu0 0.0
        %5615 = vmatprep.subr.mxu0 0.0
        %5616 = vmatpush1.msra.mxu0 0.0
        %5617 = vmatprep.subr.mxu0 0.0
        %5618 = vmatpush1.msra.mxu0 0.0
        %5619 = vmatprep.subr.mxu0 0.0
        %5620 = vmatpush1.msra.mxu0 0.0
        %5621 = vmatprep.subr.mxu0 0.0
        %5622 = vmatpush1.msra.mxu0 0.0
        %5623 = vmatprep.subr.mxu0 0.0
        %5624 = vmatpush1.msra.mxu0 0.0
        %5625 = vmatprep.subr.mxu0 0.0
        %5626 = vmatpush1.msra.mxu0 0.0
        %5627 = vmatprep.subr.mxu0 0.0
        %5628 = vmatpush1.msra.mxu0 0.0
        %5629 = vmatprep.subr.mxu0 0.0
        %5630 = vmatpush1.msra.mxu0 0.0
        %5631 = vmatprep.subr.mxu0 0.0
        %5632 = vmatpush1.msra.mxu0 0.0
        %5633 = vmatprep.subr.mxu0 0.0
        %5634 = vmatpush1.msra.mxu0 0.0
        %5635 = vmatprep.subr.mxu0 0.0
        %5636 = vmatpush1.msra.mxu0 0.0
        %5637 = vmatprep.subr.mxu0 0.0
        %5638 = vmatpush1.msra.mxu0 0.0
        %5639 = vmatprep.subr.mxu0 0.0
        %5640 = vmatpush1.msra.mxu0 0.0
        %5641 = vmatprep.subr.mxu0 0.0
        %5642 = vmatpush1.msra.mxu0 0.0
        %5643 = vmatprep.subr.mxu0 0.0
        %5644 = vmatpush1.msra.mxu0 0.0
        %5645 = vmatprep.subr.mxu0 0.0
        %5646 = vmatpush1.msra.mxu0 0.0
        %5647 = vmatprep.subr.mxu0 0.0
        %5648 = vmatpush1.msra.mxu0 0.0
        %5649 = vmatprep.subr.mxu0 0.0
        %5650 = vmatpush1.msra.mxu0 0.0
        %5651 = vmatprep.subr.mxu0 0.0
        %5652 = vmatpush1.msra.mxu0 0.0
        %5653 = vmatprep.subr.mxu0 0.0
        %5654 = vmatpush1.msra.mxu0 0.0
        %5655 = vmatprep.mubr.f32.mxu0 0.0
        %5656 = vmatmul.mubr.f32.gmra.mrb[0].mxu0 %v5589
        %v5657 = vpop.f32.mrb[0].mxu0
        %v5658 = vadd.f32 %v5585, %v5657
        %v5659 = vpop.f32.mrb[0].mxu0
        %5660 = vdwg.mxu0
        %v5661 = vld [vmem:[%s4116] ss:$4 sm:$0xff]
        %v5662 = vld [vmem:[%s7 + $0x20] sm:$0xff]
        %v5663 = vld [vmem:[%s7 + $0x28] sm:$0xff]
        %v5665 = vsel %vm3597, %v5661, 0
        %5667 = vmatprep.subr.mxu0 0.0
        %5668 = vmatpush1.msra.mxu0 %v5662
        %5669 = vmatprep.subr.mxu0 0.0
        %5670 = vmatpush1.msra.mxu0 %v5663
        %5671 = vmatprep.subr.mxu0 0.0
        %5672 = vmatpush1.msra.mxu0 0.0
        %5673 = vmatprep.subr.mxu0 0.0
        %5674 = vmatpush1.msra.mxu0 0.0
        %5675 = vmatprep.subr.mxu0 0.0
        %5676 = vmatpush1.msra.mxu0 0.0
        %5677 = vmatprep.subr.mxu0 0.0
        %5678 = vmatpush1.msra.mxu0 0.0
        %5679 = vmatprep.subr.mxu0 0.0
        %5680 = vmatpush1.msra.mxu0 0.0
        %5681 = vmatprep.subr.mxu0 0.0
        %5682 = vmatpush1.msra.mxu0 0.0
        %5683 = vmatprep.subr.mxu0 0.0
        %5684 = vmatpush1.msra.mxu0 0.0
        %5685 = vmatprep.subr.mxu0 0.0
        %5686 = vmatpush1.msra.mxu0 0.0
        %5687 = vmatprep.subr.mxu0 0.0
        %5688 = vmatpush1.msra.mxu0 0.0
        %5689 = vmatprep.subr.mxu0 0.0
        %5690 = vmatpush1.msra.mxu0 0.0
        %5691 = vmatprep.subr.mxu0 0.0
        %5692 = vmatpush1.msra.mxu0 0.0
        %5693 = vmatprep.subr.mxu0 0.0
        %5694 = vmatpush1.msra.mxu0 0.0
        %5695 = vmatprep.subr.mxu0 0.0
        %5696 = vmatpush1.msra.mxu0 0.0
        %5697 = vmatprep.subr.mxu0 0.0
        %5698 = vmatpush1.msra.mxu0 0.0
        %5699 = vmatprep.subr.mxu0 0.0
        %5700 = vmatpush1.msra.mxu0 0.0
        %5701 = vmatprep.subr.mxu0 0.0
        %5702 = vmatpush1.msra.mxu0 0.0
        %5703 = vmatprep.subr.mxu0 0.0
        %5704 = vmatpush1.msra.mxu0 0.0
        %5705 = vmatprep.subr.mxu0 0.0
        %5706 = vmatpush1.msra.mxu0 0.0
        %5707 = vmatprep.subr.mxu0 0.0
        %5708 = vmatpush1.msra.mxu0 0.0
        %5709 = vmatprep.subr.mxu0 0.0
        %5710 = vmatpush1.msra.mxu0 0.0
        %5711 = vmatprep.subr.mxu0 0.0
        %5712 = vmatpush1.msra.mxu0 0.0
        %5713 = vmatprep.subr.mxu0 0.0
        %5714 = vmatpush1.msra.mxu0 0.0
        %5715 = vmatprep.subr.mxu0 0.0
        %5716 = vmatpush1.msra.mxu0 0.0
        %5717 = vmatprep.subr.mxu0 0.0
        %5718 = vmatpush1.msra.mxu0 0.0
        %5719 = vmatprep.subr.mxu0 0.0
        %5720 = vmatpush1.msra.mxu0 0.0
        %5721 = vmatprep.subr.mxu0 0.0
        %5722 = vmatpush1.msra.mxu0 0.0
        %5723 = vmatprep.subr.mxu0 0.0
        %5724 = vmatpush1.msra.mxu0 0.0
        %5725 = vmatprep.subr.mxu0 0.0
        %5726 = vmatpush1.msra.mxu0 0.0
        %5727 = vmatprep.subr.mxu0 0.0
        %5728 = vmatpush1.msra.mxu0 0.0
        %5729 = vmatprep.subr.mxu0 0.0
        %5730 = vmatpush1.msra.mxu0 0.0
        %5731 = vmatprep.mubr.f32.mxu0 0.0
        %5732 = vmatmul.mubr.f32.gmra.mrb[0].mxu0 %v5665
        %v5733 = vpop.f32.mrb[0].mxu0
        %v5734 = vadd.f32 0.0, %v5733
        %v5735 = vpop.f32.mrb[0].mxu0
        %5736 = vdwg.mxu0
        %v5737 = vadd.f32 %v5658, %v5734
        %v5738 = vld [vmem:[%s4359] ss:$4 sm:$0xff]
        %v5739 = vld [vmem:[%s7 + $0x30] sm:$0xff]
        %v5740 = vld [vmem:[%s7 + $0x38] sm:$0xff]
        %v5742 = vsel %vm3597, %v5738, 0
        %5744 = vmatprep.subr.mxu0 0.0
        %5745 = vmatpush1.msra.mxu0 %v5739
        %5746 = vmatprep.subr.mxu0 0.0
        %5747 = vmatpush1.msra.mxu0 %v5740
        %5748 = vmatprep.subr.mxu0 0.0
        %5749 = vmatpush1.msra.mxu0 0.0
        %5750 = vmatprep.subr.mxu0 0.0
        %5751 = vmatpush1.msra.mxu0 0.0
        %5752 = vmatprep.subr.mxu0 0.0
        %5753 = vmatpush1.msra.mxu0 0.0
        %5754 = vmatprep.subr.mxu0 0.0
        %5755 = vmatpush1.msra.mxu0 0.0
        %5756 = vmatprep.subr.mxu0 0.0
        %5757 = vmatpush1.msra.mxu0 0.0
        %5758 = vmatprep.subr.mxu0 0.0
        %5759 = vmatpush1.msra.mxu0 0.0
        %5760 = vmatprep.subr.mxu0 0.0
        %5761 = vmatpush1.msra.mxu0 0.0
        %5762 = vmatprep.subr.mxu0 0.0
        %5763 = vmatpush1.msra.mxu0 0.0
        %5764 = vmatprep.subr.mxu0 0.0
        %5765 = vmatpush1.msra.mxu0 0.0
        %5766 = vmatprep.subr.mxu0 0.0
        %5767 = vmatpush1.msra.mxu0 0.0
        %5768 = vmatprep.subr.mxu0 0.0
        %5769 = vmatpush1.msra.mxu0 0.0
        %5770 = vmatprep.subr.mxu0 0.0
        %5771 = vmatpush1.msra.mxu0 0.0
        %5772 = vmatprep.subr.mxu0 0.0
        %5773 = vmatpush1.msra.mxu0 0.0
        %5774 = vmatprep.subr.mxu0 0.0
        %5775 = vmatpush1.msra.mxu0 0.0
        %5776 = vmatprep.subr.mxu0 0.0
        %5777 = vmatpush1.msra.mxu0 0.0
        %5778 = vmatprep.subr.mxu0 0.0
        %5779 = vmatpush1.msra.mxu0 0.0
        %5780 = vmatprep.subr.mxu0 0.0
        %5781 = vmatpush1.msra.mxu0 0.0
        %5782 = vmatprep.subr.mxu0 0.0
        %5783 = vmatpush1.msra.mxu0 0.0
        %5784 = vmatprep.subr.mxu0 0.0
        %5785 = vmatpush1.msra.mxu0 0.0
        %5786 = vmatprep.subr.mxu0 0.0
        %5787 = vmatpush1.msra.mxu0 0.0
        %5788 = vmatprep.subr.mxu0 0.0
        %5789 = vmatpush1.msra.mxu0 0.0
        %5790 = vmatprep.subr.mxu0 0.0
        %5791 = vmatpush1.msra.mxu0 0.0
        %5792 = vmatprep.subr.mxu0 0.0
        %5793 = vmatpush1.msra.mxu0 0.0
        %5794 = vmatprep.subr.mxu0 0.0
        %5795 = vmatpush1.msra.mxu0 0.0
        %5796 = vmatprep.subr.mxu0 0.0
        %5797 = vmatpush1.msra.mxu0 0.0
        %5798 = vmatprep.subr.mxu0 0.0
        %5799 = vmatpush1.msra.mxu0 0.0
        %5800 = vmatprep.subr.mxu0 0.0
        %5801 = vmatpush1.msra.mxu0 0.0
        %5802 = vmatprep.subr.mxu0 0.0
        %5803 = vmatpush1.msra.mxu0 0.0
        %5804 = vmatprep.subr.mxu0 0.0
        %5805 = vmatpush1.msra.mxu0 0.0
        %5806 = vmatprep.subr.mxu0 0.0
        %5807 = vmatpush1.msra.mxu0 0.0
        %5808 = vmatprep.mubr.f32.mxu0 0.0
        %5809 = vmatmul.mubr.f32.gmra.mrb[0].mxu0 %v5742
        %v5810 = vpop.f32.mrb[0].mxu0
        %v5811 = vadd.f32 0.0, %v5810
        %v5812 = vpop.f32.mrb[0].mxu0
        %5813 = vdwg.mxu0
        %v5814 = vadd.f32 %v5737, %v5811
        %v5815 = vld [vmem:[%s4602] ss:$4 sm:$0xff]
        %v5816 = vld [vmem:[%s7 + $0x40] sm:$0xff]
        %v5817 = vld [vmem:[%s7 + $0x48] sm:$0xff]
        %v5819 = vsel %vm3597, %v5815, 0
        %5821 = vmatprep.subr.mxu0 0.0
        %5822 = vmatpush1.msra.mxu0 %v5816
        %5823 = vmatprep.subr.mxu0 0.0
        %5824 = vmatpush1.msra.mxu0 %v5817
        %5825 = vmatprep.subr.mxu0 0.0
        %5826 = vmatpush1.msra.mxu0 0.0
        %5827 = vmatprep.subr.mxu0 0.0
        %5828 = vmatpush1.msra.mxu0 0.0
        %5829 = vmatprep.subr.mxu0 0.0
        %5830 = vmatpush1.msra.mxu0 0.0
        %5831 = vmatprep.subr.mxu0 0.0
        %5832 = vmatpush1.msra.mxu0 0.0
        %5833 = vmatprep.subr.mxu0 0.0
        %5834 = vmatpush1.msra.mxu0 0.0
        %5835 = vmatprep.subr.mxu0 0.0
        %5836 = vmatpush1.msra.mxu0 0.0
        %5837 = vmatprep.subr.mxu0 0.0
        %5838 = vmatpush1.msra.mxu0 0.0
        %5839 = vmatprep.subr.mxu0 0.0
        %5840 = vmatpush1.msra.mxu0 0.0
        %5841 = vmatprep.subr.mxu0 0.0
        %5842 = vmatpush1.msra.mxu0 0.0
        %5843 = vmatprep.subr.mxu0 0.0
        %5844 = vmatpush1.msra.mxu0 0.0
        %5845 = vmatprep.subr.mxu0 0.0
        %5846 = vmatpush1.msra.mxu0 0.0
        %5847 = vmatprep.subr.mxu0 0.0
        %5848 = vmatpush1.msra.mxu0 0.0
        %5849 = vmatprep.subr.mxu0 0.0
        %5850 = vmatpush1.msra.mxu0 0.0
        %5851 = vmatprep.subr.mxu0 0.0
        %5852 = vmatpush1.msra.mxu0 0.0
        %5853 = vmatprep.subr.mxu0 0.0
        %5854 = vmatpush1.msra.mxu0 0.0
        %5855 = vmatprep.subr.mxu0 0.0
        %5856 = vmatpush1.msra.mxu0 0.0
        %5857 = vmatprep.subr.mxu0 0.0
        %5858 = vmatpush1.msra.mxu0 0.0
        %5859 = vmatprep.subr.mxu0 0.0
        %5860 = vmatpush1.msra.mxu0 0.0
        %5861 = vmatprep.subr.mxu0 0.0
        %5862 = vmatpush1.msra.mxu0 0.0
        %5863 = vmatprep.subr.mxu0 0.0
        %5864 = vmatpush1.msra.mxu0 0.0
        %5865 = vmatprep.subr.mxu0 0.0
        %5866 = vmatpush1.msra.mxu0 0.0
        %5867 = vmatprep.subr.mxu0 0.0
        %5868 = vmatpush1.msra.mxu0 0.0
        %5869 = vmatprep.subr.mxu0 0.0
        %5870 = vmatpush1.msra.mxu0 0.0
        %5871 = vmatprep.subr.mxu0 0.0
        %5872 = vmatpush1.msra.mxu0 0.0
        %5873 = vmatprep.subr.mxu0 0.0
        %5874 = vmatpush1.msra.mxu0 0.0
        %5875 = vmatprep.subr.mxu0 0.0
        %5876 = vmatpush1.msra.mxu0 0.0
        %5877 = vmatprep.subr.mxu0 0.0
        %5878 = vmatpush1.msra.mxu0 0.0
        %5879 = vmatprep.subr.mxu0 0.0
        %5880 = vmatpush1.msra.mxu0 0.0
        %5881 = vmatprep.subr.mxu0 0.0
        %5882 = vmatpush1.msra.mxu0 0.0
        %5883 = vmatprep.subr.mxu0 0.0
        %5884 = vmatpush1.msra.mxu0 0.0
        %5885 = vmatprep.mubr.f32.mxu0 0.0
        %5886 = vmatmul.mubr.f32.gmra.mrb[0].mxu0 %v5819
        %v5887 = vpop.f32.mrb[0].mxu0
        %v5888 = vadd.f32 0.0, %v5887
        %v5889 = vpop.f32.mrb[0].mxu0
        %5890 = vdwg.mxu0
        %v5891 = vadd.f32 %v5814, %v5888
        %v5892 = vld [vmem:[%s8] sm:$0x1]
        %v5894 = vlaneseq
        %v5895 = vshrl.u32 %v5894, 7
        %v5896 = vsub.s32 0, %v5895
        %v5897 = vrot.slane %v5892, %v5896
        %v5899 = vadd.f32 %v5891, %v5897
        %vm5900 = vcmp.gt.f32.partialorder %v5899, 0.0
        %v5901 = vmul.f32 %v5899, 0.2
        %v5902 = vsel %vm5900, %v5899, %v5901
        %5903 = vst.msk [vmem:[#allocation3] sm:$0x3] %vm3595, 0.0
        %5904 = vst.msk [vmem:[#allocation3 + $0x2] sm:$0xff] %vm3597, %v5902
        %5905 = vst.msk [vmem:[#allocation3 + $0xa] sm:$0x3] %vm3595, 0.0
        %v5906 = vld [vmem:[#allocation3] ss:$4 sm:$0x3]
        %v5907 = vld [vmem:[%s9] sm:$0xff]
        %v5908 = vld [vmem:[%s9 + $0x8] sm:$0xff]
        %v5909 = vld [vmem:[%s4943] ss:$4 sm:$0x3]
        %v5910 = vld [vmem:[%s9 + $0x10] sm:$0xff]
        %v5911 = vld [vmem:[%s9 + $0x18] sm:$0xff]
        %v5913 = vsel %vm3597, %v5909, 0
        %5915 = vmatprep.subr.mxu0 0.0
        %5916 = vmatpush1.msra.mxu0 %v5910
        %5917 = vmatprep.subr.mxu0 0.0
        %5918 = vmatpush1.msra.mxu0 %v5911
        %5919 = vmatprep.subr.mxu0 0.0
        %5920 = vmatpush1.msra.mxu0 0.0
        %5921 = vmatprep.subr.mxu0 0.0
        %5922 = vmatpush1.msra.mxu0 0.0
        %5923 = vmatprep.subr.mxu0 0.0
        %5924 = vmatpush1.msra.mxu0 0.0
        %5925 = vmatprep.subr.mxu0 0.0
        %5926 = vmatpush1.msra.mxu0 0.0
        %5927 = vmatprep.subr.mxu0 0.0
        %5928 = vmatpush1.msra.mxu0 0.0
        %5929 = vmatprep.subr.mxu0 0.0
        %5930 = vmatpush1.msra.mxu0 0.0
        %5931 = vmatprep.subr.mxu0 0.0
        %5932 = vmatpush1.msra.mxu0 0.0
        %5933 = vmatprep.subr.mxu0 0.0
        %5934 = vmatpush1.msra.mxu0 0.0
        %5935 = vmatprep.subr.mxu0 0.0
        %5936 = vmatpush1.msra.mxu0 0.0
        %5937 = vmatprep.subr.mxu0 0.0
        %5938 = vmatpush1.msra.mxu0 0.0
        %5939 = vmatprep.subr.mxu0 0.0
        %5940 = vmatpush1.msra.mxu0 0.0
        %5941 = vmatprep.subr.mxu0 0.0
        %5942 = vmatpush1.msra.mxu0 0.0
        %5943 = vmatprep.subr.mxu0 0.0
        %5944 = vmatpush1.msra.mxu0 0.0
        %5945 = vmatprep.subr.mxu0 0.0
        %5946 = vmatpush1.msra.mxu0 0.0
        %5947 = vmatprep.subr.mxu0 0.0
        %5948 = vmatpush1.msra.mxu0 0.0
        %5949 = vmatprep.subr.mxu0 0.0
        %5950 = vmatpush1.msra.mxu0 0.0
        %5951 = vmatprep.subr.mxu0 0.0
        %5952 = vmatpush1.msra.mxu0 0.0
        %5953 = vmatprep.subr.mxu0 0.0
        %5954 = vmatpush1.msra.mxu0 0.0
        %5955 = vmatprep.subr.mxu0 0.0
        %5956 = vmatpush1.msra.mxu0 0.0
        %5957 = vmatprep.subr.mxu0 0.0
        %5958 = vmatpush1.msra.mxu0 0.0
        %5959 = vmatprep.subr.mxu0 0.0
        %5960 = vmatpush1.msra.mxu0 0.0
        %5961 = vmatprep.subr.mxu0 0.0
        %5962 = vmatpush1.msra.mxu0 0.0
        %5963 = vmatprep.subr.mxu0 0.0
        %5964 = vmatpush1.msra.mxu0 0.0
        %5965 = vmatprep.subr.mxu0 0.0
        %5966 = vmatpush1.msra.mxu0 0.0
        %5967 = vmatprep.subr.mxu0 0.0
        %5968 = vmatpush1.msra.mxu0 0.0
        %5969 = vmatprep.subr.mxu0 0.0
        %5970 = vmatpush1.msra.mxu0 0.0
        %5971 = vmatprep.subr.mxu0 0.0
        %5972 = vmatpush1.msra.mxu0 0.0
        %5973 = vmatprep.subr.mxu0 0.0
        %5974 = vmatpush1.msra.mxu0 0.0
        %5975 = vmatprep.subr.mxu0 0.0
        %5976 = vmatpush1.msra.mxu0 0.0
        %5977 = vmatprep.subr.mxu0 0.0
        %5978 = vmatpush1.msra.mxu0 0.0
        %5979 = vmatprep.mubr.f32.mxu0 0.0
        %5980 = vmatmul.mubr.f32.gmra.mrb[0].mxu0 %v5913
        %v5981 = vpop.f32.mrb[0].mxu0
        %v5982 = vadd.f32 0.0, %v5981
        %v5983 = vpop.f32.mrb[0].mxu0
        %5984 = vdwg.mxu0
        %v5986 = vsel %vm3597, %v5906, 0
        %5988 = vmatprep.subr.mxu0 0.0
        %5989 = vmatpush1.msra.mxu0 %v5907
        %5990 = vmatprep.subr.mxu0 0.0
        %5991 = vmatpush1.msra.mxu0 %v5908
        %5992 = vmatprep.subr.mxu0 0.0
        %5993 = vmatpush1.msra.mxu0 0.0
        %5994 = vmatprep.subr.mxu0 0.0
        %5995 = vmatpush1.msra.mxu0 0.0
        %5996 = vmatprep.subr.mxu0 0.0
        %5997 = vmatpush1.msra.mxu0 0.0
        %5998 = vmatprep.subr.mxu0 0.0
        %5999 = vmatpush1.msra.mxu0 0.0
        %6000 = vmatprep.subr.mxu0 0.0
        %6001 = vmatpush1.msra.mxu0 0.0
        %6002 = vmatprep.subr.mxu0 0.0
        %6003 = vmatpush1.msra.mxu0 0.0
        %6004 = vmatprep.subr.mxu0 0.0
        %6005 = vmatpush1.msra.mxu0 0.0
        %6006 = vmatprep.subr.mxu0 0.0
        %6007 = vmatpush1.msra.mxu0 0.0
        %6008 = vmatprep.subr.mxu0 0.0
        %6009 = vmatpush1.msra.mxu0 0.0
        %6010 = vmatprep.subr.mxu0 0.0
        %6011 = vmatpush1.msra.mxu0 0.0
        %6012 = vmatprep.subr.mxu0 0.0
        %6013 = vmatpush1.msra.mxu0 0.0
        %6014 = vmatprep.subr.mxu0 0.0
        %6015 = vmatpush1.msra.mxu0 0.0
        %6016 = vmatprep.subr.mxu0 0.0
        %6017 = vmatpush1.msra.mxu0 0.0
        %6018 = vmatprep.subr.mxu0 0.0
        %6019 = vmatpush1.msra.mxu0 0.0
        %6020 = vmatprep.subr.mxu0 0.0
        %6021 = vmatpush1.msra.mxu0 0.0
        %6022 = vmatprep.subr.mxu0 0.0
        %6023 = vmatpush1.msra.mxu0 0.0
        %6024 = vmatprep.subr.mxu0 0.0
        %6025 = vmatpush1.msra.mxu0 0.0
        %6026 = vmatprep.subr.mxu0 0.0
        %6027 = vmatpush1.msra.mxu0 0.0
        %6028 = vmatprep.subr.mxu0 0.0
        %6029 = vmatpush1.msra.mxu0 0.0
        %6030 = vmatprep.subr.mxu0 0.0
        %6031 = vmatpush1.msra.mxu0 0.0
        %6032 = vmatprep.subr.mxu0 0.0
        %6033 = vmatpush1.msra.mxu0 0.0
        %6034 = vmatprep.subr.mxu0 0.0
        %6035 = vmatpush1.msra.mxu0 0.0
        %6036 = vmatprep.subr.mxu0 0.0
        %6037 = vmatpush1.msra.mxu0 0.0
        %6038 = vmatprep.subr.mxu0 0.0
        %6039 = vmatpush1.msra.mxu0 0.0
        %6040 = vmatprep.subr.mxu0 0.0
        %6041 = vmatpush1.msra.mxu0 0.0
        %6042 = vmatprep.subr.mxu0 0.0
        %6043 = vmatpush1.msra.mxu0 0.0
        %6044 = vmatprep.subr.mxu0 0.0
        %6045 = vmatpush1.msra.mxu0 0.0
        %6046 = vmatprep.subr.mxu0 0.0
        %6047 = vmatpush1.msra.mxu0 0.0
        %6048 = vmatprep.subr.mxu0 0.0
        %6049 = vmatpush1.msra.mxu0 0.0
        %6050 = vmatprep.subr.mxu0 0.0
        %6051 = vmatpush1.msra.mxu0 0.0
        %6052 = vmatprep.mubr.f32.mxu0 0.0
        %6053 = vmatmul.mubr.f32.gmra.mrb[0].mxu0 %v5986
        %v6054 = vpop.f32.mrb[0].mxu0
        %v6055 = vadd.f32 %v5982, %v6054
        %v6056 = vpop.f32.mrb[0].mxu0
        %6057 = vdwg.mxu0
        %v6058 = vld [vmem:[%s5147] ss:$4 sm:$0x3]
        %v6059 = vld [vmem:[%s9 + $0x20] sm:$0xff]
        %v6060 = vld [vmem:[%s9 + $0x28] sm:$0xff]
        %v6062 = vsel %vm3597, %v6058, 0
        %6064 = vmatprep.subr.mxu0 0.0
        %6065 = vmatpush1.msra.mxu0 %v6059
        %6066 = vmatprep.subr.mxu0 0.0
        %6067 = vmatpush1.msra.mxu0 %v6060
        %6068 = vmatprep.subr.mxu0 0.0
        %6069 = vmatpush1.msra.mxu0 0.0
        %6070 = vmatprep.subr.mxu0 0.0
        %6071 = vmatpush1.msra.mxu0 0.0
        %6072 = vmatprep.subr.mxu0 0.0
        %6073 = vmatpush1.msra.mxu0 0.0
        %6074 = vmatprep.subr.mxu0 0.0
        %6075 = vmatpush1.msra.mxu0 0.0
        %6076 = vmatprep.subr.mxu0 0.0
        %6077 = vmatpush1.msra.mxu0 0.0
        %6078 = vmatprep.subr.mxu0 0.0
        %6079 = vmatpush1.msra.mxu0 0.0
        %6080 = vmatprep.subr.mxu0 0.0
        %6081 = vmatpush1.msra.mxu0 0.0
        %6082 = vmatprep.subr.mxu0 0.0
        %6083 = vmatpush1.msra.mxu0 0.0
        %6084 = vmatprep.subr.mxu0 0.0
        %6085 = vmatpush1.msra.mxu0 0.0
        %6086 = vmatprep.subr.mxu0 0.0
        %6087 = vmatpush1.msra.mxu0 0.0
        %6088 = vmatprep.subr.mxu0 0.0
        %6089 = vmatpush1.msra.mxu0 0.0
        %6090 = vmatprep.subr.mxu0 0.0
        %6091 = vmatpush1.msra.mxu0 0.0
        %6092 = vmatprep.subr.mxu0 0.0
        %6093 = vmatpush1.msra.mxu0 0.0
        %6094 = vmatprep.subr.mxu0 0.0
        %6095 = vmatpush1.msra.mxu0 0.0
        %6096 = vmatprep.subr.mxu0 0.0
        %6097 = vmatpush1.msra.mxu0 0.0
        %6098 = vmatprep.subr.mxu0 0.0
        %6099 = vmatpush1.msra.mxu0 0.0
        %6100 = vmatprep.subr.mxu0 0.0
        %6101 = vmatpush1.msra.mxu0 0.0
        %6102 = vmatprep.subr.mxu0 0.0
        %6103 = vmatpush1.msra.mxu0 0.0
        %6104 = vmatprep.subr.mxu0 0.0
        %6105 = vmatpush1.msra.mxu0 0.0
        %6106 = vmatprep.subr.mxu0 0.0
        %6107 = vmatpush1.msra.mxu0 0.0
        %6108 = vmatprep.subr.mxu0 0.0
        %6109 = vmatpush1.msra.mxu0 0.0
        %6110 = vmatprep.subr.mxu0 0.0
        %6111 = vmatpush1.msra.mxu0 0.0
        %6112 = vmatprep.subr.mxu0 0.0
        %6113 = vmatpush1.msra.mxu0 0.0
        %6114 = vmatprep.subr.mxu0 0.0
        %6115 = vmatpush1.msra.mxu0 0.0
        %6116 = vmatprep.subr.mxu0 0.0
        %6117 = vmatpush1.msra.mxu0 0.0
        %6118 = vmatprep.subr.mxu0 0.0
        %6119 = vmatpush1.msra.mxu0 0.0
        %6120 = vmatprep.subr.mxu0 0.0
        %6121 = vmatpush1.msra.mxu0 0.0
        %6122 = vmatprep.subr.mxu0 0.0
        %6123 = vmatpush1.msra.mxu0 0.0
        %6124 = vmatprep.subr.mxu0 0.0
        %6125 = vmatpush1.msra.mxu0 0.0
        %6126 = vmatprep.subr.mxu0 0.0
        %6127 = vmatpush1.msra.mxu0 0.0
        %6128 = vmatprep.mubr.f32.mxu0 0.0
        %6129 = vmatmul.mubr.f32.gmra.mrb[0].mxu0 %v6062
        %v6130 = vpop.f32.mrb[0].mxu0
        %v6131 = vadd.f32 0.0, %v6130
        %v6132 = vpop.f32.mrb[0].mxu0
        %6133 = vdwg.mxu0
        %v6134 = vadd.f32 %v6055, %v6131
        %v6135 = vld [vmem:[%s5258] ss:$4 sm:$0x3]
        %v6136 = vld [vmem:[%s9 + $0x30] sm:$0xff]
        %v6137 = vld [vmem:[%s9 + $0x38] sm:$0xff]
        %v6139 = vsel %vm3597, %v6135, 0
        %6141 = vmatprep.subr.mxu0 0.0
        %6142 = vmatpush1.msra.mxu0 %v6136
        %6143 = vmatprep.subr.mxu0 0.0
        %6144 = vmatpush1.msra.mxu0 %v6137
        %6145 = vmatprep.subr.mxu0 0.0
        %6146 = vmatpush1.msra.mxu0 0.0
        %6147 = vmatprep.subr.mxu0 0.0
        %6148 = vmatpush1.msra.mxu0 0.0
        %6149 = vmatprep.subr.mxu0 0.0
        %6150 = vmatpush1.msra.mxu0 0.0
        %6151 = vmatprep.subr.mxu0 0.0
        %6152 = vmatpush1.msra.mxu0 0.0
        %6153 = vmatprep.subr.mxu0 0.0
        %6154 = vmatpush1.msra.mxu0 0.0
        %6155 = vmatprep.subr.mxu0 0.0
        %6156 = vmatpush1.msra.mxu0 0.0
        %6157 = vmatprep.subr.mxu0 0.0
        %6158 = vmatpush1.msra.mxu0 0.0
        %6159 = vmatprep.subr.mxu0 0.0
        %6160 = vmatpush1.msra.mxu0 0.0
        %6161 = vmatprep.subr.mxu0 0.0
        %6162 = vmatpush1.msra.mxu0 0.0
        %6163 = vmatprep.subr.mxu0 0.0
        %6164 = vmatpush1.msra.mxu0 0.0
        %6165 = vmatprep.subr.mxu0 0.0
        %6166 = vmatpush1.msra.mxu0 0.0
        %6167 = vmatprep.subr.mxu0 0.0
        %6168 = vmatpush1.msra.mxu0 0.0
        %6169 = vmatprep.subr.mxu0 0.0
        %6170 = vmatpush1.msra.mxu0 0.0
        %6171 = vmatprep.subr.mxu0 0.0
        %6172 = vmatpush1.msra.mxu0 0.0
        %6173 = vmatprep.subr.mxu0 0.0
        %6174 = vmatpush1.msra.mxu0 0.0
        %6175 = vmatprep.subr.mxu0 0.0
        %6176 = vmatpush1.msra.mxu0 0.0
        %6177 = vmatprep.subr.mxu0 0.0
        %6178 = vmatpush1.msra.mxu0 0.0
        %6179 = vmatprep.subr.mxu0 0.0
        %6180 = vmatpush1.msra.mxu0 0.0
        %6181 = vmatprep.subr.mxu0 0.0
        %6182 = vmatpush1.msra.mxu0 0.0
        %6183 = vmatprep.subr.mxu0 0.0
        %6184 = vmatpush1.msra.mxu0 0.0
        %6185 = vmatprep.subr.mxu0 0.0
        %6186 = vmatpush1.msra.mxu0 0.0
        %6187 = vmatprep.subr.mxu0 0.0
        %6188 = vmatpush1.msra.mxu0 0.0
        %6189 = vmatprep.subr.mxu0 0.0
        %6190 = vmatpush1.msra.mxu0 0.0
        %6191 = vmatprep.subr.mxu0 0.0
        %6192 = vmatpush1.msra.mxu0 0.0
        %6193 = vmatprep.subr.mxu0 0.0
        %6194 = vmatpush1.msra.mxu0 0.0
        %6195 = vmatprep.subr.mxu0 0.0
        %6196 = vmatpush1.msra.mxu0 0.0
        %6197 = vmatprep.subr.mxu0 0.0
        %6198 = vmatpush1.msra.mxu0 0.0
        %6199 = vmatprep.subr.mxu0 0.0
        %6200 = vmatpush1.msra.mxu0 0.0
        %6201 = vmatprep.subr.mxu0 0.0
        %6202 = vmatpush1.msra.mxu0 0.0
        %6203 = vmatprep.subr.mxu0 0.0
        %6204 = vmatpush1.msra.mxu0 0.0
        %6205 = vmatprep.mubr.f32.mxu0 0.0
        %6206 = vmatmul.mubr.f32.gmra.mrb[0].mxu0 %v6139
        %v6207 = vpop.f32.mrb[0].mxu0
        %v6208 = vadd.f32 0.0, %v6207
        %v6209 = vpop.f32.mrb[0].mxu0
        %6210 = vdwg.mxu0
        %v6211 = vadd.f32 %v6134, %v6208
        %v6212 = vld [vmem:[%s5369] ss:$4 sm:$0x3]
        %v6213 = vld [vmem:[%s9 + $0x40] sm:$0xff]
        %v6214 = vld [vmem:[%s9 + $0x48] sm:$0xff]
        %v6216 = vsel %vm3597, %v6212, 0
        %6218 = vmatprep.subr.mxu0 0.0
        %6219 = vmatpush1.msra.mxu0 %v6213
        %6220 = vmatprep.subr.mxu0 0.0
        %6221 = vmatpush1.msra.mxu0 %v6214
        %6222 = vmatprep.subr.mxu0 0.0
        %6223 = vmatpush1.msra.mxu0 0.0
        %6224 = vmatprep.subr.mxu0 0.0
        %6225 = vmatpush1.msra.mxu0 0.0
        %6226 = vmatprep.subr.mxu0 0.0
        %6227 = vmatpush1.msra.mxu0 0.0
        %6228 = vmatprep.subr.mxu0 0.0
        %6229 = vmatpush1.msra.mxu0 0.0
        %6230 = vmatprep.subr.mxu0 0.0
        %6231 = vmatpush1.msra.mxu0 0.0
        %6232 = vmatprep.subr.mxu0 0.0
        %6233 = vmatpush1.msra.mxu0 0.0
        %6234 = vmatprep.subr.mxu0 0.0
        %6235 = vmatpush1.msra.mxu0 0.0
        %6236 = vmatprep.subr.mxu0 0.0
        %6237 = vmatpush1.msra.mxu0 0.0
        %6238 = vmatprep.subr.mxu0 0.0
        %6239 = vmatpush1.msra.mxu0 0.0
        %6240 = vmatprep.subr.mxu0 0.0
        %6241 = vmatpush1.msra.mxu0 0.0
        %6242 = vmatprep.subr.mxu0 0.0
        %6243 = vmatpush1.msra.mxu0 0.0
        %6244 = vmatprep.subr.mxu0 0.0
        %6245 = vmatpush1.msra.mxu0 0.0
        %6246 = vmatprep.subr.mxu0 0.0
        %6247 = vmatpush1.msra.mxu0 0.0
        %6248 = vmatprep.subr.mxu0 0.0
        %6249 = vmatpush1.msra.mxu0 0.0
        %6250 = vmatprep.subr.mxu0 0.0
        %6251 = vmatpush1.msra.mxu0 0.0
        %6252 = vmatprep.subr.mxu0 0.0
        %6253 = vmatpush1.msra.mxu0 0.0
        %6254 = vmatprep.subr.mxu0 0.0
        %6255 = vmatpush1.msra.mxu0 0.0
        %6256 = vmatprep.subr.mxu0 0.0
        %6257 = vmatpush1.msra.mxu0 0.0
        %6258 = vmatprep.subr.mxu0 0.0
        %6259 = vmatpush1.msra.mxu0 0.0
        %6260 = vmatprep.subr.mxu0 0.0
        %6261 = vmatpush1.msra.mxu0 0.0
        %6262 = vmatprep.subr.mxu0 0.0
        %6263 = vmatpush1.msra.mxu0 0.0
        %6264 = vmatprep.subr.mxu0 0.0
        %6265 = vmatpush1.msra.mxu0 0.0
        %6266 = vmatprep.subr.mxu0 0.0
        %6267 = vmatpush1.msra.mxu0 0.0
        %6268 = vmatprep.subr.mxu0 0.0
        %6269 = vmatpush1.msra.mxu0 0.0
        %6270 = vmatprep.subr.mxu0 0.0
        %6271 = vmatpush1.msra.mxu0 0.0
        %6272 = vmatprep.subr.mxu0 0.0
        %6273 = vmatpush1.msra.mxu0 0.0
        %6274 = vmatprep.subr.mxu0 0.0
        %6275 = vmatpush1.msra.mxu0 0.0
        %6276 = vmatprep.subr.mxu0 0.0
        %6277 = vmatpush1.msra.mxu0 0.0
        %6278 = vmatprep.subr.mxu0 0.0
        %6279 = vmatpush1.msra.mxu0 0.0
        %6280 = vmatprep.subr.mxu0 0.0
        %6281 = vmatpush1.msra.mxu0 0.0
        %6282 = vmatprep.mubr.f32.mxu0 0.0
        %6283 = vmatmul.mubr.f32.gmra.mrb[0].mxu0 %v6216
        %v6284 = vpop.f32.mrb[0].mxu0
        %v6285 = vadd.f32 0.0, %v6284
        %v6286 = vpop.f32.mrb[0].mxu0
        %6287 = vdwg.mxu0
        %v6288 = vadd.f32 %v6211, %v6285
        %v6289 = vld [vmem:[%s10] sm:$0x1]
        %v6291 = vlaneseq
        %v6292 = vshrl.u32 %v6291, 7
        %v6293 = vsub.s32 0, %v6292
        %v6294 = vrot.slane %v6289, %v6293
        %v6296 = vadd.f32 %v6288, %v6294
        %vm6297 = vcmp.gt.f32.partialorder %v6296, 0.0
        %v6298 = vmul.f32 %v6296, 0.2
        %v6299 = vsel %vm6297, %v6296, %v6298
        %6300 = vst.msk [vmem:[#allocation2] sm:$0x3] %vm3595, 0.0
        %6301 = vst.msk [vmem:[#allocation2 + $0x2] sm:$0x3] %vm3595, %v6299
        %6302 = vst.msk [vmem:[#allocation2 + $0x4] sm:$0x3] %vm3595, 0.0
        %v6303 = vld [vmem:[#allocation2] ss:$2 sm:$0x1]
        %v6304 = vld [vmem:[%s11] sm:$0xff]
        %v6305 = vld [vmem:[%s11 + $0x8] sm:$0xff]
        %v6306 = vld [vmem:[%s3696] ss:$2 sm:$0x1]
        %v6307 = vld [vmem:[%s11 + $0x10] sm:$0xff]
        %v6308 = vld [vmem:[%s11 + $0x18] sm:$0xff]
        %v6310 = vsel %vm3597, %v6306, 0
        %6312 = vmatprep.subr.mxu0 0.0
        %6313 = vmatpush1.msra.mxu0 %v6307
        %6314 = vmatprep.subr.mxu0 0.0
        %6315 = vmatpush1.msra.mxu0 %v6308
        %6316 = vmatprep.subr.mxu0 0.0
        %6317 = vmatpush1.msra.mxu0 0.0
        %6318 = vmatprep.subr.mxu0 0.0
        %6319 = vmatpush1.msra.mxu0 0.0
        %6320 = vmatprep.subr.mxu0 0.0
        %6321 = vmatpush1.msra.mxu0 0.0
        %6322 = vmatprep.subr.mxu0 0.0
        %6323 = vmatpush1.msra.mxu0 0.0
        %6324 = vmatprep.subr.mxu0 0.0
        %6325 = vmatpush1.msra.mxu0 0.0
        %6326 = vmatprep.subr.mxu0 0.0
        %6327 = vmatpush1.msra.mxu0 0.0
        %6328 = vmatprep.subr.mxu0 0.0
        %6329 = vmatpush1.msra.mxu0 0.0
        %6330 = vmatprep.subr.mxu0 0.0
        %6331 = vmatpush1.msra.mxu0 0.0
        %6332 = vmatprep.subr.mxu0 0.0
        %6333 = vmatpush1.msra.mxu0 0.0
        %6334 = vmatprep.subr.mxu0 0.0
        %6335 = vmatpush1.msra.mxu0 0.0
        %6336 = vmatprep.subr.mxu0 0.0
        %6337 = vmatpush1.msra.mxu0 0.0
        %6338 = vmatprep.subr.mxu0 0.0
        %6339 = vmatpush1.msra.mxu0 0.0
        %6340 = vmatprep.subr.mxu0 0.0
        %6341 = vmatpush1.msra.mxu0 0.0
        %6342 = vmatprep.subr.mxu0 0.0
        %6343 = vmatpush1.msra.mxu0 0.0
        %6344 = vmatprep.subr.mxu0 0.0
        %6345 = vmatpush1.msra.mxu0 0.0
        %6346 = vmatprep.subr.mxu0 0.0
        %6347 = vmatpush1.msra.mxu0 0.0
        %6348 = vmatprep.subr.mxu0 0.0
        %6349 = vmatpush1.msra.mxu0 0.0
        %6350 = vmatprep.subr.mxu0 0.0
        %6351 = vmatpush1.msra.mxu0 0.0
        %6352 = vmatprep.subr.mxu0 0.0
        %6353 = vmatpush1.msra.mxu0 0.0
        %6354 = vmatprep.subr.mxu0 0.0
        %6355 = vmatpush1.msra.mxu0 0.0
        %6356 = vmatprep.subr.mxu0 0.0
        %6357 = vmatpush1.msra.mxu0 0.0
        %6358 = vmatprep.subr.mxu0 0.0
        %6359 = vmatpush1.msra.mxu0 0.0
        %6360 = vmatprep.subr.mxu0 0.0
        %6361 = vmatpush1.msra.mxu0 0.0
        %6362 = vmatprep.subr.mxu0 0.0
        %6363 = vmatpush1.msra.mxu0 0.0
        %6364 = vmatprep.subr.mxu0 0.0
        %6365 = vmatpush1.msra.mxu0 0.0
        %6366 = vmatprep.subr.mxu0 0.0
        %6367 = vmatpush1.msra.mxu0 0.0
        %6368 = vmatprep.subr.mxu0 0.0
        %6369 = vmatpush1.msra.mxu0 0.0
        %6370 = vmatprep.subr.mxu0 0.0
        %6371 = vmatpush1.msra.mxu0 0.0
        %6372 = vmatprep.subr.mxu0 0.0
        %6373 = vmatpush1.msra.mxu0 0.0
        %6374 = vmatprep.subr.mxu0 0.0
        %6375 = vmatpush1.msra.mxu0 0.0
        %6376 = vmatprep.mubr.f32.mxu0 0.0
        %6377 = vmatmul.mubr.f32.gmra.mrb[0].mxu0 %v6310
        %v6378 = vpop.f32.mrb[0].mxu0
        %v6379 = vadd.f32 0.0, %v6378
        %v6380 = vpop.f32.mrb[0].mxu0
        %6381 = vdwg.mxu0
        %v6383 = vsel %vm3597, %v6303, 0
        %6385 = vmatprep.subr.mxu0 0.0
        %6386 = vmatpush1.msra.mxu0 %v6304
        %6387 = vmatprep.subr.mxu0 0.0
        %6388 = vmatpush1.msra.mxu0 %v6305
        %6389 = vmatprep.subr.mxu0 0.0
        %6390 = vmatpush1.msra.mxu0 0.0
        %6391 = vmatprep.subr.mxu0 0.0
        %6392 = vmatpush1.msra.mxu0 0.0
        %6393 = vmatprep.subr.mxu0 0.0
        %6394 = vmatpush1.msra.mxu0 0.0
        %6395 = vmatprep.subr.mxu0 0.0
        %6396 = vmatpush1.msra.mxu0 0.0
        %6397 = vmatprep.subr.mxu0 0.0
        %6398 = vmatpush1.msra.mxu0 0.0
        %6399 = vmatprep.subr.mxu0 0.0
        %6400 = vmatpush1.msra.mxu0 0.0
        %6401 = vmatprep.subr.mxu0 0.0
        %6402 = vmatpush1.msra.mxu0 0.0
        %6403 = vmatprep.subr.mxu0 0.0
        %6404 = vmatpush1.msra.mxu0 0.0
        %6405 = vmatprep.subr.mxu0 0.0
        %6406 = vmatpush1.msra.mxu0 0.0
        %6407 = vmatprep.subr.mxu0 0.0
        %6408 = vmatpush1.msra.mxu0 0.0
        %6409 = vmatprep.subr.mxu0 0.0
        %6410 = vmatpush1.msra.mxu0 0.0
        %6411 = vmatprep.subr.mxu0 0.0
        %6412 = vmatpush1.msra.mxu0 0.0
        %6413 = vmatprep.subr.mxu0 0.0
        %6414 = vmatpush1.msra.mxu0 0.0
        %6415 = vmatprep.subr.mxu0 0.0
        %6416 = vmatpush1.msra.mxu0 0.0
        %6417 = vmatprep.subr.mxu0 0.0
        %6418 = vmatpush1.msra.mxu0 0.0
        %6419 = vmatprep.subr.mxu0 0.0
        %6420 = vmatpush1.msra.mxu0 0.0
        %6421 = vmatprep.subr.mxu0 0.0
        %6422 = vmatpush1.msra.mxu0 0.0
        %6423 = vmatprep.subr.mxu0 0.0
        %6424 = vmatpush1.msra.mxu0 0.0
        %6425 = vmatprep.subr.mxu0 0.0
        %6426 = vmatpush1.msra.mxu0 0.0
        %6427 = vmatprep.subr.mxu0 0.0
        %6428 = vmatpush1.msra.mxu0 0.0
        %6429 = vmatprep.subr.mxu0 0.0
        %6430 = vmatpush1.msra.mxu0 0.0
        %6431 = vmatprep.subr.mxu0 0.0
        %6432 = vmatpush1.msra.mxu0 0.0
        %6433 = vmatprep.subr.mxu0 0.0
        %6434 = vmatpush1.msra.mxu0 0.0
        %6435 = vmatprep.subr.mxu0 0.0
        %6436 = vmatpush1.msra.mxu0 0.0
        %6437 = vmatprep.subr.mxu0 0.0
        %6438 = vmatpush1.msra.mxu0 0.0
        %6439 = vmatprep.subr.mxu0 0.0
        %6440 = vmatpush1.msra.mxu0 0.0
        %6441 = vmatprep.subr.mxu0 0.0
        %6442 = vmatpush1.msra.mxu0 0.0
        %6443 = vmatprep.subr.mxu0 0.0
        %6444 = vmatpush1.msra.mxu0 0.0
        %6445 = vmatprep.subr.mxu0 0.0
        %6446 = vmatpush1.msra.mxu0 0.0
        %6447 = vmatprep.subr.mxu0 0.0
        %6448 = vmatpush1.msra.mxu0 0.0
        %6449 = vmatprep.mubr.f32.mxu0 0.0
        %6450 = vmatmul.mubr.f32.gmra.mrb[0].mxu0 %v6383
        %v6451 = vpop.f32.mrb[0].mxu0
        %v6452 = vadd.f32 %v6379, %v6451
        %v6453 = vpop.f32.mrb[0].mxu0
        %6454 = vdwg.mxu0
        %v6455 = vld [vmem:[%s4116] ss:$2 sm:$0x1]
        %v6456 = vld [vmem:[%s11 + $0x20] sm:$0xff]
        %v6457 = vld [vmem:[%s11 + $0x28] sm:$0xff]
        %v6459 = vsel %vm3597, %v6455, 0
        %6461 = vmatprep.subr.mxu0 0.0
        %6462 = vmatpush1.msra.mxu0 %v6456
        %6463 = vmatprep.subr.mxu0 0.0
        %6464 = vmatpush1.msra.mxu0 %v6457
        %6465 = vmatprep.subr.mxu0 0.0
        %6466 = vmatpush1.msra.mxu0 0.0
        %6467 = vmatprep.subr.mxu0 0.0
        %6468 = vmatpush1.msra.mxu0 0.0
        %6469 = vmatprep.subr.mxu0 0.0
        %6470 = vmatpush1.msra.mxu0 0.0
        %6471 = vmatprep.subr.mxu0 0.0
        %6472 = vmatpush1.msra.mxu0 0.0
        %6473 = vmatprep.subr.mxu0 0.0
        %6474 = vmatpush1.msra.mxu0 0.0
        %6475 = vmatprep.subr.mxu0 0.0
        %6476 = vmatpush1.msra.mxu0 0.0
        %6477 = vmatprep.subr.mxu0 0.0
        %6478 = vmatpush1.msra.mxu0 0.0
        %6479 = vmatprep.subr.mxu0 0.0
        %6480 = vmatpush1.msra.mxu0 0.0
        %6481 = vmatprep.subr.mxu0 0.0
        %6482 = vmatpush1.msra.mxu0 0.0
        %6483 = vmatprep.subr.mxu0 0.0
        %6484 = vmatpush1.msra.mxu0 0.0
        %6485 = vmatprep.subr.mxu0 0.0
        %6486 = vmatpush1.msra.mxu0 0.0
        %6487 = vmatprep.subr.mxu0 0.0
        %6488 = vmatpush1.msra.mxu0 0.0
        %6489 = vmatprep.subr.mxu0 0.0
        %6490 = vmatpush1.msra.mxu0 0.0
        %6491 = vmatprep.subr.mxu0 0.0
        %6492 = vmatpush1.msra.mxu0 0.0
        %6493 = vmatprep.subr.mxu0 0.0
        %6494 = vmatpush1.msra.mxu0 0.0
        %6495 = vmatprep.subr.mxu0 0.0
        %6496 = vmatpush1.msra.mxu0 0.0
        %6497 = vmatprep.subr.mxu0 0.0
        %6498 = vmatpush1.msra.mxu0 0.0
        %6499 = vmatprep.subr.mxu0 0.0
        %6500 = vmatpush1.msra.mxu0 0.0
        %6501 = vmatprep.subr.mxu0 0.0
        %6502 = vmatpush1.msra.mxu0 0.0
        %6503 = vmatprep.subr.mxu0 0.0
        %6504 = vmatpush1.msra.mxu0 0.0
        %6505 = vmatprep.subr.mxu0 0.0
        %6506 = vmatpush1.msra.mxu0 0.0
        %6507 = vmatprep.subr.mxu0 0.0
        %6508 = vmatpush1.msra.mxu0 0.0
        %6509 = vmatprep.subr.mxu0 0.0
        %6510 = vmatpush1.msra.mxu0 0.0
        %6511 = vmatprep.subr.mxu0 0.0
        %6512 = vmatpush1.msra.mxu0 0.0
        %6513 = vmatprep.subr.mxu0 0.0
        %6514 = vmatpush1.msra.mxu0 0.0
        %6515 = vmatprep.subr.mxu0 0.0
        %6516 = vmatpush1.msra.mxu0 0.0
        %6517 = vmatprep.subr.mxu0 0.0
        %6518 = vmatpush1.msra.mxu0 0.0
        %6519 = vmatprep.subr.mxu0 0.0
        %6520 = vmatpush1.msra.mxu0 0.0
        %6521 = vmatprep.subr.mxu0 0.0
        %6522 = vmatpush1.msra.mxu0 0.0
        %6523 = vmatprep.subr.mxu0 0.0
        %6524 = vmatpush1.msra.mxu0 0.0
        %6525 = vmatprep.mubr.f32.mxu0 0.0
        %6526 = vmatmul.mubr.f32.gmra.mrb[0].mxu0 %v6459
        %v6527 = vpop.f32.mrb[0].mxu0
        %v6528 = vadd.f32 0.0, %v6527
        %v6529 = vpop.f32.mrb[0].mxu0
        %6530 = vdwg.mxu0
        %v6531 = vadd.f32 %v6452, %v6528
        %v6532 = vld [vmem:[%s4359] ss:$2 sm:$0x1]
        %v6533 = vld [vmem:[%s11 + $0x30] sm:$0xff]
        %v6534 = vld [vmem:[%s11 + $0x38] sm:$0xff]
        %v6536 = vsel %vm3597, %v6532, 0
        %6538 = vmatprep.subr.mxu0 0.0
        %6539 = vmatpush1.msra.mxu0 %v6533
        %6540 = vmatprep.subr.mxu0 0.0
        %6541 = vmatpush1.msra.mxu0 %v6534
        %6542 = vmatprep.subr.mxu0 0.0
        %6543 = vmatpush1.msra.mxu0 0.0
        %6544 = vmatprep.subr.mxu0 0.0
        %6545 = vmatpush1.msra.mxu0 0.0
        %6546 = vmatprep.subr.mxu0 0.0
        %6547 = vmatpush1.msra.mxu0 0.0
        %6548 = vmatprep.subr.mxu0 0.0
        %6549 = vmatpush1.msra.mxu0 0.0
        %6550 = vmatprep.subr.mxu0 0.0
        %6551 = vmatpush1.msra.mxu0 0.0
        %6552 = vmatprep.subr.mxu0 0.0
        %6553 = vmatpush1.msra.mxu0 0.0
        %6554 = vmatprep.subr.mxu0 0.0
        %6555 = vmatpush1.msra.mxu0 0.0
        %6556 = vmatprep.subr.mxu0 0.0
        %6557 = vmatpush1.msra.mxu0 0.0
        %6558 = vmatprep.subr.mxu0 0.0
        %6559 = vmatpush1.msra.mxu0 0.0
        %6560 = vmatprep.subr.mxu0 0.0
        %6561 = vmatpush1.msra.mxu0 0.0
        %6562 = vmatprep.subr.mxu0 0.0
        %6563 = vmatpush1.msra.mxu0 0.0
        %6564 = vmatprep.subr.mxu0 0.0
        %6565 = vmatpush1.msra.mxu0 0.0
        %6566 = vmatprep.subr.mxu0 0.0
        %6567 = vmatpush1.msra.mxu0 0.0
        %6568 = vmatprep.subr.mxu0 0.0
        %6569 = vmatpush1.msra.mxu0 0.0
        %6570 = vmatprep.subr.mxu0 0.0
        %6571 = vmatpush1.msra.mxu0 0.0
        %6572 = vmatprep.subr.mxu0 0.0
        %6573 = vmatpush1.msra.mxu0 0.0
        %6574 = vmatprep.subr.mxu0 0.0
        %6575 = vmatpush1.msra.mxu0 0.0
        %6576 = vmatprep.subr.mxu0 0.0
        %6577 = vmatpush1.msra.mxu0 0.0
        %6578 = vmatprep.subr.mxu0 0.0
        %6579 = vmatpush1.msra.mxu0 0.0
        %6580 = vmatprep.subr.mxu0 0.0
        %6581 = vmatpush1.msra.mxu0 0.0
        %6582 = vmatprep.subr.mxu0 0.0
        %6583 = vmatpush1.msra.mxu0 0.0
        %6584 = vmatprep.subr.mxu0 0.0
        %6585 = vmatpush1.msra.mxu0 0.0
        %6586 = vmatprep.subr.mxu0 0.0
        %6587 = vmatpush1.msra.mxu0 0.0
        %6588 = vmatprep.subr.mxu0 0.0
        %6589 = vmatpush1.msra.mxu0 0.0
        %6590 = vmatprep.subr.mxu0 0.0
        %6591 = vmatpush1.msra.mxu0 0.0
        %6592 = vmatprep.subr.mxu0 0.0
        %6593 = vmatpush1.msra.mxu0 0.0
        %6594 = vmatprep.subr.mxu0 0.0
        %6595 = vmatpush1.msra.mxu0 0.0
        %6596 = vmatprep.subr.mxu0 0.0
        %6597 = vmatpush1.msra.mxu0 0.0
        %6598 = vmatprep.subr.mxu0 0.0
        %6599 = vmatpush1.msra.mxu0 0.0
        %6600 = vmatprep.subr.mxu0 0.0
        %6601 = vmatpush1.msra.mxu0 0.0
        %6602 = vmatprep.mubr.f32.mxu0 0.0
        %6603 = vmatmul.mubr.f32.gmra.mrb[0].mxu0 %v6536
        %v6604 = vpop.f32.mrb[0].mxu0
        %v6605 = vadd.f32 0.0, %v6604
        %v6606 = vpop.f32.mrb[0].mxu0
        %6607 = vdwg.mxu0
        %v6608 = vadd.f32 %v6531, %v6605
        %v6609 = vld [vmem:[%s4602] ss:$2 sm:$0x1]
        %v6610 = vld [vmem:[%s11 + $0x40] sm:$0xff]
        %v6611 = vld [vmem:[%s11 + $0x48] sm:$0xff]
        %v6613 = vsel %vm3597, %v6609, 0
        %6615 = vmatprep.subr.mxu0 0.0
        %6616 = vmatpush1.msra.mxu0 %v6610
        %6617 = vmatprep.subr.mxu0 0.0
        %6618 = vmatpush1.msra.mxu0 %v6611
        %6619 = vmatprep.subr.mxu0 0.0
        %6620 = vmatpush1.msra.mxu0 0.0
        %6621 = vmatprep.subr.mxu0 0.0
        %6622 = vmatpush1.msra.mxu0 0.0
        %6623 = vmatprep.subr.mxu0 0.0
        %6624 = vmatpush1.msra.mxu0 0.0
        %6625 = vmatprep.subr.mxu0 0.0
        %6626 = vmatpush1.msra.mxu0 0.0
        %6627 = vmatprep.subr.mxu0 0.0
        %6628 = vmatpush1.msra.mxu0 0.0
        %6629 = vmatprep.subr.mxu0 0.0
        %6630 = vmatpush1.msra.mxu0 0.0
        %6631 = vmatprep.subr.mxu0 0.0
        %6632 = vmatpush1.msra.mxu0 0.0
        %6633 = vmatprep.subr.mxu0 0.0
        %6634 = vmatpush1.msra.mxu0 0.0
        %6635 = vmatprep.subr.mxu0 0.0
        %6636 = vmatpush1.msra.mxu0 0.0
        %6637 = vmatprep.subr.mxu0 0.0
        %6638 = vmatpush1.msra.mxu0 0.0
        %6639 = vmatprep.subr.mxu0 0.0
        %6640 = vmatpush1.msra.mxu0 0.0
        %6641 = vmatprep.subr.mxu0 0.0
        %6642 = vmatpush1.msra.mxu0 0.0
        %6643 = vmatprep.subr.mxu0 0.0
        %6644 = vmatpush1.msra.mxu0 0.0
        %6645 = vmatprep.subr.mxu0 0.0
        %6646 = vmatpush1.msra.mxu0 0.0
        %6647 = vmatprep.subr.mxu0 0.0
        %6648 = vmatpush1.msra.mxu0 0.0
        %6649 = vmatprep.subr.mxu0 0.0
        %6650 = vmatpush1.msra.mxu0 0.0
        %6651 = vmatprep.subr.mxu0 0.0
        %6652 = vmatpush1.msra.mxu0 0.0
        %6653 = vmatprep.subr.mxu0 0.0
        %6654 = vmatpush1.msra.mxu0 0.0
        %6655 = vmatprep.subr.mxu0 0.0
        %6656 = vmatpush1.msra.mxu0 0.0
        %6657 = vmatprep.subr.mxu0 0.0
        %6658 = vmatpush1.msra.mxu0 0.0
        %6659 = vmatprep.subr.mxu0 0.0
        %6660 = vmatpush1.msra.mxu0 0.0
        %6661 = vmatprep.subr.mxu0 0.0
        %6662 = vmatpush1.msra.mxu0 0.0
        %6663 = vmatprep.subr.mxu0 0.0
        %6664 = vmatpush1.msra.mxu0 0.0
        %6665 = vmatprep.subr.mxu0 0.0
        %6666 = vmatpush1.msra.mxu0 0.0
        %6667 = vmatprep.subr.mxu0 0.0
        %6668 = vmatpush1.msra.mxu0 0.0
        %6669 = vmatprep.subr.mxu0 0.0
        %6670 = vmatpush1.msra.mxu0 0.0
        %6671 = vmatprep.subr.mxu0 0.0
        %6672 = vmatpush1.msra.mxu0 0.0
        %6673 = vmatprep.subr.mxu0 0.0
        %6674 = vmatpush1.msra.mxu0 0.0
        %6675 = vmatprep.subr.mxu0 0.0
        %6676 = vmatpush1.msra.mxu0 0.0
        %6677 = vmatprep.subr.mxu0 0.0
        %6678 = vmatpush1.msra.mxu0 0.0
        %6679 = vmatprep.mubr.f32.mxu0 0.0
        %6680 = vmatmul.mubr.f32.gmra.mrb[0].mxu0 %v6613
        %v6681 = vpop.f32.mrb[0].mxu0
        %v6682 = vadd.f32 0.0, %v6681
        %v6683 = vpop.f32.mrb[0].mxu0
        %6684 = vdwg.mxu0
        %v6685 = vadd.f32 %v6608, %v6682
        %v6686 = vld [vmem:[%s12] sm:$0x1]
        %v6687 = vadd.f32 %v6685, %v6686
        %vm6688 = vcmp.gt.f32.partialorder %v6687, 0.0
        %v6689 = vmul.f32 %v6687, 0.2
        %v6690 = vsel %vm6688, %v6687, %v6689
        %v6691 = vld [vmem:[%s13] sm:$0xff]
        %v6692 = vld [vmem:[%s14] sm:$0x1]
        %vm6693 = vcmask 64512
        %v6695 = vsel %vm6693, %v6690, 0
        %6697 = vmatprep.subr.mxu0 0.0
        %6698 = vmatpush1.msra.mxu0 %v6691
        %6699 = vmatprep.subr.mxu0 0.0
        %6700 = vmatpush1.msra.mxu0 0.0
        %6701 = vmatprep.subr.mxu0 0.0
        %6702 = vmatpush1.msra.mxu0 0.0
        %6703 = vmatprep.subr.mxu0 0.0
        %6704 = vmatpush1.msra.mxu0 0.0
        %6705 = vmatprep.subr.mxu0 0.0
        %6706 = vmatpush1.msra.mxu0 0.0
        %6707 = vmatprep.subr.mxu0 0.0
        %6708 = vmatpush1.msra.mxu0 0.0
        %6709 = vmatprep.subr.mxu0 0.0
        %6710 = vmatpush1.msra.mxu0 0.0
        %6711 = vmatprep.subr.mxu0 0.0
        %6712 = vmatpush1.msra.mxu0 0.0
        %6713 = vmatprep.subr.mxu0 0.0
        %6714 = vmatpush1.msra.mxu0 0.0
        %6715 = vmatprep.subr.mxu0 0.0
        %6716 = vmatpush1.msra.mxu0 0.0
        %6717 = vmatprep.subr.mxu0 0.0
        %6718 = vmatpush1.msra.mxu0 0.0
        %6719 = vmatprep.subr.mxu0 0.0
        %6720 = vmatpush1.msra.mxu0 0.0
        %6721 = vmatprep.subr.mxu0 0.0
        %6722 = vmatpush1.msra.mxu0 0.0
        %6723 = vmatprep.subr.mxu0 0.0
        %6724 = vmatpush1.msra.mxu0 0.0
        %6725 = vmatprep.subr.mxu0 0.0
        %6726 = vmatpush1.msra.mxu0 0.0
        %6727 = vmatprep.subr.mxu0 0.0
        %6728 = vmatpush1.msra.mxu0 0.0
        %6729 = vmatprep.subr.mxu0 0.0
        %6730 = vmatpush1.msra.mxu0 0.0
        %6731 = vmatprep.subr.mxu0 0.0
        %6732 = vmatpush1.msra.mxu0 0.0
        %6733 = vmatprep.subr.mxu0 0.0
        %6734 = vmatpush1.msra.mxu0 0.0
        %6735 = vmatprep.subr.mxu0 0.0
        %6736 = vmatpush1.msra.mxu0 0.0
        %6737 = vmatprep.subr.mxu0 0.0
        %6738 = vmatpush1.msra.mxu0 0.0
        %6739 = vmatprep.subr.mxu0 0.0
        %6740 = vmatpush1.msra.mxu0 0.0
        %6741 = vmatprep.subr.mxu0 0.0
        %6742 = vmatpush1.msra.mxu0 0.0
        %6743 = vmatprep.subr.mxu0 0.0
        %6744 = vmatpush1.msra.mxu0 0.0
        %6745 = vmatprep.subr.mxu0 0.0
        %6746 = vmatpush1.msra.mxu0 0.0
        %6747 = vmatprep.subr.mxu0 0.0
        %6748 = vmatpush1.msra.mxu0 0.0
        %6749 = vmatprep.subr.mxu0 0.0
        %6750 = vmatpush1.msra.mxu0 0.0
        %6751 = vmatprep.subr.mxu0 0.0
        %6752 = vmatpush1.msra.mxu0 0.0
        %6753 = vmatprep.subr.mxu0 0.0
        %6754 = vmatpush1.msra.mxu0 0.0
        %6755 = vmatprep.subr.mxu0 0.0
        %6756 = vmatpush1.msra.mxu0 0.0
        %6757 = vmatprep.subr.mxu0 0.0
        %6758 = vmatpush1.msra.mxu0 0.0
        %6759 = vmatprep.subr.mxu0 0.0
        %6760 = vmatpush1.msra.mxu0 0.0
        %6761 = vmatprep.mubr.f32.mxu0 0.0
        %6762 = vmatmul.mubr.f32.gmra.mrb[0].mxu0 %v6695
        %v6763 = vpop.f32.mrb[0].mxu0
        %v6764 = vadd.f32 %v6692, %v6763
        %v6765 = vpop.f32.mrb[0].mxu0
        %6766 = vdwg.mxu0
        %vm6767 = vcmask 57344
        %6768 = vst.msk [vmem:[%s486] sm:$0x1] %vm6767, %v6764
        %s6769 = sand.u32 %s357, 1
        %s6770 = scalar_lea.sflag [#allocation5], %s6769
        %s6771 = sand.u32 %s357, 1
        %s6772 = scalar_lea.vmem [#allocation4], %s6771
        // Predicated region
        $region81: #{encoder_forward.1} parent=79 // pred_check
          %p6773 = pneg %p367
        $region82: #{encoder_forward.1} parent=79 // pred_check_branch
          %6775 = sbr.rel (%p6773) target = $region84
        $region83: #{encoder_forward.1} parent=79 // pred_region
          %s6777 = ssub.s32 16, 16
          %6778 = vsyncadd %s6770, %s6777
          %s6779 = smul.addr %s29, 16
          %s6780 = scalar_lea.hbm %s15, %s6779
          %s6782 = sshll.u32 %s6772, 4
          %s6783 = int_to_ptr.vmem [resolvable:$true] %s6782
          %6785 = dma.vmem_to_hbm [thread:$0]  %s6783, 16, %s6780, %s6770
        $region84: #{encoder_forward.1} parent=79 // pred_fallthru
          _
      $region80: #{encoder_forward.1} parent=5 // pred_fallthru
        _
      %p6786 = scmp.le.s32.totalorder 2, %s24
      // Predicated region
      $region85: #{encoder_forward.1} parent=5 // pred_check
        %p6787 = pneg %p6786
      $region86: #{encoder_forward.1} parent=5 // pred_check_branch
        %6789 = sbr.rel (%p6787) target = $region88
      $region87: #{encoder_forward.1} parent=5 // pred_region
        %s6790 = ssub.s32 %s24, 2
        // Predicated region
        $region89: #{encoder_forward.1} parent=87 // pred_check
          %p6791 = pneg %p373
        $region90: #{encoder_forward.1} parent=87 // pred_check_branch
          %6793 = sbr.rel (%p6791) target = $region92
        $region91: #{encoder_forward.1} parent=87 // pred_region
          %s6794 = sand.u32 %s358, 1
          %s6795 = scalar_lea.sflag [#allocation5], %s6794
          %s6796 = sand.u32 %s358, 1
          %s6797 = scalar_lea.vmem [#allocation4], %s6796
          %6798 = dma.done %s6795, 16
        $region92: #{encoder_forward.1} parent=87 // pred_fallthru
          _
      $region88: #{encoder_forward.1} parent=5 // pred_fallthru
        _
    $region6: #{encoder_forward.1} parent=1 // loop_footer
      %s28 = sadd.s32 1, %s24
    $region7: #{encoder_forward.1} parent=1 // loop_footer_branch
      %23 = sbr.rel target = $region3
    $region8: #{encoder_forward.1} parent=1 // loop_exit
      _
    %6799 = vsyncpa [#allocation5], 1
    %s6800 = scalar_lea.sflag [#allocation5], 1
    %6801 = vsyncpa %s6800, 1

</llo_original>
